<compile_context>
chip_gen: v5e
topology: v5e:2x2
jax: 0.10.0
libtpu: 0.0.40
codegen_flags: <defaults>
</compile_context>

<pallas_src>
import functools

import jax
import jax.numpy as jnp
import numpy as np
from jax.experimental import pallas as pl
from jax.experimental.pallas import tpu as pltpu

KSIZE = 8          # Conv1d / ConvTranspose1d kernel_size
STRIDE = 2         # stride
BN_EPS = 1e-5      # torch.nn.BatchNorm1d default
HIGHEST = jax.lax.Precision.HIGHEST


# ----------------------------------------------------------------------------- utils
def _round_up(x, m):
    return (x + m - 1) // m * m


def _pick_row_tile(rows, row_tile=None):
    if row_tile is not None:
        return max(8, _round_up(int(row_tile), 8))
    if rows <= 512:
        return _round_up(rows, 8)
    return 512


def _elu(y):
    # torch.nn.ELU(alpha=1): x if x > 0 else exp(x) - 1  (exp clamped for safety)
    return jnp.where(y > 0, y, jnp.exp(jnp.minimum(y, 0.0)) - 1.0)


# ------------------------------------------------------------------- weight repacking
def _conv_w_to_mat(w):
    # torch Conv1d weight (Cout, Cin, K) -> (K*Cin, Cout), row index = t*Cin + ci
    cout, cin, k = w.shape
    return jnp.transpose(w, (2, 1, 0)).reshape(k * cin, cout)


def _convT_w_to_mat(w):
    # torch ConvTranspose1d weight (Cin, Cout, K) -> flipped kernel, (K*Cin, Cout)
    cin, cout, k = w.shape
    return jnp.transpose(w[:, :, ::-1], (2, 0, 1)).reshape(k * cin, cout)


# --------------------------------------------------------------------- im2col helpers
def _im2col_strided(x, k, stride, pad):
    """Strided Conv1d patches. x: (B, L, C) -> (B, Lout, K*C)."""
    b, l, c = x.shape
    lout = (l + 2 * pad - k) // stride + 1
    xp = jnp.pad(x, ((0, 0), (pad, pad), (0, 0)))
    cols = [xp[:, t: t + stride * lout: stride, :] for t in range(k)]
    p = jnp.stack(cols, axis=2)                     # (B, Lout, K, C)
    return p.reshape(b, lout, k * c), lout


def _im2col_transposed(x, k, stride, pad):
    """ConvTranspose1d patches (zero-stuffed input, flipped-kernel window).

    out[j] = sum_t patches[j, t] @ w[:, :, k-1-t]   with patches[j, t] = xz[j + pad - (k-1) + t]
    x: (B, L, C) -> (B, Lout, K*C)
    """
    b, l, c = x.shape
    lout = (l - 1) * stride - 2 * pad + k
    lz = (l - 1) * stride + 1
    xz = jnp.zeros((b, lz, c), x.dtype).at[:, ::stride, :].set(x)
    xzp = jnp.pad(xz, ((0, 0), (k, k), (0, 0)))     # generous halo, then window
    start = k + (pad - k + 1)                       # = pad + 1  (>= 0)
    xf = xzp[:, start: start + lout + k - 1, :]
    cols = [xf[:, t: t + lout, :] for t in range(k)]
    p = jnp.stack(cols, axis=2)                     # (B, Lout, K, C)
    return p.reshape(b, lout, k * c), lout


# --------------------------------------------------------------------------- kernels
def _mm_stats_kernel(p_ref, w_ref, b_ref, y_ref, stats_ref, *,
                     rows_valid, row_tile, apply_elu):
    """Pass 1: full-slab matmul + bias (+ ELU) with fused BatchNorm partial sums.

    p_ref: (TR, K*Cin)  w_ref: (K*Cin, Cout)  b_ref: (1, Cout)
    y_ref: (TR, Cout)   stats_ref: (2, Cout)  -- grid-resident accumulator
    """
    i = pl.program_id(0)

    @pl.when(i == 0)
    def _():
        stats_ref[...] = jnp.zeros_like(stats_ref)

    y = jnp.dot(p_ref[...], w_ref[...],
                preferred_element_type=jnp.float32, precision=HIGHEST)
    y = y + b_ref[...]
    if apply_elu:
        y = _elu(y)
    y_ref[...] = y                                   # stored exactly once

    # mask rows that are only padding (rows were rounded up to the tile size)
    rows = i * row_tile + jax.lax.broadcasted_iota(jnp.int32, y.shape, 0)
    mask = (rows < rows_valid).astype(jnp.float32)
    ym = y * mask
    stats_ref[0:1, :] += jnp.sum(ym, axis=0, keepdims=True)       # sum(y)
    stats_ref[1:2, :] += jnp.sum(ym * y, axis=0, keepdims=True)   # sum(y^2)


def _bn_apply_kernel(y_ref, stats_ref, g_ref, bt_ref, o_ref, *,
                     inv_n, n_extra_elu):
    """Pass 2: apply training-mode BatchNorm (+ trailing misplaced ELUs)."""
    mean = stats_ref[0:1, :] * inv_n
    var = jnp.maximum(stats_ref[1:2, :] * inv_n - mean * mean, 0.0)
    scale = g_ref[...] * jax.lax.rsqrt(var + BN_EPS)
    y = (y_ref[...] - mean) * scale + bt_ref[...]
    for _ in range(n_extra_elu):
        y = _elu(y)
    o_ref[...] = y


def _final_reduce_kernel(p_ref, w_ref, b_ref, o_ref):
    """Final ConvTranspose1d(40 -> 1): VPU multiply + lane reduction, lane-dense store.

    p_ref: (1, L, K*Cin)  w_ref: (1, K*Cin)  b_ref: (1, 1)  o_ref: (1, 1, L)
    """
    prod = p_ref[0] * w_ref[...]                        # (L, K*Cin)
    o_ref[0] = jnp.sum(prod, axis=-1)[None, :] + b_ref[...]   # (1, L), L on lanes


# ------------------------------------------------------------------ layer wrappers
def conv_bn_block(x, w, b, gamma, beta, pad, *, transposed, apply_elu,
                  n_extra_elu, row_tile=None):
    """One (Conv1d | ConvTranspose1d) [+ELU] + BatchNorm1d(train stats) layer."""
    bsz = x.shape[0]
    if transposed:
        patches, lout = _im2col_transposed(x, KSIZE, STRIDE, pad)
        w_mat = _convT_w_to_mat(w)
    else:
        patches, lout = _im2col_strided(x, KSIZE, STRIDE, pad)
        w_mat = _conv_w_to_mat(w)

    kc = patches.shape[-1]
    cout = w_mat.shape[-1]
    rows = bsz * lout
    tr = _pick_row_tile(rows, row_tile)
    rows_pad = _round_up(rows, tr)
    nt = rows_pad // tr

    p2 = patches.reshape(rows, kc)
    if rows_pad != rows:
        p2 = jnp.pad(p2, ((0, rows_pad - rows), (0, 0)))

    # Pass 1: matmul + bias (+ELU) with fused BN partial sums (accumulated over tiles).
    kern1 = functools.partial(_mm_stats_kernel, rows_valid=rows, row_tile=tr,
                              apply_elu=apply_elu)
    y, stats = pl.pallas_call(
        kern1,
        out_shape=(jax.ShapeDtypeStruct((rows_pad, cout), jnp.float32),
                   jax.ShapeDtypeStruct((2, cout), jnp.float32)),
        grid=(nt,),
        in_specs=[
            pl.BlockSpec((tr, kc), lambda i: (i, 0)),
            pl.BlockSpec((kc, cout), lambda i: (0, 0)),
            pl.BlockSpec((1, cout), lambda i: (0, 0)),
        ],
        out_specs=(
            pl.BlockSpec((tr, cout), lambda i: (i, 0)),
            pl.BlockSpec((2, cout), lambda i: (0, 0)),   # grid-resident accumulator
        ),
        compiler_params=pltpu.CompilerParams(dimension_semantics=("arbitrary",)),
    )(p2, w_mat, b.reshape(1, cout))

    # Pass 2: normalize with the batch statistics (+ trailing ELUs if requested).
    kern2 = functools.partial(_bn_apply_kernel, inv_n=1.0 / float(rows),
                              n_extra_elu=n_extra_elu)
    y_norm = pl.pallas_call(
        kern2,
        out_shape=jax.ShapeDtypeStruct((rows_pad, cout), jnp.float32),
        grid=(nt,),
        in_specs=[
            pl.BlockSpec((tr, cout), lambda i: (i, 0)),
            pl.BlockSpec((2, cout), lambda i: (0, 0)),
            pl.BlockSpec((1, cout), lambda i: (0, 0)),
            pl.BlockSpec((1, cout), lambda i: (0, 0)),
        ],
        out_specs=pl.BlockSpec((tr, cout), lambda i: (i, 0)),
        compiler_params=pltpu.CompilerParams(dimension_semantics=("parallel",)),
    )(y, stats, gamma.reshape(1, cout), beta.reshape(1, cout))

    return y_norm[:rows].reshape(bsz, lout, cout)


def final_convT_layer(x, w, b, pad):
    """Last decoder layer: ConvTranspose1d(40 -> 1), no BN, no activation."""
    bsz = x.shape[0]
    patches, lout = _im2col_transposed(x, KSIZE, STRIDE, pad)   # (B, Lout, K*Cin)
    kc = patches.shape[-1]
    w_row = _convT_w_to_mat(w).reshape(1, kc)                   # (K*Cin, 1) -> (1, K*Cin)

    out = pl.pallas_call(
        _final_reduce_kernel,
        out_shape=jax.ShapeDtypeStruct((bsz, 1, lout), jnp.float32),
        grid=(bsz,),
        in_specs=[
            pl.BlockSpec((1, lout, kc), lambda bi: (bi, 0, 0)),
            pl.BlockSpec((1, kc), lambda bi: (0, 0)),
            pl.BlockSpec((1, 1), lambda bi: (0, 0)),
        ],
        out_specs=pl.BlockSpec((1, 1, lout), lambda bi: (bi, 0, 0)),
        compiler_params=pltpu.CompilerParams(dimension_semantics=("parallel",)),
    )(patches, w_row, b.reshape(1, 1))
    return out.reshape(bsz, lout)


# --------------------------------------------------------------------- full forward
def autoencoder_forward(x, params, pad, row_tile=None):
    """x: (B, input_len, h_size) -> squeezed output, matching torch forward()."""
    h = x.astype(jnp.float32)
    enc = params["encoder"]
    for li, p in enumerate(enc):
        h = conv_bn_block(h, p["w"], p["b"], p["gamma"], p["beta"], pad,
                          transposed=False, apply_elu=True,
                          n_extra_elu=4 if li == len(enc) - 1 else 0,
                          row_tile=row_tile)
    for p in params["decoder_bn"]:
        h = conv_bn_block(h, p["w"], p["b"], p["gamma"], p["beta"], pad,
                          transposed=True, apply_elu=False, n_extra_elu=0,
                          row_tile=row_tile)
    pf = params["decoder_final"]
    out = final_convT_layer(h, pf["w"], pf["b"], pad)     # (B, L)
    return jnp.squeeze(out)   # matches torch .squeeze(): also drops batch dim if B == 1


# ------------------------------------------------------------------------ parameters
def init_params(key, h_size):
    """Deterministic torch-like init; weights stored in torch layouts."""
    enc_ch = [(h_size, 40), (40, 20), (20, 20), (20, 20), (20, 40)]
    dec_ch = [(40, 20), (20, 20), (20, 20), (20, 40)]
    params = {"encoder": [], "decoder_bn": [], "decoder_final": None}

    def uni(k, shape, fan_in):
        bound = 1.0 / np.sqrt(fan_in)
        return jax.random.uniform(k, shape, jnp.float32, -bound, bound)

    for cin, cout in enc_ch:
        key, kw, kb, kg, kbt = jax.random.split(key, 5)
        params["encoder"].append(dict(
            w=uni(kw, (cout, cin, KSIZE), cin * KSIZE),     # torch Conv1d layout
            b=uni(kb, (cout,), cin * KSIZE),
            gamma=1.0 + 0.1 * jax.random.normal(kg, (cout,), jnp.float32),
            beta=0.1 * jax.random.normal(kbt, (cout,), jnp.float32),
        ))
    for cin, cout in dec_ch:
        key, kw, kb, kg, kbt = jax.random.split(key, 5)
        params["decoder_bn"].append(dict(
            w=uni(kw, (cin, cout, KSIZE), cout * KSIZE),    # torch ConvTranspose1d layout
            b=uni(kb, (cout,), cout * KSIZE),
            gamma=1.0 + 0.1 * jax.random.normal(kg, (cout,), jnp.float32),
            beta=0.1 * jax.random.normal(kbt, (cout,), jnp.float32),
        ))
    key, kw, kb = jax.random.split(key, 3)
    params["decoder_final"] = dict(
        w=uni(kw, (40, 1, KSIZE), 1 * KSIZE),
        b=uni(kb, (1,), 1 * KSIZE),
    )
    return params


# ------------------------------------------------------------------ pure-JAX reference
def _ref_conv1d(x, w, b, stride, pad):
    bsz, l, _ = x.shape
    cout, _, k = w.shape
    lout = (l + 2 * pad - k) // stride + 1
    xp = jnp.pad(x, ((0, 0), (pad, pad), (0, 0)))
    y = jnp.zeros((bsz, lout, cout), jnp.float32)
    for t in range(k):
        y = y + jnp.einsum("blc,oc->blo", xp[:, t: t + stride * lout: stride, :],
                           w[:, :, t], precision=HIGHEST)
    return y + b[None, None, :]


def _ref_convT1d(x, w, b, stride, pad):
    bsz, l, _ = x.shape
    _, cout, k = w.shape
    lfull = (l - 1) * stride + k
    lout = lfull - 2 * pad
    full = jnp.zeros((bsz, lfull, cout), jnp.float32)
    for t in range(k):
        full = full.at[:, t: t + stride * l: stride, :].add(
            jnp.einsum("blc,co->blo", x, w[:, :, t], precision=HIGHEST))
    return full[:, pad: pad + lout, :] + b[None, None, :]


def _ref_bn(y, gamma, beta):
    mean = y.mean(axis=(0, 1), keepdims=True)
    var = ((y - mean) ** 2).mean(axis=(0, 1), keepdims=True)
    return gamma[None, None, :] * (y - mean) / jnp.sqrt(var + BN_EPS) + beta[None, None, :]


def reference_forward(x, params, pad):
    h = x.astype(jnp.float32)
    enc = params["encoder"]
    for li, p in enumerate(enc):
        h = _ref_conv1d(h, p["w"], p["b"], STRIDE, pad)
        h = _elu(h)
        h = _ref_bn(h, p["gamma"], p["beta"])
        if li == len(enc) - 1:
            for _ in range(4):          # misplaced decoder activations
                h = _elu(h)
    for p in params["decoder_bn"]:
        h = _ref_convT1d(h, p["w"], p["b"], STRIDE, pad)
        h = _ref_bn(h, p["gamma"], p["beta"])
    pf = params["decoder_final"]
    h = _ref_convT1d(h, pf["w"], pf["b"], STRIDE, pad)     # (B, L, 1)
    return jnp.squeeze(h)


# -------------------------------------------------------------------------------- main
if __name__ == "__main__":
    key = jax.random.PRNGKey(0)
    kx, kp = jax.random.split(key)

    B, L, H = 2, 16, 8                      # batch, input_len, h_size (small test)
    pad = ((STRIDE - 1) * L - STRIDE + KSIZE) // 2   # same formula as the module
    x = jax.random.normal(kx, (B, L, H), jnp.float32)
    params = init_params(kp, H)

    # row_tile=24 forces multiple row tiles (+ padded-row masking) even at this tiny
    # size, exercising the grid-resident BN-stats accumulator path.
    fwd = jax.jit(lambda xx, pp: autoencoder_forward(xx, pp, pad, row_tile=24))
    out = jax.block_until_ready(fwd(x, params))
    assert out.shape == (B, L), out.shape

    ref = jax.block_until_ready(reference_forward(x, params, pad))
    np.testing.assert_allclose(np.asarray(out), np.asarray(ref), rtol=2e-3, atol=2e-3)

    print("KERNEL_OK")
</pallas_src>

<mosaic_0001>
module attributes {stable_mosaic.version = 11 : i64} {
  func.func @_bn_apply_kernel(%arg0: i32, %arg1: memref<24x40xf32, #tpu.memory_space<vmem>>, %arg2: memref<2x40xf32, #tpu.memory_space<vmem>>, %arg3: memref<1x40xf32, #tpu.memory_space<vmem>>, %arg4: memref<1x40xf32, #tpu.memory_space<vmem>>, %arg5: memref<24x40xf32, #tpu.memory_space<vmem>>) attributes {dimension_semantics = [#tpu.dimension_semantics<parallel>], iteration_bounds = array<i64: 2>, scalar_prefetch = 0 : i64, scratch_operands = 0 : i64, tpu.core_type = #tpu.core_type<tc>, window_params = [{transform_indices = @transform_0, window_bounds = array<i64: 24, 40>}, {pipeline_mode = #tpu.pipeline_mode<synchronous>, transform_indices = @transform_1, window_bounds = array<i64: 2, 40>}, {pipeline_mode = #tpu.pipeline_mode<synchronous>, transform_indices = @transform_2, window_bounds = array<i64: 1, 40>}, {pipeline_mode = #tpu.pipeline_mode<synchronous>, transform_indices = @transform_3, window_bounds = array<i64: 1, 40>}, {transform_indices = @transform_4, window_bounds = array<i64: 24, 40>}]} {
    %c0 = arith.constant 0 : index
    %c0_0 = arith.constant 0 : index
    %0 = vector.load %arg2[%c0, %c0_0] : memref<2x40xf32, #tpu.memory_space<vmem>>, vector<1x40xf32>
    %cst = arith.constant 3.125000e-02 : f32
    %1 = vector.broadcast %cst : f32 to vector<1x40xf32>
    %2 = arith.mulf %0, %1 : vector<1x40xf32>
    %c1 = arith.constant 1 : index
    %c0_1 = arith.constant 0 : index
    %3 = vector.load %arg2[%c1, %c0_1] : memref<2x40xf32, #tpu.memory_space<vmem>>, vector<1x40xf32>
    %cst_2 = arith.constant 3.125000e-02 : f32
    %4 = vector.broadcast %cst_2 : f32 to vector<1x40xf32>
    %5 = arith.mulf %3, %4 : vector<1x40xf32>
    %6 = arith.mulf %2, %2 : vector<1x40xf32>
    %7 = arith.subf %5, %6 : vector<1x40xf32>
    %cst_3 = arith.constant 0.000000e+00 : f32
    %8 = vector.broadcast %cst_3 : f32 to vector<1x40xf32>
    %9 = arith.maximumf %7, %8 : vector<1x40xf32>
    %c0_4 = arith.constant 0 : index
    %c0_5 = arith.constant 0 : index
    %10 = vector.load %arg3[%c0_4, %c0_5] : memref<1x40xf32, #tpu.memory_space<vmem>>, vector<1x40xf32>
    %cst_6 = arith.constant 9.99999974E-6 : f32
    %11 = vector.broadcast %cst_6 : f32 to vector<1x40xf32>
    %12 = arith.addf %9, %11 : vector<1x40xf32>
    %13 = math.rsqrt %12 : vector<1x40xf32>
    %14 = arith.mulf %10, %13 : vector<1x40xf32>
    %c0_7 = arith.constant 0 : index
    %c0_8 = arith.constant 0 : index
    %15 = vector.load %arg1[%c0_7, %c0_8] : memref<24x40xf32, #tpu.memory_space<vmem>>, vector<24x40xf32>
    %16 = vector.broadcast %2 : vector<1x40xf32> to vector<24x40xf32>
    %17 = arith.subf %15, %16 : vector<24x40xf32>
    %18 = vector.broadcast %14 : vector<1x40xf32> to vector<24x40xf32>
    %19 = arith.mulf %17, %18 : vector<24x40xf32>
    %c0_9 = arith.constant 0 : index
    %c0_10 = arith.constant 0 : index
    %20 = vector.load %arg4[%c0_9, %c0_10] : memref<1x40xf32, #tpu.memory_space<vmem>>, vector<1x40xf32>
    %21 = vector.broadcast %20 : vector<1x40xf32> to vector<24x40xf32>
    %22 = arith.addf %19, %21 : vector<24x40xf32>
    %c0_11 = arith.constant 0 : index
    %c0_12 = arith.constant 0 : index
    %23 = vector.load %arg5[%c0_11, %c0_12] : memref<24x40xf32, #tpu.memory_space<vmem>>, vector<24x40xf32>
    tpu.vector_store %arg5[%c0_11, %c0_12], %22 {strides = array<i32>} : memref<24x40xf32, #tpu.memory_space<vmem>>, vector<24x40xf32>,
    return
  }
  func.func @transform_0(%arg0: i32) -> (i32, i32) {
    %c0_i32 = arith.constant 0 : i32
    %c0_i32_0 = arith.constant 0 : i32
    return %arg0, %c0_i32 : i32, i32
  }
  func.func @transform_1(%arg0: i32) -> (i32, i32) {
    %c0_i32 = arith.constant 0 : i32
    %c0_i32_0 = arith.constant 0 : i32
    %c0_i32_1 = arith.constant 0 : i32
    return %c0_i32, %c0_i32_0 : i32, i32
  }
  func.func @transform_2(%arg0: i32) -> (i32, i32) {
    %c0_i32 = arith.constant 0 : i32
    %c0_i32_0 = arith.constant 0 : i32
    %c0_i32_1 = arith.constant 0 : i32
    return %c0_i32, %c0_i32_0 : i32, i32
  }
  func.func @transform_3(%arg0: i32) -> (i32, i32) {
    %c0_i32 = arith.constant 0 : i32
    %c0_i32_0 = arith.constant 0 : i32
    %c0_i32_1 = arith.constant 0 : i32
    return %c0_i32, %c0_i32_0 : i32, i32
  }
  func.func @transform_4(%arg0: i32) -> (i32, i32) {
    %c0_i32 = arith.constant 0 : i32
    %c0_i32_0 = arith.constant 0 : i32
    return %arg0, %c0_i32 : i32, i32
  }
}

module attributes {stable_mosaic.version = 11 : i64} {
  func.func @_mm_stats_kernel(%arg0: i32, %arg1: memref<24x64xf32, #tpu.memory_space<vmem>>, %arg2: memref<64x40xf32, #tpu.memory_space<vmem>>, %arg3: memref<1x40xf32, #tpu.memory_space<vmem>>, %arg4: memref<24x40xf32, #tpu.memory_space<vmem>>, %arg5: memref<2x40xf32, #tpu.memory_space<vmem>>) attributes {dimension_semantics = [#tpu.dimension_semantics<arbitrary>], iteration_bounds = array<i64: 2>, scalar_prefetch = 0 : i64, scratch_operands = 0 : i64, tpu.core_type = #tpu.core_type<tc>, window_params = [{transform_indices = @transform_0, window_bounds = array<i64: 24, 64>}, {pipeline_mode = #tpu.pipeline_mode<synchronous>, transform_indices = @transform_1, window_bounds = array<i64: 64, 40>}, {pipeline_mode = #tpu.pipeline_mode<synchronous>, transform_indices = @transform_2, window_bounds = array<i64: 1, 40>}, {transform_indices = @transform_3, window_bounds = array<i64: 24, 40>}, {pipeline_mode = #tpu.pipeline_mode<synchronous>, transform_indices = @transform_4, window_bounds = array<i64: 2, 40>}]} {
    %c0_i32 = arith.constant 0 : i32
    %0 = arith.cmpi eq, %arg0, %c0_i32 : i32
    %1 = arith.extui %0 : i1 to i32
    %c0_i32_0 = arith.constant 0 : i32
    %2 = arith.cmpi ne, %1, %c0_i32_0 : i32
    scf.if %2 {
      %cst_20 = arith.constant 0.000000e+00 : f32
      %38 = vector.broadcast %cst_20 : f32 to vector<2x40xf32>
      %c0_21 = arith.constant 0 : index
      %c0_22 = arith.constant 0 : index
      %39 = vector.load %arg5[%c0_21, %c0_22] : memref<2x40xf32, #tpu.memory_space<vmem>>, vector<2x40xf32>
      tpu.vector_store %arg5[%c0_21, %c0_22], %38 {strides = array<i32>} : memref<2x40xf32, #tpu.memory_space<vmem>>, vector<2x40xf32>,
    } else {
    }
    %c0 = arith.constant 0 : index
    %c0_1 = arith.constant 0 : index
    %3 = vector.load %arg1[%c0, %c0_1] : memref<24x64xf32, #tpu.memory_space<vmem>>, vector<24x64xf32>
    %c0_2 = arith.constant 0 : index
    %c0_3 = arith.constant 0 : index
    %4 = vector.load %arg2[%c0_2, %c0_3] : memref<64x40xf32, #tpu.memory_space<vmem>>, vector<64x40xf32>
    %cst = arith.constant dense<0.000000e+00> : vector<24x40xf32>
    %5 = tpu.matmul %3, %4, %cst {dimension_numbers = #tpu.dot_dimension_numbers<[1], [0], [0], [1], [0, 0, 1, 1], [], []>, precision = #tpu.contract_precision<fp32>} : vector<24x64xf32>, vector<64x40xf32>, vector<24x40xf32> -> vector<24x40xf32>
    %c0_4 = arith.constant 0 : index
    %c0_5 = arith.constant 0 : index
    %6 = vector.load %arg3[%c0_4, %c0_5] : memref<1x40xf32, #tpu.memory_space<vmem>>, vector<1x40xf32>
    %7 = vector.broadcast %6 : vector<1x40xf32> to vector<24x40xf32>
    %8 = arith.addf %5, %7 : vector<24x40xf32>
    %cst_6 = arith.constant 0.000000e+00 : f32
    %9 = vector.broadcast %cst_6 : f32 to vector<24x40xf32>
    %10 = arith.cmpf ogt, %8, %9 : vector<24x40xf32>
    %cst_7 = arith.constant 0.000000e+00 : f32
    %11 = vector.broadcast %cst_7 : f32 to vector<24x40xf32>
    %12 = arith.minimumf %8, %11 : vector<24x40xf32>
    %13 = math.exp %12 : vector<24x40xf32>
    %cst_8 = arith.constant 1.000000e+00 : f32
    %14 = vector.broadcast %cst_8 : f32 to vector<24x40xf32>
    %15 = arith.subf %13, %14 : vector<24x40xf32>
    %16 = arith.select %10, %8, %15 : vector<24x40xi1>, vector<24x40xf32>
    %c0_9 = arith.constant 0 : index
    %c0_10 = arith.constant 0 : index
    %17 = vector.load %arg4[%c0_9, %c0_10] : memref<24x40xf32, #tpu.memory_space<vmem>>, vector<24x40xf32>
    tpu.vector_store %arg4[%c0_9, %c0_10], %16 {strides = array<i32>} : memref<24x40xf32, #tpu.memory_space<vmem>>, vector<24x40xf32>,
    %c24_i32 = arith.constant 24 : i32
    %18 = arith.muli %arg0, %c24_i32 : i32
    %19 = tpu.iota {dimensions = array<i32: 0>} : vector<24x40xi32>
    %20 = vector.broadcast %18 : i32 to vector<24x40xi32>
    %21 = arith.addi %20, %19 : vector<24x40xi32>
    %c32_i32 = arith.constant 32 : i32
    %22 = vector.broadcast %c32_i32 : i32 to vector<24x40xi32>
    %23 = arith.cmpi slt, %21, %22 : vector<24x40xi32>
    %24 = arith.extui %23 : vector<24x40xi1> to vector<24x40xi32>
    %25 = arith.sitofp %24 : vector<24x40xi32> to vector<24x40xf32>
    %26 = arith.mulf %16, %25 : vector<24x40xf32>
    %c0_11 = arith.constant 0 : index
    %c0_12 = arith.constant 0 : index
    %27 = vector.load %arg5[%c0_11, %c0_12] : memref<2x40xf32, #tpu.memory_space<vmem>>, vector<1x40xf32>
    %cst_13 = arith.constant dense<0.000000e+00> : vector<40xf32>
    %28 = vector.multi_reduction <add>, %26, %cst_13 [0] : vector<24x40xf32> to vector<40xf32>
    %29 = vector.shape_cast %28 : vector<40xf32> to vector<1x40xf32>
    %30 = arith.addf %27, %29 : vector<1x40xf32>
    %c0_14 = arith.constant 0 : index
    %c0_15 = arith.constant 0 : index
    %31 = vector.load %arg5[%c0_14, %c0_15] : memref<2x40xf32, #tpu.memory_space<vmem>>, vector<1x40xf32>
    tpu.vector_store %arg5[%c0_14, %c0_15], %30 {strides = array<i32>} : memref<2x40xf32, #tpu.memory_space<vmem>>, vector<1x40xf32>,
    %c1 = arith.constant 1 : index
    %c0_16 = arith.constant 0 : index
    %32 = vector.load %arg5[%c1, %c0_16] : memref<2x40xf32, #tpu.memory_space<vmem>>, vector<1x40xf32>
    %33 = arith.mulf %26, %16 : vector<24x40xf32>
    %cst_17 = arith.constant dense<0.000000e+00> : vector<40xf32>
    %34 = vector.multi_reduction <add>, %33, %cst_17 [0] : vector<24x40xf32> to vector<40xf32>
    %35 = vector.shape_cast %34 : vector<40xf32> to vector<1x40xf32>
    %36 = arith.addf %32, %35 : vector<1x40xf32>
    %c1_18 = arith.constant 1 : index
    %c0_19 = arith.constant 0 : index
    %37 = vector.load %arg5[%c1_18, %c0_19] : memref<2x40xf32, #tpu.memory_space<vmem>>, vector<1x40xf32>
    tpu.vector_store %arg5[%c1_18, %c0_19], %36 {strides = array<i32>} : memref<2x40xf32, #tpu.memory_space<vmem>>, vector<1x40xf32>,
    return
  }
  func.func @transform_0(%arg0: i32) -> (i32, i32) {
    %c0_i32 = arith.constant 0 : i32
    %c0_i32_0 = arith.constant 0 : i32
    return %arg0, %c0_i32 : i32, i32
  }
  func.func @transform_1(%arg0: i32) -> (i32, i32) {
    %c0_i32 = arith.constant 0 : i32
    %c0_i32_0 = arith.constant 0 : i32
    %c0_i32_1 = arith.constant 0 : i32
    return %c0_i32, %c0_i32_0 : i32, i32
  }
  func.func @transform_2(%arg0: i32) -> (i32, i32) {
    %c0_i32 = arith.constant 0 : i32
    %c0_i32_0 = arith.constant 0 : i32
    %c0_i32_1 = arith.constant 0 : i32
    return %c0_i32, %c0_i32_0 : i32, i32
  }
  func.func @transform_3(%arg0: i32) -> (i32, i32) {
    %c0_i32 = arith.constant 0 : i32
    %c0_i32_0 = arith.constant 0 : i32
    return %arg0, %c0_i32 : i32, i32
  }
  func.func @transform_4(%arg0: i32) -> (i32, i32) {
    %c0_i32 = arith.constant 0 : i32
    %c0_i32_0 = arith.constant 0 : i32
    %c0_i32_1 = arith.constant 0 : i32
    return %c0_i32, %c0_i32_0 : i32, i32
  }
}

module attributes {stable_mosaic.version = 11 : i64} {
  func.func @_mm_stats_kernel(%arg0: i32, %arg1: memref<24x320xf32, #tpu.memory_space<vmem>>, %arg2: memref<320x20xf32, #tpu.memory_space<vmem>>, %arg3: memref<1x20xf32, #tpu.memory_space<vmem>>, %arg4: memref<24x20xf32, #tpu.memory_space<vmem>>, %arg5: memref<2x20xf32, #tpu.memory_space<vmem>>) attributes {dimension_semantics = [#tpu.dimension_semantics<arbitrary>], iteration_bounds = array<i64: 2>, scalar_prefetch = 0 : i64, scratch_operands = 0 : i64, tpu.core_type = #tpu.core_type<tc>, window_params = [{transform_indices = @transform_0, window_bounds = array<i64: 24, 320>}, {pipeline_mode = #tpu.pipeline_mode<synchronous>, transform_indices = @transform_1, window_bounds = array<i64: 320, 20>}, {pipeline_mode = #tpu.pipeline_mode<synchronous>, transform_indices = @transform_2, window_bounds = array<i64: 1, 20>}, {transform_indices = @transform_3, window_bounds = array<i64: 24, 20>}, {pipeline_mode = #tpu.pipeline_mode<synchronous>, transform_indices = @transform_4, window_bounds = array<i64: 2, 20>}]} {
    %c0_i32 = arith.constant 0 : i32
    %0 = arith.cmpi eq, %arg0, %c0_i32 : i32
    %1 = arith.extui %0 : i1 to i32
    %c0_i32_0 = arith.constant 0 : i32
    %2 = arith.cmpi ne, %1, %c0_i32_0 : i32
    scf.if %2 {
      %cst_20 = arith.constant 0.000000e+00 : f32
      %38 = vector.broadcast %cst_20 : f32 to vector<2x20xf32>
      %c0_21 = arith.constant 0 : index
      %c0_22 = arith.constant 0 : index
      %39 = vector.load %arg5[%c0_21, %c0_22] : memref<2x20xf32, #tpu.memory_space<vmem>>, vector<2x20xf32>
      tpu.vector_store %arg5[%c0_21, %c0_22], %38 {strides = array<i32>} : memref<2x20xf32, #tpu.memory_space<vmem>>, vector<2x20xf32>,
    } else {
    }
    %c0 = arith.constant 0 : index
    %c0_1 = arith.constant 0 : index
    %3 = vector.load %arg1[%c0, %c0_1] : memref<24x320xf32, #tpu.memory_space<vmem>>, vector<24x320xf32>
    %c0_2 = arith.constant 0 : index
    %c0_3 = arith.constant 0 : index
    %4 = vector.load %arg2[%c0_2, %c0_3] : memref<320x20xf32, #tpu.memory_space<vmem>>, vector<320x20xf32>
    %cst = arith.constant dense<0.000000e+00> : vector<24x20xf32>
    %5 = tpu.matmul %3, %4, %cst {dimension_numbers = #tpu.dot_dimension_numbers<[1], [0], [0], [1], [0, 0, 1, 1], [], []>, precision = #tpu.contract_precision<fp32>} : vector<24x320xf32>, vector<320x20xf32>, vector<24x20xf32> -> vector<24x20xf32>
    %c0_4 = arith.constant 0 : index
    %c0_5 = arith.constant 0 : index
    %6 = vector.load %arg3[%c0_4, %c0_5] : memref<1x20xf32, #tpu.memory_space<vmem>>, vector<1x20xf32>
    %7 = vector.broadcast %6 : vector<1x20xf32> to vector<24x20xf32>
    %8 = arith.addf %5, %7 : vector<24x20xf32>
    %cst_6 = arith.constant 0.000000e+00 : f32
    %9 = vector.broadcast %cst_6 : f32 to vector<24x20xf32>
    %10 = arith.cmpf ogt, %8, %9 : vector<24x20xf32>
    %cst_7 = arith.constant 0.000000e+00 : f32
    %11 = vector.broadcast %cst_7 : f32 to vector<24x20xf32>
    %12 = arith.minimumf %8, %11 : vector<24x20xf32>
    %13 = math.exp %12 : vector<24x20xf32>
    %cst_8 = arith.constant 1.000000e+00 : f32
    %14 = vector.broadcast %cst_8 : f32 to vector<24x20xf32>
    %15 = arith.subf %13, %14 : vector<24x20xf32>
    %16 = arith.select %10, %8, %15 : vector<24x20xi1>, vector<24x20xf32>
    %c0_9 = arith.constant 0 : index
    %c0_10 = arith.constant 0 : index
    %17 = vector.load %arg4[%c0_9, %c0_10] : memref<24x20xf32, #tpu.memory_space<vmem>>, vector<24x20xf32>
    tpu.vector_store %arg4[%c0_9, %c0_10], %16 {strides = array<i32>} : memref<24x20xf32, #tpu.memory_space<vmem>>, vector<24x20xf32>,
    %c24_i32 = arith.constant 24 : i32
    %18 = arith.muli %arg0, %c24_i32 : i32
    %19 = tpu.iota {dimensions = array<i32: 0>} : vector<24x20xi32>
    %20 = vector.broadcast %18 : i32 to vector<24x20xi32>
    %21 = arith.addi %20, %19 : vector<24x20xi32>
    %c32_i32 = arith.constant 32 : i32
    %22 = vector.broadcast %c32_i32 : i32 to vector<24x20xi32>
    %23 = arith.cmpi slt, %21, %22 : vector<24x20xi32>
    %24 = arith.extui %23 : vector<24x20xi1> to vector<24x20xi32>
    %25 = arith.sitofp %24 : vector<24x20xi32> to vector<24x20xf32>
    %26 = arith.mulf %16, %25 : vector<24x20xf32>
    %c0_11 = arith.constant 0 : index
    %c0_12 = arith.constant 0 : index
    %27 = vector.load %arg5[%c0_11, %c0_12] : memref<2x20xf32, #tpu.memory_space<vmem>>, vector<1x20xf32>
    %cst_13 = arith.constant dense<0.000000e+00> : vector<20xf32>
    %28 = vector.multi_reduction <add>, %26, %cst_13 [0] : vector<24x20xf32> to vector<20xf32>
    %29 = vector.shape_cast %28 : vector<20xf32> to vector<1x20xf32>
    %30 = arith.addf %27, %29 : vector<1x20xf32>
    %c0_14 = arith.constant 0 : index
    %c0_15 = arith.constant 0 : index
    %31 = vector.load %arg5[%c0_14, %c0_15] : memref<2x20xf32, #tpu.memory_space<vmem>>, vector<1x20xf32>
    tpu.vector_store %arg5[%c0_14, %c0_15], %30 {strides = array<i32>} : memref<2x20xf32, #tpu.memory_space<vmem>>, vector<1x20xf32>,
    %c1 = arith.constant 1 : index
    %c0_16 = arith.constant 0 : index
    %32 = vector.load %arg5[%c1, %c0_16] : memref<2x20xf32, #tpu.memory_space<vmem>>, vector<1x20xf32>
    %33 = arith.mulf %26, %16 : vector<24x20xf32>
    %cst_17 = arith.constant dense<0.000000e+00> : vector<20xf32>
    %34 = vector.multi_reduction <add>, %33, %cst_17 [0] : vector<24x20xf32> to vector<20xf32>
    %35 = vector.shape_cast %34 : vector<20xf32> to vector<1x20xf32>
    %36 = arith.addf %32, %35 : vector<1x20xf32>
    %c1_18 = arith.constant 1 : index
    %c0_19 = arith.constant 0 : index
    %37 = vector.load %arg5[%c1_18, %c0_19] : memref<2x20xf32, #tpu.memory_space<vmem>>, vector<1x20xf32>
    tpu.vector_store %arg5[%c1_18, %c0_19], %36 {strides = array<i32>} : memref<2x20xf32, #tpu.memory_space<vmem>>, vector<1x20xf32>,
    return
  }
  func.func @transform_0(%arg0: i32) -> (i32, i32) {
    %c0_i32 = arith.constant 0 : i32
    %c0_i32_0 = arith.constant 0 : i32
    return %arg0, %c0_i32 : i32, i32
  }
  func.func @transform_1(%arg0: i32) -> (i32, i32) {
    %c0_i32 = arith.constant 0 : i32
    %c0_i32_0 = arith.constant 0 : i32
    %c0_i32_1 = arith.constant 0 : i32
    return %c0_i32, %c0_i32_0 : i32, i32
  }
  func.func @transform_2(%arg0: i32) -> (i32, i32) {
    %c0_i32 = arith.constant 0 : i32
    %c0_i32_0 = arith.constant 0 : i32
    %c0_i32_1 = arith.constant 0 : i32
    return %c0_i32, %c0_i32_0 : i32, i32
  }
  func.func @transform_3(%arg0: i32) -> (i32, i32) {
    %c0_i32 = arith.constant 0 : i32
    %c0_i32_0 = arith.constant 0 : i32
    return %arg0, %c0_i32 : i32, i32
  }
  func.func @transform_4(%arg0: i32) -> (i32, i32) {
    %c0_i32 = arith.constant 0 : i32
    %c0_i32_0 = arith.constant 0 : i32
    %c0_i32_1 = arith.constant 0 : i32
    return %c0_i32, %c0_i32_0 : i32, i32
  }
}

module attributes {stable_mosaic.version = 11 : i64} {
  func.func @_bn_apply_kernel(%arg0: i32, %arg1: memref<24x20xf32, #tpu.memory_space<vmem>>, %arg2: memref<2x20xf32, #tpu.memory_space<vmem>>, %arg3: memref<1x20xf32, #tpu.memory_space<vmem>>, %arg4: memref<1x20xf32, #tpu.memory_space<vmem>>, %arg5: memref<24x20xf32, #tpu.memory_space<vmem>>) attributes {dimension_semantics = [#tpu.dimension_semantics<parallel>], iteration_bounds = array<i64: 2>, scalar_prefetch = 0 : i64, scratch_operands = 0 : i64, tpu.core_type = #tpu.core_type<tc>, window_params = [{transform_indices = @transform_0, window_bounds = array<i64: 24, 20>}, {pipeline_mode = #tpu.pipeline_mode<synchronous>, transform_indices = @transform_1, window_bounds = array<i64: 2, 20>}, {pipeline_mode = #tpu.pipeline_mode<synchronous>, transform_indices = @transform_2, window_bounds = array<i64: 1, 20>}, {pipeline_mode = #tpu.pipeline_mode<synchronous>, transform_indices = @transform_3, window_bounds = array<i64: 1, 20>}, {transform_indices = @transform_4, window_bounds = array<i64: 24, 20>}]} {
    %c0 = arith.constant 0 : index
    %c0_0 = arith.constant 0 : index
    %0 = vector.load %arg2[%c0, %c0_0] : memref<2x20xf32, #tpu.memory_space<vmem>>, vector<1x20xf32>
    %cst = arith.constant 3.125000e-02 : f32
    %1 = vector.broadcast %cst : f32 to vector<1x20xf32>
    %2 = arith.mulf %0, %1 : vector<1x20xf32>
    %c1 = arith.constant 1 : index
    %c0_1 = arith.constant 0 : index
    %3 = vector.load %arg2[%c1, %c0_1] : memref<2x20xf32, #tpu.memory_space<vmem>>, vector<1x20xf32>
    %cst_2 = arith.constant 3.125000e-02 : f32
    %4 = vector.broadcast %cst_2 : f32 to vector<1x20xf32>
    %5 = arith.mulf %3, %4 : vector<1x20xf32>
    %6 = arith.mulf %2, %2 : vector<1x20xf32>
    %7 = arith.subf %5, %6 : vector<1x20xf32>
    %cst_3 = arith.constant 0.000000e+00 : f32
    %8 = vector.broadcast %cst_3 : f32 to vector<1x20xf32>
    %9 = arith.maximumf %7, %8 : vector<1x20xf32>
    %c0_4 = arith.constant 0 : index
    %c0_5 = arith.constant 0 : index
    %10 = vector.load %arg3[%c0_4, %c0_5] : memref<1x20xf32, #tpu.memory_space<vmem>>, vector<1x20xf32>
    %cst_6 = arith.constant 9.99999974E-6 : f32
    %11 = vector.broadcast %cst_6 : f32 to vector<1x20xf32>
    %12 = arith.addf %9, %11 : vector<1x20xf32>
    %13 = math.rsqrt %12 : vector<1x20xf32>
    %14 = arith.mulf %10, %13 : vector<1x20xf32>
    %c0_7 = arith.constant 0 : index
    %c0_8 = arith.constant 0 : index
    %15 = vector.load %arg1[%c0_7, %c0_8] : memref<24x20xf32, #tpu.memory_space<vmem>>, vector<24x20xf32>
    %16 = vector.broadcast %2 : vector<1x20xf32> to vector<24x20xf32>
    %17 = arith.subf %15, %16 : vector<24x20xf32>
    %18 = vector.broadcast %14 : vector<1x20xf32> to vector<24x20xf32>
    %19 = arith.mulf %17, %18 : vector<24x20xf32>
    %c0_9 = arith.constant 0 : index
    %c0_10 = arith.constant 0 : index
    %20 = vector.load %arg4[%c0_9, %c0_10] : memref<1x20xf32, #tpu.memory_space<vmem>>, vector<1x20xf32>
    %21 = vector.broadcast %20 : vector<1x20xf32> to vector<24x20xf32>
    %22 = arith.addf %19, %21 : vector<24x20xf32>
    %c0_11 = arith.constant 0 : index
    %c0_12 = arith.constant 0 : index
    %23 = vector.load %arg5[%c0_11, %c0_12] : memref<24x20xf32, #tpu.memory_space<vmem>>, vector<24x20xf32>
    tpu.vector_store %arg5[%c0_11, %c0_12], %22 {strides = array<i32>} : memref<24x20xf32, #tpu.memory_space<vmem>>, vector<24x20xf32>,
    return
  }
  func.func @transform_0(%arg0: i32) -> (i32, i32) {
    %c0_i32 = arith.constant 0 : i32
    %c0_i32_0 = arith.constant 0 : i32
    return %arg0, %c0_i32 : i32, i32
  }
  func.func @transform_1(%arg0: i32) -> (i32, i32) {
    %c0_i32 = arith.constant 0 : i32
    %c0_i32_0 = arith.constant 0 : i32
    %c0_i32_1 = arith.constant 0 : i32
    return %c0_i32, %c0_i32_0 : i32, i32
  }
  func.func @transform_2(%arg0: i32) -> (i32, i32) {
    %c0_i32 = arith.constant 0 : i32
    %c0_i32_0 = arith.constant 0 : i32
    %c0_i32_1 = arith.constant 0 : i32
    return %c0_i32, %c0_i32_0 : i32, i32
  }
  func.func @transform_3(%arg0: i32) -> (i32, i32) {
    %c0_i32 = arith.constant 0 : i32
    %c0_i32_0 = arith.constant 0 : i32
    %c0_i32_1 = arith.constant 0 : i32
    return %c0_i32, %c0_i32_0 : i32, i32
  }
  func.func @transform_4(%arg0: i32) -> (i32, i32) {
    %c0_i32 = arith.constant 0 : i32
    %c0_i32_0 = arith.constant 0 : i32
    return %arg0, %c0_i32 : i32, i32
  }
}

module attributes {stable_mosaic.version = 11 : i64} {
  func.func @_mm_stats_kernel(%arg0: i32, %arg1: memref<24x160xf32, #tpu.memory_space<vmem>>, %arg2: memref<160x20xf32, #tpu.memory_space<vmem>>, %arg3: memref<1x20xf32, #tpu.memory_space<vmem>>, %arg4: memref<24x20xf32, #tpu.memory_space<vmem>>, %arg5: memref<2x20xf32, #tpu.memory_space<vmem>>) attributes {dimension_semantics = [#tpu.dimension_semantics<arbitrary>], iteration_bounds = array<i64: 2>, scalar_prefetch = 0 : i64, scratch_operands = 0 : i64, tpu.core_type = #tpu.core_type<tc>, window_params = [{transform_indices = @transform_0, window_bounds = array<i64: 24, 160>}, {pipeline_mode = #tpu.pipeline_mode<synchronous>, transform_indices = @transform_1, window_bounds = array<i64: 160, 20>}, {pipeline_mode = #tpu.pipeline_mode<synchronous>, transform_indices = @transform_2, window_bounds = array<i64: 1, 20>}, {transform_indices = @transform_3, window_bounds = array<i64: 24, 20>}, {pipeline_mode = #tpu.pipeline_mode<synchronous>, transform_indices = @transform_4, window_bounds = array<i64: 2, 20>}]} {
    %c0_i32 = arith.constant 0 : i32
    %0 = arith.cmpi eq, %arg0, %c0_i32 : i32
    %1 = arith.extui %0 : i1 to i32
    %c0_i32_0 = arith.constant 0 : i32
    %2 = arith.cmpi ne, %1, %c0_i32_0 : i32
    scf.if %2 {
      %cst_20 = arith.constant 0.000000e+00 : f32
      %38 = vector.broadcast %cst_20 : f32 to vector<2x20xf32>
      %c0_21 = arith.constant 0 : index
      %c0_22 = arith.constant 0 : index
      %39 = vector.load %arg5[%c0_21, %c0_22] : memref<2x20xf32, #tpu.memory_space<vmem>>, vector<2x20xf32>
      tpu.vector_store %arg5[%c0_21, %c0_22], %38 {strides = array<i32>} : memref<2x20xf32, #tpu.memory_space<vmem>>, vector<2x20xf32>,
    } else {
    }
    %c0 = arith.constant 0 : index
    %c0_1 = arith.constant 0 : index
    %3 = vector.load %arg1[%c0, %c0_1] : memref<24x160xf32, #tpu.memory_space<vmem>>, vector<24x160xf32>
    %c0_2 = arith.constant 0 : index
    %c0_3 = arith.constant 0 : index
    %4 = vector.load %arg2[%c0_2, %c0_3] : memref<160x20xf32, #tpu.memory_space<vmem>>, vector<160x20xf32>
    %cst = arith.constant dense<0.000000e+00> : vector<24x20xf32>
    %5 = tpu.matmul %3, %4, %cst {dimension_numbers = #tpu.dot_dimension_numbers<[1], [0], [0], [1], [0, 0, 1, 1], [], []>, precision = #tpu.contract_precision<fp32>} : vector<24x160xf32>, vector<160x20xf32>, vector<24x20xf32> -> vector<24x20xf32>
    %c0_4 = arith.constant 0 : index
    %c0_5 = arith.constant 0 : index
    %6 = vector.load %arg3[%c0_4, %c0_5] : memref<1x20xf32, #tpu.memory_space<vmem>>, vector<1x20xf32>
    %7 = vector.broadcast %6 : vector<1x20xf32> to vector<24x20xf32>
    %8 = arith.addf %5, %7 : vector<24x20xf32>
    %cst_6 = arith.constant 0.000000e+00 : f32
    %9 = vector.broadcast %cst_6 : f32 to vector<24x20xf32>
    %10 = arith.cmpf ogt, %8, %9 : vector<24x20xf32>
    %cst_7 = arith.constant 0.000000e+00 : f32
    %11 = vector.broadcast %cst_7 : f32 to vector<24x20xf32>
    %12 = arith.minimumf %8, %11 : vector<24x20xf32>
    %13 = math.exp %12 : vector<24x20xf32>
    %cst_8 = arith.constant 1.000000e+00 : f32
    %14 = vector.broadcast %cst_8 : f32 to vector<24x20xf32>
    %15 = arith.subf %13, %14 : vector<24x20xf32>
    %16 = arith.select %10, %8, %15 : vector<24x20xi1>, vector<24x20xf32>
    %c0_9 = arith.constant 0 : index
    %c0_10 = arith.constant 0 : index
    %17 = vector.load %arg4[%c0_9, %c0_10] : memref<24x20xf32, #tpu.memory_space<vmem>>, vector<24x20xf32>
    tpu.vector_store %arg4[%c0_9, %c0_10], %16 {strides = array<i32>} : memref<24x20xf32, #tpu.memory_space<vmem>>, vector<24x20xf32>,
    %c24_i32 = arith.constant 24 : i32
    %18 = arith.muli %arg0, %c24_i32 : i32
    %19 = tpu.iota {dimensions = array<i32: 0>} : vector<24x20xi32>
    %20 = vector.broadcast %18 : i32 to vector<24x20xi32>
    %21 = arith.addi %20, %19 : vector<24x20xi32>
    %c32_i32 = arith.constant 32 : i32
    %22 = vector.broadcast %c32_i32 : i32 to vector<24x20xi32>
    %23 = arith.cmpi slt, %21, %22 : vector<24x20xi32>
    %24 = arith.extui %23 : vector<24x20xi1> to vector<24x20xi32>
    %25 = arith.sitofp %24 : vector<24x20xi32> to vector<24x20xf32>
    %26 = arith.mulf %16, %25 : vector<24x20xf32>
    %c0_11 = arith.constant 0 : index
    %c0_12 = arith.constant 0 : index
    %27 = vector.load %arg5[%c0_11, %c0_12] : memref<2x20xf32, #tpu.memory_space<vmem>>, vector<1x20xf32>
    %cst_13 = arith.constant dense<0.000000e+00> : vector<20xf32>
    %28 = vector.multi_reduction <add>, %26, %cst_13 [0] : vector<24x20xf32> to vector<20xf32>
    %29 = vector.shape_cast %28 : vector<20xf32> to vector<1x20xf32>
    %30 = arith.addf %27, %29 : vector<1x20xf32>
    %c0_14 = arith.constant 0 : index
    %c0_15 = arith.constant 0 : index
    %31 = vector.load %arg5[%c0_14, %c0_15] : memref<2x20xf32, #tpu.memory_space<vmem>>, vector<1x20xf32>
    tpu.vector_store %arg5[%c0_14, %c0_15], %30 {strides = array<i32>} : memref<2x20xf32, #tpu.memory_space<vmem>>, vector<1x20xf32>,
    %c1 = arith.constant 1 : index
    %c0_16 = arith.constant 0 : index
    %32 = vector.load %arg5[%c1, %c0_16] : memref<2x20xf32, #tpu.memory_space<vmem>>, vector<1x20xf32>
    %33 = arith.mulf %26, %16 : vector<24x20xf32>
    %cst_17 = arith.constant dense<0.000000e+00> : vector<20xf32>
    %34 = vector.multi_reduction <add>, %33, %cst_17 [0] : vector<24x20xf32> to vector<20xf32>
    %35 = vector.shape_cast %34 : vector<20xf32> to vector<1x20xf32>
    %36 = arith.addf %32, %35 : vector<1x20xf32>
    %c1_18 = arith.constant 1 : index
    %c0_19 = arith.constant 0 : index
    %37 = vector.load %arg5[%c1_18, %c0_19] : memref<2x20xf32, #tpu.memory_space<vmem>>, vector<1x20xf32>
    tpu.vector_store %arg5[%c1_18, %c0_19], %36 {strides = array<i32>} : memref<2x20xf32, #tpu.memory_space<vmem>>, vector<1x20xf32>,
    return
  }
  func.func @transform_0(%arg0: i32) -> (i32, i32) {
    %c0_i32 = arith.constant 0 : i32
    %c0_i32_0 = arith.constant 0 : i32
    return %arg0, %c0_i32 : i32, i32
  }
  func.func @transform_1(%arg0: i32) -> (i32, i32) {
    %c0_i32 = arith.constant 0 : i32
    %c0_i32_0 = arith.constant 0 : i32
    %c0_i32_1 = arith.constant 0 : i32
    return %c0_i32, %c0_i32_0 : i32, i32
  }
  func.func @transform_2(%arg0: i32) -> (i32, i32) {
    %c0_i32 = arith.constant 0 : i32
    %c0_i32_0 = arith.constant 0 : i32
    %c0_i32_1 = arith.constant 0 : i32
    return %c0_i32, %c0_i32_0 : i32, i32
  }
  func.func @transform_3(%arg0: i32) -> (i32, i32) {
    %c0_i32 = arith.constant 0 : i32
    %c0_i32_0 = arith.constant 0 : i32
    return %arg0, %c0_i32 : i32, i32
  }
  func.func @transform_4(%arg0: i32) -> (i32, i32) {
    %c0_i32 = arith.constant 0 : i32
    %c0_i32_0 = arith.constant 0 : i32
    %c0_i32_1 = arith.constant 0 : i32
    return %c0_i32, %c0_i32_0 : i32, i32
  }
}

module attributes {stable_mosaic.version = 11 : i64} {
  func.func @_mm_stats_kernel(%arg0: i32, %arg1: memref<24x160xf32, #tpu.memory_space<vmem>>, %arg2: memref<160x40xf32, #tpu.memory_space<vmem>>, %arg3: memref<1x40xf32, #tpu.memory_space<vmem>>, %arg4: memref<24x40xf32, #tpu.memory_space<vmem>>, %arg5: memref<2x40xf32, #tpu.memory_space<vmem>>) attributes {dimension_semantics = [#tpu.dimension_semantics<arbitrary>], iteration_bounds = array<i64: 2>, scalar_prefetch = 0 : i64, scratch_operands = 0 : i64, tpu.core_type = #tpu.core_type<tc>, window_params = [{transform_indices = @transform_0, window_bounds = array<i64: 24, 160>}, {pipeline_mode = #tpu.pipeline_mode<synchronous>, transform_indices = @transform_1, window_bounds = array<i64: 160, 40>}, {pipeline_mode = #tpu.pipeline_mode<synchronous>, transform_indices = @transform_2, window_bounds = array<i64: 1, 40>}, {transform_indices = @transform_3, window_bounds = array<i64: 24, 40>}, {pipeline_mode = #tpu.pipeline_mode<synchronous>, transform_indices = @transform_4, window_bounds = array<i64: 2, 40>}]} {
    %c0_i32 = arith.constant 0 : i32
    %0 = arith.cmpi eq, %arg0, %c0_i32 : i32
    %1 = arith.extui %0 : i1 to i32
    %c0_i32_0 = arith.constant 0 : i32
    %2 = arith.cmpi ne, %1, %c0_i32_0 : i32
    scf.if %2 {
      %cst_20 = arith.constant 0.000000e+00 : f32
      %38 = vector.broadcast %cst_20 : f32 to vector<2x40xf32>
      %c0_21 = arith.constant 0 : index
      %c0_22 = arith.constant 0 : index
      %39 = vector.load %arg5[%c0_21, %c0_22] : memref<2x40xf32, #tpu.memory_space<vmem>>, vector<2x40xf32>
      tpu.vector_store %arg5[%c0_21, %c0_22], %38 {strides = array<i32>} : memref<2x40xf32, #tpu.memory_space<vmem>>, vector<2x40xf32>,
    } else {
    }
    %c0 = arith.constant 0 : index
    %c0_1 = arith.constant 0 : index
    %3 = vector.load %arg1[%c0, %c0_1] : memref<24x160xf32, #tpu.memory_space<vmem>>, vector<24x160xf32>
    %c0_2 = arith.constant 0 : index
    %c0_3 = arith.constant 0 : index
    %4 = vector.load %arg2[%c0_2, %c0_3] : memref<160x40xf32, #tpu.memory_space<vmem>>, vector<160x40xf32>
    %cst = arith.constant dense<0.000000e+00> : vector<24x40xf32>
    %5 = tpu.matmul %3, %4, %cst {dimension_numbers = #tpu.dot_dimension_numbers<[1], [0], [0], [1], [0, 0, 1, 1], [], []>, precision = #tpu.contract_precision<fp32>} : vector<24x160xf32>, vector<160x40xf32>, vector<24x40xf32> -> vector<24x40xf32>
    %c0_4 = arith.constant 0 : index
    %c0_5 = arith.constant 0 : index
    %6 = vector.load %arg3[%c0_4, %c0_5] : memref<1x40xf32, #tpu.memory_space<vmem>>, vector<1x40xf32>
    %7 = vector.broadcast %6 : vector<1x40xf32> to vector<24x40xf32>
    %8 = arith.addf %5, %7 : vector<24x40xf32>
    %cst_6 = arith.constant 0.000000e+00 : f32
    %9 = vector.broadcast %cst_6 : f32 to vector<24x40xf32>
    %10 = arith.cmpf ogt, %8, %9 : vector<24x40xf32>
    %cst_7 = arith.constant 0.000000e+00 : f32
    %11 = vector.broadcast %cst_7 : f32 to vector<24x40xf32>
    %12 = arith.minimumf %8, %11 : vector<24x40xf32>
    %13 = math.exp %12 : vector<24x40xf32>
    %cst_8 = arith.constant 1.000000e+00 : f32
    %14 = vector.broadcast %cst_8 : f32 to vector<24x40xf32>
    %15 = arith.subf %13, %14 : vector<24x40xf32>
    %16 = arith.select %10, %8, %15 : vector<24x40xi1>, vector<24x40xf32>
    %c0_9 = arith.constant 0 : index
    %c0_10 = arith.constant 0 : index
    %17 = vector.load %arg4[%c0_9, %c0_10] : memref<24x40xf32, #tpu.memory_space<vmem>>, vector<24x40xf32>
    tpu.vector_store %arg4[%c0_9, %c0_10], %16 {strides = array<i32>} : memref<24x40xf32, #tpu.memory_space<vmem>>, vector<24x40xf32>,
    %c24_i32 = arith.constant 24 : i32
    %18 = arith.muli %arg0, %c24_i32 : i32
    %19 = tpu.iota {dimensions = array<i32: 0>} : vector<24x40xi32>
    %20 = vector.broadcast %18 : i32 to vector<24x40xi32>
    %21 = arith.addi %20, %19 : vector<24x40xi32>
    %c32_i32 = arith.constant 32 : i32
    %22 = vector.broadcast %c32_i32 : i32 to vector<24x40xi32>
    %23 = arith.cmpi slt, %21, %22 : vector<24x40xi32>
    %24 = arith.extui %23 : vector<24x40xi1> to vector<24x40xi32>
    %25 = arith.sitofp %24 : vector<24x40xi32> to vector<24x40xf32>
    %26 = arith.mulf %16, %25 : vector<24x40xf32>
    %c0_11 = arith.constant 0 : index
    %c0_12 = arith.constant 0 : index
    %27 = vector.load %arg5[%c0_11, %c0_12] : memref<2x40xf32, #tpu.memory_space<vmem>>, vector<1x40xf32>
    %cst_13 = arith.constant dense<0.000000e+00> : vector<40xf32>
    %28 = vector.multi_reduction <add>, %26, %cst_13 [0] : vector<24x40xf32> to vector<40xf32>
    %29 = vector.shape_cast %28 : vector<40xf32> to vector<1x40xf32>
    %30 = arith.addf %27, %29 : vector<1x40xf32>
    %c0_14 = arith.constant 0 : index
    %c0_15 = arith.constant 0 : index
    %31 = vector.load %arg5[%c0_14, %c0_15] : memref<2x40xf32, #tpu.memory_space<vmem>>, vector<1x40xf32>
    tpu.vector_store %arg5[%c0_14, %c0_15], %30 {strides = array<i32>} : memref<2x40xf32, #tpu.memory_space<vmem>>, vector<1x40xf32>,
    %c1 = arith.constant 1 : index
    %c0_16 = arith.constant 0 : index
    %32 = vector.load %arg5[%c1, %c0_16] : memref<2x40xf32, #tpu.memory_space<vmem>>, vector<1x40xf32>
    %33 = arith.mulf %26, %16 : vector<24x40xf32>
    %cst_17 = arith.constant dense<0.000000e+00> : vector<40xf32>
    %34 = vector.multi_reduction <add>, %33, %cst_17 [0] : vector<24x40xf32> to vector<40xf32>
    %35 = vector.shape_cast %34 : vector<40xf32> to vector<1x40xf32>
    %36 = arith.addf %32, %35 : vector<1x40xf32>
    %c1_18 = arith.constant 1 : index
    %c0_19 = arith.constant 0 : index
    %37 = vector.load %arg5[%c1_18, %c0_19] : memref<2x40xf32, #tpu.memory_space<vmem>>, vector<1x40xf32>
    tpu.vector_store %arg5[%c1_18, %c0_19], %36 {strides = array<i32>} : memref<2x40xf32, #tpu.memory_space<vmem>>, vector<1x40xf32>,
    return
  }
  func.func @transform_0(%arg0: i32) -> (i32, i32) {
    %c0_i32 = arith.constant 0 : i32
    %c0_i32_0 = arith.constant 0 : i32
    return %arg0, %c0_i32 : i32, i32
  }
  func.func @transform_1(%arg0: i32) -> (i32, i32) {
    %c0_i32 = arith.constant 0 : i32
    %c0_i32_0 = arith.constant 0 : i32
    %c0_i32_1 = arith.constant 0 : i32
    return %c0_i32, %c0_i32_0 : i32, i32
  }
  func.func @transform_2(%arg0: i32) -> (i32, i32) {
    %c0_i32 = arith.constant 0 : i32
    %c0_i32_0 = arith.constant 0 : i32
    %c0_i32_1 = arith.constant 0 : i32
    return %c0_i32, %c0_i32_0 : i32, i32
  }
  func.func @transform_3(%arg0: i32) -> (i32, i32) {
    %c0_i32 = arith.constant 0 : i32
    %c0_i32_0 = arith.constant 0 : i32
    return %arg0, %c0_i32 : i32, i32
  }
  func.func @transform_4(%arg0: i32) -> (i32, i32) {
    %c0_i32 = arith.constant 0 : i32
    %c0_i32_0 = arith.constant 0 : i32
    %c0_i32_1 = arith.constant 0 : i32
    return %c0_i32, %c0_i32_0 : i32, i32
  }
}

module attributes {stable_mosaic.version = 11 : i64} {
  func.func @_bn_apply_kernel(%arg0: i32, %arg1: memref<24x40xf32, #tpu.memory_space<vmem>>, %arg2: memref<2x40xf32, #tpu.memory_space<vmem>>, %arg3: memref<1x40xf32, #tpu.memory_space<vmem>>, %arg4: memref<1x40xf32, #tpu.memory_space<vmem>>, %arg5: memref<24x40xf32, #tpu.memory_space<vmem>>) attributes {dimension_semantics = [#tpu.dimension_semantics<parallel>], iteration_bounds = array<i64: 2>, scalar_prefetch = 0 : i64, scratch_operands = 0 : i64, tpu.core_type = #tpu.core_type<tc>, window_params = [{transform_indices = @transform_0, window_bounds = array<i64: 24, 40>}, {pipeline_mode = #tpu.pipeline_mode<synchronous>, transform_indices = @transform_1, window_bounds = array<i64: 2, 40>}, {pipeline_mode = #tpu.pipeline_mode<synchronous>, transform_indices = @transform_2, window_bounds = array<i64: 1, 40>}, {pipeline_mode = #tpu.pipeline_mode<synchronous>, transform_indices = @transform_3, window_bounds = array<i64: 1, 40>}, {transform_indices = @transform_4, window_bounds = array<i64: 24, 40>}]} {
    %c0 = arith.constant 0 : index
    %c0_0 = arith.constant 0 : index
    %0 = vector.load %arg2[%c0, %c0_0] : memref<2x40xf32, #tpu.memory_space<vmem>>, vector<1x40xf32>
    %cst = arith.constant 3.125000e-02 : f32
    %1 = vector.broadcast %cst : f32 to vector<1x40xf32>
    %2 = arith.mulf %0, %1 : vector<1x40xf32>
    %c1 = arith.constant 1 : index
    %c0_1 = arith.constant 0 : index
    %3 = vector.load %arg2[%c1, %c0_1] : memref<2x40xf32, #tpu.memory_space<vmem>>, vector<1x40xf32>
    %cst_2 = arith.constant 3.125000e-02 : f32
    %4 = vector.broadcast %cst_2 : f32 to vector<1x40xf32>
    %5 = arith.mulf %3, %4 : vector<1x40xf32>
    %6 = arith.mulf %2, %2 : vector<1x40xf32>
    %7 = arith.subf %5, %6 : vector<1x40xf32>
    %cst_3 = arith.constant 0.000000e+00 : f32
    %8 = vector.broadcast %cst_3 : f32 to vector<1x40xf32>
    %9 = arith.maximumf %7, %8 : vector<1x40xf32>
    %c0_4 = arith.constant 0 : index
    %c0_5 = arith.constant 0 : index
    %10 = vector.load %arg3[%c0_4, %c0_5] : memref<1x40xf32, #tpu.memory_space<vmem>>, vector<1x40xf32>
    %cst_6 = arith.constant 9.99999974E-6 : f32
    %11 = vector.broadcast %cst_6 : f32 to vector<1x40xf32>
    %12 = arith.addf %9, %11 : vector<1x40xf32>
    %13 = math.rsqrt %12 : vector<1x40xf32>
    %14 = arith.mulf %10, %13 : vector<1x40xf32>
    %c0_7 = arith.constant 0 : index
    %c0_8 = arith.constant 0 : index
    %15 = vector.load %arg1[%c0_7, %c0_8] : memref<24x40xf32, #tpu.memory_space<vmem>>, vector<24x40xf32>
    %16 = vector.broadcast %2 : vector<1x40xf32> to vector<24x40xf32>
    %17 = arith.subf %15, %16 : vector<24x40xf32>
    %18 = vector.broadcast %14 : vector<1x40xf32> to vector<24x40xf32>
    %19 = arith.mulf %17, %18 : vector<24x40xf32>
    %c0_9 = arith.constant 0 : index
    %c0_10 = arith.constant 0 : index
    %20 = vector.load %arg4[%c0_9, %c0_10] : memref<1x40xf32, #tpu.memory_space<vmem>>, vector<1x40xf32>
    %21 = vector.broadcast %20 : vector<1x40xf32> to vector<24x40xf32>
    %22 = arith.addf %19, %21 : vector<24x40xf32>
    %cst_11 = arith.constant 0.000000e+00 : f32
    %23 = vector.broadcast %cst_11 : f32 to vector<24x40xf32>
    %24 = arith.cmpf ogt, %22, %23 : vector<24x40xf32>
    %cst_12 = arith.constant 0.000000e+00 : f32
    %25 = vector.broadcast %cst_12 : f32 to vector<24x40xf32>
    %26 = arith.minimumf %22, %25 : vector<24x40xf32>
    %27 = math.exp %26 : vector<24x40xf32>
    %cst_13 = arith.constant 1.000000e+00 : f32
    %28 = vector.broadcast %cst_13 : f32 to vector<24x40xf32>
    %29 = arith.subf %27, %28 : vector<24x40xf32>
    %30 = arith.select %24, %22, %29 : vector<24x40xi1>, vector<24x40xf32>
    %cst_14 = arith.constant 0.000000e+00 : f32
    %31 = vector.broadcast %cst_14 : f32 to vector<24x40xf32>
    %32 = arith.cmpf ogt, %30, %31 : vector<24x40xf32>
    %cst_15 = arith.constant 0.000000e+00 : f32
    %33 = vector.broadcast %cst_15 : f32 to vector<24x40xf32>
    %34 = arith.minimumf %30, %33 : vector<24x40xf32>
    %35 = math.exp %34 : vector<24x40xf32>
    %cst_16 = arith.constant 1.000000e+00 : f32
    %36 = vector.broadcast %cst_16 : f32 to vector<24x40xf32>
    %37 = arith.subf %35, %36 : vector<24x40xf32>
    %38 = arith.select %32, %30, %37 : vector<24x40xi1>, vector<24x40xf32>
    %cst_17 = arith.constant 0.000000e+00 : f32
    %39 = vector.broadcast %cst_17 : f32 to vector<24x40xf32>
    %40 = arith.cmpf ogt, %38, %39 : vector<24x40xf32>
    %cst_18 = arith.constant 0.000000e+00 : f32
    %41 = vector.broadcast %cst_18 : f32 to vector<24x40xf32>
    %42 = arith.minimumf %38, %41 : vector<24x40xf32>
    %43 = math.exp %42 : vector<24x40xf32>
    %cst_19 = arith.constant 1.000000e+00 : f32
    %44 = vector.broadcast %cst_19 : f32 to vector<24x40xf32>
    %45 = arith.subf %43, %44 : vector<24x40xf32>
    %46 = arith.select %40, %38, %45 : vector<24x40xi1>, vector<24x40xf32>
    %cst_20 = arith.constant 0.000000e+00 : f32
    %47 = vector.broadcast %cst_20 : f32 to vector<24x40xf32>
    %48 = arith.cmpf ogt, %46, %47 : vector<24x40xf32>
    %cst_21 = arith.constant 0.000000e+00 : f32
    %49 = vector.broadcast %cst_21 : f32 to vector<24x40xf32>
    %50 = arith.minimumf %46, %49 : vector<24x40xf32>
    %51 = math.exp %50 : vector<24x40xf32>
    %cst_22 = arith.constant 1.000000e+00 : f32
    %52 = vector.broadcast %cst_22 : f32 to vector<24x40xf32>
    %53 = arith.subf %51, %52 : vector<24x40xf32>
    %54 = arith.select %48, %46, %53 : vector<24x40xi1>, vector<24x40xf32>
    %c0_23 = arith.constant 0 : index
    %c0_24 = arith.constant 0 : index
    %55 = vector.load %arg5[%c0_23, %c0_24] : memref<24x40xf32, #tpu.memory_space<vmem>>, vector<24x40xf32>
    tpu.vector_store %arg5[%c0_23, %c0_24], %54 {strides = array<i32>} : memref<24x40xf32, #tpu.memory_space<vmem>>, vector<24x40xf32>,
    return
  }
  func.func @transform_0(%arg0: i32) -> (i32, i32) {
    %c0_i32 = arith.constant 0 : i32
    %c0_i32_0 = arith.constant 0 : i32
    return %arg0, %c0_i32 : i32, i32
  }
  func.func @transform_1(%arg0: i32) -> (i32, i32) {
    %c0_i32 = arith.constant 0 : i32
    %c0_i32_0 = arith.constant 0 : i32
    %c0_i32_1 = arith.constant 0 : i32
    return %c0_i32, %c0_i32_0 : i32, i32
  }
  func.func @transform_2(%arg0: i32) -> (i32, i32) {
    %c0_i32 = arith.constant 0 : i32
    %c0_i32_0 = arith.constant 0 : i32
    %c0_i32_1 = arith.constant 0 : i32
    return %c0_i32, %c0_i32_0 : i32, i32
  }
  func.func @transform_3(%arg0: i32) -> (i32, i32) {
    %c0_i32 = arith.constant 0 : i32
    %c0_i32_0 = arith.constant 0 : i32
    %c0_i32_1 = arith.constant 0 : i32
    return %c0_i32, %c0_i32_0 : i32, i32
  }
  func.func @transform_4(%arg0: i32) -> (i32, i32) {
    %c0_i32 = arith.constant 0 : i32
    %c0_i32_0 = arith.constant 0 : i32
    return %arg0, %c0_i32 : i32, i32
  }
}

module attributes {stable_mosaic.version = 11 : i64} {
  func.func @_mm_stats_kernel(%arg0: i32, %arg1: memref<24x320xf32, #tpu.memory_space<vmem>>, %arg2: memref<320x20xf32, #tpu.memory_space<vmem>>, %arg3: memref<1x20xf32, #tpu.memory_space<vmem>>, %arg4: memref<24x20xf32, #tpu.memory_space<vmem>>, %arg5: memref<2x20xf32, #tpu.memory_space<vmem>>) attributes {dimension_semantics = [#tpu.dimension_semantics<arbitrary>], iteration_bounds = array<i64: 2>, scalar_prefetch = 0 : i64, scratch_operands = 0 : i64, tpu.core_type = #tpu.core_type<tc>, window_params = [{transform_indices = @transform_0, window_bounds = array<i64: 24, 320>}, {pipeline_mode = #tpu.pipeline_mode<synchronous>, transform_indices = @transform_1, window_bounds = array<i64: 320, 20>}, {pipeline_mode = #tpu.pipeline_mode<synchronous>, transform_indices = @transform_2, window_bounds = array<i64: 1, 20>}, {transform_indices = @transform_3, window_bounds = array<i64: 24, 20>}, {pipeline_mode = #tpu.pipeline_mode<synchronous>, transform_indices = @transform_4, window_bounds = array<i64: 2, 20>}]} {
    %c0_i32 = arith.constant 0 : i32
    %0 = arith.cmpi eq, %arg0, %c0_i32 : i32
    %1 = arith.extui %0 : i1 to i32
    %c0_i32_0 = arith.constant 0 : i32
    %2 = arith.cmpi ne, %1, %c0_i32_0 : i32
    scf.if %2 {
      %cst_17 = arith.constant 0.000000e+00 : f32
      %30 = vector.broadcast %cst_17 : f32 to vector<2x20xf32>
      %c0_18 = arith.constant 0 : index
      %c0_19 = arith.constant 0 : index
      %31 = vector.load %arg5[%c0_18, %c0_19] : memref<2x20xf32, #tpu.memory_space<vmem>>, vector<2x20xf32>
      tpu.vector_store %arg5[%c0_18, %c0_19], %30 {strides = array<i32>} : memref<2x20xf32, #tpu.memory_space<vmem>>, vector<2x20xf32>,
    } else {
    }
    %c0 = arith.constant 0 : index
    %c0_1 = arith.constant 0 : index
    %3 = vector.load %arg1[%c0, %c0_1] : memref<24x320xf32, #tpu.memory_space<vmem>>, vector<24x320xf32>
    %c0_2 = arith.constant 0 : index
    %c0_3 = arith.constant 0 : index
    %4 = vector.load %arg2[%c0_2, %c0_3] : memref<320x20xf32, #tpu.memory_space<vmem>>, vector<320x20xf32>
    %cst = arith.constant dense<0.000000e+00> : vector<24x20xf32>
    %5 = tpu.matmul %3, %4, %cst {dimension_numbers = #tpu.dot_dimension_numbers<[1], [0], [0], [1], [0, 0, 1, 1], [], []>, precision = #tpu.contract_precision<fp32>} : vector<24x320xf32>, vector<320x20xf32>, vector<24x20xf32> -> vector<24x20xf32>
    %c0_4 = arith.constant 0 : index
    %c0_5 = arith.constant 0 : index
    %6 = vector.load %arg3[%c0_4, %c0_5] : memref<1x20xf32, #tpu.memory_space<vmem>>, vector<1x20xf32>
    %7 = vector.broadcast %6 : vector<1x20xf32> to vector<24x20xf32>
    %8 = arith.addf %5, %7 : vector<24x20xf32>
    %c0_6 = arith.constant 0 : index
    %c0_7 = arith.constant 0 : index
    %9 = vector.load %arg4[%c0_6, %c0_7] : memref<24x20xf32, #tpu.memory_space<vmem>>, vector<24x20xf32>
    tpu.vector_store %arg4[%c0_6, %c0_7], %8 {strides = array<i32>} : memref<24x20xf32, #tpu.memory_space<vmem>>, vector<24x20xf32>,
    %c24_i32 = arith.constant 24 : i32
    %10 = arith.muli %arg0, %c24_i32 : i32
    %11 = tpu.iota {dimensions = array<i32: 0>} : vector<24x20xi32>
    %12 = vector.broadcast %10 : i32 to vector<24x20xi32>
    %13 = arith.addi %12, %11 : vector<24x20xi32>
    %c32_i32 = arith.constant 32 : i32
    %14 = vector.broadcast %c32_i32 : i32 to vector<24x20xi32>
    %15 = arith.cmpi slt, %13, %14 : vector<24x20xi32>
    %16 = arith.extui %15 : vector<24x20xi1> to vector<24x20xi32>
    %17 = arith.sitofp %16 : vector<24x20xi32> to vector<24x20xf32>
    %18 = arith.mulf %8, %17 : vector<24x20xf32>
    %c0_8 = arith.constant 0 : index
    %c0_9 = arith.constant 0 : index
    %19 = vector.load %arg5[%c0_8, %c0_9] : memref<2x20xf32, #tpu.memory_space<vmem>>, vector<1x20xf32>
    %cst_10 = arith.constant dense<0.000000e+00> : vector<20xf32>
    %20 = vector.multi_reduction <add>, %18, %cst_10 [0] : vector<24x20xf32> to vector<20xf32>
    %21 = vector.shape_cast %20 : vector<20xf32> to vector<1x20xf32>
    %22 = arith.addf %19, %21 : vector<1x20xf32>
    %c0_11 = arith.constant 0 : index
    %c0_12 = arith.constant 0 : index
    %23 = vector.load %arg5[%c0_11, %c0_12] : memref<2x20xf32, #tpu.memory_space<vmem>>, vector<1x20xf32>
    tpu.vector_store %arg5[%c0_11, %c0_12], %22 {strides = array<i32>} : memref<2x20xf32, #tpu.memory_space<vmem>>, vector<1x20xf32>,
    %c1 = arith.constant 1 : index
    %c0_13 = arith.constant 0 : index
    %24 = vector.load %arg5[%c1, %c0_13] : memref<2x20xf32, #tpu.memory_space<vmem>>, vector<1x20xf32>
    %25 = arith.mulf %18, %8 : vector<24x20xf32>
    %cst_14 = arith.constant dense<0.000000e+00> : vector<20xf32>
    %26 = vector.multi_reduction <add>, %25, %cst_14 [0] : vector<24x20xf32> to vector<20xf32>
    %27 = vector.shape_cast %26 : vector<20xf32> to vector<1x20xf32>
    %28 = arith.addf %24, %27 : vector<1x20xf32>
    %c1_15 = arith.constant 1 : index
    %c0_16 = arith.constant 0 : index
    %29 = vector.load %arg5[%c1_15, %c0_16] : memref<2x20xf32, #tpu.memory_space<vmem>>, vector<1x20xf32>
    tpu.vector_store %arg5[%c1_15, %c0_16], %28 {strides = array<i32>} : memref<2x20xf32, #tpu.memory_space<vmem>>, vector<1x20xf32>,
    return
  }
  func.func @transform_0(%arg0: i32) -> (i32, i32) {
    %c0_i32 = arith.constant 0 : i32
    %c0_i32_0 = arith.constant 0 : i32
    return %arg0, %c0_i32 : i32, i32
  }
  func.func @transform_1(%arg0: i32) -> (i32, i32) {
    %c0_i32 = arith.constant 0 : i32
    %c0_i32_0 = arith.constant 0 : i32
    %c0_i32_1 = arith.constant 0 : i32
    return %c0_i32, %c0_i32_0 : i32, i32
  }
  func.func @transform_2(%arg0: i32) -> (i32, i32) {
    %c0_i32 = arith.constant 0 : i32
    %c0_i32_0 = arith.constant 0 : i32
    %c0_i32_1 = arith.constant 0 : i32
    return %c0_i32, %c0_i32_0 : i32, i32
  }
  func.func @transform_3(%arg0: i32) -> (i32, i32) {
    %c0_i32 = arith.constant 0 : i32
    %c0_i32_0 = arith.constant 0 : i32
    return %arg0, %c0_i32 : i32, i32
  }
  func.func @transform_4(%arg0: i32) -> (i32, i32) {
    %c0_i32 = arith.constant 0 : i32
    %c0_i32_0 = arith.constant 0 : i32
    %c0_i32_1 = arith.constant 0 : i32
    return %c0_i32, %c0_i32_0 : i32, i32
  }
}

module attributes {stable_mosaic.version = 11 : i64} {
  func.func @_mm_stats_kernel(%arg0: i32, %arg1: memref<24x160xf32, #tpu.memory_space<vmem>>, %arg2: memref<160x20xf32, #tpu.memory_space<vmem>>, %arg3: memref<1x20xf32, #tpu.memory_space<vmem>>, %arg4: memref<24x20xf32, #tpu.memory_space<vmem>>, %arg5: memref<2x20xf32, #tpu.memory_space<vmem>>) attributes {dimension_semantics = [#tpu.dimension_semantics<arbitrary>], iteration_bounds = array<i64: 2>, scalar_prefetch = 0 : i64, scratch_operands = 0 : i64, tpu.core_type = #tpu.core_type<tc>, window_params = [{transform_indices = @transform_0, window_bounds = array<i64: 24, 160>}, {pipeline_mode = #tpu.pipeline_mode<synchronous>, transform_indices = @transform_1, window_bounds = array<i64: 160, 20>}, {pipeline_mode = #tpu.pipeline_mode<synchronous>, transform_indices = @transform_2, window_bounds = array<i64: 1, 20>}, {transform_indices = @transform_3, window_bounds = array<i64: 24, 20>}, {pipeline_mode = #tpu.pipeline_mode<synchronous>, transform_indices = @transform_4, window_bounds = array<i64: 2, 20>}]} {
    %c0_i32 = arith.constant 0 : i32
    %0 = arith.cmpi eq, %arg0, %c0_i32 : i32
    %1 = arith.extui %0 : i1 to i32
    %c0_i32_0 = arith.constant 0 : i32
    %2 = arith.cmpi ne, %1, %c0_i32_0 : i32
    scf.if %2 {
      %cst_17 = arith.constant 0.000000e+00 : f32
      %30 = vector.broadcast %cst_17 : f32 to vector<2x20xf32>
      %c0_18 = arith.constant 0 : index
      %c0_19 = arith.constant 0 : index
      %31 = vector.load %arg5[%c0_18, %c0_19] : memref<2x20xf32, #tpu.memory_space<vmem>>, vector<2x20xf32>
      tpu.vector_store %arg5[%c0_18, %c0_19], %30 {strides = array<i32>} : memref<2x20xf32, #tpu.memory_space<vmem>>, vector<2x20xf32>,
    } else {
    }
    %c0 = arith.constant 0 : index
    %c0_1 = arith.constant 0 : index
    %3 = vector.load %arg1[%c0, %c0_1] : memref<24x160xf32, #tpu.memory_space<vmem>>, vector<24x160xf32>
    %c0_2 = arith.constant 0 : index
    %c0_3 = arith.constant 0 : index
    %4 = vector.load %arg2[%c0_2, %c0_3] : memref<160x20xf32, #tpu.memory_space<vmem>>, vector<160x20xf32>
    %cst = arith.constant dense<0.000000e+00> : vector<24x20xf32>
    %5 = tpu.matmul %3, %4, %cst {dimension_numbers = #tpu.dot_dimension_numbers<[1], [0], [0], [1], [0, 0, 1, 1], [], []>, precision = #tpu.contract_precision<fp32>} : vector<24x160xf32>, vector<160x20xf32>, vector<24x20xf32> -> vector<24x20xf32>
    %c0_4 = arith.constant 0 : index
    %c0_5 = arith.constant 0 : index
    %6 = vector.load %arg3[%c0_4, %c0_5] : memref<1x20xf32, #tpu.memory_space<vmem>>, vector<1x20xf32>
    %7 = vector.broadcast %6 : vector<1x20xf32> to vector<24x20xf32>
    %8 = arith.addf %5, %7 : vector<24x20xf32>
    %c0_6 = arith.constant 0 : index
    %c0_7 = arith.constant 0 : index
    %9 = vector.load %arg4[%c0_6, %c0_7] : memref<24x20xf32, #tpu.memory_space<vmem>>, vector<24x20xf32>
    tpu.vector_store %arg4[%c0_6, %c0_7], %8 {strides = array<i32>} : memref<24x20xf32, #tpu.memory_space<vmem>>, vector<24x20xf32>,
    %c24_i32 = arith.constant 24 : i32
    %10 = arith.muli %arg0, %c24_i32 : i32
    %11 = tpu.iota {dimensions = array<i32: 0>} : vector<24x20xi32>
    %12 = vector.broadcast %10 : i32 to vector<24x20xi32>
    %13 = arith.addi %12, %11 : vector<24x20xi32>
    %c32_i32 = arith.constant 32 : i32
    %14 = vector.broadcast %c32_i32 : i32 to vector<24x20xi32>
    %15 = arith.cmpi slt, %13, %14 : vector<24x20xi32>
    %16 = arith.extui %15 : vector<24x20xi1> to vector<24x20xi32>
    %17 = arith.sitofp %16 : vector<24x20xi32> to vector<24x20xf32>
    %18 = arith.mulf %8, %17 : vector<24x20xf32>
    %c0_8 = arith.constant 0 : index
    %c0_9 = arith.constant 0 : index
    %19 = vector.load %arg5[%c0_8, %c0_9] : memref<2x20xf32, #tpu.memory_space<vmem>>, vector<1x20xf32>
    %cst_10 = arith.constant dense<0.000000e+00> : vector<20xf32>
    %20 = vector.multi_reduction <add>, %18, %cst_10 [0] : vector<24x20xf32> to vector<20xf32>
    %21 = vector.shape_cast %20 : vector<20xf32> to vector<1x20xf32>
    %22 = arith.addf %19, %21 : vector<1x20xf32>
    %c0_11 = arith.constant 0 : index
    %c0_12 = arith.constant 0 : index
    %23 = vector.load %arg5[%c0_11, %c0_12] : memref<2x20xf32, #tpu.memory_space<vmem>>, vector<1x20xf32>
    tpu.vector_store %arg5[%c0_11, %c0_12], %22 {strides = array<i32>} : memref<2x20xf32, #tpu.memory_space<vmem>>, vector<1x20xf32>,
    %c1 = arith.constant 1 : index
    %c0_13 = arith.constant 0 : index
    %24 = vector.load %arg5[%c1, %c0_13] : memref<2x20xf32, #tpu.memory_space<vmem>>, vector<1x20xf32>
    %25 = arith.mulf %18, %8 : vector<24x20xf32>
    %cst_14 = arith.constant dense<0.000000e+00> : vector<20xf32>
    %26 = vector.multi_reduction <add>, %25, %cst_14 [0] : vector<24x20xf32> to vector<20xf32>
    %27 = vector.shape_cast %26 : vector<20xf32> to vector<1x20xf32>
    %28 = arith.addf %24, %27 : vector<1x20xf32>
    %c1_15 = arith.constant 1 : index
    %c0_16 = arith.constant 0 : index
    %29 = vector.load %arg5[%c1_15, %c0_16] : memref<2x20xf32, #tpu.memory_space<vmem>>, vector<1x20xf32>
    tpu.vector_store %arg5[%c1_15, %c0_16], %28 {strides = array<i32>} : memref<2x20xf32, #tpu.memory_space<vmem>>, vector<1x20xf32>,
    return
  }
  func.func @transform_0(%arg0: i32) -> (i32, i32) {
    %c0_i32 = arith.constant 0 : i32
    %c0_i32_0 = arith.constant 0 : i32
    return %arg0, %c0_i32 : i32, i32
  }
  func.func @transform_1(%arg0: i32) -> (i32, i32) {
    %c0_i32 = arith.constant 0 : i32
    %c0_i32_0 = arith.constant 0 : i32
    %c0_i32_1 = arith.constant 0 : i32
    return %c0_i32, %c0_i32_0 : i32, i32
  }
  func.func @transform_2(%arg0: i32) -> (i32, i32) {
    %c0_i32 = arith.constant 0 : i32
    %c0_i32_0 = arith.constant 0 : i32
    %c0_i32_1 = arith.constant 0 : i32
    return %c0_i32, %c0_i32_0 : i32, i32
  }
  func.func @transform_3(%arg0: i32) -> (i32, i32) {
    %c0_i32 = arith.constant 0 : i32
    %c0_i32_0 = arith.constant 0 : i32
    return %arg0, %c0_i32 : i32, i32
  }
  func.func @transform_4(%arg0: i32) -> (i32, i32) {
    %c0_i32 = arith.constant 0 : i32
    %c0_i32_0 = arith.constant 0 : i32
    %c0_i32_1 = arith.constant 0 : i32
    return %c0_i32, %c0_i32_0 : i32, i32
  }
}

module attributes {stable_mosaic.version = 11 : i64} {
  func.func @_mm_stats_kernel(%arg0: i32, %arg1: memref<24x160xf32, #tpu.memory_space<vmem>>, %arg2: memref<160x40xf32, #tpu.memory_space<vmem>>, %arg3: memref<1x40xf32, #tpu.memory_space<vmem>>, %arg4: memref<24x40xf32, #tpu.memory_space<vmem>>, %arg5: memref<2x40xf32, #tpu.memory_space<vmem>>) attributes {dimension_semantics = [#tpu.dimension_semantics<arbitrary>], iteration_bounds = array<i64: 2>, scalar_prefetch = 0 : i64, scratch_operands = 0 : i64, tpu.core_type = #tpu.core_type<tc>, window_params = [{transform_indices = @transform_0, window_bounds = array<i64: 24, 160>}, {pipeline_mode = #tpu.pipeline_mode<synchronous>, transform_indices = @transform_1, window_bounds = array<i64: 160, 40>}, {pipeline_mode = #tpu.pipeline_mode<synchronous>, transform_indices = @transform_2, window_bounds = array<i64: 1, 40>}, {transform_indices = @transform_3, window_bounds = array<i64: 24, 40>}, {pipeline_mode = #tpu.pipeline_mode<synchronous>, transform_indices = @transform_4, window_bounds = array<i64: 2, 40>}]} {
    %c0_i32 = arith.constant 0 : i32
    %0 = arith.cmpi eq, %arg0, %c0_i32 : i32
    %1 = arith.extui %0 : i1 to i32
    %c0_i32_0 = arith.constant 0 : i32
    %2 = arith.cmpi ne, %1, %c0_i32_0 : i32
    scf.if %2 {
      %cst_17 = arith.constant 0.000000e+00 : f32
      %30 = vector.broadcast %cst_17 : f32 to vector<2x40xf32>
      %c0_18 = arith.constant 0 : index
      %c0_19 = arith.constant 0 : index
      %31 = vector.load %arg5[%c0_18, %c0_19] : memref<2x40xf32, #tpu.memory_space<vmem>>, vector<2x40xf32>
      tpu.vector_store %arg5[%c0_18, %c0_19], %30 {strides = array<i32>} : memref<2x40xf32, #tpu.memory_space<vmem>>, vector<2x40xf32>,
    } else {
    }
    %c0 = arith.constant 0 : index
    %c0_1 = arith.constant 0 : index
    %3 = vector.load %arg1[%c0, %c0_1] : memref<24x160xf32, #tpu.memory_space<vmem>>, vector<24x160xf32>
    %c0_2 = arith.constant 0 : index
    %c0_3 = arith.constant 0 : index
    %4 = vector.load %arg2[%c0_2, %c0_3] : memref<160x40xf32, #tpu.memory_space<vmem>>, vector<160x40xf32>
    %cst = arith.constant dense<0.000000e+00> : vector<24x40xf32>
    %5 = tpu.matmul %3, %4, %cst {dimension_numbers = #tpu.dot_dimension_numbers<[1], [0], [0], [1], [0, 0, 1, 1], [], []>, precision = #tpu.contract_precision<fp32>} : vector<24x160xf32>, vector<160x40xf32>, vector<24x40xf32> -> vector<24x40xf32>
    %c0_4 = arith.constant 0 : index
    %c0_5 = arith.constant 0 : index
    %6 = vector.load %arg3[%c0_4, %c0_5] : memref<1x40xf32, #tpu.memory_space<vmem>>, vector<1x40xf32>
    %7 = vector.broadcast %6 : vector<1x40xf32> to vector<24x40xf32>
    %8 = arith.addf %5, %7 : vector<24x40xf32>
    %c0_6 = arith.constant 0 : index
    %c0_7 = arith.constant 0 : index
    %9 = vector.load %arg4[%c0_6, %c0_7] : memref<24x40xf32, #tpu.memory_space<vmem>>, vector<24x40xf32>
    tpu.vector_store %arg4[%c0_6, %c0_7], %8 {strides = array<i32>} : memref<24x40xf32, #tpu.memory_space<vmem>>, vector<24x40xf32>,
    %c24_i32 = arith.constant 24 : i32
    %10 = arith.muli %arg0, %c24_i32 : i32
    %11 = tpu.iota {dimensions = array<i32: 0>} : vector<24x40xi32>
    %12 = vector.broadcast %10 : i32 to vector<24x40xi32>
    %13 = arith.addi %12, %11 : vector<24x40xi32>
    %c32_i32 = arith.constant 32 : i32
    %14 = vector.broadcast %c32_i32 : i32 to vector<24x40xi32>
    %15 = arith.cmpi slt, %13, %14 : vector<24x40xi32>
    %16 = arith.extui %15 : vector<24x40xi1> to vector<24x40xi32>
    %17 = arith.sitofp %16 : vector<24x40xi32> to vector<24x40xf32>
    %18 = arith.mulf %8, %17 : vector<24x40xf32>
    %c0_8 = arith.constant 0 : index
    %c0_9 = arith.constant 0 : index
    %19 = vector.load %arg5[%c0_8, %c0_9] : memref<2x40xf32, #tpu.memory_space<vmem>>, vector<1x40xf32>
    %cst_10 = arith.constant dense<0.000000e+00> : vector<40xf32>
    %20 = vector.multi_reduction <add>, %18, %cst_10 [0] : vector<24x40xf32> to vector<40xf32>
    %21 = vector.shape_cast %20 : vector<40xf32> to vector<1x40xf32>
    %22 = arith.addf %19, %21 : vector<1x40xf32>
    %c0_11 = arith.constant 0 : index
    %c0_12 = arith.constant 0 : index
    %23 = vector.load %arg5[%c0_11, %c0_12] : memref<2x40xf32, #tpu.memory_space<vmem>>, vector<1x40xf32>
    tpu.vector_store %arg5[%c0_11, %c0_12], %22 {strides = array<i32>} : memref<2x40xf32, #tpu.memory_space<vmem>>, vector<1x40xf32>,
    %c1 = arith.constant 1 : index
    %c0_13 = arith.constant 0 : index
    %24 = vector.load %arg5[%c1, %c0_13] : memref<2x40xf32, #tpu.memory_space<vmem>>, vector<1x40xf32>
    %25 = arith.mulf %18, %8 : vector<24x40xf32>
    %cst_14 = arith.constant dense<0.000000e+00> : vector<40xf32>
    %26 = vector.multi_reduction <add>, %25, %cst_14 [0] : vector<24x40xf32> to vector<40xf32>
    %27 = vector.shape_cast %26 : vector<40xf32> to vector<1x40xf32>
    %28 = arith.addf %24, %27 : vector<1x40xf32>
    %c1_15 = arith.constant 1 : index
    %c0_16 = arith.constant 0 : index
    %29 = vector.load %arg5[%c1_15, %c0_16] : memref<2x40xf32, #tpu.memory_space<vmem>>, vector<1x40xf32>
    tpu.vector_store %arg5[%c1_15, %c0_16], %28 {strides = array<i32>} : memref<2x40xf32, #tpu.memory_space<vmem>>, vector<1x40xf32>,
    return
  }
  func.func @transform_0(%arg0: i32) -> (i32, i32) {
    %c0_i32 = arith.constant 0 : i32
    %c0_i32_0 = arith.constant 0 : i32
    return %arg0, %c0_i32 : i32, i32
  }
  func.func @transform_1(%arg0: i32) -> (i32, i32) {
    %c0_i32 = arith.constant 0 : i32
    %c0_i32_0 = arith.constant 0 : i32
    %c0_i32_1 = arith.constant 0 : i32
    return %c0_i32, %c0_i32_0 : i32, i32
  }
  func.func @transform_2(%arg0: i32) -> (i32, i32) {
    %c0_i32 = arith.constant 0 : i32
    %c0_i32_0 = arith.constant 0 : i32
    %c0_i32_1 = arith.constant 0 : i32
    return %c0_i32, %c0_i32_0 : i32, i32
  }
  func.func @transform_3(%arg0: i32) -> (i32, i32) {
    %c0_i32 = arith.constant 0 : i32
    %c0_i32_0 = arith.constant 0 : i32
    return %arg0, %c0_i32 : i32, i32
  }
  func.func @transform_4(%arg0: i32) -> (i32, i32) {
    %c0_i32 = arith.constant 0 : i32
    %c0_i32_0 = arith.constant 0 : i32
    %c0_i32_1 = arith.constant 0 : i32
    return %c0_i32, %c0_i32_0 : i32, i32
  }
}

module attributes {stable_mosaic.version = 11 : i64} {
  func.func @_final_reduce_kernel(%arg0: i32, %arg1: memref<1x16x320xf32, #tpu.memory_space<vmem>>, %arg2: memref<1x320xf32, #tpu.memory_space<vmem>>, %arg3: memref<1x1xf32, #tpu.memory_space<vmem>>, %arg4: memref<1x1x16xf32, #tpu.memory_space<vmem>>) attributes {dimension_semantics = [#tpu.dimension_semantics<parallel>], iteration_bounds = array<i64: 2>, scalar_prefetch = 0 : i64, scratch_operands = 0 : i64, tpu.core_type = #tpu.core_type<tc>, window_params = [{transform_indices = @transform_0, window_bounds = array<i64: 1, 16, 320>}, {pipeline_mode = #tpu.pipeline_mode<synchronous>, transform_indices = @transform_1, window_bounds = array<i64: 1, 320>}, {pipeline_mode = #tpu.pipeline_mode<synchronous>, transform_indices = @transform_2, window_bounds = array<i64: 1, 1>}, {transform_indices = @transform_3, window_bounds = array<i64: 1, 1, 16>}]} {
    %c0 = arith.constant 0 : index
    %c0_0 = arith.constant 0 : index
    %c0_1 = arith.constant 0 : index
    %0 = vector.load %arg1[%c0, %c0_0, %c0_1] : memref<1x16x320xf32, #tpu.memory_space<vmem>>, vector<1x16x320xf32>
    %1 = vector.shape_cast %0 : vector<1x16x320xf32> to vector<16x320xf32>
    %c0_2 = arith.constant 0 : index
    %c0_3 = arith.constant 0 : index
    %2 = vector.load %arg2[%c0_2, %c0_3] : memref<1x320xf32, #tpu.memory_space<vmem>>, vector<1x320xf32>
    %3 = vector.broadcast %2 : vector<1x320xf32> to vector<16x320xf32>
    %4 = arith.mulf %1, %3 : vector<16x320xf32>
    %cst = arith.constant dense<0.000000e+00> : vector<16xf32>
    %5 = vector.multi_reduction <add>, %4, %cst [1] : vector<16x320xf32> to vector<16xf32>
    %6 = vector.shape_cast %5 : vector<16xf32> to vector<1x16xf32>
    %c0_4 = arith.constant 0 : index
    %c0_5 = arith.constant 0 : index
    %7 = vector.load %arg3[%c0_4, %c0_5] : memref<1x1xf32, #tpu.memory_space<vmem>>, vector<1x1xf32>
    %8 = vector.broadcast %7 : vector<1x1xf32> to vector<1x16xf32>
    %9 = arith.addf %6, %8 : vector<1x16xf32>
    %c0_6 = arith.constant 0 : index
    %c0_7 = arith.constant 0 : index
    %c0_8 = arith.constant 0 : index
    %10 = vector.load %arg4[%c0_6, %c0_7, %c0_8] : memref<1x1x16xf32, #tpu.memory_space<vmem>>, vector<1x1x16xf32>
    %11 = vector.shape_cast %10 : vector<1x1x16xf32> to vector<1x16xf32>
    %12 = vector.shape_cast %9 : vector<1x16xf32> to vector<1x1x16xf32>
    tpu.vector_store %arg4[%c0_6, %c0_7, %c0_8], %12 {strides = array<i32>} : memref<1x1x16xf32, #tpu.memory_space<vmem>>, vector<1x1x16xf32>,
    return
  }
  func.func @transform_0(%arg0: i32) -> (i32, i32, i32) {
    %c0_i32 = arith.constant 0 : i32
    %c0_i32_0 = arith.constant 0 : i32
    %c0_i32_1 = arith.constant 0 : i32
    return %arg0, %c0_i32, %c0_i32_0 : i32, i32, i32
  }
  func.func @transform_1(%arg0: i32) -> (i32, i32) {
    %c0_i32 = arith.constant 0 : i32
    %c0_i32_0 = arith.constant 0 : i32
    %c0_i32_1 = arith.constant 0 : i32
    return %c0_i32, %c0_i32_0 : i32, i32
  }
  func.func @transform_2(%arg0: i32) -> (i32, i32) {
    %c0_i32 = arith.constant 0 : i32
    %c0_i32_0 = arith.constant 0 : i32
    %c0_i32_1 = arith.constant 0 : i32
    return %c0_i32, %c0_i32_0 : i32, i32
  }
  func.func @transform_3(%arg0: i32) -> (i32, i32, i32) {
    %c0_i32 = arith.constant 0 : i32
    %c0_i32_0 = arith.constant 0 : i32
    %c0_i32_1 = arith.constant 0 : i32
    return %arg0, %c0_i32, %c0_i32_0 : i32, i32, i32
  }
}

</mosaic_0001>

<llo_original>
// kernel: _lambda_.20
$region0: #{_lambda_.20}
  #allocation0 [shape = 'u32[]', space=smem, size = 0x4, offset = 0x4, fixed_abs, tag = 'smem constant byte address 0x4 - core index']
  #allocation1 [shape = 'u32[72,128]{1,0:T(1,128)}', space=vmem, size = 0x9000, scoped, tag = 'internal scratch']
  %s0 = inlined_call_operand.vmem [shape: f32[48,40], index: 0, kind: input, shape index: {}]
  %s1 = inlined_call_operand.vmem [shape: f32[2,40], index: 1, kind: input, shape index: {}]
  %s2 = inlined_call_operand.vmem [shape: f32[1,40], index: 2, kind: input, shape index: {}]
  %s3 = inlined_call_operand.vmem [shape: f32[1,40], index: 3, kind: input, shape index: {}]
  %s4 = inlined_call_operand.vmem [shape: f32[48,40], index: 4, kind: output, shape index: {}]
  %s5 = sld [smem:[#allocation0]]
  $region49: #{_lambda_.20} parent=0
    _
  %s7 = ssub.s32 1, %s5
  %s8 = scalar_select 0, %s7, %s5
  loop: start=0, step=1, limit=4
  $region2: #{_lambda_.20} parent=0 // loop_pre_header
    _
  $region3: #{_lambda_.20} parent=0 // loop_header
    %s10 = sphi 0, %s14
    %p11 = scmp.ge.s32.totalorder %s10, 4
    %s20 = sphi 0, %s22
    %s23 = sphi 0, %s20
    %s24 = sphi 0, %s23
    %s40 = sphi 0, %s24
    %s44 = sphi 0, %s44
    %s46 = sphi 0, %s44
    %s47 = sphi 0, %s46
    %s61 = sphi 0, %s47
    %s65 = sphi 0, %s65
    %s67 = sphi 0, %s65
    %s68 = sphi 0, %s67
    %s82 = sphi 0, %s68
    %s86 = sphi 0, %s86
    %s88 = sphi 0, %s86
    %s89 = sphi 0, %s88
    %s103 = sphi 0, %s89
    %s109 = sphi 0, %s111
    %s112 = sphi 0, %s109
    %s113 = sphi 0, %s112
    %s129 = sphi 0, %s113
  $region4: #{_lambda_.20} parent=0 // loop_header_branch
    %13 = sbr.rel (%p11) target = $region8
  $region5: #{_lambda_.20} parent=0 // loop_body
    %s15 = ssub.s32 %s10, 1
    %s16 = ssub.s32 %s10, 2
    %s17 = sadd.s32 %s10, 1
    %s18 = ssub.s32 %s10, %s17
    %p19 = scmp.eq.s32.totalorder %s18, 0
    %s21 = sadd.s32 %s20, 1
    %s22 = scalar_select %p19, %s20, %s21
    %p25 = pneg %p19
    %p26 = scmp.eq.s32.totalorder %s10, 1
    %p27 = por %p25, %p26
    %p28 = scmp.ne.s32.totalorder %s20, %s23
    %p29 = scmp.eq.s32.totalorder %s10, 0
    %p30 = por %p28, %p29
    %p31 = scmp.ne.s32.totalorder %s20, %s23
    %p32 = scmp.eq.s32.totalorder %s15, 1
    %p33 = por %p31, %p32
    %p34 = scmp.ne.s32.totalorder %s23, %s24
    %p35 = scmp.eq.s32.totalorder %s15, 0
    %p36 = por %p34, %p35
    %p37 = scmp.ne.s32.totalorder %s23, %s24
    %p38 = scmp.eq.s32.totalorder %s16, 1
    %p39 = por %p37, %p38
    %p41 = scmp.ne.s32.totalorder %s24, %s40
    %p42 = scmp.eq.s32.totalorder %s16, 0
    %p43 = por %p41, %p42
    %s45 = sadd.s32 %s44, 1
    %p48 = scmp.eq.s32.totalorder %s10, 1
    %p49 = scmp.ne.s32.totalorder %s44, %s46
    %p50 = scmp.eq.s32.totalorder %s10, 0
    %p51 = por %p49, %p50
    %p52 = scmp.ne.s32.totalorder %s44, %s46
    %p53 = scmp.eq.s32.totalorder %s15, 1
    %p54 = por %p52, %p53
    %p55 = scmp.ne.s32.totalorder %s46, %s47
    %p56 = scmp.eq.s32.totalorder %s15, 0
    %p57 = por %p55, %p56
    %p58 = scmp.ne.s32.totalorder %s46, %s47
    %p59 = scmp.eq.s32.totalorder %s16, 1
    %p60 = por %p58, %p59
    %p62 = scmp.ne.s32.totalorder %s47, %s61
    %p63 = scmp.eq.s32.totalorder %s16, 0
    %p64 = por %p62, %p63
    %s66 = sadd.s32 %s65, 1
    %p69 = scmp.eq.s32.totalorder %s10, 1
    %p70 = scmp.ne.s32.totalorder %s65, %s67
    %p71 = scmp.eq.s32.totalorder %s10, 0
    %p72 = por %p70, %p71
    %p73 = scmp.ne.s32.totalorder %s65, %s67
    %p74 = scmp.eq.s32.totalorder %s15, 1
    %p75 = por %p73, %p74
    %p76 = scmp.ne.s32.totalorder %s67, %s68
    %p77 = scmp.eq.s32.totalorder %s15, 0
    %p78 = por %p76, %p77
    %p79 = scmp.ne.s32.totalorder %s67, %s68
    %p80 = scmp.eq.s32.totalorder %s16, 1
    %p81 = por %p79, %p80
    %p83 = scmp.ne.s32.totalorder %s68, %s82
    %p84 = scmp.eq.s32.totalorder %s16, 0
    %p85 = por %p83, %p84
    %s87 = sadd.s32 %s86, 1
    %p90 = scmp.eq.s32.totalorder %s10, 1
    %p91 = scmp.ne.s32.totalorder %s86, %s88
    %p92 = scmp.eq.s32.totalorder %s10, 0
    %p93 = por %p91, %p92
    %p94 = scmp.ne.s32.totalorder %s86, %s88
    %p95 = scmp.eq.s32.totalorder %s15, 1
    %p96 = por %p94, %p95
    %p97 = scmp.ne.s32.totalorder %s88, %s89
    %p98 = scmp.eq.s32.totalorder %s15, 0
    %p99 = por %p97, %p98
    %p100 = scmp.ne.s32.totalorder %s88, %s89
    %p101 = scmp.eq.s32.totalorder %s16, 1
    %p102 = por %p100, %p101
    %p104 = scmp.ne.s32.totalorder %s89, %s103
    %p105 = scmp.eq.s32.totalorder %s16, 0
    %p106 = por %p104, %p105
    %s107 = ssub.s32 %s10, %s17
    %p108 = scmp.eq.s32.totalorder %s107, 0
    %s110 = sadd.s32 %s109, 1
    %s111 = scalar_select %p108, %s109, %s110
    %p114 = pneg %p108
    %p115 = scmp.eq.s32.totalorder %s10, 1
    %p116 = por %p114, %p115
    %p117 = scmp.ne.s32.totalorder %s109, %s112
    %p118 = scmp.eq.s32.totalorder %s10, 0
    %p119 = por %p117, %p118
    %p120 = scmp.ne.s32.totalorder %s109, %s112
    %p121 = scmp.eq.s32.totalorder %s15, 1
    %p122 = por %p120, %p121
    %p123 = scmp.ne.s32.totalorder %s112, %s113
    %p124 = scmp.eq.s32.totalorder %s15, 0
    %p125 = por %p123, %p124
    %p126 = scmp.ne.s32.totalorder %s112, %s113
    %p127 = scmp.eq.s32.totalorder %s16, 1
    %p128 = por %p126, %p127
    %p130 = scmp.ne.s32.totalorder %s113, %s129
    %p131 = scmp.eq.s32.totalorder %s16, 0
    %p132 = por %p130, %p131
    %p133 = scmp.le.s32.totalorder 1, %s10
    %p134 = scmp.lt.s32.totalorder %s10, 3
    %p135 = pnand %p133, %p134
    %p136 = pneg %p135
    // Predicated region
    $region9: #{_lambda_.20} parent=5 // pred_check
      _
    $region10: #{_lambda_.20} parent=5 // pred_check_branch
      %138 = sbr.rel (%p135) target = $region12
    $region11: #{_lambda_.20} parent=5 // pred_region
      %s139 = ssub.s32 %s10, 1
      // Predicated region
      $region13: #{_lambda_.20} parent=11 // pred_check
        %p140 = pneg %p57
      $region14: #{_lambda_.20} parent=11 // pred_check_branch
        %142 = sbr.rel (%p140) target = $region16
      $region15: #{_lambda_.20} parent=11 // pred_region
        _
      $region16: #{_lambda_.20} parent=11 // pred_fallthru
        _
      // Predicated region
      $region17: #{_lambda_.20} parent=11 // pred_check
        %p143 = pneg %p78
      $region18: #{_lambda_.20} parent=11 // pred_check_branch
        %145 = sbr.rel (%p143) target = $region20
      $region19: #{_lambda_.20} parent=11 // pred_region
        _
      $region20: #{_lambda_.20} parent=11 // pred_fallthru
        _
      // Predicated region
      $region21: #{_lambda_.20} parent=11 // pred_check
        %p146 = pneg %p99
      $region22: #{_lambda_.20} parent=11 // pred_check_branch
        %148 = sbr.rel (%p146) target = $region24
      $region23: #{_lambda_.20} parent=11 // pred_region
        _
      $region24: #{_lambda_.20} parent=11 // pred_fallthru
        _
    $region12: #{_lambda_.20} parent=5 // pred_fallthru
      _
    %p149 = scmp.lt.s32.totalorder %s10, 2
    // Predicated region
    $region25: #{_lambda_.20} parent=5 // pred_check
      %p150 = pneg %p149
    $region26: #{_lambda_.20} parent=5 // pred_check_branch
      %152 = sbr.rel (%p150) target = $region28
    $region27: #{_lambda_.20} parent=5 // pred_region
      // Predicated region
      $region29: #{_lambda_.20} parent=27 // pred_check
        %p153 = pneg %p30
      $region30: #{_lambda_.20} parent=27 // pred_check_branch
        %155 = sbr.rel (%p153) target = $region32
      $region31: #{_lambda_.20} parent=27 // pred_region
        %s156 = smul.u32 3, %s10
        %p157 = scmp.lt.s32.totalorder %s156, 5
        %s158 = scalar_select %p157, %s156, 5
        %s159 = smul.addr %s158, 8
        %s160 = scalar_lea.vmem %s0, %s159
        %s161 = smul.u32 3, %s10
      $region32: #{_lambda_.20} parent=27 // pred_fallthru
        _
    $region28: #{_lambda_.20} parent=5 // pred_fallthru
      _
    %p162 = scmp.le.s32.totalorder 1, %s10
    %p163 = scmp.lt.s32.totalorder %s10, 3
    %p164 = pnand %p162, %p163
    %p165 = pneg %p164
    // Predicated region
    $region33: #{_lambda_.20} parent=5 // pred_check
      _
    $region34: #{_lambda_.20} parent=5 // pred_check_branch
      %167 = sbr.rel (%p164) target = $region36
    $region35: #{_lambda_.20} parent=5 // pred_region
      %s168 = ssub.s32 %s10, 1
      %s169 = smul.u32 3, %s15
      %p170 = scmp.lt.s32.totalorder %s169, 5
      %s171 = scalar_select %p170, %s169, 5
      %s172 = smul.addr %s171, 8
      %s173 = scalar_lea.vmem %s0, %s172
      %p174 = pneg %p36
      %p175 = pneg %p33
      %p176 = pneg %p57
      %p177 = pneg %p54
      %p178 = pneg %p78
      %p179 = pneg %p75
      %p180 = pneg %p99
      %p181 = pneg %p96
      %p182 = pneg %p125
      %p183 = pneg %p122
      %s184 = smul.u32 3, %s15
      %p185 = scmp.lt.s32.totalorder %s184, 5
      %s186 = scalar_select %p185, %s184, 5
      %s187 = smul.addr %s186, 8
      %s188 = scalar_lea.vmem %s4, %s187
      %s189 = smul.u32 3, %s15
      %p190 = scmp.lt.s32.totalorder %s189, 5
      %s191 = scalar_select %p190, %s189, 5
      %s192 = smul.addr %s191, 8
      %s193 = scalar_lea.vmem %s0, %s192
      %s194 = smul.u32 3, %s15
      %s195 = smul.u32 3, %s15
      %p196 = scmp.lt.s32.totalorder %s195, 5
      %s197 = scalar_select %p196, %s195, 5
      %s198 = smul.addr %s197, 8
      %s199 = scalar_lea.vmem %s4, %s198
      %s200 = smul.u32 3, %s15
      %v201 = vld [vmem:[%s1] sm:$0x1]
      %v202 = vmul.f32 %v201, 0.03125
      %v203 = vld [vmem:[%s1 + $0x1] sm:$0x1]
      %v204 = vmul.f32 %v203, 0.03125
      %v205 = vmul.f32 %v202, %v202
      %v206 = vsub.f32 %v204, %v205
      %v207 = vmax.f32 %v206, 0.0
      %v208 = vld [vmem:[%s2] sm:$0x1]
      %v209 = vadd.f32 %v207, 1e-05
      %v210 = vrsqrt.pop %v209
      %v211 = vmul.f32 %v210, %v209
      %v212 = vmul.f32 %v211, %v210
      %v213 = vmul.f32 0.5, %v212
      %v214 = vsub.f32 1.5, %v213
      %v215 = vmul.f32 %v210, %v214
      %vm216 = vweird.f32 %v209
      %vm217 = vweird.f32 %v210
      %vm218 = vmor %vm216, %vm217
      %v219 = vsel %vm218, %v210, %v215
      %v220 = vmul.f32 %v208, %v219
      %v221 = vld [vmem:[%s193] sm:$0xff]
      %v222 = vld [vmem:[%s193 + $0x8] sm:$0xff]
      %v223 = vld [vmem:[%s193 + $0x10] sm:$0xff]
      %v224 = vperm.slane %v202, 0
      %v225 = vsub.f32 %v221, %v224
      %v226 = vsub.f32 %v222, %v224
      %v227 = vsub.f32 %v223, %v224
      %v229 = vperm.slane %v220, 0
      %v231 = vmul.f32 %v225, %v229
      %v232 = vmul.f32 %v226, %v229
      %v233 = vmul.f32 %v227, %v229
      %v234 = vld [vmem:[%s3] sm:$0x1]
      %v236 = vperm.slane %v234, 0
      %v238 = vadd.f32 %v231, %v236
      %v239 = vadd.f32 %v232, %v236
      %v240 = vadd.f32 %v233, %v236
      %vm241 = vcmask 326656
      %242 = vst.msk [vmem:[%s199] sm:$0xff] %vm241, %v238
      %243 = vst.msk [vmem:[%s199 + $0x8] sm:$0xff] %vm241, %v239
      %244 = vst.msk [vmem:[%s199 + $0x10] sm:$0xff] %vm241, %v240
      %s245 = smul.u32 3, %s15
      %p246 = scmp.lt.s32.totalorder %s245, 5
      %s247 = scalar_select %p246, %s245, 5
      %s248 = smul.addr %s247, 8
      %s249 = scalar_lea.vmem %s4, %s248
      // Predicated region
      $region37: #{_lambda_.20} parent=35 // pred_check
        %p250 = pneg %p122
      $region38: #{_lambda_.20} parent=35 // pred_check_branch
        %252 = sbr.rel (%p250) target = $region40
      $region39: #{_lambda_.20} parent=35 // pred_region
        %s253 = smul.u32 3, %s15
      $region40: #{_lambda_.20} parent=35 // pred_fallthru
        _
    $region36: #{_lambda_.20} parent=5 // pred_fallthru
      _
    %p254 = scmp.le.s32.totalorder 2, %s10
    // Predicated region
    $region41: #{_lambda_.20} parent=5 // pred_check
      %p255 = pneg %p254
    $region42: #{_lambda_.20} parent=5 // pred_check_branch
      %257 = sbr.rel (%p255) target = $region44
    $region43: #{_lambda_.20} parent=5 // pred_region
      %s258 = ssub.s32 %s10, 2
      // Predicated region
      $region45: #{_lambda_.20} parent=43 // pred_check
        %p259 = pneg %p128
      $region46: #{_lambda_.20} parent=43 // pred_check_branch
        %261 = sbr.rel (%p259) target = $region48
      $region47: #{_lambda_.20} parent=43 // pred_region
        %s262 = smul.u32 3, %s16
        %p263 = scmp.lt.s32.totalorder %s262, 5
        %s264 = scalar_select %p263, %s262, 5
        %s265 = smul.addr %s264, 8
        %s266 = scalar_lea.vmem %s4, %s265
      $region48: #{_lambda_.20} parent=43 // pred_fallthru
        _
    $region44: #{_lambda_.20} parent=5 // pred_fallthru
      _
  $region6: #{_lambda_.20} parent=0 // loop_footer
    %s14 = sadd.s32 1, %s10
  $region7: #{_lambda_.20} parent=0 // loop_footer_branch
    %9 = sbr.rel target = $region3
  $region8: #{_lambda_.20} parent=0 // loop_exit
    _

// kernel: _lambda_.19
$region0: #{_lambda_.19}
  #allocation0 [shape = 'u32[]', space=smem, size = 0x4, offset = 0x4, fixed_abs, tag = 'smem constant byte address 0x4 - core index']
  #allocation1 [shape = 'u32[72,128]{1,0:T(1,128)}', space=vmem, size = 0x9000, scoped, tag = 'internal scratch']
  %s0 = inlined_call_operand.vmem [shape: f32[48,64], index: 0, kind: input, shape index: {}]
  %s1 = inlined_call_operand.vmem [shape: f32[64,40], index: 1, kind: input, shape index: {}]
  %s2 = inlined_call_operand.vmem [shape: f32[1,40], index: 2, kind: input, shape index: {}]
  %s3 = inlined_call_operand.vmem [shape: f32[48,40], index: 3, kind: output, shape index: {0}]
  %s4 = inlined_call_operand.vmem [shape: f32[2,40], index: 4, kind: output, shape index: {1}]
  %5 = xla_tuple %s3, %s4
  %s6 = sld [smem:[#allocation0]]
  $region57: #{_lambda_.19} parent=0
    _
  %s8 = ssub.s32 1, %s6
  %s9 = scalar_select 0, %s8, %s6
  loop: start=0, step=1, limit=4
  $region2: #{_lambda_.19} parent=0 // loop_pre_header
    _
  $region3: #{_lambda_.19} parent=0 // loop_header
    %s11 = sphi 0, %s15
    %p12 = scmp.ge.s32.totalorder %s11, 4
    %s21 = sphi 0, %s23
    %s24 = sphi 0, %s21
    %s25 = sphi 0, %s24
    %s41 = sphi 0, %s25
    %s45 = sphi 0, %s45
    %s47 = sphi 0, %s45
    %s48 = sphi 0, %s47
    %s62 = sphi 0, %s48
    %s66 = sphi 0, %s66
    %s68 = sphi 0, %s66
    %s69 = sphi 0, %s68
    %s83 = sphi 0, %s69
    %s89 = sphi 0, %s91
    %s92 = sphi 0, %s89
    %s93 = sphi 0, %s92
    %s109 = sphi 0, %s93
    %s113 = sphi 0, %s113
    %s115 = sphi 0, %s113
    %s116 = sphi 0, %s115
    %s130 = sphi 0, %s116
  $region4: #{_lambda_.19} parent=0 // loop_header_branch
    %14 = sbr.rel (%p12) target = $region8
  $region5: #{_lambda_.19} parent=0 // loop_body
    %s16 = ssub.s32 %s11, 1
    %s17 = ssub.s32 %s11, 2
    %s18 = sadd.s32 %s11, 1
    %s19 = ssub.s32 %s11, %s18
    %p20 = scmp.eq.s32.totalorder %s19, 0
    %s22 = sadd.s32 %s21, 1
    %s23 = scalar_select %p20, %s21, %s22
    %p26 = pneg %p20
    %p27 = scmp.eq.s32.totalorder %s11, 1
    %p28 = por %p26, %p27
    %p29 = scmp.ne.s32.totalorder %s21, %s24
    %p30 = scmp.eq.s32.totalorder %s11, 0
    %p31 = por %p29, %p30
    %p32 = scmp.ne.s32.totalorder %s21, %s24
    %p33 = scmp.eq.s32.totalorder %s16, 1
    %p34 = por %p32, %p33
    %p35 = scmp.ne.s32.totalorder %s24, %s25
    %p36 = scmp.eq.s32.totalorder %s16, 0
    %p37 = por %p35, %p36
    %p38 = scmp.ne.s32.totalorder %s24, %s25
    %p39 = scmp.eq.s32.totalorder %s17, 1
    %p40 = por %p38, %p39
    %p42 = scmp.ne.s32.totalorder %s25, %s41
    %p43 = scmp.eq.s32.totalorder %s17, 0
    %p44 = por %p42, %p43
    %s46 = sadd.s32 %s45, 1
    %p49 = scmp.eq.s32.totalorder %s11, 1
    %p50 = scmp.ne.s32.totalorder %s45, %s47
    %p51 = scmp.eq.s32.totalorder %s11, 0
    %p52 = por %p50, %p51
    %p53 = scmp.ne.s32.totalorder %s45, %s47
    %p54 = scmp.eq.s32.totalorder %s16, 1
    %p55 = por %p53, %p54
    %p56 = scmp.ne.s32.totalorder %s47, %s48
    %p57 = scmp.eq.s32.totalorder %s16, 0
    %p58 = por %p56, %p57
    %p59 = scmp.ne.s32.totalorder %s47, %s48
    %p60 = scmp.eq.s32.totalorder %s17, 1
    %p61 = por %p59, %p60
    %p63 = scmp.ne.s32.totalorder %s48, %s62
    %p64 = scmp.eq.s32.totalorder %s17, 0
    %p65 = por %p63, %p64
    %s67 = sadd.s32 %s66, 1
    %p70 = scmp.eq.s32.totalorder %s11, 1
    %p71 = scmp.ne.s32.totalorder %s66, %s68
    %p72 = scmp.eq.s32.totalorder %s11, 0
    %p73 = por %p71, %p72
    %p74 = scmp.ne.s32.totalorder %s66, %s68
    %p75 = scmp.eq.s32.totalorder %s16, 1
    %p76 = por %p74, %p75
    %p77 = scmp.ne.s32.totalorder %s68, %s69
    %p78 = scmp.eq.s32.totalorder %s16, 0
    %p79 = por %p77, %p78
    %p80 = scmp.ne.s32.totalorder %s68, %s69
    %p81 = scmp.eq.s32.totalorder %s17, 1
    %p82 = por %p80, %p81
    %p84 = scmp.ne.s32.totalorder %s69, %s83
    %p85 = scmp.eq.s32.totalorder %s17, 0
    %p86 = por %p84, %p85
    %s87 = ssub.s32 %s11, %s18
    %p88 = scmp.eq.s32.totalorder %s87, 0
    %s90 = sadd.s32 %s89, 1
    %s91 = scalar_select %p88, %s89, %s90
    %p94 = pneg %p88
    %p95 = scmp.eq.s32.totalorder %s11, 1
    %p96 = por %p94, %p95
    %p97 = scmp.ne.s32.totalorder %s89, %s92
    %p98 = scmp.eq.s32.totalorder %s11, 0
    %p99 = por %p97, %p98
    %p100 = scmp.ne.s32.totalorder %s89, %s92
    %p101 = scmp.eq.s32.totalorder %s16, 1
    %p102 = por %p100, %p101
    %p103 = scmp.ne.s32.totalorder %s92, %s93
    %p104 = scmp.eq.s32.totalorder %s16, 0
    %p105 = por %p103, %p104
    %p106 = scmp.ne.s32.totalorder %s92, %s93
    %p107 = scmp.eq.s32.totalorder %s17, 1
    %p108 = por %p106, %p107
    %p110 = scmp.ne.s32.totalorder %s93, %s109
    %p111 = scmp.eq.s32.totalorder %s17, 0
    %p112 = por %p110, %p111
    %s114 = sadd.s32 %s113, 1
    %p117 = scmp.eq.s32.totalorder %s11, 1
    %p118 = scmp.ne.s32.totalorder %s113, %s115
    %p119 = scmp.eq.s32.totalorder %s11, 0
    %p120 = por %p118, %p119
    %p121 = scmp.ne.s32.totalorder %s113, %s115
    %p122 = scmp.eq.s32.totalorder %s16, 1
    %p123 = por %p121, %p122
    %p124 = scmp.ne.s32.totalorder %s115, %s116
    %p125 = scmp.eq.s32.totalorder %s16, 0
    %p126 = por %p124, %p125
    %p127 = scmp.ne.s32.totalorder %s115, %s116
    %p128 = scmp.eq.s32.totalorder %s17, 1
    %p129 = por %p127, %p128
    %p131 = scmp.ne.s32.totalorder %s116, %s130
    %p132 = scmp.eq.s32.totalorder %s17, 0
    %p133 = por %p131, %p132
    %p134 = scmp.le.s32.totalorder 1, %s11
    %p135 = scmp.lt.s32.totalorder %s11, 3
    %p136 = pnand %p134, %p135
    %p137 = pneg %p136
    // Predicated region
    $region9: #{_lambda_.19} parent=5 // pred_check
      _
    $region10: #{_lambda_.19} parent=5 // pred_check_branch
      %139 = sbr.rel (%p136) target = $region12
    $region11: #{_lambda_.19} parent=5 // pred_region
      %s140 = ssub.s32 %s11, 1
      // Predicated region
      $region13: #{_lambda_.19} parent=11 // pred_check
        %p141 = pneg %p58
      $region14: #{_lambda_.19} parent=11 // pred_check_branch
        %143 = sbr.rel (%p141) target = $region16
      $region15: #{_lambda_.19} parent=11 // pred_region
        _
      $region16: #{_lambda_.19} parent=11 // pred_fallthru
        _
      // Predicated region
      $region17: #{_lambda_.19} parent=11 // pred_check
        %p144 = pneg %p79
      $region18: #{_lambda_.19} parent=11 // pred_check_branch
        %146 = sbr.rel (%p144) target = $region20
      $region19: #{_lambda_.19} parent=11 // pred_region
        _
      $region20: #{_lambda_.19} parent=11 // pred_fallthru
        _
    $region12: #{_lambda_.19} parent=5 // pred_fallthru
      _
    %p147 = scmp.lt.s32.totalorder %s11, 2
    // Predicated region
    $region21: #{_lambda_.19} parent=5 // pred_check
      %p148 = pneg %p147
    $region22: #{_lambda_.19} parent=5 // pred_check_branch
      %150 = sbr.rel (%p148) target = $region24
    $region23: #{_lambda_.19} parent=5 // pred_region
      // Predicated region
      $region25: #{_lambda_.19} parent=23 // pred_check
        %p151 = pneg %p31
      $region26: #{_lambda_.19} parent=23 // pred_check_branch
        %153 = sbr.rel (%p151) target = $region28
      $region27: #{_lambda_.19} parent=23 // pred_region
        %s154 = smul.u32 3, %s11
        %p155 = scmp.lt.s32.totalorder %s154, 5
        %s156 = scalar_select %p155, %s154, 5
        %s157 = smul.addr %s156, 8
        %s158 = scalar_lea.vmem %s0, %s157
        %s159 = smul.u32 3, %s11
      $region28: #{_lambda_.19} parent=23 // pred_fallthru
        _
    $region24: #{_lambda_.19} parent=5 // pred_fallthru
      _
    %p160 = scmp.le.s32.totalorder 1, %s11
    %p161 = scmp.lt.s32.totalorder %s11, 3
    %p162 = pnand %p160, %p161
    %p163 = pneg %p162
    // Predicated region
    $region29: #{_lambda_.19} parent=5 // pred_check
      _
    $region30: #{_lambda_.19} parent=5 // pred_check_branch
      %165 = sbr.rel (%p162) target = $region32
    $region31: #{_lambda_.19} parent=5 // pred_region
      %s166 = ssub.s32 %s11, 1
      %s167 = smul.u32 3, %s16
      %p168 = scmp.lt.s32.totalorder %s167, 5
      %s169 = scalar_select %p168, %s167, 5
      %s170 = smul.addr %s169, 8
      %s171 = scalar_lea.vmem %s0, %s170
      %p172 = pneg %p37
      %p173 = pneg %p34
      %p174 = pneg %p58
      %p175 = pneg %p55
      %p176 = pneg %p79
      %p177 = pneg %p76
      %p178 = pneg %p105
      %p179 = pneg %p102
      %s180 = smul.u32 3, %s16
      %p181 = scmp.lt.s32.totalorder %s180, 5
      %s182 = scalar_select %p181, %s180, 5
      %s183 = smul.addr %s182, 8
      %s184 = scalar_lea.vmem %s3, %s183
      %p185 = pneg %p126
      %p186 = pneg %p123
      %s187 = smul.u32 3, %s16
      %p188 = scmp.lt.s32.totalorder %s187, 5
      %s189 = scalar_select %p188, %s187, 5
      %s190 = smul.addr %s189, 8
      %s191 = scalar_lea.vmem %s0, %s190
      %s192 = smul.u32 3, %s16
      %s193 = smul.u32 3, %s16
      %p194 = scmp.lt.s32.totalorder %s193, 5
      %s195 = scalar_select %p194, %s193, 5
      %s196 = smul.addr %s195, 8
      %s197 = scalar_lea.vmem %s3, %s196
      %s198 = smul.u32 3, %s16
      %p199 = scmp.eq.s32.totalorder %s16, 0
      // Predicated region
      $region33: #{_lambda_.19} parent=31 // pred_check
        %p200 = pneg %p199
      $region34: #{_lambda_.19} parent=31 // pred_check_branch
        %202 = sbr.rel (%p200) target = $region36
      $region35: #{_lambda_.19} parent=31 // pred_region
        %vm203 = vcmask 320512
        %204 = vst.msk [vmem:[%s4] sm:$0x3] %vm203, 0.0
      $region36: #{_lambda_.19} parent=31 // pred_fallthru
        _
      %v205 = vld [vmem:[%s191] sm:$0xff]
      %v206 = vld [vmem:[%s191 + $0x8] sm:$0xff]
      %v207 = vld [vmem:[%s191 + $0x10] sm:$0xff]
      %v208 = vld [vmem:[%s1] sm:$0xff]
      %v209 = vld [vmem:[%s1 + $0x8] sm:$0xff]
      %v210 = vld [vmem:[%s1 + $0x10] sm:$0xff]
      %v211 = vld [vmem:[%s1 + $0x18] sm:$0xff]
      %v212 = vld [vmem:[%s1 + $0x20] sm:$0xff]
      %v213 = vld [vmem:[%s1 + $0x28] sm:$0xff]
      %v214 = vld [vmem:[%s1 + $0x30] sm:$0xff]
      %v215 = vld [vmem:[%s1 + $0x38] sm:$0xff]
      %v216 = vld [vmem:[%s2] sm:$0x1]
      %v218 = vperm.slane %v216, 0
      %vm220 = vcmask 523264
      %v222 = vsel %vm220, %v205, 0
      %v225 = vsel %vm220, %v206, 0
      %v228 = vsel %vm220, %v207, 0
      %230 = vmatpush.msra.mxu0 0.0
      %231 = vmatpush.msra.mxu0 0.0
      %232 = vmatpush.msra.mxu0 0.0
      %233 = vmatpush.msra.mxu0 0.0
      %234 = vmatpush.msra.mxu0 0.0
      %235 = vmatpush.msra.mxu0 0.0
      %236 = vmatpush.msra.mxu0 0.0
      %237 = vmatpush.msra.mxu0 0.0
      %v238 = vand.u32 %v215, 4294901760
      %239 = vmatpush.msra.mxu0 %v238
      %v240 = vand.u32 %v214, 4294901760
      %241 = vmatpush.msra.mxu0 %v240
      %v242 = vand.u32 %v213, 4294901760
      %243 = vmatpush.msra.mxu0 %v242
      %v244 = vand.u32 %v212, 4294901760
      %245 = vmatpush.msra.mxu0 %v244
      %v246 = vand.u32 %v211, 4294901760
      %247 = vmatpush.msra.mxu0 %v246
      %v248 = vand.u32 %v210, 4294901760
      %249 = vmatpush.msra.mxu0 %v248
      %v250 = vand.u32 %v209, 4294901760
      %251 = vmatpush.msra.mxu0 %v250
      %v252 = vand.u32 %v208, 4294901760
      %253 = vmatpush.msra.mxu0 %v252
      %v254 = vand.u32 %v222, 4294901760
      %v255 = vsub.f32 %v222, %v254
      %v256 = vand.u32 %v255, 4294901760
      %v257 = vsub.f32 %v255, %v256
      %v258 = vand.u32 %v257, 4294901760
      %259 = vmatmul.f32.gmra.mxu0 %v258
      %v260 = vpop.f32.mrf.mxu0
      %v261 = vadd.f32 %v218, %v260
      %v262 = vand.u32 %v225, 4294901760
      %v263 = vsub.f32 %v225, %v262
      %v264 = vand.u32 %v263, 4294901760
      %v265 = vsub.f32 %v263, %v264
      %v266 = vand.u32 %v265, 4294901760
      %267 = vmatmul.f32.gmra.mxu0 %v266
      %v268 = vpop.f32.mrf.mxu0
      %v269 = vadd.f32 %v218, %v268
      %v270 = vand.u32 %v228, 4294901760
      %v271 = vsub.f32 %v228, %v270
      %v272 = vand.u32 %v271, 4294901760
      %v273 = vsub.f32 %v271, %v272
      %v274 = vand.u32 %v273, 4294901760
      %275 = vmatmul.f32.gmra.mxu0 %v274
      %v276 = vpop.f32.mrf.mxu0
      %v277 = vadd.f32 %v218, %v276
      %278 = vdwg.mxu0
      %279 = vmatpush.msra.mxu0 0.0
      %280 = vmatpush.msra.mxu0 0.0
      %281 = vmatpush.msra.mxu0 0.0
      %282 = vmatpush.msra.mxu0 0.0
      %283 = vmatpush.msra.mxu0 0.0
      %284 = vmatpush.msra.mxu0 0.0
      %285 = vmatpush.msra.mxu0 0.0
      %286 = vmatpush.msra.mxu0 0.0
      %v287 = vand.u32 %v215, 4294901760
      %v288 = vsub.f32 %v215, %v287
      %v289 = vand.u32 %v288, 4294901760
      %v290 = vsub.f32 %v288, %v289
      %v291 = vand.u32 %v290, 4294901760
      %292 = vmatpush.msra.mxu0 %v291
      %v293 = vand.u32 %v214, 4294901760
      %v294 = vsub.f32 %v214, %v293
      %v295 = vand.u32 %v294, 4294901760
      %v296 = vsub.f32 %v294, %v295
      %v297 = vand.u32 %v296, 4294901760
      %298 = vmatpush.msra.mxu0 %v297
      %v299 = vand.u32 %v213, 4294901760
      %v300 = vsub.f32 %v213, %v299
      %v301 = vand.u32 %v300, 4294901760
      %v302 = vsub.f32 %v300, %v301
      %v303 = vand.u32 %v302, 4294901760
      %304 = vmatpush.msra.mxu0 %v303
      %v305 = vand.u32 %v212, 4294901760
      %v306 = vsub.f32 %v212, %v305
      %v307 = vand.u32 %v306, 4294901760
      %v308 = vsub.f32 %v306, %v307
      %v309 = vand.u32 %v308, 4294901760
      %310 = vmatpush.msra.mxu0 %v309
      %v311 = vand.u32 %v211, 4294901760
      %v312 = vsub.f32 %v211, %v311
      %v313 = vand.u32 %v312, 4294901760
      %v314 = vsub.f32 %v312, %v313
      %v315 = vand.u32 %v314, 4294901760
      %316 = vmatpush.msra.mxu0 %v315
      %v317 = vand.u32 %v210, 4294901760
      %v318 = vsub.f32 %v210, %v317
      %v319 = vand.u32 %v318, 4294901760
      %v320 = vsub.f32 %v318, %v319
      %v321 = vand.u32 %v320, 4294901760
      %322 = vmatpush.msra.mxu0 %v321
      %v323 = vand.u32 %v209, 4294901760
      %v324 = vsub.f32 %v209, %v323
      %v325 = vand.u32 %v324, 4294901760
      %v326 = vsub.f32 %v324, %v325
      %v327 = vand.u32 %v326, 4294901760
      %328 = vmatpush.msra.mxu0 %v327
      %v329 = vand.u32 %v208, 4294901760
      %v330 = vsub.f32 %v208, %v329
      %v331 = vand.u32 %v330, 4294901760
      %v332 = vsub.f32 %v330, %v331
      %v333 = vand.u32 %v332, 4294901760
      %334 = vmatpush.msra.mxu0 %v333
      %v335 = vand.u32 %v222, 4294901760
      %336 = vmatmul.f32.gmra.mxu0 %v335
      %v337 = vpop.f32.mrf.mxu0
      %v338 = vadd.f32 %v261, %v337
      %v339 = vand.u32 %v225, 4294901760
      %340 = vmatmul.f32.gmra.mxu0 %v339
      %v341 = vpop.f32.mrf.mxu0
      %v342 = vadd.f32 %v269, %v341
      %v343 = vand.u32 %v228, 4294901760
      %344 = vmatmul.f32.gmra.mxu0 %v343
      %v345 = vpop.f32.mrf.mxu0
      %v346 = vadd.f32 %v277, %v345
      %347 = vdwg.mxu0
      %348 = vmatpush.msra.mxu0 0.0
      %349 = vmatpush.msra.mxu0 0.0
      %350 = vmatpush.msra.mxu0 0.0
      %351 = vmatpush.msra.mxu0 0.0
      %352 = vmatpush.msra.mxu0 0.0
      %353 = vmatpush.msra.mxu0 0.0
      %354 = vmatpush.msra.mxu0 0.0
      %355 = vmatpush.msra.mxu0 0.0
      %v356 = vand.u32 %v215, 4294901760
      %v357 = vsub.f32 %v215, %v356
      %358 = vmatpush.msra.mxu0 %v357
      %v359 = vand.u32 %v214, 4294901760
      %v360 = vsub.f32 %v214, %v359
      %361 = vmatpush.msra.mxu0 %v360
      %v362 = vand.u32 %v213, 4294901760
      %v363 = vsub.f32 %v213, %v362
      %364 = vmatpush.msra.mxu0 %v363
      %v365 = vand.u32 %v212, 4294901760
      %v366 = vsub.f32 %v212, %v365
      %367 = vmatpush.msra.mxu0 %v366
      %v368 = vand.u32 %v211, 4294901760
      %v369 = vsub.f32 %v211, %v368
      %370 = vmatpush.msra.mxu0 %v369
      %v371 = vand.u32 %v210, 4294901760
      %v372 = vsub.f32 %v210, %v371
      %373 = vmatpush.msra.mxu0 %v372
      %v374 = vand.u32 %v209, 4294901760
      %v375 = vsub.f32 %v209, %v374
      %376 = vmatpush.msra.mxu0 %v375
      %v377 = vand.u32 %v208, 4294901760
      %v378 = vsub.f32 %v208, %v377
      %379 = vmatpush.msra.mxu0 %v378
      %v380 = vand.u32 %v222, 4294901760
      %v381 = vsub.f32 %v222, %v380
      %382 = vmatmul.f32.gmra.mxu0 %v381
      %v383 = vpop.f32.mrf.mxu0
      %v384 = vadd.f32 %v338, %v383
      %v385 = vand.u32 %v225, 4294901760
      %v386 = vsub.f32 %v225, %v385
      %387 = vmatmul.f32.gmra.mxu0 %v386
      %v388 = vpop.f32.mrf.mxu0
      %v389 = vadd.f32 %v342, %v388
      %v390 = vand.u32 %v228, 4294901760
      %v391 = vsub.f32 %v228, %v390
      %392 = vmatmul.f32.gmra.mxu0 %v391
      %v393 = vpop.f32.mrf.mxu0
      %v394 = vadd.f32 %v346, %v393
      %395 = vdwg.mxu0
      %396 = vmatpush.msra.mxu0 0.0
      %397 = vmatpush.msra.mxu0 0.0
      %398 = vmatpush.msra.mxu0 0.0
      %399 = vmatpush.msra.mxu0 0.0
      %400 = vmatpush.msra.mxu0 0.0
      %401 = vmatpush.msra.mxu0 0.0
      %402 = vmatpush.msra.mxu0 0.0
      %403 = vmatpush.msra.mxu0 0.0
      %v404 = vand.u32 %v215, 4294901760
      %405 = vmatpush.msra.mxu0 %v404
      %v406 = vand.u32 %v214, 4294901760
      %407 = vmatpush.msra.mxu0 %v406
      %v408 = vand.u32 %v213, 4294901760
      %409 = vmatpush.msra.mxu0 %v408
      %v410 = vand.u32 %v212, 4294901760
      %411 = vmatpush.msra.mxu0 %v410
      %v412 = vand.u32 %v211, 4294901760
      %413 = vmatpush.msra.mxu0 %v412
      %v414 = vand.u32 %v210, 4294901760
      %415 = vmatpush.msra.mxu0 %v414
      %v416 = vand.u32 %v209, 4294901760
      %417 = vmatpush.msra.mxu0 %v416
      %v418 = vand.u32 %v208, 4294901760
      %419 = vmatpush.msra.mxu0 %v418
      %v420 = vand.u32 %v222, 4294901760
      %v421 = vsub.f32 %v222, %v420
      %v422 = vand.u32 %v421, 4294901760
      %423 = vmatmul.f32.gmra.mxu0 %v422
      %v424 = vpop.f32.mrf.mxu0
      %v425 = vadd.f32 %v384, %v424
      %v426 = vand.u32 %v225, 4294901760
      %v427 = vsub.f32 %v225, %v426
      %v428 = vand.u32 %v427, 4294901760
      %429 = vmatmul.f32.gmra.mxu0 %v428
      %v430 = vpop.f32.mrf.mxu0
      %v431 = vadd.f32 %v389, %v430
      %v432 = vand.u32 %v228, 4294901760
      %v433 = vsub.f32 %v228, %v432
      %v434 = vand.u32 %v433, 4294901760
      %435 = vmatmul.f32.gmra.mxu0 %v434
      %v436 = vpop.f32.mrf.mxu0
      %v437 = vadd.f32 %v394, %v436
      %438 = vdwg.mxu0
      %439 = vmatpush.msra.mxu0 0.0
      %440 = vmatpush.msra.mxu0 0.0
      %441 = vmatpush.msra.mxu0 0.0
      %442 = vmatpush.msra.mxu0 0.0
      %443 = vmatpush.msra.mxu0 0.0
      %444 = vmatpush.msra.mxu0 0.0
      %445 = vmatpush.msra.mxu0 0.0
      %446 = vmatpush.msra.mxu0 0.0
      %v447 = vand.u32 %v215, 4294901760
      %v448 = vsub.f32 %v215, %v447
      %v449 = vand.u32 %v448, 4294901760
      %450 = vmatpush.msra.mxu0 %v449
      %v451 = vand.u32 %v214, 4294901760
      %v452 = vsub.f32 %v214, %v451
      %v453 = vand.u32 %v452, 4294901760
      %454 = vmatpush.msra.mxu0 %v453
      %v455 = vand.u32 %v213, 4294901760
      %v456 = vsub.f32 %v213, %v455
      %v457 = vand.u32 %v456, 4294901760
      %458 = vmatpush.msra.mxu0 %v457
      %v459 = vand.u32 %v212, 4294901760
      %v460 = vsub.f32 %v212, %v459
      %v461 = vand.u32 %v460, 4294901760
      %462 = vmatpush.msra.mxu0 %v461
      %v463 = vand.u32 %v211, 4294901760
      %v464 = vsub.f32 %v211, %v463
      %v465 = vand.u32 %v464, 4294901760
      %466 = vmatpush.msra.mxu0 %v465
      %v467 = vand.u32 %v210, 4294901760
      %v468 = vsub.f32 %v210, %v467
      %v469 = vand.u32 %v468, 4294901760
      %470 = vmatpush.msra.mxu0 %v469
      %v471 = vand.u32 %v209, 4294901760
      %v472 = vsub.f32 %v209, %v471
      %v473 = vand.u32 %v472, 4294901760
      %474 = vmatpush.msra.mxu0 %v473
      %v475 = vand.u32 %v208, 4294901760
      %v476 = vsub.f32 %v208, %v475
      %v477 = vand.u32 %v476, 4294901760
      %478 = vmatpush.msra.mxu0 %v477
      %v479 = vand.u32 %v222, 4294901760
      %480 = vmatmul.f32.gmra.mxu0 %v479
      %v481 = vpop.f32.mrf.mxu0
      %v482 = vadd.f32 %v425, %v481
      %v483 = vand.u32 %v225, 4294901760
      %484 = vmatmul.f32.gmra.mxu0 %v483
      %v485 = vpop.f32.mrf.mxu0
      %v486 = vadd.f32 %v431, %v485
      %v487 = vand.u32 %v228, 4294901760
      %488 = vmatmul.f32.gmra.mxu0 %v487
      %v489 = vpop.f32.mrf.mxu0
      %v490 = vadd.f32 %v437, %v489
      %491 = vdwg.mxu0
      %492 = vmatpush.msra.mxu0 0.0
      %493 = vmatpush.msra.mxu0 0.0
      %494 = vmatpush.msra.mxu0 0.0
      %495 = vmatpush.msra.mxu0 0.0
      %496 = vmatpush.msra.mxu0 0.0
      %497 = vmatpush.msra.mxu0 0.0
      %498 = vmatpush.msra.mxu0 0.0
      %499 = vmatpush.msra.mxu0 0.0
      %v500 = vand.u32 %v215, 4294901760
      %501 = vmatpush.msra.mxu0 %v500
      %v502 = vand.u32 %v214, 4294901760
      %503 = vmatpush.msra.mxu0 %v502
      %v504 = vand.u32 %v213, 4294901760
      %505 = vmatpush.msra.mxu0 %v504
      %v506 = vand.u32 %v212, 4294901760
      %507 = vmatpush.msra.mxu0 %v506
      %v508 = vand.u32 %v211, 4294901760
      %509 = vmatpush.msra.mxu0 %v508
      %v510 = vand.u32 %v210, 4294901760
      %511 = vmatpush.msra.mxu0 %v510
      %v512 = vand.u32 %v209, 4294901760
      %513 = vmatpush.msra.mxu0 %v512
      %v514 = vand.u32 %v208, 4294901760
      %515 = vmatpush.msra.mxu0 %v514
      %v516 = vand.u32 %v222, 4294901760
      %517 = vmatmul.f32.gmra.mxu0 %v516
      %v518 = vpop.f32.mrf.mxu0
      %v519 = vadd.f32 %v482, %v518
      %v520 = vand.u32 %v225, 4294901760
      %521 = vmatmul.f32.gmra.mxu0 %v520
      %v522 = vpop.f32.mrf.mxu0
      %v523 = vadd.f32 %v486, %v522
      %v524 = vand.u32 %v228, 4294901760
      %525 = vmatmul.f32.gmra.mxu0 %v524
      %v526 = vpop.f32.mrf.mxu0
      %v527 = vadd.f32 %v490, %v526
      %528 = vdwg.mxu0
      %vm529 = vcmp.gt.f32.partialorder %v519, 0.0
      %vm530 = vcmp.gt.f32.partialorder %v523, 0.0
      %vm531 = vcmp.gt.f32.partialorder %v527, 0.0
      %v532 = vmin.f32 %v519, 0.0
      %v533 = vmin.f32 %v523, 0.0
      %v534 = vmin.f32 %v527, 0.0
      %v535 = vmul.f32 %v532, 1.442695
      %v536 = vpow.pop %v535
      %v537 = vmul.f32 %v533, 1.442695
      %v538 = vpow.pop %v537
      %v539 = vmul.f32 %v534, 1.442695
      %v540 = vpow.pop %v539
      %v541 = vsub.f32 %v536, 1.0
      %v542 = vsub.f32 %v538, 1.0
      %v543 = vsub.f32 %v540, 1.0
      %v544 = vsel %vm529, %v519, %v541
      %v545 = vsel %vm530, %v523, %v542
      %v546 = vsel %vm531, %v527, %v543
      %vm547 = vcmask 326656
      %548 = vst.msk [vmem:[%s197] sm:$0xff] %vm547, %v544
      %549 = vst.msk [vmem:[%s197 + $0x8] sm:$0xff] %vm547, %v545
      %550 = vst.msk [vmem:[%s197 + $0x10] sm:$0xff] %vm547, %v546
      %s551 = smul.u32 %s16, 24
      %v552 = vlaneseq
      %v553 = vshrl.u32 %v552, 7
      %v554 = vadd.s32 %v553, 8
      %v555 = vadd.s32 %v553, 16
      %v556 = vstv %s551
      %v557 = vadd.s32 %v556, %v553
      %v558 = vadd.s32 %v556, %v554
      %v559 = vadd.s32 %v556, %v555
      %vm560 = vcmp.lt.s32.totalorder %v557, 32
      %vm561 = vcmp.lt.s32.totalorder %v558, 32
      %vm562 = vcmp.lt.s32.totalorder %v559, 32
      %v563 = vsel %vm560, 1, 0
      %v564 = vsel %vm561, 1, 0
      %v565 = vsel %vm562, 1, 0
      %v566 = vcvt.s32.f32 %v563
      %v567 = vcvt.s32.f32 %v564
      %v568 = vcvt.s32.f32 %v565
      %v569 = vmul.f32 %v544, %v566
      %v570 = vmul.f32 %v545, %v567
      %v571 = vmul.f32 %v546, %v568
      %v572 = vld [vmem:[%s4] sm:$0x1]
      %v573 = vsel %vm547, %v569, 0.0
      %v574 = vsel %vm547, %v570, 0.0
      %v575 = vadd.f32 %v573, %v574
      %v576 = vsel %vm547, %v571, 0.0
      %v577 = vadd.f32 %v575, %v576
      %v578 = vrot.slane %v577, 4
      %v579 = vadd.f32 %v577, %v578
      %v580 = vrot.slane %v579, 2
      %v581 = vadd.f32 %v579, %v580
      %v582 = vrot.slane %v581, 1
      %v583 = vadd.f32 %v581, %v582
      %v584 = vadd.f32 %v572, %v583
      %vm585 = vcmask 319488
      %586 = vst.msk [vmem:[%s4] sm:$0x1] %vm585, %v584
      %v587 = vld [vmem:[%s4 + $0x1] sm:$0x1]
      %v588 = vmul.f32 %v569, %v544
      %v589 = vmul.f32 %v570, %v545
      %v590 = vmul.f32 %v571, %v546
      %v591 = vsel %vm547, %v588, 0.0
      %v592 = vsel %vm547, %v589, 0.0
      %v593 = vadd.f32 %v591, %v592
      %v594 = vsel %vm547, %v590, 0.0
      %v595 = vadd.f32 %v593, %v594
      %v596 = vrot.slane %v595, 4
      %v597 = vadd.f32 %v595, %v596
      %v598 = vrot.slane %v597, 2
      %v599 = vadd.f32 %v597, %v598
      %v600 = vrot.slane %v599, 1
      %v601 = vadd.f32 %v599, %v600
      %v602 = vadd.f32 %v587, %v601
      %603 = vst.msk [vmem:[%s4 + $0x1] sm:$0x1] %vm585, %v602
      %s604 = smul.u32 3, %s16
      %p605 = scmp.lt.s32.totalorder %s604, 5
      %s606 = scalar_select %p605, %s604, 5
      %s607 = smul.addr %s606, 8
      %s608 = scalar_lea.vmem %s3, %s607
      // Predicated region
      $region37: #{_lambda_.19} parent=31 // pred_check
        %p609 = pneg %p102
      $region38: #{_lambda_.19} parent=31 // pred_check_branch
        %611 = sbr.rel (%p609) target = $region40
      $region39: #{_lambda_.19} parent=31 // pred_region
        %s612 = smul.u32 3, %s16
      $region40: #{_lambda_.19} parent=31 // pred_fallthru
        _
      // Predicated region
      $region41: #{_lambda_.19} parent=31 // pred_check
        %p613 = pneg %p123
      $region42: #{_lambda_.19} parent=31 // pred_check_branch
        %615 = sbr.rel (%p613) target = $region44
      $region43: #{_lambda_.19} parent=31 // pred_region
        _
      $region44: #{_lambda_.19} parent=31 // pred_fallthru
        _
      // Predicated region
      $region45: #{_lambda_.19} parent=31 // pred_check
        %p616 = pneg %p123
      $region46: #{_lambda_.19} parent=31 // pred_check_branch
        %618 = sbr.rel (%p616) target = $region48
      $region47: #{_lambda_.19} parent=31 // pred_region
        _
      $region48: #{_lambda_.19} parent=31 // pred_fallthru
        _
    $region32: #{_lambda_.19} parent=5 // pred_fallthru
      _
    %p619 = scmp.le.s32.totalorder 2, %s11
    // Predicated region
    $region49: #{_lambda_.19} parent=5 // pred_check
      %p620 = pneg %p619
    $region50: #{_lambda_.19} parent=5 // pred_check_branch
      %622 = sbr.rel (%p620) target = $region52
    $region51: #{_lambda_.19} parent=5 // pred_region
      %s623 = ssub.s32 %s11, 2
      // Predicated region
      $region53: #{_lambda_.19} parent=51 // pred_check
        %p624 = pneg %p108
      $region54: #{_lambda_.19} parent=51 // pred_check_branch
        %626 = sbr.rel (%p624) target = $region56
      $region55: #{_lambda_.19} parent=51 // pred_region
        %s627 = smul.u32 3, %s17
        %p628 = scmp.lt.s32.totalorder %s627, 5
        %s629 = scalar_select %p628, %s627, 5
        %s630 = smul.addr %s629, 8
        %s631 = scalar_lea.vmem %s3, %s630
      $region56: #{_lambda_.19} parent=51 // pred_fallthru
        _
    $region52: #{_lambda_.19} parent=5 // pred_fallthru
      _
  $region6: #{_lambda_.19} parent=0 // loop_footer
    %s15 = sadd.s32 1, %s11
  $region7: #{_lambda_.19} parent=0 // loop_footer_branch
    %10 = sbr.rel target = $region3
  $region8: #{_lambda_.19} parent=0 // loop_exit
    _

// kernel: _lambda_.22
$region0: #{_lambda_.22}
  #allocation0 [shape = 'u32[]', space=smem, size = 0x4, offset = 0x4, fixed_abs, tag = 'smem constant byte address 0x4 - core index']
  #allocation1 [shape = 'u32[72,128]{1,0:T(1,128)}', space=vmem, size = 0x9000, scoped, tag = 'internal scratch']
  %s0 = inlined_call_operand.vmem [shape: f32[48,20], index: 0, kind: input, shape index: {}]
  %s1 = inlined_call_operand.vmem [shape: f32[2,20], index: 1, kind: input, shape index: {}]
  %s2 = inlined_call_operand.vmem [shape: f32[1,20], index: 2, kind: input, shape index: {}]
  %s3 = inlined_call_operand.vmem [shape: f32[1,20], index: 3, kind: input, shape index: {}]
  %s4 = inlined_call_operand.vmem [shape: f32[48,20], index: 4, kind: output, shape index: {}]
  %s5 = sld [smem:[#allocation0]]
  $region49: #{_lambda_.22} parent=0
    _
  %s7 = ssub.s32 1, %s5
  %s8 = scalar_select 0, %s7, %s5
  loop: start=0, step=1, limit=4
  $region2: #{_lambda_.22} parent=0 // loop_pre_header
    _
  $region3: #{_lambda_.22} parent=0 // loop_header
    %s10 = sphi 0, %s14
    %p11 = scmp.ge.s32.totalorder %s10, 4
    %s20 = sphi 0, %s22
    %s23 = sphi 0, %s20
    %s24 = sphi 0, %s23
    %s40 = sphi 0, %s24
    %s44 = sphi 0, %s44
    %s46 = sphi 0, %s44
    %s47 = sphi 0, %s46
    %s61 = sphi 0, %s47
    %s65 = sphi 0, %s65
    %s67 = sphi 0, %s65
    %s68 = sphi 0, %s67
    %s82 = sphi 0, %s68
    %s86 = sphi 0, %s86
    %s88 = sphi 0, %s86
    %s89 = sphi 0, %s88
    %s103 = sphi 0, %s89
    %s109 = sphi 0, %s111
    %s112 = sphi 0, %s109
    %s113 = sphi 0, %s112
    %s129 = sphi 0, %s113
  $region4: #{_lambda_.22} parent=0 // loop_header_branch
    %13 = sbr.rel (%p11) target = $region8
  $region5: #{_lambda_.22} parent=0 // loop_body
    %s15 = ssub.s32 %s10, 1
    %s16 = ssub.s32 %s10, 2
    %s17 = sadd.s32 %s10, 1
    %s18 = ssub.s32 %s10, %s17
    %p19 = scmp.eq.s32.totalorder %s18, 0
    %s21 = sadd.s32 %s20, 1
    %s22 = scalar_select %p19, %s20, %s21
    %p25 = pneg %p19
    %p26 = scmp.eq.s32.totalorder %s10, 1
    %p27 = por %p25, %p26
    %p28 = scmp.ne.s32.totalorder %s20, %s23
    %p29 = scmp.eq.s32.totalorder %s10, 0
    %p30 = por %p28, %p29
    %p31 = scmp.ne.s32.totalorder %s20, %s23
    %p32 = scmp.eq.s32.totalorder %s15, 1
    %p33 = por %p31, %p32
    %p34 = scmp.ne.s32.totalorder %s23, %s24
    %p35 = scmp.eq.s32.totalorder %s15, 0
    %p36 = por %p34, %p35
    %p37 = scmp.ne.s32.totalorder %s23, %s24
    %p38 = scmp.eq.s32.totalorder %s16, 1
    %p39 = por %p37, %p38
    %p41 = scmp.ne.s32.totalorder %s24, %s40
    %p42 = scmp.eq.s32.totalorder %s16, 0
    %p43 = por %p41, %p42
    %s45 = sadd.s32 %s44, 1
    %p48 = scmp.eq.s32.totalorder %s10, 1
    %p49 = scmp.ne.s32.totalorder %s44, %s46
    %p50 = scmp.eq.s32.totalorder %s10, 0
    %p51 = por %p49, %p50
    %p52 = scmp.ne.s32.totalorder %s44, %s46
    %p53 = scmp.eq.s32.totalorder %s15, 1
    %p54 = por %p52, %p53
    %p55 = scmp.ne.s32.totalorder %s46, %s47
    %p56 = scmp.eq.s32.totalorder %s15, 0
    %p57 = por %p55, %p56
    %p58 = scmp.ne.s32.totalorder %s46, %s47
    %p59 = scmp.eq.s32.totalorder %s16, 1
    %p60 = por %p58, %p59
    %p62 = scmp.ne.s32.totalorder %s47, %s61
    %p63 = scmp.eq.s32.totalorder %s16, 0
    %p64 = por %p62, %p63
    %s66 = sadd.s32 %s65, 1
    %p69 = scmp.eq.s32.totalorder %s10, 1
    %p70 = scmp.ne.s32.totalorder %s65, %s67
    %p71 = scmp.eq.s32.totalorder %s10, 0
    %p72 = por %p70, %p71
    %p73 = scmp.ne.s32.totalorder %s65, %s67
    %p74 = scmp.eq.s32.totalorder %s15, 1
    %p75 = por %p73, %p74
    %p76 = scmp.ne.s32.totalorder %s67, %s68
    %p77 = scmp.eq.s32.totalorder %s15, 0
    %p78 = por %p76, %p77
    %p79 = scmp.ne.s32.totalorder %s67, %s68
    %p80 = scmp.eq.s32.totalorder %s16, 1
    %p81 = por %p79, %p80
    %p83 = scmp.ne.s32.totalorder %s68, %s82
    %p84 = scmp.eq.s32.totalorder %s16, 0
    %p85 = por %p83, %p84
    %s87 = sadd.s32 %s86, 1
    %p90 = scmp.eq.s32.totalorder %s10, 1
    %p91 = scmp.ne.s32.totalorder %s86, %s88
    %p92 = scmp.eq.s32.totalorder %s10, 0
    %p93 = por %p91, %p92
    %p94 = scmp.ne.s32.totalorder %s86, %s88
    %p95 = scmp.eq.s32.totalorder %s15, 1
    %p96 = por %p94, %p95
    %p97 = scmp.ne.s32.totalorder %s88, %s89
    %p98 = scmp.eq.s32.totalorder %s15, 0
    %p99 = por %p97, %p98
    %p100 = scmp.ne.s32.totalorder %s88, %s89
    %p101 = scmp.eq.s32.totalorder %s16, 1
    %p102 = por %p100, %p101
    %p104 = scmp.ne.s32.totalorder %s89, %s103
    %p105 = scmp.eq.s32.totalorder %s16, 0
    %p106 = por %p104, %p105
    %s107 = ssub.s32 %s10, %s17
    %p108 = scmp.eq.s32.totalorder %s107, 0
    %s110 = sadd.s32 %s109, 1
    %s111 = scalar_select %p108, %s109, %s110
    %p114 = pneg %p108
    %p115 = scmp.eq.s32.totalorder %s10, 1
    %p116 = por %p114, %p115
    %p117 = scmp.ne.s32.totalorder %s109, %s112
    %p118 = scmp.eq.s32.totalorder %s10, 0
    %p119 = por %p117, %p118
    %p120 = scmp.ne.s32.totalorder %s109, %s112
    %p121 = scmp.eq.s32.totalorder %s15, 1
    %p122 = por %p120, %p121
    %p123 = scmp.ne.s32.totalorder %s112, %s113
    %p124 = scmp.eq.s32.totalorder %s15, 0
    %p125 = por %p123, %p124
    %p126 = scmp.ne.s32.totalorder %s112, %s113
    %p127 = scmp.eq.s32.totalorder %s16, 1
    %p128 = por %p126, %p127
    %p130 = scmp.ne.s32.totalorder %s113, %s129
    %p131 = scmp.eq.s32.totalorder %s16, 0
    %p132 = por %p130, %p131
    %p133 = scmp.le.s32.totalorder 1, %s10
    %p134 = scmp.lt.s32.totalorder %s10, 3
    %p135 = pnand %p133, %p134
    %p136 = pneg %p135
    // Predicated region
    $region9: #{_lambda_.22} parent=5 // pred_check
      _
    $region10: #{_lambda_.22} parent=5 // pred_check_branch
      %138 = sbr.rel (%p135) target = $region12
    $region11: #{_lambda_.22} parent=5 // pred_region
      %s139 = ssub.s32 %s10, 1
      // Predicated region
      $region13: #{_lambda_.22} parent=11 // pred_check
        %p140 = pneg %p57
      $region14: #{_lambda_.22} parent=11 // pred_check_branch
        %142 = sbr.rel (%p140) target = $region16
      $region15: #{_lambda_.22} parent=11 // pred_region
        _
      $region16: #{_lambda_.22} parent=11 // pred_fallthru
        _
      // Predicated region
      $region17: #{_lambda_.22} parent=11 // pred_check
        %p143 = pneg %p78
      $region18: #{_lambda_.22} parent=11 // pred_check_branch
        %145 = sbr.rel (%p143) target = $region20
      $region19: #{_lambda_.22} parent=11 // pred_region
        _
      $region20: #{_lambda_.22} parent=11 // pred_fallthru
        _
      // Predicated region
      $region21: #{_lambda_.22} parent=11 // pred_check
        %p146 = pneg %p99
      $region22: #{_lambda_.22} parent=11 // pred_check_branch
        %148 = sbr.rel (%p146) target = $region24
      $region23: #{_lambda_.22} parent=11 // pred_region
        _
      $region24: #{_lambda_.22} parent=11 // pred_fallthru
        _
    $region12: #{_lambda_.22} parent=5 // pred_fallthru
      _
    %p149 = scmp.lt.s32.totalorder %s10, 2
    // Predicated region
    $region25: #{_lambda_.22} parent=5 // pred_check
      %p150 = pneg %p149
    $region26: #{_lambda_.22} parent=5 // pred_check_branch
      %152 = sbr.rel (%p150) target = $region28
    $region27: #{_lambda_.22} parent=5 // pred_region
      // Predicated region
      $region29: #{_lambda_.22} parent=27 // pred_check
        %p153 = pneg %p30
      $region30: #{_lambda_.22} parent=27 // pred_check_branch
        %155 = sbr.rel (%p153) target = $region32
      $region31: #{_lambda_.22} parent=27 // pred_region
        %s156 = smul.u32 3, %s10
        %p157 = scmp.lt.s32.totalorder %s156, 5
        %s158 = scalar_select %p157, %s156, 5
        %s159 = smul.addr %s158, 8
        %s160 = scalar_lea.vmem %s0, %s159
        %s161 = smul.u32 3, %s10
      $region32: #{_lambda_.22} parent=27 // pred_fallthru
        _
    $region28: #{_lambda_.22} parent=5 // pred_fallthru
      _
    %p162 = scmp.le.s32.totalorder 1, %s10
    %p163 = scmp.lt.s32.totalorder %s10, 3
    %p164 = pnand %p162, %p163
    %p165 = pneg %p164
    // Predicated region
    $region33: #{_lambda_.22} parent=5 // pred_check
      _
    $region34: #{_lambda_.22} parent=5 // pred_check_branch
      %167 = sbr.rel (%p164) target = $region36
    $region35: #{_lambda_.22} parent=5 // pred_region
      %s168 = ssub.s32 %s10, 1
      %s169 = smul.u32 3, %s15
      %p170 = scmp.lt.s32.totalorder %s169, 5
      %s171 = scalar_select %p170, %s169, 5
      %s172 = smul.addr %s171, 8
      %s173 = scalar_lea.vmem %s0, %s172
      %p174 = pneg %p36
      %p175 = pneg %p33
      %p176 = pneg %p57
      %p177 = pneg %p54
      %p178 = pneg %p78
      %p179 = pneg %p75
      %p180 = pneg %p99
      %p181 = pneg %p96
      %p182 = pneg %p125
      %p183 = pneg %p122
      %s184 = smul.u32 3, %s15
      %p185 = scmp.lt.s32.totalorder %s184, 5
      %s186 = scalar_select %p185, %s184, 5
      %s187 = smul.addr %s186, 8
      %s188 = scalar_lea.vmem %s4, %s187
      %s189 = smul.u32 3, %s15
      %p190 = scmp.lt.s32.totalorder %s189, 5
      %s191 = scalar_select %p190, %s189, 5
      %s192 = smul.addr %s191, 8
      %s193 = scalar_lea.vmem %s0, %s192
      %s194 = smul.u32 3, %s15
      %s195 = smul.u32 3, %s15
      %p196 = scmp.lt.s32.totalorder %s195, 5
      %s197 = scalar_select %p196, %s195, 5
      %s198 = smul.addr %s197, 8
      %s199 = scalar_lea.vmem %s4, %s198
      %s200 = smul.u32 3, %s15
      %v201 = vld [vmem:[%s1] sm:$0x1]
      %v202 = vmul.f32 %v201, 0.03125
      %v203 = vld [vmem:[%s1 + $0x1] sm:$0x1]
      %v204 = vmul.f32 %v203, 0.03125
      %v205 = vmul.f32 %v202, %v202
      %v206 = vsub.f32 %v204, %v205
      %v207 = vmax.f32 %v206, 0.0
      %v208 = vld [vmem:[%s2] sm:$0x1]
      %v209 = vadd.f32 %v207, 1e-05
      %v210 = vrsqrt.pop %v209
      %v211 = vmul.f32 %v210, %v209
      %v212 = vmul.f32 %v211, %v210
      %v213 = vmul.f32 0.5, %v212
      %v214 = vsub.f32 1.5, %v213
      %v215 = vmul.f32 %v210, %v214
      %vm216 = vweird.f32 %v209
      %vm217 = vweird.f32 %v210
      %vm218 = vmor %vm216, %vm217
      %v219 = vsel %vm218, %v210, %v215
      %v220 = vmul.f32 %v208, %v219
      %v221 = vld [vmem:[%s193] sm:$0xff]
      %v222 = vld [vmem:[%s193 + $0x8] sm:$0xff]
      %v223 = vld [vmem:[%s193 + $0x10] sm:$0xff]
      %v224 = vperm.slane %v202, 0
      %v225 = vsub.f32 %v221, %v224
      %v226 = vsub.f32 %v222, %v224
      %v227 = vsub.f32 %v223, %v224
      %v229 = vperm.slane %v220, 0
      %v231 = vmul.f32 %v225, %v229
      %v232 = vmul.f32 %v226, %v229
      %v233 = vmul.f32 %v227, %v229
      %v234 = vld [vmem:[%s3] sm:$0x1]
      %v236 = vperm.slane %v234, 0
      %v238 = vadd.f32 %v231, %v236
      %v239 = vadd.f32 %v232, %v236
      %v240 = vadd.f32 %v233, %v236
      %vm241 = vcmask 162816
      %242 = vst.msk [vmem:[%s199] sm:$0xff] %vm241, %v238
      %243 = vst.msk [vmem:[%s199 + $0x8] sm:$0xff] %vm241, %v239
      %244 = vst.msk [vmem:[%s199 + $0x10] sm:$0xff] %vm241, %v240
      %s245 = smul.u32 3, %s15
      %p246 = scmp.lt.s32.totalorder %s245, 5
      %s247 = scalar_select %p246, %s245, 5
      %s248 = smul.addr %s247, 8
      %s249 = scalar_lea.vmem %s4, %s248
      // Predicated region
      $region37: #{_lambda_.22} parent=35 // pred_check
        %p250 = pneg %p122
      $region38: #{_lambda_.22} parent=35 // pred_check_branch
        %252 = sbr.rel (%p250) target = $region40
      $region39: #{_lambda_.22} parent=35 // pred_region
        %s253 = smul.u32 3, %s15
      $region40: #{_lambda_.22} parent=35 // pred_fallthru
        _
    $region36: #{_lambda_.22} parent=5 // pred_fallthru
      _
    %p254 = scmp.le.s32.totalorder 2, %s10
    // Predicated region
    $region41: #{_lambda_.22} parent=5 // pred_check
      %p255 = pneg %p254
    $region42: #{_lambda_.22} parent=5 // pred_check_branch
      %257 = sbr.rel (%p255) target = $region44
    $region43: #{_lambda_.22} parent=5 // pred_region
      %s258 = ssub.s32 %s10, 2
      // Predicated region
      $region45: #{_lambda_.22} parent=43 // pred_check
        %p259 = pneg %p128
      $region46: #{_lambda_.22} parent=43 // pred_check_branch
        %261 = sbr.rel (%p259) target = $region48
      $region47: #{_lambda_.22} parent=43 // pred_region
        %s262 = smul.u32 3, %s16
        %p263 = scmp.lt.s32.totalorder %s262, 5
        %s264 = scalar_select %p263, %s262, 5
        %s265 = smul.addr %s264, 8
        %s266 = scalar_lea.vmem %s4, %s265
      $region48: #{_lambda_.22} parent=43 // pred_fallthru
        _
    $region44: #{_lambda_.22} parent=5 // pred_fallthru
      _
  $region6: #{_lambda_.22} parent=0 // loop_footer
    %s14 = sadd.s32 1, %s10
  $region7: #{_lambda_.22} parent=0 // loop_footer_branch
    %9 = sbr.rel target = $region3
  $region8: #{_lambda_.22} parent=0 // loop_exit
    _

// kernel: _lambda_.21
$region0: #{_lambda_.21}
  #allocation0 [shape = 'u32[]', space=smem, size = 0x4, offset = 0x4, fixed_abs, tag = 'smem constant byte address 0x4 - core index']
  #allocation1 [shape = 'u32[72,128]{1,0:T(1,128)}', space=vmem, size = 0x9000, scoped, tag = 'internal scratch']
  %s0 = inlined_call_operand.vmem [shape: f32[48,320], index: 0, kind: input, shape index: {}]
  %s1 = inlined_call_operand.vmem [shape: f32[320,20], index: 1, kind: input, shape index: {}]
  %s2 = inlined_call_operand.vmem [shape: f32[1,20], index: 2, kind: input, shape index: {}]
  %s3 = inlined_call_operand.vmem [shape: f32[48,20], index: 3, kind: output, shape index: {0}]
  %s4 = inlined_call_operand.vmem [shape: f32[2,20], index: 4, kind: output, shape index: {1}]
  %5 = xla_tuple %s3, %s4
  %s6 = sld [smem:[#allocation0]]
  $region57: #{_lambda_.21} parent=0
    _
  %s8 = ssub.s32 1, %s6
  %s9 = scalar_select 0, %s8, %s6
  loop: start=0, step=1, limit=4
  $region2: #{_lambda_.21} parent=0 // loop_pre_header
    _
  $region3: #{_lambda_.21} parent=0 // loop_header
    %s11 = sphi 0, %s15
    %p12 = scmp.ge.s32.totalorder %s11, 4
    %s21 = sphi 0, %s23
    %s24 = sphi 0, %s21
    %s25 = sphi 0, %s24
    %s41 = sphi 0, %s25
    %s45 = sphi 0, %s45
    %s47 = sphi 0, %s45
    %s48 = sphi 0, %s47
    %s62 = sphi 0, %s48
    %s66 = sphi 0, %s66
    %s68 = sphi 0, %s66
    %s69 = sphi 0, %s68
    %s83 = sphi 0, %s69
    %s89 = sphi 0, %s91
    %s92 = sphi 0, %s89
    %s93 = sphi 0, %s92
    %s109 = sphi 0, %s93
    %s113 = sphi 0, %s113
    %s115 = sphi 0, %s113
    %s116 = sphi 0, %s115
    %s130 = sphi 0, %s116
  $region4: #{_lambda_.21} parent=0 // loop_header_branch
    %14 = sbr.rel (%p12) target = $region8
  $region5: #{_lambda_.21} parent=0 // loop_body
    %s16 = ssub.s32 %s11, 1
    %s17 = ssub.s32 %s11, 2
    %s18 = sadd.s32 %s11, 1
    %s19 = ssub.s32 %s11, %s18
    %p20 = scmp.eq.s32.totalorder %s19, 0
    %s22 = sadd.s32 %s21, 1
    %s23 = scalar_select %p20, %s21, %s22
    %p26 = pneg %p20
    %p27 = scmp.eq.s32.totalorder %s11, 1
    %p28 = por %p26, %p27
    %p29 = scmp.ne.s32.totalorder %s21, %s24
    %p30 = scmp.eq.s32.totalorder %s11, 0
    %p31 = por %p29, %p30
    %p32 = scmp.ne.s32.totalorder %s21, %s24
    %p33 = scmp.eq.s32.totalorder %s16, 1
    %p34 = por %p32, %p33
    %p35 = scmp.ne.s32.totalorder %s24, %s25
    %p36 = scmp.eq.s32.totalorder %s16, 0
    %p37 = por %p35, %p36
    %p38 = scmp.ne.s32.totalorder %s24, %s25
    %p39 = scmp.eq.s32.totalorder %s17, 1
    %p40 = por %p38, %p39
    %p42 = scmp.ne.s32.totalorder %s25, %s41
    %p43 = scmp.eq.s32.totalorder %s17, 0
    %p44 = por %p42, %p43
    %s46 = sadd.s32 %s45, 1
    %p49 = scmp.eq.s32.totalorder %s11, 1
    %p50 = scmp.ne.s32.totalorder %s45, %s47
    %p51 = scmp.eq.s32.totalorder %s11, 0
    %p52 = por %p50, %p51
    %p53 = scmp.ne.s32.totalorder %s45, %s47
    %p54 = scmp.eq.s32.totalorder %s16, 1
    %p55 = por %p53, %p54
    %p56 = scmp.ne.s32.totalorder %s47, %s48
    %p57 = scmp.eq.s32.totalorder %s16, 0
    %p58 = por %p56, %p57
    %p59 = scmp.ne.s32.totalorder %s47, %s48
    %p60 = scmp.eq.s32.totalorder %s17, 1
    %p61 = por %p59, %p60
    %p63 = scmp.ne.s32.totalorder %s48, %s62
    %p64 = scmp.eq.s32.totalorder %s17, 0
    %p65 = por %p63, %p64
    %s67 = sadd.s32 %s66, 1
    %p70 = scmp.eq.s32.totalorder %s11, 1
    %p71 = scmp.ne.s32.totalorder %s66, %s68
    %p72 = scmp.eq.s32.totalorder %s11, 0
    %p73 = por %p71, %p72
    %p74 = scmp.ne.s32.totalorder %s66, %s68
    %p75 = scmp.eq.s32.totalorder %s16, 1
    %p76 = por %p74, %p75
    %p77 = scmp.ne.s32.totalorder %s68, %s69
    %p78 = scmp.eq.s32.totalorder %s16, 0
    %p79 = por %p77, %p78
    %p80 = scmp.ne.s32.totalorder %s68, %s69
    %p81 = scmp.eq.s32.totalorder %s17, 1
    %p82 = por %p80, %p81
    %p84 = scmp.ne.s32.totalorder %s69, %s83
    %p85 = scmp.eq.s32.totalorder %s17, 0
    %p86 = por %p84, %p85
    %s87 = ssub.s32 %s11, %s18
    %p88 = scmp.eq.s32.totalorder %s87, 0
    %s90 = sadd.s32 %s89, 1
    %s91 = scalar_select %p88, %s89, %s90
    %p94 = pneg %p88
    %p95 = scmp.eq.s32.totalorder %s11, 1
    %p96 = por %p94, %p95
    %p97 = scmp.ne.s32.totalorder %s89, %s92
    %p98 = scmp.eq.s32.totalorder %s11, 0
    %p99 = por %p97, %p98
    %p100 = scmp.ne.s32.totalorder %s89, %s92
    %p101 = scmp.eq.s32.totalorder %s16, 1
    %p102 = por %p100, %p101
    %p103 = scmp.ne.s32.totalorder %s92, %s93
    %p104 = scmp.eq.s32.totalorder %s16, 0
    %p105 = por %p103, %p104
    %p106 = scmp.ne.s32.totalorder %s92, %s93
    %p107 = scmp.eq.s32.totalorder %s17, 1
    %p108 = por %p106, %p107
    %p110 = scmp.ne.s32.totalorder %s93, %s109
    %p111 = scmp.eq.s32.totalorder %s17, 0
    %p112 = por %p110, %p111
    %s114 = sadd.s32 %s113, 1
    %p117 = scmp.eq.s32.totalorder %s11, 1
    %p118 = scmp.ne.s32.totalorder %s113, %s115
    %p119 = scmp.eq.s32.totalorder %s11, 0
    %p120 = por %p118, %p119
    %p121 = scmp.ne.s32.totalorder %s113, %s115
    %p122 = scmp.eq.s32.totalorder %s16, 1
    %p123 = por %p121, %p122
    %p124 = scmp.ne.s32.totalorder %s115, %s116
    %p125 = scmp.eq.s32.totalorder %s16, 0
    %p126 = por %p124, %p125
    %p127 = scmp.ne.s32.totalorder %s115, %s116
    %p128 = scmp.eq.s32.totalorder %s17, 1
    %p129 = por %p127, %p128
    %p131 = scmp.ne.s32.totalorder %s116, %s130
    %p132 = scmp.eq.s32.totalorder %s17, 0
    %p133 = por %p131, %p132
    %p134 = scmp.le.s32.totalorder 1, %s11
    %p135 = scmp.lt.s32.totalorder %s11, 3
    %p136 = pnand %p134, %p135
    %p137 = pneg %p136
    // Predicated region
    $region9: #{_lambda_.21} parent=5 // pred_check
      _
    $region10: #{_lambda_.21} parent=5 // pred_check_branch
      %139 = sbr.rel (%p136) target = $region12
    $region11: #{_lambda_.21} parent=5 // pred_region
      %s140 = ssub.s32 %s11, 1
      // Predicated region
      $region13: #{_lambda_.21} parent=11 // pred_check
        %p141 = pneg %p58
      $region14: #{_lambda_.21} parent=11 // pred_check_branch
        %143 = sbr.rel (%p141) target = $region16
      $region15: #{_lambda_.21} parent=11 // pred_region
        _
      $region16: #{_lambda_.21} parent=11 // pred_fallthru
        _
      // Predicated region
      $region17: #{_lambda_.21} parent=11 // pred_check
        %p144 = pneg %p79
      $region18: #{_lambda_.21} parent=11 // pred_check_branch
        %146 = sbr.rel (%p144) target = $region20
      $region19: #{_lambda_.21} parent=11 // pred_region
        _
      $region20: #{_lambda_.21} parent=11 // pred_fallthru
        _
    $region12: #{_lambda_.21} parent=5 // pred_fallthru
      _
    %p147 = scmp.lt.s32.totalorder %s11, 2
    // Predicated region
    $region21: #{_lambda_.21} parent=5 // pred_check
      %p148 = pneg %p147
    $region22: #{_lambda_.21} parent=5 // pred_check_branch
      %150 = sbr.rel (%p148) target = $region24
    $region23: #{_lambda_.21} parent=5 // pred_region
      // Predicated region
      $region25: #{_lambda_.21} parent=23 // pred_check
        %p151 = pneg %p31
      $region26: #{_lambda_.21} parent=23 // pred_check_branch
        %153 = sbr.rel (%p151) target = $region28
      $region27: #{_lambda_.21} parent=23 // pred_region
        %s154 = smul.u32 3, %s11
        %p155 = scmp.lt.s32.totalorder %s154, 5
        %s156 = scalar_select %p155, %s154, 5
        %s157 = smul.addr %s156, 3
        %s158 = smul.addr %s157, 8
        %s159 = scalar_lea.vmem %s0, %s158
        %s160 = smul.u32 3, %s11
      $region28: #{_lambda_.21} parent=23 // pred_fallthru
        _
    $region24: #{_lambda_.21} parent=5 // pred_fallthru
      _
    %p161 = scmp.le.s32.totalorder 1, %s11
    %p162 = scmp.lt.s32.totalorder %s11, 3
    %p163 = pnand %p161, %p162
    %p164 = pneg %p163
    // Predicated region
    $region29: #{_lambda_.21} parent=5 // pred_check
      _
    $region30: #{_lambda_.21} parent=5 // pred_check_branch
      %166 = sbr.rel (%p163) target = $region32
    $region31: #{_lambda_.21} parent=5 // pred_region
      %s167 = ssub.s32 %s11, 1
      %s168 = smul.u32 3, %s16
      %p169 = scmp.lt.s32.totalorder %s168, 5
      %s170 = scalar_select %p169, %s168, 5
      %s171 = smul.addr %s170, 3
      %s172 = smul.addr %s171, 8
      %s173 = scalar_lea.vmem %s0, %s172
      %p174 = pneg %p37
      %p175 = pneg %p34
      %p176 = pneg %p58
      %p177 = pneg %p55
      %p178 = pneg %p79
      %p179 = pneg %p76
      %p180 = pneg %p105
      %p181 = pneg %p102
      %s182 = smul.u32 3, %s16
      %p183 = scmp.lt.s32.totalorder %s182, 5
      %s184 = scalar_select %p183, %s182, 5
      %s185 = smul.addr %s184, 8
      %s186 = scalar_lea.vmem %s3, %s185
      %p187 = pneg %p126
      %p188 = pneg %p123
      %s189 = smul.u32 3, %s16
      %p190 = scmp.lt.s32.totalorder %s189, 5
      %s191 = scalar_select %p190, %s189, 5
      %s192 = smul.addr %s191, 3
      %s193 = smul.addr %s192, 8
      %s194 = scalar_lea.vmem %s0, %s193
      %s195 = smul.u32 3, %s16
      %s196 = smul.u32 3, %s16
      %p197 = scmp.lt.s32.totalorder %s196, 5
      %s198 = scalar_select %p197, %s196, 5
      %s199 = smul.addr %s198, 8
      %s200 = scalar_lea.vmem %s3, %s199
      %s201 = smul.u32 3, %s16
      %p202 = scmp.eq.s32.totalorder %s16, 0
      // Predicated region
      $region33: #{_lambda_.21} parent=31 // pred_check
        %p203 = pneg %p202
      $region34: #{_lambda_.21} parent=31 // pred_check_branch
        %205 = sbr.rel (%p203) target = $region36
      $region35: #{_lambda_.21} parent=31 // pred_region
        %vm206 = vcmask 156672
        %207 = vst.msk [vmem:[%s4] sm:$0x3] %vm206, 0.0
      $region36: #{_lambda_.21} parent=31 // pred_fallthru
        _
      %v208 = vld [vmem:[%s194] sm:$0xff]
      %v209 = vld [vmem:[%s194 + $0x8] sm:$0xff]
      %v210 = vld [vmem:[%s194 + $0x10] sm:$0xff]
      %v211 = vld [vmem:[%s194 + $0x18] sm:$0xff]
      %v212 = vld [vmem:[%s194 + $0x20] sm:$0xff]
      %v213 = vld [vmem:[%s194 + $0x28] sm:$0xff]
      %v214 = vld [vmem:[%s194 + $0x30] sm:$0xff]
      %v215 = vld [vmem:[%s194 + $0x38] sm:$0xff]
      %v216 = vld [vmem:[%s194 + $0x40] sm:$0xff]
      %v217 = vld [vmem:[%s1] sm:$0xff]
      %v218 = vld [vmem:[%s1 + $0x8] sm:$0xff]
      %v219 = vld [vmem:[%s1 + $0x10] sm:$0xff]
      %v220 = vld [vmem:[%s1 + $0x18] sm:$0xff]
      %v221 = vld [vmem:[%s1 + $0x20] sm:$0xff]
      %v222 = vld [vmem:[%s1 + $0x28] sm:$0xff]
      %v223 = vld [vmem:[%s1 + $0x30] sm:$0xff]
      %v224 = vld [vmem:[%s1 + $0x38] sm:$0xff]
      %v225 = vld [vmem:[%s1 + $0x40] sm:$0xff]
      %v226 = vld [vmem:[%s1 + $0x48] sm:$0xff]
      %v227 = vld [vmem:[%s1 + $0x50] sm:$0xff]
      %v228 = vld [vmem:[%s1 + $0x58] sm:$0xff]
      %v229 = vld [vmem:[%s1 + $0x60] sm:$0xff]
      %v230 = vld [vmem:[%s1 + $0x68] sm:$0xff]
      %v231 = vld [vmem:[%s1 + $0x70] sm:$0xff]
      %v232 = vld [vmem:[%s1 + $0x78] sm:$0xff]
      %v233 = vld [vmem:[%s1 + $0x80] sm:$0xff]
      %v234 = vld [vmem:[%s1 + $0x88] sm:$0xff]
      %v235 = vld [vmem:[%s1 + $0x90] sm:$0xff]
      %v236 = vld [vmem:[%s1 + $0x98] sm:$0xff]
      %v237 = vld [vmem:[%s1 + $0xa0] sm:$0xff]
      %v238 = vld [vmem:[%s1 + $0xa8] sm:$0xff]
      %v239 = vld [vmem:[%s1 + $0xb0] sm:$0xff]
      %v240 = vld [vmem:[%s1 + $0xb8] sm:$0xff]
      %v241 = vld [vmem:[%s1 + $0xc0] sm:$0xff]
      %v242 = vld [vmem:[%s1 + $0xc8] sm:$0xff]
      %v243 = vld [vmem:[%s1 + $0xd0] sm:$0xff]
      %v244 = vld [vmem:[%s1 + $0xd8] sm:$0xff]
      %v245 = vld [vmem:[%s1 + $0xe0] sm:$0xff]
      %v246 = vld [vmem:[%s1 + $0xe8] sm:$0xff]
      %v247 = vld [vmem:[%s1 + $0xf0] sm:$0xff]
      %v248 = vld [vmem:[%s1 + $0xf8] sm:$0xff]
      %v249 = vld [vmem:[%s1 + $0x100] sm:$0xff]
      %v250 = vld [vmem:[%s1 + $0x108] sm:$0xff]
      %v251 = vld [vmem:[%s1 + $0x110] sm:$0xff]
      %v252 = vld [vmem:[%s1 + $0x118] sm:$0xff]
      %v253 = vld [vmem:[%s1 + $0x120] sm:$0xff]
      %v254 = vld [vmem:[%s1 + $0x128] sm:$0xff]
      %v255 = vld [vmem:[%s1 + $0x130] sm:$0xff]
      %v256 = vld [vmem:[%s1 + $0x138] sm:$0xff]
      %v257 = vld [vmem:[%s2] sm:$0x1]
      %v259 = vperm.slane %v257, 0
      %vm261 = vcmask 523264
      %v263 = vsel %vm261, %v210, 0
      %v266 = vsel %vm261, %v213, 0
      %v269 = vsel %vm261, %v216, 0
      %v271 = vand.u32 %v232, 4294901760
      %272 = vmatpush.msra.mxu0 %v271
      %v273 = vand.u32 %v231, 4294901760
      %274 = vmatpush.msra.mxu0 %v273
      %v275 = vand.u32 %v230, 4294901760
      %276 = vmatpush.msra.mxu0 %v275
      %v277 = vand.u32 %v229, 4294901760
      %278 = vmatpush.msra.mxu0 %v277
      %v279 = vand.u32 %v228, 4294901760
      %280 = vmatpush.msra.mxu0 %v279
      %v281 = vand.u32 %v227, 4294901760
      %282 = vmatpush.msra.mxu0 %v281
      %v283 = vand.u32 %v226, 4294901760
      %284 = vmatpush.msra.mxu0 %v283
      %v285 = vand.u32 %v225, 4294901760
      %286 = vmatpush.msra.mxu0 %v285
      %v287 = vand.u32 %v224, 4294901760
      %288 = vmatpush.msra.mxu0 %v287
      %v289 = vand.u32 %v223, 4294901760
      %290 = vmatpush.msra.mxu0 %v289
      %v291 = vand.u32 %v222, 4294901760
      %292 = vmatpush.msra.mxu0 %v291
      %v293 = vand.u32 %v221, 4294901760
      %294 = vmatpush.msra.mxu0 %v293
      %v295 = vand.u32 %v220, 4294901760
      %296 = vmatpush.msra.mxu0 %v295
      %v297 = vand.u32 %v219, 4294901760
      %298 = vmatpush.msra.mxu0 %v297
      %v299 = vand.u32 %v218, 4294901760
      %300 = vmatpush.msra.mxu0 %v299
      %v301 = vand.u32 %v217, 4294901760
      %302 = vmatpush.msra.mxu0 %v301
      %v303 = vand.u32 %v208, 4294901760
      %v304 = vsub.f32 %v208, %v303
      %v305 = vand.u32 %v304, 4294901760
      %v306 = vsub.f32 %v304, %v305
      %v307 = vand.u32 %v306, 4294901760
      %308 = vmatmul.f32.gmra.mxu0 %v307
      %v309 = vpop.f32.mrf.mxu0
      %v310 = vadd.f32 %v259, %v309
      %v311 = vand.u32 %v211, 4294901760
      %v312 = vsub.f32 %v211, %v311
      %v313 = vand.u32 %v312, 4294901760
      %v314 = vsub.f32 %v312, %v313
      %v315 = vand.u32 %v314, 4294901760
      %316 = vmatmul.f32.gmra.mxu0 %v315
      %v317 = vpop.f32.mrf.mxu0
      %v318 = vadd.f32 %v259, %v317
      %v319 = vand.u32 %v214, 4294901760
      %v320 = vsub.f32 %v214, %v319
      %v321 = vand.u32 %v320, 4294901760
      %v322 = vsub.f32 %v320, %v321
      %v323 = vand.u32 %v322, 4294901760
      %324 = vmatmul.f32.gmra.mxu0 %v323
      %v325 = vpop.f32.mrf.mxu0
      %v326 = vadd.f32 %v259, %v325
      %327 = vdwg.mxu0
      %v328 = vand.u32 %v232, 4294901760
      %v329 = vsub.f32 %v232, %v328
      %v330 = vand.u32 %v329, 4294901760
      %v331 = vsub.f32 %v329, %v330
      %v332 = vand.u32 %v331, 4294901760
      %333 = vmatpush.msra.mxu0 %v332
      %v334 = vand.u32 %v231, 4294901760
      %v335 = vsub.f32 %v231, %v334
      %v336 = vand.u32 %v335, 4294901760
      %v337 = vsub.f32 %v335, %v336
      %v338 = vand.u32 %v337, 4294901760
      %339 = vmatpush.msra.mxu0 %v338
      %v340 = vand.u32 %v230, 4294901760
      %v341 = vsub.f32 %v230, %v340
      %v342 = vand.u32 %v341, 4294901760
      %v343 = vsub.f32 %v341, %v342
      %v344 = vand.u32 %v343, 4294901760
      %345 = vmatpush.msra.mxu0 %v344
      %v346 = vand.u32 %v229, 4294901760
      %v347 = vsub.f32 %v229, %v346
      %v348 = vand.u32 %v347, 4294901760
      %v349 = vsub.f32 %v347, %v348
      %v350 = vand.u32 %v349, 4294901760
      %351 = vmatpush.msra.mxu0 %v350
      %v352 = vand.u32 %v228, 4294901760
      %v353 = vsub.f32 %v228, %v352
      %v354 = vand.u32 %v353, 4294901760
      %v355 = vsub.f32 %v353, %v354
      %v356 = vand.u32 %v355, 4294901760
      %357 = vmatpush.msra.mxu0 %v356
      %v358 = vand.u32 %v227, 4294901760
      %v359 = vsub.f32 %v227, %v358
      %v360 = vand.u32 %v359, 4294901760
      %v361 = vsub.f32 %v359, %v360
      %v362 = vand.u32 %v361, 4294901760
      %363 = vmatpush.msra.mxu0 %v362
      %v364 = vand.u32 %v226, 4294901760
      %v365 = vsub.f32 %v226, %v364
      %v366 = vand.u32 %v365, 4294901760
      %v367 = vsub.f32 %v365, %v366
      %v368 = vand.u32 %v367, 4294901760
      %369 = vmatpush.msra.mxu0 %v368
      %v370 = vand.u32 %v225, 4294901760
      %v371 = vsub.f32 %v225, %v370
      %v372 = vand.u32 %v371, 4294901760
      %v373 = vsub.f32 %v371, %v372
      %v374 = vand.u32 %v373, 4294901760
      %375 = vmatpush.msra.mxu0 %v374
      %v376 = vand.u32 %v224, 4294901760
      %v377 = vsub.f32 %v224, %v376
      %v378 = vand.u32 %v377, 4294901760
      %v379 = vsub.f32 %v377, %v378
      %v380 = vand.u32 %v379, 4294901760
      %381 = vmatpush.msra.mxu0 %v380
      %v382 = vand.u32 %v223, 4294901760
      %v383 = vsub.f32 %v223, %v382
      %v384 = vand.u32 %v383, 4294901760
      %v385 = vsub.f32 %v383, %v384
      %v386 = vand.u32 %v385, 4294901760
      %387 = vmatpush.msra.mxu0 %v386
      %v388 = vand.u32 %v222, 4294901760
      %v389 = vsub.f32 %v222, %v388
      %v390 = vand.u32 %v389, 4294901760
      %v391 = vsub.f32 %v389, %v390
      %v392 = vand.u32 %v391, 4294901760
      %393 = vmatpush.msra.mxu0 %v392
      %v394 = vand.u32 %v221, 4294901760
      %v395 = vsub.f32 %v221, %v394
      %v396 = vand.u32 %v395, 4294901760
      %v397 = vsub.f32 %v395, %v396
      %v398 = vand.u32 %v397, 4294901760
      %399 = vmatpush.msra.mxu0 %v398
      %v400 = vand.u32 %v220, 4294901760
      %v401 = vsub.f32 %v220, %v400
      %v402 = vand.u32 %v401, 4294901760
      %v403 = vsub.f32 %v401, %v402
      %v404 = vand.u32 %v403, 4294901760
      %405 = vmatpush.msra.mxu0 %v404
      %v406 = vand.u32 %v219, 4294901760
      %v407 = vsub.f32 %v219, %v406
      %v408 = vand.u32 %v407, 4294901760
      %v409 = vsub.f32 %v407, %v408
      %v410 = vand.u32 %v409, 4294901760
      %411 = vmatpush.msra.mxu0 %v410
      %v412 = vand.u32 %v218, 4294901760
      %v413 = vsub.f32 %v218, %v412
      %v414 = vand.u32 %v413, 4294901760
      %v415 = vsub.f32 %v413, %v414
      %v416 = vand.u32 %v415, 4294901760
      %417 = vmatpush.msra.mxu0 %v416
      %v418 = vand.u32 %v217, 4294901760
      %v419 = vsub.f32 %v217, %v418
      %v420 = vand.u32 %v419, 4294901760
      %v421 = vsub.f32 %v419, %v420
      %v422 = vand.u32 %v421, 4294901760
      %423 = vmatpush.msra.mxu0 %v422
      %v424 = vand.u32 %v208, 4294901760
      %425 = vmatmul.f32.gmra.mxu0 %v424
      %v426 = vpop.f32.mrf.mxu0
      %v427 = vadd.f32 %v310, %v426
      %v428 = vand.u32 %v211, 4294901760
      %429 = vmatmul.f32.gmra.mxu0 %v428
      %v430 = vpop.f32.mrf.mxu0
      %v431 = vadd.f32 %v318, %v430
      %v432 = vand.u32 %v214, 4294901760
      %433 = vmatmul.f32.gmra.mxu0 %v432
      %v434 = vpop.f32.mrf.mxu0
      %v435 = vadd.f32 %v326, %v434
      %436 = vdwg.mxu0
      %v437 = vand.u32 %v232, 4294901760
      %v438 = vsub.f32 %v232, %v437
      %439 = vmatpush.msra.mxu0 %v438
      %v440 = vand.u32 %v231, 4294901760
      %v441 = vsub.f32 %v231, %v440
      %442 = vmatpush.msra.mxu0 %v441
      %v443 = vand.u32 %v230, 4294901760
      %v444 = vsub.f32 %v230, %v443
      %445 = vmatpush.msra.mxu0 %v444
      %v446 = vand.u32 %v229, 4294901760
      %v447 = vsub.f32 %v229, %v446
      %448 = vmatpush.msra.mxu0 %v447
      %v449 = vand.u32 %v228, 4294901760
      %v450 = vsub.f32 %v228, %v449
      %451 = vmatpush.msra.mxu0 %v450
      %v452 = vand.u32 %v227, 4294901760
      %v453 = vsub.f32 %v227, %v452
      %454 = vmatpush.msra.mxu0 %v453
      %v455 = vand.u32 %v226, 4294901760
      %v456 = vsub.f32 %v226, %v455
      %457 = vmatpush.msra.mxu0 %v456
      %v458 = vand.u32 %v225, 4294901760
      %v459 = vsub.f32 %v225, %v458
      %460 = vmatpush.msra.mxu0 %v459
      %v461 = vand.u32 %v224, 4294901760
      %v462 = vsub.f32 %v224, %v461
      %463 = vmatpush.msra.mxu0 %v462
      %v464 = vand.u32 %v223, 4294901760
      %v465 = vsub.f32 %v223, %v464
      %466 = vmatpush.msra.mxu0 %v465
      %v467 = vand.u32 %v222, 4294901760
      %v468 = vsub.f32 %v222, %v467
      %469 = vmatpush.msra.mxu0 %v468
      %v470 = vand.u32 %v221, 4294901760
      %v471 = vsub.f32 %v221, %v470
      %472 = vmatpush.msra.mxu0 %v471
      %v473 = vand.u32 %v220, 4294901760
      %v474 = vsub.f32 %v220, %v473
      %475 = vmatpush.msra.mxu0 %v474
      %v476 = vand.u32 %v219, 4294901760
      %v477 = vsub.f32 %v219, %v476
      %478 = vmatpush.msra.mxu0 %v477
      %v479 = vand.u32 %v218, 4294901760
      %v480 = vsub.f32 %v218, %v479
      %481 = vmatpush.msra.mxu0 %v480
      %v482 = vand.u32 %v217, 4294901760
      %v483 = vsub.f32 %v217, %v482
      %484 = vmatpush.msra.mxu0 %v483
      %v485 = vand.u32 %v208, 4294901760
      %v486 = vsub.f32 %v208, %v485
      %487 = vmatmul.f32.gmra.mxu0 %v486
      %v488 = vpop.f32.mrf.mxu0
      %v489 = vadd.f32 %v427, %v488
      %v490 = vand.u32 %v211, 4294901760
      %v491 = vsub.f32 %v211, %v490
      %492 = vmatmul.f32.gmra.mxu0 %v491
      %v493 = vpop.f32.mrf.mxu0
      %v494 = vadd.f32 %v431, %v493
      %v495 = vand.u32 %v214, 4294901760
      %v496 = vsub.f32 %v214, %v495
      %497 = vmatmul.f32.gmra.mxu0 %v496
      %v498 = vpop.f32.mrf.mxu0
      %v499 = vadd.f32 %v435, %v498
      %500 = vdwg.mxu0
      %v501 = vand.u32 %v232, 4294901760
      %502 = vmatpush.msra.mxu0 %v501
      %v503 = vand.u32 %v231, 4294901760
      %504 = vmatpush.msra.mxu0 %v503
      %v505 = vand.u32 %v230, 4294901760
      %506 = vmatpush.msra.mxu0 %v505
      %v507 = vand.u32 %v229, 4294901760
      %508 = vmatpush.msra.mxu0 %v507
      %v509 = vand.u32 %v228, 4294901760
      %510 = vmatpush.msra.mxu0 %v509
      %v511 = vand.u32 %v227, 4294901760
      %512 = vmatpush.msra.mxu0 %v511
      %v513 = vand.u32 %v226, 4294901760
      %514 = vmatpush.msra.mxu0 %v513
      %v515 = vand.u32 %v225, 4294901760
      %516 = vmatpush.msra.mxu0 %v515
      %v517 = vand.u32 %v224, 4294901760
      %518 = vmatpush.msra.mxu0 %v517
      %v519 = vand.u32 %v223, 4294901760
      %520 = vmatpush.msra.mxu0 %v519
      %v521 = vand.u32 %v222, 4294901760
      %522 = vmatpush.msra.mxu0 %v521
      %v523 = vand.u32 %v221, 4294901760
      %524 = vmatpush.msra.mxu0 %v523
      %v525 = vand.u32 %v220, 4294901760
      %526 = vmatpush.msra.mxu0 %v525
      %v527 = vand.u32 %v219, 4294901760
      %528 = vmatpush.msra.mxu0 %v527
      %v529 = vand.u32 %v218, 4294901760
      %530 = vmatpush.msra.mxu0 %v529
      %v531 = vand.u32 %v217, 4294901760
      %532 = vmatpush.msra.mxu0 %v531
      %v533 = vand.u32 %v208, 4294901760
      %v534 = vsub.f32 %v208, %v533
      %v535 = vand.u32 %v534, 4294901760
      %536 = vmatmul.f32.gmra.mxu0 %v535
      %v537 = vpop.f32.mrf.mxu0
      %v538 = vadd.f32 %v489, %v537
      %v539 = vand.u32 %v211, 4294901760
      %v540 = vsub.f32 %v211, %v539
      %v541 = vand.u32 %v540, 4294901760
      %542 = vmatmul.f32.gmra.mxu0 %v541
      %v543 = vpop.f32.mrf.mxu0
      %v544 = vadd.f32 %v494, %v543
      %v545 = vand.u32 %v214, 4294901760
      %v546 = vsub.f32 %v214, %v545
      %v547 = vand.u32 %v546, 4294901760
      %548 = vmatmul.f32.gmra.mxu0 %v547
      %v549 = vpop.f32.mrf.mxu0
      %v550 = vadd.f32 %v499, %v549
      %551 = vdwg.mxu0
      %v552 = vand.u32 %v232, 4294901760
      %v553 = vsub.f32 %v232, %v552
      %v554 = vand.u32 %v553, 4294901760
      %555 = vmatpush.msra.mxu0 %v554
      %v556 = vand.u32 %v231, 4294901760
      %v557 = vsub.f32 %v231, %v556
      %v558 = vand.u32 %v557, 4294901760
      %559 = vmatpush.msra.mxu0 %v558
      %v560 = vand.u32 %v230, 4294901760
      %v561 = vsub.f32 %v230, %v560
      %v562 = vand.u32 %v561, 4294901760
      %563 = vmatpush.msra.mxu0 %v562
      %v564 = vand.u32 %v229, 4294901760
      %v565 = vsub.f32 %v229, %v564
      %v566 = vand.u32 %v565, 4294901760
      %567 = vmatpush.msra.mxu0 %v566
      %v568 = vand.u32 %v228, 4294901760
      %v569 = vsub.f32 %v228, %v568
      %v570 = vand.u32 %v569, 4294901760
      %571 = vmatpush.msra.mxu0 %v570
      %v572 = vand.u32 %v227, 4294901760
      %v573 = vsub.f32 %v227, %v572
      %v574 = vand.u32 %v573, 4294901760
      %575 = vmatpush.msra.mxu0 %v574
      %v576 = vand.u32 %v226, 4294901760
      %v577 = vsub.f32 %v226, %v576
      %v578 = vand.u32 %v577, 4294901760
      %579 = vmatpush.msra.mxu0 %v578
      %v580 = vand.u32 %v225, 4294901760
      %v581 = vsub.f32 %v225, %v580
      %v582 = vand.u32 %v581, 4294901760
      %583 = vmatpush.msra.mxu0 %v582
      %v584 = vand.u32 %v224, 4294901760
      %v585 = vsub.f32 %v224, %v584
      %v586 = vand.u32 %v585, 4294901760
      %587 = vmatpush.msra.mxu0 %v586
      %v588 = vand.u32 %v223, 4294901760
      %v589 = vsub.f32 %v223, %v588
      %v590 = vand.u32 %v589, 4294901760
      %591 = vmatpush.msra.mxu0 %v590
      %v592 = vand.u32 %v222, 4294901760
      %v593 = vsub.f32 %v222, %v592
      %v594 = vand.u32 %v593, 4294901760
      %595 = vmatpush.msra.mxu0 %v594
      %v596 = vand.u32 %v221, 4294901760
      %v597 = vsub.f32 %v221, %v596
      %v598 = vand.u32 %v597, 4294901760
      %599 = vmatpush.msra.mxu0 %v598
      %v600 = vand.u32 %v220, 4294901760
      %v601 = vsub.f32 %v220, %v600
      %v602 = vand.u32 %v601, 4294901760
      %603 = vmatpush.msra.mxu0 %v602
      %v604 = vand.u32 %v219, 4294901760
      %v605 = vsub.f32 %v219, %v604
      %v606 = vand.u32 %v605, 4294901760
      %607 = vmatpush.msra.mxu0 %v606
      %v608 = vand.u32 %v218, 4294901760
      %v609 = vsub.f32 %v218, %v608
      %v610 = vand.u32 %v609, 4294901760
      %611 = vmatpush.msra.mxu0 %v610
      %v612 = vand.u32 %v217, 4294901760
      %v613 = vsub.f32 %v217, %v612
      %v614 = vand.u32 %v613, 4294901760
      %615 = vmatpush.msra.mxu0 %v614
      %v616 = vand.u32 %v208, 4294901760
      %617 = vmatmul.f32.gmra.mxu0 %v616
      %v618 = vpop.f32.mrf.mxu0
      %v619 = vadd.f32 %v538, %v618
      %v620 = vand.u32 %v211, 4294901760
      %621 = vmatmul.f32.gmra.mxu0 %v620
      %v622 = vpop.f32.mrf.mxu0
      %v623 = vadd.f32 %v544, %v622
      %v624 = vand.u32 %v214, 4294901760
      %625 = vmatmul.f32.gmra.mxu0 %v624
      %v626 = vpop.f32.mrf.mxu0
      %v627 = vadd.f32 %v550, %v626
      %628 = vdwg.mxu0
      %v629 = vand.u32 %v232, 4294901760
      %630 = vmatpush.msra.mxu0 %v629
      %v631 = vand.u32 %v231, 4294901760
      %632 = vmatpush.msra.mxu0 %v631
      %v633 = vand.u32 %v230, 4294901760
      %634 = vmatpush.msra.mxu0 %v633
      %v635 = vand.u32 %v229, 4294901760
      %636 = vmatpush.msra.mxu0 %v635
      %v637 = vand.u32 %v228, 4294901760
      %638 = vmatpush.msra.mxu0 %v637
      %v639 = vand.u32 %v227, 4294901760
      %640 = vmatpush.msra.mxu0 %v639
      %v641 = vand.u32 %v226, 4294901760
      %642 = vmatpush.msra.mxu0 %v641
      %v643 = vand.u32 %v225, 4294901760
      %644 = vmatpush.msra.mxu0 %v643
      %v645 = vand.u32 %v224, 4294901760
      %646 = vmatpush.msra.mxu0 %v645
      %v647 = vand.u32 %v223, 4294901760
      %648 = vmatpush.msra.mxu0 %v647
      %v649 = vand.u32 %v222, 4294901760
      %650 = vmatpush.msra.mxu0 %v649
      %v651 = vand.u32 %v221, 4294901760
      %652 = vmatpush.msra.mxu0 %v651
      %v653 = vand.u32 %v220, 4294901760
      %654 = vmatpush.msra.mxu0 %v653
      %v655 = vand.u32 %v219, 4294901760
      %656 = vmatpush.msra.mxu0 %v655
      %v657 = vand.u32 %v218, 4294901760
      %658 = vmatpush.msra.mxu0 %v657
      %v659 = vand.u32 %v217, 4294901760
      %660 = vmatpush.msra.mxu0 %v659
      %v661 = vand.u32 %v208, 4294901760
      %662 = vmatmul.f32.gmra.mxu0 %v661
      %v663 = vpop.f32.mrf.mxu0
      %v664 = vadd.f32 %v619, %v663
      %v665 = vand.u32 %v211, 4294901760
      %666 = vmatmul.f32.gmra.mxu0 %v665
      %v667 = vpop.f32.mrf.mxu0
      %v668 = vadd.f32 %v623, %v667
      %v669 = vand.u32 %v214, 4294901760
      %670 = vmatmul.f32.gmra.mxu0 %v669
      %v671 = vpop.f32.mrf.mxu0
      %v672 = vadd.f32 %v627, %v671
      %673 = vdwg.mxu0
      %v674 = vand.u32 %v248, 4294901760
      %675 = vmatpush.msra.mxu0 %v674
      %v676 = vand.u32 %v247, 4294901760
      %677 = vmatpush.msra.mxu0 %v676
      %v678 = vand.u32 %v246, 4294901760
      %679 = vmatpush.msra.mxu0 %v678
      %v680 = vand.u32 %v245, 4294901760
      %681 = vmatpush.msra.mxu0 %v680
      %v682 = vand.u32 %v244, 4294901760
      %683 = vmatpush.msra.mxu0 %v682
      %v684 = vand.u32 %v243, 4294901760
      %685 = vmatpush.msra.mxu0 %v684
      %v686 = vand.u32 %v242, 4294901760
      %687 = vmatpush.msra.mxu0 %v686
      %v688 = vand.u32 %v241, 4294901760
      %689 = vmatpush.msra.mxu0 %v688
      %v690 = vand.u32 %v240, 4294901760
      %691 = vmatpush.msra.mxu0 %v690
      %v692 = vand.u32 %v239, 4294901760
      %693 = vmatpush.msra.mxu0 %v692
      %v694 = vand.u32 %v238, 4294901760
      %695 = vmatpush.msra.mxu0 %v694
      %v696 = vand.u32 %v237, 4294901760
      %697 = vmatpush.msra.mxu0 %v696
      %v698 = vand.u32 %v236, 4294901760
      %699 = vmatpush.msra.mxu0 %v698
      %v700 = vand.u32 %v235, 4294901760
      %701 = vmatpush.msra.mxu0 %v700
      %v702 = vand.u32 %v234, 4294901760
      %703 = vmatpush.msra.mxu0 %v702
      %v704 = vand.u32 %v233, 4294901760
      %705 = vmatpush.msra.mxu0 %v704
      %v706 = vand.u32 %v209, 4294901760
      %v707 = vsub.f32 %v209, %v706
      %v708 = vand.u32 %v707, 4294901760
      %v709 = vsub.f32 %v707, %v708
      %v710 = vand.u32 %v709, 4294901760
      %711 = vmatmul.f32.gmra.mxu0 %v710
      %v712 = vpop.f32.mrf.mxu0
      %v713 = vadd.f32 %v664, %v712
      %v714 = vand.u32 %v212, 4294901760
      %v715 = vsub.f32 %v212, %v714
      %v716 = vand.u32 %v715, 4294901760
      %v717 = vsub.f32 %v715, %v716
      %v718 = vand.u32 %v717, 4294901760
      %719 = vmatmul.f32.gmra.mxu0 %v718
      %v720 = vpop.f32.mrf.mxu0
      %v721 = vadd.f32 %v668, %v720
      %v722 = vand.u32 %v215, 4294901760
      %v723 = vsub.f32 %v215, %v722
      %v724 = vand.u32 %v723, 4294901760
      %v725 = vsub.f32 %v723, %v724
      %v726 = vand.u32 %v725, 4294901760
      %727 = vmatmul.f32.gmra.mxu0 %v726
      %v728 = vpop.f32.mrf.mxu0
      %v729 = vadd.f32 %v672, %v728
      %730 = vdwg.mxu0
      %v731 = vand.u32 %v248, 4294901760
      %v732 = vsub.f32 %v248, %v731
      %v733 = vand.u32 %v732, 4294901760
      %v734 = vsub.f32 %v732, %v733
      %v735 = vand.u32 %v734, 4294901760
      %736 = vmatpush.msra.mxu0 %v735
      %v737 = vand.u32 %v247, 4294901760
      %v738 = vsub.f32 %v247, %v737
      %v739 = vand.u32 %v738, 4294901760
      %v740 = vsub.f32 %v738, %v739
      %v741 = vand.u32 %v740, 4294901760
      %742 = vmatpush.msra.mxu0 %v741
      %v743 = vand.u32 %v246, 4294901760
      %v744 = vsub.f32 %v246, %v743
      %v745 = vand.u32 %v744, 4294901760
      %v746 = vsub.f32 %v744, %v745
      %v747 = vand.u32 %v746, 4294901760
      %748 = vmatpush.msra.mxu0 %v747
      %v749 = vand.u32 %v245, 4294901760
      %v750 = vsub.f32 %v245, %v749
      %v751 = vand.u32 %v750, 4294901760
      %v752 = vsub.f32 %v750, %v751
      %v753 = vand.u32 %v752, 4294901760
      %754 = vmatpush.msra.mxu0 %v753
      %v755 = vand.u32 %v244, 4294901760
      %v756 = vsub.f32 %v244, %v755
      %v757 = vand.u32 %v756, 4294901760
      %v758 = vsub.f32 %v756, %v757
      %v759 = vand.u32 %v758, 4294901760
      %760 = vmatpush.msra.mxu0 %v759
      %v761 = vand.u32 %v243, 4294901760
      %v762 = vsub.f32 %v243, %v761
      %v763 = vand.u32 %v762, 4294901760
      %v764 = vsub.f32 %v762, %v763
      %v765 = vand.u32 %v764, 4294901760
      %766 = vmatpush.msra.mxu0 %v765
      %v767 = vand.u32 %v242, 4294901760
      %v768 = vsub.f32 %v242, %v767
      %v769 = vand.u32 %v768, 4294901760
      %v770 = vsub.f32 %v768, %v769
      %v771 = vand.u32 %v770, 4294901760
      %772 = vmatpush.msra.mxu0 %v771
      %v773 = vand.u32 %v241, 4294901760
      %v774 = vsub.f32 %v241, %v773
      %v775 = vand.u32 %v774, 4294901760
      %v776 = vsub.f32 %v774, %v775
      %v777 = vand.u32 %v776, 4294901760
      %778 = vmatpush.msra.mxu0 %v777
      %v779 = vand.u32 %v240, 4294901760
      %v780 = vsub.f32 %v240, %v779
      %v781 = vand.u32 %v780, 4294901760
      %v782 = vsub.f32 %v780, %v781
      %v783 = vand.u32 %v782, 4294901760
      %784 = vmatpush.msra.mxu0 %v783
      %v785 = vand.u32 %v239, 4294901760
      %v786 = vsub.f32 %v239, %v785
      %v787 = vand.u32 %v786, 4294901760
      %v788 = vsub.f32 %v786, %v787
      %v789 = vand.u32 %v788, 4294901760
      %790 = vmatpush.msra.mxu0 %v789
      %v791 = vand.u32 %v238, 4294901760
      %v792 = vsub.f32 %v238, %v791
      %v793 = vand.u32 %v792, 4294901760
      %v794 = vsub.f32 %v792, %v793
      %v795 = vand.u32 %v794, 4294901760
      %796 = vmatpush.msra.mxu0 %v795
      %v797 = vand.u32 %v237, 4294901760
      %v798 = vsub.f32 %v237, %v797
      %v799 = vand.u32 %v798, 4294901760
      %v800 = vsub.f32 %v798, %v799
      %v801 = vand.u32 %v800, 4294901760
      %802 = vmatpush.msra.mxu0 %v801
      %v803 = vand.u32 %v236, 4294901760
      %v804 = vsub.f32 %v236, %v803
      %v805 = vand.u32 %v804, 4294901760
      %v806 = vsub.f32 %v804, %v805
      %v807 = vand.u32 %v806, 4294901760
      %808 = vmatpush.msra.mxu0 %v807
      %v809 = vand.u32 %v235, 4294901760
      %v810 = vsub.f32 %v235, %v809
      %v811 = vand.u32 %v810, 4294901760
      %v812 = vsub.f32 %v810, %v811
      %v813 = vand.u32 %v812, 4294901760
      %814 = vmatpush.msra.mxu0 %v813
      %v815 = vand.u32 %v234, 4294901760
      %v816 = vsub.f32 %v234, %v815
      %v817 = vand.u32 %v816, 4294901760
      %v818 = vsub.f32 %v816, %v817
      %v819 = vand.u32 %v818, 4294901760
      %820 = vmatpush.msra.mxu0 %v819
      %v821 = vand.u32 %v233, 4294901760
      %v822 = vsub.f32 %v233, %v821
      %v823 = vand.u32 %v822, 4294901760
      %v824 = vsub.f32 %v822, %v823
      %v825 = vand.u32 %v824, 4294901760
      %826 = vmatpush.msra.mxu0 %v825
      %v827 = vand.u32 %v209, 4294901760
      %828 = vmatmul.f32.gmra.mxu0 %v827
      %v829 = vpop.f32.mrf.mxu0
      %v830 = vadd.f32 %v713, %v829
      %v831 = vand.u32 %v212, 4294901760
      %832 = vmatmul.f32.gmra.mxu0 %v831
      %v833 = vpop.f32.mrf.mxu0
      %v834 = vadd.f32 %v721, %v833
      %v835 = vand.u32 %v215, 4294901760
      %836 = vmatmul.f32.gmra.mxu0 %v835
      %v837 = vpop.f32.mrf.mxu0
      %v838 = vadd.f32 %v729, %v837
      %839 = vdwg.mxu0
      %v840 = vand.u32 %v248, 4294901760
      %v841 = vsub.f32 %v248, %v840
      %842 = vmatpush.msra.mxu0 %v841
      %v843 = vand.u32 %v247, 4294901760
      %v844 = vsub.f32 %v247, %v843
      %845 = vmatpush.msra.mxu0 %v844
      %v846 = vand.u32 %v246, 4294901760
      %v847 = vsub.f32 %v246, %v846
      %848 = vmatpush.msra.mxu0 %v847
      %v849 = vand.u32 %v245, 4294901760
      %v850 = vsub.f32 %v245, %v849
      %851 = vmatpush.msra.mxu0 %v850
      %v852 = vand.u32 %v244, 4294901760
      %v853 = vsub.f32 %v244, %v852
      %854 = vmatpush.msra.mxu0 %v853
      %v855 = vand.u32 %v243, 4294901760
      %v856 = vsub.f32 %v243, %v855
      %857 = vmatpush.msra.mxu0 %v856
      %v858 = vand.u32 %v242, 4294901760
      %v859 = vsub.f32 %v242, %v858
      %860 = vmatpush.msra.mxu0 %v859
      %v861 = vand.u32 %v241, 4294901760
      %v862 = vsub.f32 %v241, %v861
      %863 = vmatpush.msra.mxu0 %v862
      %v864 = vand.u32 %v240, 4294901760
      %v865 = vsub.f32 %v240, %v864
      %866 = vmatpush.msra.mxu0 %v865
      %v867 = vand.u32 %v239, 4294901760
      %v868 = vsub.f32 %v239, %v867
      %869 = vmatpush.msra.mxu0 %v868
      %v870 = vand.u32 %v238, 4294901760
      %v871 = vsub.f32 %v238, %v870
      %872 = vmatpush.msra.mxu0 %v871
      %v873 = vand.u32 %v237, 4294901760
      %v874 = vsub.f32 %v237, %v873
      %875 = vmatpush.msra.mxu0 %v874
      %v876 = vand.u32 %v236, 4294901760
      %v877 = vsub.f32 %v236, %v876
      %878 = vmatpush.msra.mxu0 %v877
      %v879 = vand.u32 %v235, 4294901760
      %v880 = vsub.f32 %v235, %v879
      %881 = vmatpush.msra.mxu0 %v880
      %v882 = vand.u32 %v234, 4294901760
      %v883 = vsub.f32 %v234, %v882
      %884 = vmatpush.msra.mxu0 %v883
      %v885 = vand.u32 %v233, 4294901760
      %v886 = vsub.f32 %v233, %v885
      %887 = vmatpush.msra.mxu0 %v886
      %v888 = vand.u32 %v209, 4294901760
      %v889 = vsub.f32 %v209, %v888
      %890 = vmatmul.f32.gmra.mxu0 %v889
      %v891 = vpop.f32.mrf.mxu0
      %v892 = vadd.f32 %v830, %v891
      %v893 = vand.u32 %v212, 4294901760
      %v894 = vsub.f32 %v212, %v893
      %895 = vmatmul.f32.gmra.mxu0 %v894
      %v896 = vpop.f32.mrf.mxu0
      %v897 = vadd.f32 %v834, %v896
      %v898 = vand.u32 %v215, 4294901760
      %v899 = vsub.f32 %v215, %v898
      %900 = vmatmul.f32.gmra.mxu0 %v899
      %v901 = vpop.f32.mrf.mxu0
      %v902 = vadd.f32 %v838, %v901
      %903 = vdwg.mxu0
      %v904 = vand.u32 %v248, 4294901760
      %905 = vmatpush.msra.mxu0 %v904
      %v906 = vand.u32 %v247, 4294901760
      %907 = vmatpush.msra.mxu0 %v906
      %v908 = vand.u32 %v246, 4294901760
      %909 = vmatpush.msra.mxu0 %v908
      %v910 = vand.u32 %v245, 4294901760
      %911 = vmatpush.msra.mxu0 %v910
      %v912 = vand.u32 %v244, 4294901760
      %913 = vmatpush.msra.mxu0 %v912
      %v914 = vand.u32 %v243, 4294901760
      %915 = vmatpush.msra.mxu0 %v914
      %v916 = vand.u32 %v242, 4294901760
      %917 = vmatpush.msra.mxu0 %v916
      %v918 = vand.u32 %v241, 4294901760
      %919 = vmatpush.msra.mxu0 %v918
      %v920 = vand.u32 %v240, 4294901760
      %921 = vmatpush.msra.mxu0 %v920
      %v922 = vand.u32 %v239, 4294901760
      %923 = vmatpush.msra.mxu0 %v922
      %v924 = vand.u32 %v238, 4294901760
      %925 = vmatpush.msra.mxu0 %v924
      %v926 = vand.u32 %v237, 4294901760
      %927 = vmatpush.msra.mxu0 %v926
      %v928 = vand.u32 %v236, 4294901760
      %929 = vmatpush.msra.mxu0 %v928
      %v930 = vand.u32 %v235, 4294901760
      %931 = vmatpush.msra.mxu0 %v930
      %v932 = vand.u32 %v234, 4294901760
      %933 = vmatpush.msra.mxu0 %v932
      %v934 = vand.u32 %v233, 4294901760
      %935 = vmatpush.msra.mxu0 %v934
      %v936 = vand.u32 %v209, 4294901760
      %v937 = vsub.f32 %v209, %v936
      %v938 = vand.u32 %v937, 4294901760
      %939 = vmatmul.f32.gmra.mxu0 %v938
      %v940 = vpop.f32.mrf.mxu0
      %v941 = vadd.f32 %v892, %v940
      %v942 = vand.u32 %v212, 4294901760
      %v943 = vsub.f32 %v212, %v942
      %v944 = vand.u32 %v943, 4294901760
      %945 = vmatmul.f32.gmra.mxu0 %v944
      %v946 = vpop.f32.mrf.mxu0
      %v947 = vadd.f32 %v897, %v946
      %v948 = vand.u32 %v215, 4294901760
      %v949 = vsub.f32 %v215, %v948
      %v950 = vand.u32 %v949, 4294901760
      %951 = vmatmul.f32.gmra.mxu0 %v950
      %v952 = vpop.f32.mrf.mxu0
      %v953 = vadd.f32 %v902, %v952
      %954 = vdwg.mxu0
      %v955 = vand.u32 %v248, 4294901760
      %v956 = vsub.f32 %v248, %v955
      %v957 = vand.u32 %v956, 4294901760
      %958 = vmatpush.msra.mxu0 %v957
      %v959 = vand.u32 %v247, 4294901760
      %v960 = vsub.f32 %v247, %v959
      %v961 = vand.u32 %v960, 4294901760
      %962 = vmatpush.msra.mxu0 %v961
      %v963 = vand.u32 %v246, 4294901760
      %v964 = vsub.f32 %v246, %v963
      %v965 = vand.u32 %v964, 4294901760
      %966 = vmatpush.msra.mxu0 %v965
      %v967 = vand.u32 %v245, 4294901760
      %v968 = vsub.f32 %v245, %v967
      %v969 = vand.u32 %v968, 4294901760
      %970 = vmatpush.msra.mxu0 %v969
      %v971 = vand.u32 %v244, 4294901760
      %v972 = vsub.f32 %v244, %v971
      %v973 = vand.u32 %v972, 4294901760
      %974 = vmatpush.msra.mxu0 %v973
      %v975 = vand.u32 %v243, 4294901760
      %v976 = vsub.f32 %v243, %v975
      %v977 = vand.u32 %v976, 4294901760
      %978 = vmatpush.msra.mxu0 %v977
      %v979 = vand.u32 %v242, 4294901760
      %v980 = vsub.f32 %v242, %v979
      %v981 = vand.u32 %v980, 4294901760
      %982 = vmatpush.msra.mxu0 %v981
      %v983 = vand.u32 %v241, 4294901760
      %v984 = vsub.f32 %v241, %v983
      %v985 = vand.u32 %v984, 4294901760
      %986 = vmatpush.msra.mxu0 %v985
      %v987 = vand.u32 %v240, 4294901760
      %v988 = vsub.f32 %v240, %v987
      %v989 = vand.u32 %v988, 4294901760
      %990 = vmatpush.msra.mxu0 %v989
      %v991 = vand.u32 %v239, 4294901760
      %v992 = vsub.f32 %v239, %v991
      %v993 = vand.u32 %v992, 4294901760
      %994 = vmatpush.msra.mxu0 %v993
      %v995 = vand.u32 %v238, 4294901760
      %v996 = vsub.f32 %v238, %v995
      %v997 = vand.u32 %v996, 4294901760
      %998 = vmatpush.msra.mxu0 %v997
      %v999 = vand.u32 %v237, 4294901760
      %v1000 = vsub.f32 %v237, %v999
      %v1001 = vand.u32 %v1000, 4294901760
      %1002 = vmatpush.msra.mxu0 %v1001
      %v1003 = vand.u32 %v236, 4294901760
      %v1004 = vsub.f32 %v236, %v1003
      %v1005 = vand.u32 %v1004, 4294901760
      %1006 = vmatpush.msra.mxu0 %v1005
      %v1007 = vand.u32 %v235, 4294901760
      %v1008 = vsub.f32 %v235, %v1007
      %v1009 = vand.u32 %v1008, 4294901760
      %1010 = vmatpush.msra.mxu0 %v1009
      %v1011 = vand.u32 %v234, 4294901760
      %v1012 = vsub.f32 %v234, %v1011
      %v1013 = vand.u32 %v1012, 4294901760
      %1014 = vmatpush.msra.mxu0 %v1013
      %v1015 = vand.u32 %v233, 4294901760
      %v1016 = vsub.f32 %v233, %v1015
      %v1017 = vand.u32 %v1016, 4294901760
      %1018 = vmatpush.msra.mxu0 %v1017
      %v1019 = vand.u32 %v209, 4294901760
      %1020 = vmatmul.f32.gmra.mxu0 %v1019
      %v1021 = vpop.f32.mrf.mxu0
      %v1022 = vadd.f32 %v941, %v1021
      %v1023 = vand.u32 %v212, 4294901760
      %1024 = vmatmul.f32.gmra.mxu0 %v1023
      %v1025 = vpop.f32.mrf.mxu0
      %v1026 = vadd.f32 %v947, %v1025
      %v1027 = vand.u32 %v215, 4294901760
      %1028 = vmatmul.f32.gmra.mxu0 %v1027
      %v1029 = vpop.f32.mrf.mxu0
      %v1030 = vadd.f32 %v953, %v1029
      %1031 = vdwg.mxu0
      %v1032 = vand.u32 %v248, 4294901760
      %1033 = vmatpush.msra.mxu0 %v1032
      %v1034 = vand.u32 %v247, 4294901760
      %1035 = vmatpush.msra.mxu0 %v1034
      %v1036 = vand.u32 %v246, 4294901760
      %1037 = vmatpush.msra.mxu0 %v1036
      %v1038 = vand.u32 %v245, 4294901760
      %1039 = vmatpush.msra.mxu0 %v1038
      %v1040 = vand.u32 %v244, 4294901760
      %1041 = vmatpush.msra.mxu0 %v1040
      %v1042 = vand.u32 %v243, 4294901760
      %1043 = vmatpush.msra.mxu0 %v1042
      %v1044 = vand.u32 %v242, 4294901760
      %1045 = vmatpush.msra.mxu0 %v1044
      %v1046 = vand.u32 %v241, 4294901760
      %1047 = vmatpush.msra.mxu0 %v1046
      %v1048 = vand.u32 %v240, 4294901760
      %1049 = vmatpush.msra.mxu0 %v1048
      %v1050 = vand.u32 %v239, 4294901760
      %1051 = vmatpush.msra.mxu0 %v1050
      %v1052 = vand.u32 %v238, 4294901760
      %1053 = vmatpush.msra.mxu0 %v1052
      %v1054 = vand.u32 %v237, 4294901760
      %1055 = vmatpush.msra.mxu0 %v1054
      %v1056 = vand.u32 %v236, 4294901760
      %1057 = vmatpush.msra.mxu0 %v1056
      %v1058 = vand.u32 %v235, 4294901760
      %1059 = vmatpush.msra.mxu0 %v1058
      %v1060 = vand.u32 %v234, 4294901760
      %1061 = vmatpush.msra.mxu0 %v1060
      %v1062 = vand.u32 %v233, 4294901760
      %1063 = vmatpush.msra.mxu0 %v1062
      %v1064 = vand.u32 %v209, 4294901760
      %1065 = vmatmul.f32.gmra.mxu0 %v1064
      %v1066 = vpop.f32.mrf.mxu0
      %v1067 = vadd.f32 %v1022, %v1066
      %v1068 = vand.u32 %v212, 4294901760
      %1069 = vmatmul.f32.gmra.mxu0 %v1068
      %v1070 = vpop.f32.mrf.mxu0
      %v1071 = vadd.f32 %v1026, %v1070
      %v1072 = vand.u32 %v215, 4294901760
      %1073 = vmatmul.f32.gmra.mxu0 %v1072
      %v1074 = vpop.f32.mrf.mxu0
      %v1075 = vadd.f32 %v1030, %v1074
      %1076 = vdwg.mxu0
      %1077 = vmatpush.msra.mxu0 0.0
      %1078 = vmatpush.msra.mxu0 0.0
      %1079 = vmatpush.msra.mxu0 0.0
      %1080 = vmatpush.msra.mxu0 0.0
      %1081 = vmatpush.msra.mxu0 0.0
      %1082 = vmatpush.msra.mxu0 0.0
      %1083 = vmatpush.msra.mxu0 0.0
      %1084 = vmatpush.msra.mxu0 0.0
      %v1085 = vand.u32 %v256, 4294901760
      %1086 = vmatpush.msra.mxu0 %v1085
      %v1087 = vand.u32 %v255, 4294901760
      %1088 = vmatpush.msra.mxu0 %v1087
      %v1089 = vand.u32 %v254, 4294901760
      %1090 = vmatpush.msra.mxu0 %v1089
      %v1091 = vand.u32 %v253, 4294901760
      %1092 = vmatpush.msra.mxu0 %v1091
      %v1093 = vand.u32 %v252, 4294901760
      %1094 = vmatpush.msra.mxu0 %v1093
      %v1095 = vand.u32 %v251, 4294901760
      %1096 = vmatpush.msra.mxu0 %v1095
      %v1097 = vand.u32 %v250, 4294901760
      %1098 = vmatpush.msra.mxu0 %v1097
      %v1099 = vand.u32 %v249, 4294901760
      %1100 = vmatpush.msra.mxu0 %v1099
      %v1101 = vand.u32 %v263, 4294901760
      %v1102 = vsub.f32 %v263, %v1101
      %v1103 = vand.u32 %v1102, 4294901760
      %v1104 = vsub.f32 %v1102, %v1103
      %v1105 = vand.u32 %v1104, 4294901760
      %1106 = vmatmul.f32.gmra.mxu0 %v1105
      %v1107 = vpop.f32.mrf.mxu0
      %v1108 = vadd.f32 %v1067, %v1107
      %v1109 = vand.u32 %v266, 4294901760
      %v1110 = vsub.f32 %v266, %v1109
      %v1111 = vand.u32 %v1110, 4294901760
      %v1112 = vsub.f32 %v1110, %v1111
      %v1113 = vand.u32 %v1112, 4294901760
      %1114 = vmatmul.f32.gmra.mxu0 %v1113
      %v1115 = vpop.f32.mrf.mxu0
      %v1116 = vadd.f32 %v1071, %v1115
      %v1117 = vand.u32 %v269, 4294901760
      %v1118 = vsub.f32 %v269, %v1117
      %v1119 = vand.u32 %v1118, 4294901760
      %v1120 = vsub.f32 %v1118, %v1119
      %v1121 = vand.u32 %v1120, 4294901760
      %1122 = vmatmul.f32.gmra.mxu0 %v1121
      %v1123 = vpop.f32.mrf.mxu0
      %v1124 = vadd.f32 %v1075, %v1123
      %1125 = vdwg.mxu0
      %1126 = vmatpush.msra.mxu0 0.0
      %1127 = vmatpush.msra.mxu0 0.0
      %1128 = vmatpush.msra.mxu0 0.0
      %1129 = vmatpush.msra.mxu0 0.0
      %1130 = vmatpush.msra.mxu0 0.0
      %1131 = vmatpush.msra.mxu0 0.0
      %1132 = vmatpush.msra.mxu0 0.0
      %1133 = vmatpush.msra.mxu0 0.0
      %v1134 = vand.u32 %v256, 4294901760
      %v1135 = vsub.f32 %v256, %v1134
      %v1136 = vand.u32 %v1135, 4294901760
      %v1137 = vsub.f32 %v1135, %v1136
      %v1138 = vand.u32 %v1137, 4294901760
      %1139 = vmatpush.msra.mxu0 %v1138
      %v1140 = vand.u32 %v255, 4294901760
      %v1141 = vsub.f32 %v255, %v1140
      %v1142 = vand.u32 %v1141, 4294901760
      %v1143 = vsub.f32 %v1141, %v1142
      %v1144 = vand.u32 %v1143, 4294901760
      %1145 = vmatpush.msra.mxu0 %v1144
      %v1146 = vand.u32 %v254, 4294901760
      %v1147 = vsub.f32 %v254, %v1146
      %v1148 = vand.u32 %v1147, 4294901760
      %v1149 = vsub.f32 %v1147, %v1148
      %v1150 = vand.u32 %v1149, 4294901760
      %1151 = vmatpush.msra.mxu0 %v1150
      %v1152 = vand.u32 %v253, 4294901760
      %v1153 = vsub.f32 %v253, %v1152
      %v1154 = vand.u32 %v1153, 4294901760
      %v1155 = vsub.f32 %v1153, %v1154
      %v1156 = vand.u32 %v1155, 4294901760
      %1157 = vmatpush.msra.mxu0 %v1156
      %v1158 = vand.u32 %v252, 4294901760
      %v1159 = vsub.f32 %v252, %v1158
      %v1160 = vand.u32 %v1159, 4294901760
      %v1161 = vsub.f32 %v1159, %v1160
      %v1162 = vand.u32 %v1161, 4294901760
      %1163 = vmatpush.msra.mxu0 %v1162
      %v1164 = vand.u32 %v251, 4294901760
      %v1165 = vsub.f32 %v251, %v1164
      %v1166 = vand.u32 %v1165, 4294901760
      %v1167 = vsub.f32 %v1165, %v1166
      %v1168 = vand.u32 %v1167, 4294901760
      %1169 = vmatpush.msra.mxu0 %v1168
      %v1170 = vand.u32 %v250, 4294901760
      %v1171 = vsub.f32 %v250, %v1170
      %v1172 = vand.u32 %v1171, 4294901760
      %v1173 = vsub.f32 %v1171, %v1172
      %v1174 = vand.u32 %v1173, 4294901760
      %1175 = vmatpush.msra.mxu0 %v1174
      %v1176 = vand.u32 %v249, 4294901760
      %v1177 = vsub.f32 %v249, %v1176
      %v1178 = vand.u32 %v1177, 4294901760
      %v1179 = vsub.f32 %v1177, %v1178
      %v1180 = vand.u32 %v1179, 4294901760
      %1181 = vmatpush.msra.mxu0 %v1180
      %v1182 = vand.u32 %v263, 4294901760
      %1183 = vmatmul.f32.gmra.mxu0 %v1182
      %v1184 = vpop.f32.mrf.mxu0
      %v1185 = vadd.f32 %v1108, %v1184
      %v1186 = vand.u32 %v266, 4294901760
      %1187 = vmatmul.f32.gmra.mxu0 %v1186
      %v1188 = vpop.f32.mrf.mxu0
      %v1189 = vadd.f32 %v1116, %v1188
      %v1190 = vand.u32 %v269, 4294901760
      %1191 = vmatmul.f32.gmra.mxu0 %v1190
      %v1192 = vpop.f32.mrf.mxu0
      %v1193 = vadd.f32 %v1124, %v1192
      %1194 = vdwg.mxu0
      %1195 = vmatpush.msra.mxu0 0.0
      %1196 = vmatpush.msra.mxu0 0.0
      %1197 = vmatpush.msra.mxu0 0.0
      %1198 = vmatpush.msra.mxu0 0.0
      %1199 = vmatpush.msra.mxu0 0.0
      %1200 = vmatpush.msra.mxu0 0.0
      %1201 = vmatpush.msra.mxu0 0.0
      %1202 = vmatpush.msra.mxu0 0.0
      %v1203 = vand.u32 %v256, 4294901760
      %v1204 = vsub.f32 %v256, %v1203
      %1205 = vmatpush.msra.mxu0 %v1204
      %v1206 = vand.u32 %v255, 4294901760
      %v1207 = vsub.f32 %v255, %v1206
      %1208 = vmatpush.msra.mxu0 %v1207
      %v1209 = vand.u32 %v254, 4294901760
      %v1210 = vsub.f32 %v254, %v1209
      %1211 = vmatpush.msra.mxu0 %v1210
      %v1212 = vand.u32 %v253, 4294901760
      %v1213 = vsub.f32 %v253, %v1212
      %1214 = vmatpush.msra.mxu0 %v1213
      %v1215 = vand.u32 %v252, 4294901760
      %v1216 = vsub.f32 %v252, %v1215
      %1217 = vmatpush.msra.mxu0 %v1216
      %v1218 = vand.u32 %v251, 4294901760
      %v1219 = vsub.f32 %v251, %v1218
      %1220 = vmatpush.msra.mxu0 %v1219
      %v1221 = vand.u32 %v250, 4294901760
      %v1222 = vsub.f32 %v250, %v1221
      %1223 = vmatpush.msra.mxu0 %v1222
      %v1224 = vand.u32 %v249, 4294901760
      %v1225 = vsub.f32 %v249, %v1224
      %1226 = vmatpush.msra.mxu0 %v1225
      %v1227 = vand.u32 %v263, 4294901760
      %v1228 = vsub.f32 %v263, %v1227
      %1229 = vmatmul.f32.gmra.mxu0 %v1228
      %v1230 = vpop.f32.mrf.mxu0
      %v1231 = vadd.f32 %v1185, %v1230
      %v1232 = vand.u32 %v266, 4294901760
      %v1233 = vsub.f32 %v266, %v1232
      %1234 = vmatmul.f32.gmra.mxu0 %v1233
      %v1235 = vpop.f32.mrf.mxu0
      %v1236 = vadd.f32 %v1189, %v1235
      %v1237 = vand.u32 %v269, 4294901760
      %v1238 = vsub.f32 %v269, %v1237
      %1239 = vmatmul.f32.gmra.mxu0 %v1238
      %v1240 = vpop.f32.mrf.mxu0
      %v1241 = vadd.f32 %v1193, %v1240
      %1242 = vdwg.mxu0
      %1243 = vmatpush.msra.mxu0 0.0
      %1244 = vmatpush.msra.mxu0 0.0
      %1245 = vmatpush.msra.mxu0 0.0
      %1246 = vmatpush.msra.mxu0 0.0
      %1247 = vmatpush.msra.mxu0 0.0
      %1248 = vmatpush.msra.mxu0 0.0
      %1249 = vmatpush.msra.mxu0 0.0
      %1250 = vmatpush.msra.mxu0 0.0
      %v1251 = vand.u32 %v256, 4294901760
      %1252 = vmatpush.msra.mxu0 %v1251
      %v1253 = vand.u32 %v255, 4294901760
      %1254 = vmatpush.msra.mxu0 %v1253
      %v1255 = vand.u32 %v254, 4294901760
      %1256 = vmatpush.msra.mxu0 %v1255
      %v1257 = vand.u32 %v253, 4294901760
      %1258 = vmatpush.msra.mxu0 %v1257
      %v1259 = vand.u32 %v252, 4294901760
      %1260 = vmatpush.msra.mxu0 %v1259
      %v1261 = vand.u32 %v251, 4294901760
      %1262 = vmatpush.msra.mxu0 %v1261
      %v1263 = vand.u32 %v250, 4294901760
      %1264 = vmatpush.msra.mxu0 %v1263
      %v1265 = vand.u32 %v249, 4294901760
      %1266 = vmatpush.msra.mxu0 %v1265
      %v1267 = vand.u32 %v263, 4294901760
      %v1268 = vsub.f32 %v263, %v1267
      %v1269 = vand.u32 %v1268, 4294901760
      %1270 = vmatmul.f32.gmra.mxu0 %v1269
      %v1271 = vpop.f32.mrf.mxu0
      %v1272 = vadd.f32 %v1231, %v1271
      %v1273 = vand.u32 %v266, 4294901760
      %v1274 = vsub.f32 %v266, %v1273
      %v1275 = vand.u32 %v1274, 4294901760
      %1276 = vmatmul.f32.gmra.mxu0 %v1275
      %v1277 = vpop.f32.mrf.mxu0
      %v1278 = vadd.f32 %v1236, %v1277
      %v1279 = vand.u32 %v269, 4294901760
      %v1280 = vsub.f32 %v269, %v1279
      %v1281 = vand.u32 %v1280, 4294901760
      %1282 = vmatmul.f32.gmra.mxu0 %v1281
      %v1283 = vpop.f32.mrf.mxu0
      %v1284 = vadd.f32 %v1241, %v1283
      %1285 = vdwg.mxu0
      %1286 = vmatpush.msra.mxu0 0.0
      %1287 = vmatpush.msra.mxu0 0.0
      %1288 = vmatpush.msra.mxu0 0.0
      %1289 = vmatpush.msra.mxu0 0.0
      %1290 = vmatpush.msra.mxu0 0.0
      %1291 = vmatpush.msra.mxu0 0.0
      %1292 = vmatpush.msra.mxu0 0.0
      %1293 = vmatpush.msra.mxu0 0.0
      %v1294 = vand.u32 %v256, 4294901760
      %v1295 = vsub.f32 %v256, %v1294
      %v1296 = vand.u32 %v1295, 4294901760
      %1297 = vmatpush.msra.mxu0 %v1296
      %v1298 = vand.u32 %v255, 4294901760
      %v1299 = vsub.f32 %v255, %v1298
      %v1300 = vand.u32 %v1299, 4294901760
      %1301 = vmatpush.msra.mxu0 %v1300
      %v1302 = vand.u32 %v254, 4294901760
      %v1303 = vsub.f32 %v254, %v1302
      %v1304 = vand.u32 %v1303, 4294901760
      %1305 = vmatpush.msra.mxu0 %v1304
      %v1306 = vand.u32 %v253, 4294901760
      %v1307 = vsub.f32 %v253, %v1306
      %v1308 = vand.u32 %v1307, 4294901760
      %1309 = vmatpush.msra.mxu0 %v1308
      %v1310 = vand.u32 %v252, 4294901760
      %v1311 = vsub.f32 %v252, %v1310
      %v1312 = vand.u32 %v1311, 4294901760
      %1313 = vmatpush.msra.mxu0 %v1312
      %v1314 = vand.u32 %v251, 4294901760
      %v1315 = vsub.f32 %v251, %v1314
      %v1316 = vand.u32 %v1315, 4294901760
      %1317 = vmatpush.msra.mxu0 %v1316
      %v1318 = vand.u32 %v250, 4294901760
      %v1319 = vsub.f32 %v250, %v1318
      %v1320 = vand.u32 %v1319, 4294901760
      %1321 = vmatpush.msra.mxu0 %v1320
      %v1322 = vand.u32 %v249, 4294901760
      %v1323 = vsub.f32 %v249, %v1322
      %v1324 = vand.u32 %v1323, 4294901760
      %1325 = vmatpush.msra.mxu0 %v1324
      %v1326 = vand.u32 %v263, 4294901760
      %1327 = vmatmul.f32.gmra.mxu0 %v1326
      %v1328 = vpop.f32.mrf.mxu0
      %v1329 = vadd.f32 %v1272, %v1328
      %v1330 = vand.u32 %v266, 4294901760
      %1331 = vmatmul.f32.gmra.mxu0 %v1330
      %v1332 = vpop.f32.mrf.mxu0
      %v1333 = vadd.f32 %v1278, %v1332
      %v1334 = vand.u32 %v269, 4294901760
      %1335 = vmatmul.f32.gmra.mxu0 %v1334
      %v1336 = vpop.f32.mrf.mxu0
      %v1337 = vadd.f32 %v1284, %v1336
      %1338 = vdwg.mxu0
      %1339 = vmatpush.msra.mxu0 0.0
      %1340 = vmatpush.msra.mxu0 0.0
      %1341 = vmatpush.msra.mxu0 0.0
      %1342 = vmatpush.msra.mxu0 0.0
      %1343 = vmatpush.msra.mxu0 0.0
      %1344 = vmatpush.msra.mxu0 0.0
      %1345 = vmatpush.msra.mxu0 0.0
      %1346 = vmatpush.msra.mxu0 0.0
      %v1347 = vand.u32 %v256, 4294901760
      %1348 = vmatpush.msra.mxu0 %v1347
      %v1349 = vand.u32 %v255, 4294901760
      %1350 = vmatpush.msra.mxu0 %v1349
      %v1351 = vand.u32 %v254, 4294901760
      %1352 = vmatpush.msra.mxu0 %v1351
      %v1353 = vand.u32 %v253, 4294901760
      %1354 = vmatpush.msra.mxu0 %v1353
      %v1355 = vand.u32 %v252, 4294901760
      %1356 = vmatpush.msra.mxu0 %v1355
      %v1357 = vand.u32 %v251, 4294901760
      %1358 = vmatpush.msra.mxu0 %v1357
      %v1359 = vand.u32 %v250, 4294901760
      %1360 = vmatpush.msra.mxu0 %v1359
      %v1361 = vand.u32 %v249, 4294901760
      %1362 = vmatpush.msra.mxu0 %v1361
      %v1363 = vand.u32 %v263, 4294901760
      %1364 = vmatmul.f32.gmra.mxu0 %v1363
      %v1365 = vpop.f32.mrf.mxu0
      %v1366 = vadd.f32 %v1329, %v1365
      %v1367 = vand.u32 %v266, 4294901760
      %1368 = vmatmul.f32.gmra.mxu0 %v1367
      %v1369 = vpop.f32.mrf.mxu0
      %v1370 = vadd.f32 %v1333, %v1369
      %v1371 = vand.u32 %v269, 4294901760
      %1372 = vmatmul.f32.gmra.mxu0 %v1371
      %v1373 = vpop.f32.mrf.mxu0
      %v1374 = vadd.f32 %v1337, %v1373
      %1375 = vdwg.mxu0
      %vm1376 = vcmp.gt.f32.partialorder %v1366, 0.0
      %vm1377 = vcmp.gt.f32.partialorder %v1370, 0.0
      %vm1378 = vcmp.gt.f32.partialorder %v1374, 0.0
      %v1379 = vmin.f32 %v1366, 0.0
      %v1380 = vmin.f32 %v1370, 0.0
      %v1381 = vmin.f32 %v1374, 0.0
      %v1382 = vmul.f32 %v1379, 1.442695
      %v1383 = vpow.pop %v1382
      %v1384 = vmul.f32 %v1380, 1.442695
      %v1385 = vpow.pop %v1384
      %v1386 = vmul.f32 %v1381, 1.442695
      %v1387 = vpow.pop %v1386
      %v1388 = vsub.f32 %v1383, 1.0
      %v1389 = vsub.f32 %v1385, 1.0
      %v1390 = vsub.f32 %v1387, 1.0
      %v1391 = vsel %vm1376, %v1366, %v1388
      %v1392 = vsel %vm1377, %v1370, %v1389
      %v1393 = vsel %vm1378, %v1374, %v1390
      %vm1394 = vcmask 162816
      %1395 = vst.msk [vmem:[%s200] sm:$0xff] %vm1394, %v1391
      %1396 = vst.msk [vmem:[%s200 + $0x8] sm:$0xff] %vm1394, %v1392
      %1397 = vst.msk [vmem:[%s200 + $0x10] sm:$0xff] %vm1394, %v1393
      %s1398 = smul.u32 %s16, 24
      %v1399 = vlaneseq
      %v1400 = vshrl.u32 %v1399, 7
      %v1401 = vadd.s32 %v1400, 8
      %v1402 = vadd.s32 %v1400, 16
      %v1403 = vstv %s1398
      %v1404 = vadd.s32 %v1403, %v1400
      %v1405 = vadd.s32 %v1403, %v1401
      %v1406 = vadd.s32 %v1403, %v1402
      %vm1407 = vcmp.lt.s32.totalorder %v1404, 32
      %vm1408 = vcmp.lt.s32.totalorder %v1405, 32
      %vm1409 = vcmp.lt.s32.totalorder %v1406, 32
      %v1410 = vsel %vm1407, 1, 0
      %v1411 = vsel %vm1408, 1, 0
      %v1412 = vsel %vm1409, 1, 0
      %v1413 = vcvt.s32.f32 %v1410
      %v1414 = vcvt.s32.f32 %v1411
      %v1415 = vcvt.s32.f32 %v1412
      %v1416 = vmul.f32 %v1391, %v1413
      %v1417 = vmul.f32 %v1392, %v1414
      %v1418 = vmul.f32 %v1393, %v1415
      %v1419 = vld [vmem:[%s4] sm:$0x1]
      %v1420 = vsel %vm1394, %v1416, 0.0
      %v1421 = vsel %vm1394, %v1417, 0.0
      %v1422 = vadd.f32 %v1420, %v1421
      %v1423 = vsel %vm1394, %v1418, 0.0
      %v1424 = vadd.f32 %v1422, %v1423
      %v1425 = vrot.slane %v1424, 4
      %v1426 = vadd.f32 %v1424, %v1425
      %v1427 = vrot.slane %v1426, 2
      %v1428 = vadd.f32 %v1426, %v1427
      %v1429 = vrot.slane %v1428, 1
      %v1430 = vadd.f32 %v1428, %v1429
      %v1431 = vadd.f32 %v1419, %v1430
      %vm1432 = vcmask 155648
      %1433 = vst.msk [vmem:[%s4] sm:$0x1] %vm1432, %v1431
      %v1434 = vld [vmem:[%s4 + $0x1] sm:$0x1]
      %v1435 = vmul.f32 %v1416, %v1391
      %v1436 = vmul.f32 %v1417, %v1392
      %v1437 = vmul.f32 %v1418, %v1393
      %v1438 = vsel %vm1394, %v1435, 0.0
      %v1439 = vsel %vm1394, %v1436, 0.0
      %v1440 = vadd.f32 %v1438, %v1439
      %v1441 = vsel %vm1394, %v1437, 0.0
      %v1442 = vadd.f32 %v1440, %v1441
      %v1443 = vrot.slane %v1442, 4
      %v1444 = vadd.f32 %v1442, %v1443
      %v1445 = vrot.slane %v1444, 2
      %v1446 = vadd.f32 %v1444, %v1445
      %v1447 = vrot.slane %v1446, 1
      %v1448 = vadd.f32 %v1446, %v1447
      %v1449 = vadd.f32 %v1434, %v1448
      %1450 = vst.msk [vmem:[%s4 + $0x1] sm:$0x1] %vm1432, %v1449
      %s1451 = smul.u32 3, %s16
      %p1452 = scmp.lt.s32.totalorder %s1451, 5
      %s1453 = scalar_select %p1452, %s1451, 5
      %s1454 = smul.addr %s1453, 8
      %s1455 = scalar_lea.vmem %s3, %s1454
      // Predicated region
      $region37: #{_lambda_.21} parent=31 // pred_check
        %p1456 = pneg %p102
      $region38: #{_lambda_.21} parent=31 // pred_check_branch
        %1458 = sbr.rel (%p1456) target = $region40
      $region39: #{_lambda_.21} parent=31 // pred_region
        %s1459 = smul.u32 3, %s16
      $region40: #{_lambda_.21} parent=31 // pred_fallthru
        _
      // Predicated region
      $region41: #{_lambda_.21} parent=31 // pred_check
        %p1460 = pneg %p123
      $region42: #{_lambda_.21} parent=31 // pred_check_branch
        %1462 = sbr.rel (%p1460) target = $region44
      $region43: #{_lambda_.21} parent=31 // pred_region
        _
      $region44: #{_lambda_.21} parent=31 // pred_fallthru
        _
      // Predicated region
      $region45: #{_lambda_.21} parent=31 // pred_check
        %p1463 = pneg %p123
      $region46: #{_lambda_.21} parent=31 // pred_check_branch
        %1465 = sbr.rel (%p1463) target = $region48
      $region47: #{_lambda_.21} parent=31 // pred_region
        _
      $region48: #{_lambda_.21} parent=31 // pred_fallthru
        _
    $region32: #{_lambda_.21} parent=5 // pred_fallthru
      _
    %p1466 = scmp.le.s32.totalorder 2, %s11
    // Predicated region
    $region49: #{_lambda_.21} parent=5 // pred_check
      %p1467 = pneg %p1466
    $region50: #{_lambda_.21} parent=5 // pred_check_branch
      %1469 = sbr.rel (%p1467) target = $region52
    $region51: #{_lambda_.21} parent=5 // pred_region
      %s1470 = ssub.s32 %s11, 2
      // Predicated region
      $region53: #{_lambda_.21} parent=51 // pred_check
        %p1471 = pneg %p108
      $region54: #{_lambda_.21} parent=51 // pred_check_branch
        %1473 = sbr.rel (%p1471) target = $region56
      $region55: #{_lambda_.21} parent=51 // pred_region
        %s1474 = smul.u32 3, %s17
        %p1475 = scmp.lt.s32.totalorder %s1474, 5
        %s1476 = scalar_select %p1475, %s1474, 5
        %s1477 = smul.addr %s1476, 8
        %s1478 = scalar_lea.vmem %s3, %s1477
      $region56: #{_lambda_.21} parent=51 // pred_fallthru
        _
    $region52: #{_lambda_.21} parent=5 // pred_fallthru
      _
  $region6: #{_lambda_.21} parent=0 // loop_footer
    %s15 = sadd.s32 1, %s11
  $region7: #{_lambda_.21} parent=0 // loop_footer_branch
    %10 = sbr.rel target = $region3
  $region8: #{_lambda_.21} parent=0 // loop_exit
    _

// kernel: _lambda_.23
$region0: #{_lambda_.23}
  #allocation0 [shape = 'u32[]', space=smem, size = 0x4, offset = 0x4, fixed_abs, tag = 'smem constant byte address 0x4 - core index']
  #allocation1 [shape = 'u32[72,128]{1,0:T(1,128)}', space=vmem, size = 0x9000, scoped, tag = 'internal scratch']
  %s0 = inlined_call_operand.vmem [shape: f32[48,160], index: 0, kind: input, shape index: {}]
  %s1 = inlined_call_operand.vmem [shape: f32[160,20], index: 1, kind: input, shape index: {}]
  %s2 = inlined_call_operand.vmem [shape: f32[1,20], index: 2, kind: input, shape index: {}]
  %s3 = inlined_call_operand.vmem [shape: f32[48,20], index: 3, kind: output, shape index: {0}]
  %s4 = inlined_call_operand.vmem [shape: f32[2,20], index: 4, kind: output, shape index: {1}]
  %5 = xla_tuple %s3, %s4
  %s6 = sld [smem:[#allocation0]]
  $region57: #{_lambda_.23} parent=0
    _
  %s8 = ssub.s32 1, %s6
  %s9 = scalar_select 0, %s8, %s6
  loop: start=0, step=1, limit=4
  $region2: #{_lambda_.23} parent=0 // loop_pre_header
    _
  $region3: #{_lambda_.23} parent=0 // loop_header
    %s11 = sphi 0, %s15
    %p12 = scmp.ge.s32.totalorder %s11, 4
    %s21 = sphi 0, %s23
    %s24 = sphi 0, %s21
    %s25 = sphi 0, %s24
    %s41 = sphi 0, %s25
    %s45 = sphi 0, %s45
    %s47 = sphi 0, %s45
    %s48 = sphi 0, %s47
    %s62 = sphi 0, %s48
    %s66 = sphi 0, %s66
    %s68 = sphi 0, %s66
    %s69 = sphi 0, %s68
    %s83 = sphi 0, %s69
    %s89 = sphi 0, %s91
    %s92 = sphi 0, %s89
    %s93 = sphi 0, %s92
    %s109 = sphi 0, %s93
    %s113 = sphi 0, %s113
    %s115 = sphi 0, %s113
    %s116 = sphi 0, %s115
    %s130 = sphi 0, %s116
  $region4: #{_lambda_.23} parent=0 // loop_header_branch
    %14 = sbr.rel (%p12) target = $region8
  $region5: #{_lambda_.23} parent=0 // loop_body
    %s16 = ssub.s32 %s11, 1
    %s17 = ssub.s32 %s11, 2
    %s18 = sadd.s32 %s11, 1
    %s19 = ssub.s32 %s11, %s18
    %p20 = scmp.eq.s32.totalorder %s19, 0
    %s22 = sadd.s32 %s21, 1
    %s23 = scalar_select %p20, %s21, %s22
    %p26 = pneg %p20
    %p27 = scmp.eq.s32.totalorder %s11, 1
    %p28 = por %p26, %p27
    %p29 = scmp.ne.s32.totalorder %s21, %s24
    %p30 = scmp.eq.s32.totalorder %s11, 0
    %p31 = por %p29, %p30
    %p32 = scmp.ne.s32.totalorder %s21, %s24
    %p33 = scmp.eq.s32.totalorder %s16, 1
    %p34 = por %p32, %p33
    %p35 = scmp.ne.s32.totalorder %s24, %s25
    %p36 = scmp.eq.s32.totalorder %s16, 0
    %p37 = por %p35, %p36
    %p38 = scmp.ne.s32.totalorder %s24, %s25
    %p39 = scmp.eq.s32.totalorder %s17, 1
    %p40 = por %p38, %p39
    %p42 = scmp.ne.s32.totalorder %s25, %s41
    %p43 = scmp.eq.s32.totalorder %s17, 0
    %p44 = por %p42, %p43
    %s46 = sadd.s32 %s45, 1
    %p49 = scmp.eq.s32.totalorder %s11, 1
    %p50 = scmp.ne.s32.totalorder %s45, %s47
    %p51 = scmp.eq.s32.totalorder %s11, 0
    %p52 = por %p50, %p51
    %p53 = scmp.ne.s32.totalorder %s45, %s47
    %p54 = scmp.eq.s32.totalorder %s16, 1
    %p55 = por %p53, %p54
    %p56 = scmp.ne.s32.totalorder %s47, %s48
    %p57 = scmp.eq.s32.totalorder %s16, 0
    %p58 = por %p56, %p57
    %p59 = scmp.ne.s32.totalorder %s47, %s48
    %p60 = scmp.eq.s32.totalorder %s17, 1
    %p61 = por %p59, %p60
    %p63 = scmp.ne.s32.totalorder %s48, %s62
    %p64 = scmp.eq.s32.totalorder %s17, 0
    %p65 = por %p63, %p64
    %s67 = sadd.s32 %s66, 1
    %p70 = scmp.eq.s32.totalorder %s11, 1
    %p71 = scmp.ne.s32.totalorder %s66, %s68
    %p72 = scmp.eq.s32.totalorder %s11, 0
    %p73 = por %p71, %p72
    %p74 = scmp.ne.s32.totalorder %s66, %s68
    %p75 = scmp.eq.s32.totalorder %s16, 1
    %p76 = por %p74, %p75
    %p77 = scmp.ne.s32.totalorder %s68, %s69
    %p78 = scmp.eq.s32.totalorder %s16, 0
    %p79 = por %p77, %p78
    %p80 = scmp.ne.s32.totalorder %s68, %s69
    %p81 = scmp.eq.s32.totalorder %s17, 1
    %p82 = por %p80, %p81
    %p84 = scmp.ne.s32.totalorder %s69, %s83
    %p85 = scmp.eq.s32.totalorder %s17, 0
    %p86 = por %p84, %p85
    %s87 = ssub.s32 %s11, %s18
    %p88 = scmp.eq.s32.totalorder %s87, 0
    %s90 = sadd.s32 %s89, 1
    %s91 = scalar_select %p88, %s89, %s90
    %p94 = pneg %p88
    %p95 = scmp.eq.s32.totalorder %s11, 1
    %p96 = por %p94, %p95
    %p97 = scmp.ne.s32.totalorder %s89, %s92
    %p98 = scmp.eq.s32.totalorder %s11, 0
    %p99 = por %p97, %p98
    %p100 = scmp.ne.s32.totalorder %s89, %s92
    %p101 = scmp.eq.s32.totalorder %s16, 1
    %p102 = por %p100, %p101
    %p103 = scmp.ne.s32.totalorder %s92, %s93
    %p104 = scmp.eq.s32.totalorder %s16, 0
    %p105 = por %p103, %p104
    %p106 = scmp.ne.s32.totalorder %s92, %s93
    %p107 = scmp.eq.s32.totalorder %s17, 1
    %p108 = por %p106, %p107
    %p110 = scmp.ne.s32.totalorder %s93, %s109
    %p111 = scmp.eq.s32.totalorder %s17, 0
    %p112 = por %p110, %p111
    %s114 = sadd.s32 %s113, 1
    %p117 = scmp.eq.s32.totalorder %s11, 1
    %p118 = scmp.ne.s32.totalorder %s113, %s115
    %p119 = scmp.eq.s32.totalorder %s11, 0
    %p120 = por %p118, %p119
    %p121 = scmp.ne.s32.totalorder %s113, %s115
    %p122 = scmp.eq.s32.totalorder %s16, 1
    %p123 = por %p121, %p122
    %p124 = scmp.ne.s32.totalorder %s115, %s116
    %p125 = scmp.eq.s32.totalorder %s16, 0
    %p126 = por %p124, %p125
    %p127 = scmp.ne.s32.totalorder %s115, %s116
    %p128 = scmp.eq.s32.totalorder %s17, 1
    %p129 = por %p127, %p128
    %p131 = scmp.ne.s32.totalorder %s116, %s130
    %p132 = scmp.eq.s32.totalorder %s17, 0
    %p133 = por %p131, %p132
    %p134 = scmp.le.s32.totalorder 1, %s11
    %p135 = scmp.lt.s32.totalorder %s11, 3
    %p136 = pnand %p134, %p135
    %p137 = pneg %p136
    // Predicated region
    $region9: #{_lambda_.23} parent=5 // pred_check
      _
    $region10: #{_lambda_.23} parent=5 // pred_check_branch
      %139 = sbr.rel (%p136) target = $region12
    $region11: #{_lambda_.23} parent=5 // pred_region
      %s140 = ssub.s32 %s11, 1
      // Predicated region
      $region13: #{_lambda_.23} parent=11 // pred_check
        %p141 = pneg %p58
      $region14: #{_lambda_.23} parent=11 // pred_check_branch
        %143 = sbr.rel (%p141) target = $region16
      $region15: #{_lambda_.23} parent=11 // pred_region
        _
      $region16: #{_lambda_.23} parent=11 // pred_fallthru
        _
      // Predicated region
      $region17: #{_lambda_.23} parent=11 // pred_check
        %p144 = pneg %p79
      $region18: #{_lambda_.23} parent=11 // pred_check_branch
        %146 = sbr.rel (%p144) target = $region20
      $region19: #{_lambda_.23} parent=11 // pred_region
        _
      $region20: #{_lambda_.23} parent=11 // pred_fallthru
        _
    $region12: #{_lambda_.23} parent=5 // pred_fallthru
      _
    %p147 = scmp.lt.s32.totalorder %s11, 2
    // Predicated region
    $region21: #{_lambda_.23} parent=5 // pred_check
      %p148 = pneg %p147
    $region22: #{_lambda_.23} parent=5 // pred_check_branch
      %150 = sbr.rel (%p148) target = $region24
    $region23: #{_lambda_.23} parent=5 // pred_region
      // Predicated region
      $region25: #{_lambda_.23} parent=23 // pred_check
        %p151 = pneg %p31
      $region26: #{_lambda_.23} parent=23 // pred_check_branch
        %153 = sbr.rel (%p151) target = $region28
      $region27: #{_lambda_.23} parent=23 // pred_region
        %s154 = smul.u32 3, %s11
        %p155 = scmp.lt.s32.totalorder %s154, 5
        %s156 = scalar_select %p155, %s154, 5
        %s157 = smul.addr %s156, 2
        %s158 = smul.addr %s157, 8
        %s159 = scalar_lea.vmem %s0, %s158
        %s160 = smul.u32 3, %s11
      $region28: #{_lambda_.23} parent=23 // pred_fallthru
        _
    $region24: #{_lambda_.23} parent=5 // pred_fallthru
      _
    %p161 = scmp.le.s32.totalorder 1, %s11
    %p162 = scmp.lt.s32.totalorder %s11, 3
    %p163 = pnand %p161, %p162
    %p164 = pneg %p163
    // Predicated region
    $region29: #{_lambda_.23} parent=5 // pred_check
      _
    $region30: #{_lambda_.23} parent=5 // pred_check_branch
      %166 = sbr.rel (%p163) target = $region32
    $region31: #{_lambda_.23} parent=5 // pred_region
      %s167 = ssub.s32 %s11, 1
      %s168 = smul.u32 3, %s16
      %p169 = scmp.lt.s32.totalorder %s168, 5
      %s170 = scalar_select %p169, %s168, 5
      %s171 = smul.addr %s170, 2
      %s172 = smul.addr %s171, 8
      %s173 = scalar_lea.vmem %s0, %s172
      %p174 = pneg %p37
      %p175 = pneg %p34
      %p176 = pneg %p58
      %p177 = pneg %p55
      %p178 = pneg %p79
      %p179 = pneg %p76
      %p180 = pneg %p105
      %p181 = pneg %p102
      %s182 = smul.u32 3, %s16
      %p183 = scmp.lt.s32.totalorder %s182, 5
      %s184 = scalar_select %p183, %s182, 5
      %s185 = smul.addr %s184, 8
      %s186 = scalar_lea.vmem %s3, %s185
      %p187 = pneg %p126
      %p188 = pneg %p123
      %s189 = smul.u32 3, %s16
      %p190 = scmp.lt.s32.totalorder %s189, 5
      %s191 = scalar_select %p190, %s189, 5
      %s192 = smul.addr %s191, 2
      %s193 = smul.addr %s192, 8
      %s194 = scalar_lea.vmem %s0, %s193
      %s195 = smul.u32 3, %s16
      %s196 = smul.u32 3, %s16
      %p197 = scmp.lt.s32.totalorder %s196, 5
      %s198 = scalar_select %p197, %s196, 5
      %s199 = smul.addr %s198, 8
      %s200 = scalar_lea.vmem %s3, %s199
      %s201 = smul.u32 3, %s16
      %p202 = scmp.eq.s32.totalorder %s16, 0
      // Predicated region
      $region33: #{_lambda_.23} parent=31 // pred_check
        %p203 = pneg %p202
      $region34: #{_lambda_.23} parent=31 // pred_check_branch
        %205 = sbr.rel (%p203) target = $region36
      $region35: #{_lambda_.23} parent=31 // pred_region
        %vm206 = vcmask 156672
        %207 = vst.msk [vmem:[%s4] sm:$0x3] %vm206, 0.0
      $region36: #{_lambda_.23} parent=31 // pred_fallthru
        _
      %v208 = vld [vmem:[%s194] sm:$0xff]
      %v209 = vld [vmem:[%s194 + $0x8] sm:$0xff]
      %v210 = vld [vmem:[%s194 + $0x10] sm:$0xff]
      %v211 = vld [vmem:[%s194 + $0x18] sm:$0xff]
      %v212 = vld [vmem:[%s194 + $0x20] sm:$0xff]
      %v213 = vld [vmem:[%s194 + $0x28] sm:$0xff]
      %v214 = vld [vmem:[%s1] sm:$0xff]
      %v215 = vld [vmem:[%s1 + $0x8] sm:$0xff]
      %v216 = vld [vmem:[%s1 + $0x10] sm:$0xff]
      %v217 = vld [vmem:[%s1 + $0x18] sm:$0xff]
      %v218 = vld [vmem:[%s1 + $0x20] sm:$0xff]
      %v219 = vld [vmem:[%s1 + $0x28] sm:$0xff]
      %v220 = vld [vmem:[%s1 + $0x30] sm:$0xff]
      %v221 = vld [vmem:[%s1 + $0x38] sm:$0xff]
      %v222 = vld [vmem:[%s1 + $0x40] sm:$0xff]
      %v223 = vld [vmem:[%s1 + $0x48] sm:$0xff]
      %v224 = vld [vmem:[%s1 + $0x50] sm:$0xff]
      %v225 = vld [vmem:[%s1 + $0x58] sm:$0xff]
      %v226 = vld [vmem:[%s1 + $0x60] sm:$0xff]
      %v227 = vld [vmem:[%s1 + $0x68] sm:$0xff]
      %v228 = vld [vmem:[%s1 + $0x70] sm:$0xff]
      %v229 = vld [vmem:[%s1 + $0x78] sm:$0xff]
      %v230 = vld [vmem:[%s1 + $0x80] sm:$0xff]
      %v231 = vld [vmem:[%s1 + $0x88] sm:$0xff]
      %v232 = vld [vmem:[%s1 + $0x90] sm:$0xff]
      %v233 = vld [vmem:[%s1 + $0x98] sm:$0xff]
      %v234 = vld [vmem:[%s2] sm:$0x1]
      %v236 = vperm.slane %v234, 0
      %vm238 = vcmask 261120
      %v240 = vsel %vm238, %v209, 0
      %v243 = vsel %vm238, %v211, 0
      %v246 = vsel %vm238, %v213, 0
      %v248 = vand.u32 %v229, 4294901760
      %249 = vmatpush.msra.mxu0 %v248
      %v250 = vand.u32 %v228, 4294901760
      %251 = vmatpush.msra.mxu0 %v250
      %v252 = vand.u32 %v227, 4294901760
      %253 = vmatpush.msra.mxu0 %v252
      %v254 = vand.u32 %v226, 4294901760
      %255 = vmatpush.msra.mxu0 %v254
      %v256 = vand.u32 %v225, 4294901760
      %257 = vmatpush.msra.mxu0 %v256
      %v258 = vand.u32 %v224, 4294901760
      %259 = vmatpush.msra.mxu0 %v258
      %v260 = vand.u32 %v223, 4294901760
      %261 = vmatpush.msra.mxu0 %v260
      %v262 = vand.u32 %v222, 4294901760
      %263 = vmatpush.msra.mxu0 %v262
      %v264 = vand.u32 %v221, 4294901760
      %265 = vmatpush.msra.mxu0 %v264
      %v266 = vand.u32 %v220, 4294901760
      %267 = vmatpush.msra.mxu0 %v266
      %v268 = vand.u32 %v219, 4294901760
      %269 = vmatpush.msra.mxu0 %v268
      %v270 = vand.u32 %v218, 4294901760
      %271 = vmatpush.msra.mxu0 %v270
      %v272 = vand.u32 %v217, 4294901760
      %273 = vmatpush.msra.mxu0 %v272
      %v274 = vand.u32 %v216, 4294901760
      %275 = vmatpush.msra.mxu0 %v274
      %v276 = vand.u32 %v215, 4294901760
      %277 = vmatpush.msra.mxu0 %v276
      %v278 = vand.u32 %v214, 4294901760
      %279 = vmatpush.msra.mxu0 %v278
      %v280 = vand.u32 %v208, 4294901760
      %v281 = vsub.f32 %v208, %v280
      %v282 = vand.u32 %v281, 4294901760
      %v283 = vsub.f32 %v281, %v282
      %v284 = vand.u32 %v283, 4294901760
      %285 = vmatmul.f32.gmra.mxu0 %v284
      %v286 = vpop.f32.mrf.mxu0
      %v287 = vadd.f32 %v236, %v286
      %v288 = vand.u32 %v210, 4294901760
      %v289 = vsub.f32 %v210, %v288
      %v290 = vand.u32 %v289, 4294901760
      %v291 = vsub.f32 %v289, %v290
      %v292 = vand.u32 %v291, 4294901760
      %293 = vmatmul.f32.gmra.mxu0 %v292
      %v294 = vpop.f32.mrf.mxu0
      %v295 = vadd.f32 %v236, %v294
      %v296 = vand.u32 %v212, 4294901760
      %v297 = vsub.f32 %v212, %v296
      %v298 = vand.u32 %v297, 4294901760
      %v299 = vsub.f32 %v297, %v298
      %v300 = vand.u32 %v299, 4294901760
      %301 = vmatmul.f32.gmra.mxu0 %v300
      %v302 = vpop.f32.mrf.mxu0
      %v303 = vadd.f32 %v236, %v302
      %304 = vdwg.mxu0
      %v305 = vand.u32 %v229, 4294901760
      %v306 = vsub.f32 %v229, %v305
      %v307 = vand.u32 %v306, 4294901760
      %v308 = vsub.f32 %v306, %v307
      %v309 = vand.u32 %v308, 4294901760
      %310 = vmatpush.msra.mxu0 %v309
      %v311 = vand.u32 %v228, 4294901760
      %v312 = vsub.f32 %v228, %v311
      %v313 = vand.u32 %v312, 4294901760
      %v314 = vsub.f32 %v312, %v313
      %v315 = vand.u32 %v314, 4294901760
      %316 = vmatpush.msra.mxu0 %v315
      %v317 = vand.u32 %v227, 4294901760
      %v318 = vsub.f32 %v227, %v317
      %v319 = vand.u32 %v318, 4294901760
      %v320 = vsub.f32 %v318, %v319
      %v321 = vand.u32 %v320, 4294901760
      %322 = vmatpush.msra.mxu0 %v321
      %v323 = vand.u32 %v226, 4294901760
      %v324 = vsub.f32 %v226, %v323
      %v325 = vand.u32 %v324, 4294901760
      %v326 = vsub.f32 %v324, %v325
      %v327 = vand.u32 %v326, 4294901760
      %328 = vmatpush.msra.mxu0 %v327
      %v329 = vand.u32 %v225, 4294901760
      %v330 = vsub.f32 %v225, %v329
      %v331 = vand.u32 %v330, 4294901760
      %v332 = vsub.f32 %v330, %v331
      %v333 = vand.u32 %v332, 4294901760
      %334 = vmatpush.msra.mxu0 %v333
      %v335 = vand.u32 %v224, 4294901760
      %v336 = vsub.f32 %v224, %v335
      %v337 = vand.u32 %v336, 4294901760
      %v338 = vsub.f32 %v336, %v337
      %v339 = vand.u32 %v338, 4294901760
      %340 = vmatpush.msra.mxu0 %v339
      %v341 = vand.u32 %v223, 4294901760
      %v342 = vsub.f32 %v223, %v341
      %v343 = vand.u32 %v342, 4294901760
      %v344 = vsub.f32 %v342, %v343
      %v345 = vand.u32 %v344, 4294901760
      %346 = vmatpush.msra.mxu0 %v345
      %v347 = vand.u32 %v222, 4294901760
      %v348 = vsub.f32 %v222, %v347
      %v349 = vand.u32 %v348, 4294901760
      %v350 = vsub.f32 %v348, %v349
      %v351 = vand.u32 %v350, 4294901760
      %352 = vmatpush.msra.mxu0 %v351
      %v353 = vand.u32 %v221, 4294901760
      %v354 = vsub.f32 %v221, %v353
      %v355 = vand.u32 %v354, 4294901760
      %v356 = vsub.f32 %v354, %v355
      %v357 = vand.u32 %v356, 4294901760
      %358 = vmatpush.msra.mxu0 %v357
      %v359 = vand.u32 %v220, 4294901760
      %v360 = vsub.f32 %v220, %v359
      %v361 = vand.u32 %v360, 4294901760
      %v362 = vsub.f32 %v360, %v361
      %v363 = vand.u32 %v362, 4294901760
      %364 = vmatpush.msra.mxu0 %v363
      %v365 = vand.u32 %v219, 4294901760
      %v366 = vsub.f32 %v219, %v365
      %v367 = vand.u32 %v366, 4294901760
      %v368 = vsub.f32 %v366, %v367
      %v369 = vand.u32 %v368, 4294901760
      %370 = vmatpush.msra.mxu0 %v369
      %v371 = vand.u32 %v218, 4294901760
      %v372 = vsub.f32 %v218, %v371
      %v373 = vand.u32 %v372, 4294901760
      %v374 = vsub.f32 %v372, %v373
      %v375 = vand.u32 %v374, 4294901760
      %376 = vmatpush.msra.mxu0 %v375
      %v377 = vand.u32 %v217, 4294901760
      %v378 = vsub.f32 %v217, %v377
      %v379 = vand.u32 %v378, 4294901760
      %v380 = vsub.f32 %v378, %v379
      %v381 = vand.u32 %v380, 4294901760
      %382 = vmatpush.msra.mxu0 %v381
      %v383 = vand.u32 %v216, 4294901760
      %v384 = vsub.f32 %v216, %v383
      %v385 = vand.u32 %v384, 4294901760
      %v386 = vsub.f32 %v384, %v385
      %v387 = vand.u32 %v386, 4294901760
      %388 = vmatpush.msra.mxu0 %v387
      %v389 = vand.u32 %v215, 4294901760
      %v390 = vsub.f32 %v215, %v389
      %v391 = vand.u32 %v390, 4294901760
      %v392 = vsub.f32 %v390, %v391
      %v393 = vand.u32 %v392, 4294901760
      %394 = vmatpush.msra.mxu0 %v393
      %v395 = vand.u32 %v214, 4294901760
      %v396 = vsub.f32 %v214, %v395
      %v397 = vand.u32 %v396, 4294901760
      %v398 = vsub.f32 %v396, %v397
      %v399 = vand.u32 %v398, 4294901760
      %400 = vmatpush.msra.mxu0 %v399
      %v401 = vand.u32 %v208, 4294901760
      %402 = vmatmul.f32.gmra.mxu0 %v401
      %v403 = vpop.f32.mrf.mxu0
      %v404 = vadd.f32 %v287, %v403
      %v405 = vand.u32 %v210, 4294901760
      %406 = vmatmul.f32.gmra.mxu0 %v405
      %v407 = vpop.f32.mrf.mxu0
      %v408 = vadd.f32 %v295, %v407
      %v409 = vand.u32 %v212, 4294901760
      %410 = vmatmul.f32.gmra.mxu0 %v409
      %v411 = vpop.f32.mrf.mxu0
      %v412 = vadd.f32 %v303, %v411
      %413 = vdwg.mxu0
      %v414 = vand.u32 %v229, 4294901760
      %v415 = vsub.f32 %v229, %v414
      %416 = vmatpush.msra.mxu0 %v415
      %v417 = vand.u32 %v228, 4294901760
      %v418 = vsub.f32 %v228, %v417
      %419 = vmatpush.msra.mxu0 %v418
      %v420 = vand.u32 %v227, 4294901760
      %v421 = vsub.f32 %v227, %v420
      %422 = vmatpush.msra.mxu0 %v421
      %v423 = vand.u32 %v226, 4294901760
      %v424 = vsub.f32 %v226, %v423
      %425 = vmatpush.msra.mxu0 %v424
      %v426 = vand.u32 %v225, 4294901760
      %v427 = vsub.f32 %v225, %v426
      %428 = vmatpush.msra.mxu0 %v427
      %v429 = vand.u32 %v224, 4294901760
      %v430 = vsub.f32 %v224, %v429
      %431 = vmatpush.msra.mxu0 %v430
      %v432 = vand.u32 %v223, 4294901760
      %v433 = vsub.f32 %v223, %v432
      %434 = vmatpush.msra.mxu0 %v433
      %v435 = vand.u32 %v222, 4294901760
      %v436 = vsub.f32 %v222, %v435
      %437 = vmatpush.msra.mxu0 %v436
      %v438 = vand.u32 %v221, 4294901760
      %v439 = vsub.f32 %v221, %v438
      %440 = vmatpush.msra.mxu0 %v439
      %v441 = vand.u32 %v220, 4294901760
      %v442 = vsub.f32 %v220, %v441
      %443 = vmatpush.msra.mxu0 %v442
      %v444 = vand.u32 %v219, 4294901760
      %v445 = vsub.f32 %v219, %v444
      %446 = vmatpush.msra.mxu0 %v445
      %v447 = vand.u32 %v218, 4294901760
      %v448 = vsub.f32 %v218, %v447
      %449 = vmatpush.msra.mxu0 %v448
      %v450 = vand.u32 %v217, 4294901760
      %v451 = vsub.f32 %v217, %v450
      %452 = vmatpush.msra.mxu0 %v451
      %v453 = vand.u32 %v216, 4294901760
      %v454 = vsub.f32 %v216, %v453
      %455 = vmatpush.msra.mxu0 %v454
      %v456 = vand.u32 %v215, 4294901760
      %v457 = vsub.f32 %v215, %v456
      %458 = vmatpush.msra.mxu0 %v457
      %v459 = vand.u32 %v214, 4294901760
      %v460 = vsub.f32 %v214, %v459
      %461 = vmatpush.msra.mxu0 %v460
      %v462 = vand.u32 %v208, 4294901760
      %v463 = vsub.f32 %v208, %v462
      %464 = vmatmul.f32.gmra.mxu0 %v463
      %v465 = vpop.f32.mrf.mxu0
      %v466 = vadd.f32 %v404, %v465
      %v467 = vand.u32 %v210, 4294901760
      %v468 = vsub.f32 %v210, %v467
      %469 = vmatmul.f32.gmra.mxu0 %v468
      %v470 = vpop.f32.mrf.mxu0
      %v471 = vadd.f32 %v408, %v470
      %v472 = vand.u32 %v212, 4294901760
      %v473 = vsub.f32 %v212, %v472
      %474 = vmatmul.f32.gmra.mxu0 %v473
      %v475 = vpop.f32.mrf.mxu0
      %v476 = vadd.f32 %v412, %v475
      %477 = vdwg.mxu0
      %v478 = vand.u32 %v229, 4294901760
      %479 = vmatpush.msra.mxu0 %v478
      %v480 = vand.u32 %v228, 4294901760
      %481 = vmatpush.msra.mxu0 %v480
      %v482 = vand.u32 %v227, 4294901760
      %483 = vmatpush.msra.mxu0 %v482
      %v484 = vand.u32 %v226, 4294901760
      %485 = vmatpush.msra.mxu0 %v484
      %v486 = vand.u32 %v225, 4294901760
      %487 = vmatpush.msra.mxu0 %v486
      %v488 = vand.u32 %v224, 4294901760
      %489 = vmatpush.msra.mxu0 %v488
      %v490 = vand.u32 %v223, 4294901760
      %491 = vmatpush.msra.mxu0 %v490
      %v492 = vand.u32 %v222, 4294901760
      %493 = vmatpush.msra.mxu0 %v492
      %v494 = vand.u32 %v221, 4294901760
      %495 = vmatpush.msra.mxu0 %v494
      %v496 = vand.u32 %v220, 4294901760
      %497 = vmatpush.msra.mxu0 %v496
      %v498 = vand.u32 %v219, 4294901760
      %499 = vmatpush.msra.mxu0 %v498
      %v500 = vand.u32 %v218, 4294901760
      %501 = vmatpush.msra.mxu0 %v500
      %v502 = vand.u32 %v217, 4294901760
      %503 = vmatpush.msra.mxu0 %v502
      %v504 = vand.u32 %v216, 4294901760
      %505 = vmatpush.msra.mxu0 %v504
      %v506 = vand.u32 %v215, 4294901760
      %507 = vmatpush.msra.mxu0 %v506
      %v508 = vand.u32 %v214, 4294901760
      %509 = vmatpush.msra.mxu0 %v508
      %v510 = vand.u32 %v208, 4294901760
      %v511 = vsub.f32 %v208, %v510
      %v512 = vand.u32 %v511, 4294901760
      %513 = vmatmul.f32.gmra.mxu0 %v512
      %v514 = vpop.f32.mrf.mxu0
      %v515 = vadd.f32 %v466, %v514
      %v516 = vand.u32 %v210, 4294901760
      %v517 = vsub.f32 %v210, %v516
      %v518 = vand.u32 %v517, 4294901760
      %519 = vmatmul.f32.gmra.mxu0 %v518
      %v520 = vpop.f32.mrf.mxu0
      %v521 = vadd.f32 %v471, %v520
      %v522 = vand.u32 %v212, 4294901760
      %v523 = vsub.f32 %v212, %v522
      %v524 = vand.u32 %v523, 4294901760
      %525 = vmatmul.f32.gmra.mxu0 %v524
      %v526 = vpop.f32.mrf.mxu0
      %v527 = vadd.f32 %v476, %v526
      %528 = vdwg.mxu0
      %v529 = vand.u32 %v229, 4294901760
      %v530 = vsub.f32 %v229, %v529
      %v531 = vand.u32 %v530, 4294901760
      %532 = vmatpush.msra.mxu0 %v531
      %v533 = vand.u32 %v228, 4294901760
      %v534 = vsub.f32 %v228, %v533
      %v535 = vand.u32 %v534, 4294901760
      %536 = vmatpush.msra.mxu0 %v535
      %v537 = vand.u32 %v227, 4294901760
      %v538 = vsub.f32 %v227, %v537
      %v539 = vand.u32 %v538, 4294901760
      %540 = vmatpush.msra.mxu0 %v539
      %v541 = vand.u32 %v226, 4294901760
      %v542 = vsub.f32 %v226, %v541
      %v543 = vand.u32 %v542, 4294901760
      %544 = vmatpush.msra.mxu0 %v543
      %v545 = vand.u32 %v225, 4294901760
      %v546 = vsub.f32 %v225, %v545
      %v547 = vand.u32 %v546, 4294901760
      %548 = vmatpush.msra.mxu0 %v547
      %v549 = vand.u32 %v224, 4294901760
      %v550 = vsub.f32 %v224, %v549
      %v551 = vand.u32 %v550, 4294901760
      %552 = vmatpush.msra.mxu0 %v551
      %v553 = vand.u32 %v223, 4294901760
      %v554 = vsub.f32 %v223, %v553
      %v555 = vand.u32 %v554, 4294901760
      %556 = vmatpush.msra.mxu0 %v555
      %v557 = vand.u32 %v222, 4294901760
      %v558 = vsub.f32 %v222, %v557
      %v559 = vand.u32 %v558, 4294901760
      %560 = vmatpush.msra.mxu0 %v559
      %v561 = vand.u32 %v221, 4294901760
      %v562 = vsub.f32 %v221, %v561
      %v563 = vand.u32 %v562, 4294901760
      %564 = vmatpush.msra.mxu0 %v563
      %v565 = vand.u32 %v220, 4294901760
      %v566 = vsub.f32 %v220, %v565
      %v567 = vand.u32 %v566, 4294901760
      %568 = vmatpush.msra.mxu0 %v567
      %v569 = vand.u32 %v219, 4294901760
      %v570 = vsub.f32 %v219, %v569
      %v571 = vand.u32 %v570, 4294901760
      %572 = vmatpush.msra.mxu0 %v571
      %v573 = vand.u32 %v218, 4294901760
      %v574 = vsub.f32 %v218, %v573
      %v575 = vand.u32 %v574, 4294901760
      %576 = vmatpush.msra.mxu0 %v575
      %v577 = vand.u32 %v217, 4294901760
      %v578 = vsub.f32 %v217, %v577
      %v579 = vand.u32 %v578, 4294901760
      %580 = vmatpush.msra.mxu0 %v579
      %v581 = vand.u32 %v216, 4294901760
      %v582 = vsub.f32 %v216, %v581
      %v583 = vand.u32 %v582, 4294901760
      %584 = vmatpush.msra.mxu0 %v583
      %v585 = vand.u32 %v215, 4294901760
      %v586 = vsub.f32 %v215, %v585
      %v587 = vand.u32 %v586, 4294901760
      %588 = vmatpush.msra.mxu0 %v587
      %v589 = vand.u32 %v214, 4294901760
      %v590 = vsub.f32 %v214, %v589
      %v591 = vand.u32 %v590, 4294901760
      %592 = vmatpush.msra.mxu0 %v591
      %v593 = vand.u32 %v208, 4294901760
      %594 = vmatmul.f32.gmra.mxu0 %v593
      %v595 = vpop.f32.mrf.mxu0
      %v596 = vadd.f32 %v515, %v595
      %v597 = vand.u32 %v210, 4294901760
      %598 = vmatmul.f32.gmra.mxu0 %v597
      %v599 = vpop.f32.mrf.mxu0
      %v600 = vadd.f32 %v521, %v599
      %v601 = vand.u32 %v212, 4294901760
      %602 = vmatmul.f32.gmra.mxu0 %v601
      %v603 = vpop.f32.mrf.mxu0
      %v604 = vadd.f32 %v527, %v603
      %605 = vdwg.mxu0
      %v606 = vand.u32 %v229, 4294901760
      %607 = vmatpush.msra.mxu0 %v606
      %v608 = vand.u32 %v228, 4294901760
      %609 = vmatpush.msra.mxu0 %v608
      %v610 = vand.u32 %v227, 4294901760
      %611 = vmatpush.msra.mxu0 %v610
      %v612 = vand.u32 %v226, 4294901760
      %613 = vmatpush.msra.mxu0 %v612
      %v614 = vand.u32 %v225, 4294901760
      %615 = vmatpush.msra.mxu0 %v614
      %v616 = vand.u32 %v224, 4294901760
      %617 = vmatpush.msra.mxu0 %v616
      %v618 = vand.u32 %v223, 4294901760
      %619 = vmatpush.msra.mxu0 %v618
      %v620 = vand.u32 %v222, 4294901760
      %621 = vmatpush.msra.mxu0 %v620
      %v622 = vand.u32 %v221, 4294901760
      %623 = vmatpush.msra.mxu0 %v622
      %v624 = vand.u32 %v220, 4294901760
      %625 = vmatpush.msra.mxu0 %v624
      %v626 = vand.u32 %v219, 4294901760
      %627 = vmatpush.msra.mxu0 %v626
      %v628 = vand.u32 %v218, 4294901760
      %629 = vmatpush.msra.mxu0 %v628
      %v630 = vand.u32 %v217, 4294901760
      %631 = vmatpush.msra.mxu0 %v630
      %v632 = vand.u32 %v216, 4294901760
      %633 = vmatpush.msra.mxu0 %v632
      %v634 = vand.u32 %v215, 4294901760
      %635 = vmatpush.msra.mxu0 %v634
      %v636 = vand.u32 %v214, 4294901760
      %637 = vmatpush.msra.mxu0 %v636
      %v638 = vand.u32 %v208, 4294901760
      %639 = vmatmul.f32.gmra.mxu0 %v638
      %v640 = vpop.f32.mrf.mxu0
      %v641 = vadd.f32 %v596, %v640
      %v642 = vand.u32 %v210, 4294901760
      %643 = vmatmul.f32.gmra.mxu0 %v642
      %v644 = vpop.f32.mrf.mxu0
      %v645 = vadd.f32 %v600, %v644
      %v646 = vand.u32 %v212, 4294901760
      %647 = vmatmul.f32.gmra.mxu0 %v646
      %v648 = vpop.f32.mrf.mxu0
      %v649 = vadd.f32 %v604, %v648
      %650 = vdwg.mxu0
      %651 = vmatpush.msra.mxu0 0.0
      %652 = vmatpush.msra.mxu0 0.0
      %653 = vmatpush.msra.mxu0 0.0
      %654 = vmatpush.msra.mxu0 0.0
      %655 = vmatpush.msra.mxu0 0.0
      %656 = vmatpush.msra.mxu0 0.0
      %657 = vmatpush.msra.mxu0 0.0
      %658 = vmatpush.msra.mxu0 0.0
      %659 = vmatpush.msra.mxu0 0.0
      %660 = vmatpush.msra.mxu0 0.0
      %661 = vmatpush.msra.mxu0 0.0
      %662 = vmatpush.msra.mxu0 0.0
      %v663 = vand.u32 %v233, 4294901760
      %664 = vmatpush.msra.mxu0 %v663
      %v665 = vand.u32 %v232, 4294901760
      %666 = vmatpush.msra.mxu0 %v665
      %v667 = vand.u32 %v231, 4294901760
      %668 = vmatpush.msra.mxu0 %v667
      %v669 = vand.u32 %v230, 4294901760
      %670 = vmatpush.msra.mxu0 %v669
      %v671 = vand.u32 %v240, 4294901760
      %v672 = vsub.f32 %v240, %v671
      %v673 = vand.u32 %v672, 4294901760
      %v674 = vsub.f32 %v672, %v673
      %v675 = vand.u32 %v674, 4294901760
      %676 = vmatmul.f32.gmra.mxu0 %v675
      %v677 = vpop.f32.mrf.mxu0
      %v678 = vadd.f32 %v641, %v677
      %v679 = vand.u32 %v243, 4294901760
      %v680 = vsub.f32 %v243, %v679
      %v681 = vand.u32 %v680, 4294901760
      %v682 = vsub.f32 %v680, %v681
      %v683 = vand.u32 %v682, 4294901760
      %684 = vmatmul.f32.gmra.mxu0 %v683
      %v685 = vpop.f32.mrf.mxu0
      %v686 = vadd.f32 %v645, %v685
      %v687 = vand.u32 %v246, 4294901760
      %v688 = vsub.f32 %v246, %v687
      %v689 = vand.u32 %v688, 4294901760
      %v690 = vsub.f32 %v688, %v689
      %v691 = vand.u32 %v690, 4294901760
      %692 = vmatmul.f32.gmra.mxu0 %v691
      %v693 = vpop.f32.mrf.mxu0
      %v694 = vadd.f32 %v649, %v693
      %695 = vdwg.mxu0
      %696 = vmatpush.msra.mxu0 0.0
      %697 = vmatpush.msra.mxu0 0.0
      %698 = vmatpush.msra.mxu0 0.0
      %699 = vmatpush.msra.mxu0 0.0
      %700 = vmatpush.msra.mxu0 0.0
      %701 = vmatpush.msra.mxu0 0.0
      %702 = vmatpush.msra.mxu0 0.0
      %703 = vmatpush.msra.mxu0 0.0
      %704 = vmatpush.msra.mxu0 0.0
      %705 = vmatpush.msra.mxu0 0.0
      %706 = vmatpush.msra.mxu0 0.0
      %707 = vmatpush.msra.mxu0 0.0
      %v708 = vand.u32 %v233, 4294901760
      %v709 = vsub.f32 %v233, %v708
      %v710 = vand.u32 %v709, 4294901760
      %v711 = vsub.f32 %v709, %v710
      %v712 = vand.u32 %v711, 4294901760
      %713 = vmatpush.msra.mxu0 %v712
      %v714 = vand.u32 %v232, 4294901760
      %v715 = vsub.f32 %v232, %v714
      %v716 = vand.u32 %v715, 4294901760
      %v717 = vsub.f32 %v715, %v716
      %v718 = vand.u32 %v717, 4294901760
      %719 = vmatpush.msra.mxu0 %v718
      %v720 = vand.u32 %v231, 4294901760
      %v721 = vsub.f32 %v231, %v720
      %v722 = vand.u32 %v721, 4294901760
      %v723 = vsub.f32 %v721, %v722
      %v724 = vand.u32 %v723, 4294901760
      %725 = vmatpush.msra.mxu0 %v724
      %v726 = vand.u32 %v230, 4294901760
      %v727 = vsub.f32 %v230, %v726
      %v728 = vand.u32 %v727, 4294901760
      %v729 = vsub.f32 %v727, %v728
      %v730 = vand.u32 %v729, 4294901760
      %731 = vmatpush.msra.mxu0 %v730
      %v732 = vand.u32 %v240, 4294901760
      %733 = vmatmul.f32.gmra.mxu0 %v732
      %v734 = vpop.f32.mrf.mxu0
      %v735 = vadd.f32 %v678, %v734
      %v736 = vand.u32 %v243, 4294901760
      %737 = vmatmul.f32.gmra.mxu0 %v736
      %v738 = vpop.f32.mrf.mxu0
      %v739 = vadd.f32 %v686, %v738
      %v740 = vand.u32 %v246, 4294901760
      %741 = vmatmul.f32.gmra.mxu0 %v740
      %v742 = vpop.f32.mrf.mxu0
      %v743 = vadd.f32 %v694, %v742
      %744 = vdwg.mxu0
      %745 = vmatpush.msra.mxu0 0.0
      %746 = vmatpush.msra.mxu0 0.0
      %747 = vmatpush.msra.mxu0 0.0
      %748 = vmatpush.msra.mxu0 0.0
      %749 = vmatpush.msra.mxu0 0.0
      %750 = vmatpush.msra.mxu0 0.0
      %751 = vmatpush.msra.mxu0 0.0
      %752 = vmatpush.msra.mxu0 0.0
      %753 = vmatpush.msra.mxu0 0.0
      %754 = vmatpush.msra.mxu0 0.0
      %755 = vmatpush.msra.mxu0 0.0
      %756 = vmatpush.msra.mxu0 0.0
      %v757 = vand.u32 %v233, 4294901760
      %v758 = vsub.f32 %v233, %v757
      %759 = vmatpush.msra.mxu0 %v758
      %v760 = vand.u32 %v232, 4294901760
      %v761 = vsub.f32 %v232, %v760
      %762 = vmatpush.msra.mxu0 %v761
      %v763 = vand.u32 %v231, 4294901760
      %v764 = vsub.f32 %v231, %v763
      %765 = vmatpush.msra.mxu0 %v764
      %v766 = vand.u32 %v230, 4294901760
      %v767 = vsub.f32 %v230, %v766
      %768 = vmatpush.msra.mxu0 %v767
      %v769 = vand.u32 %v240, 4294901760
      %v770 = vsub.f32 %v240, %v769
      %771 = vmatmul.f32.gmra.mxu0 %v770
      %v772 = vpop.f32.mrf.mxu0
      %v773 = vadd.f32 %v735, %v772
      %v774 = vand.u32 %v243, 4294901760
      %v775 = vsub.f32 %v243, %v774
      %776 = vmatmul.f32.gmra.mxu0 %v775
      %v777 = vpop.f32.mrf.mxu0
      %v778 = vadd.f32 %v739, %v777
      %v779 = vand.u32 %v246, 4294901760
      %v780 = vsub.f32 %v246, %v779
      %781 = vmatmul.f32.gmra.mxu0 %v780
      %v782 = vpop.f32.mrf.mxu0
      %v783 = vadd.f32 %v743, %v782
      %784 = vdwg.mxu0
      %785 = vmatpush.msra.mxu0 0.0
      %786 = vmatpush.msra.mxu0 0.0
      %787 = vmatpush.msra.mxu0 0.0
      %788 = vmatpush.msra.mxu0 0.0
      %789 = vmatpush.msra.mxu0 0.0
      %790 = vmatpush.msra.mxu0 0.0
      %791 = vmatpush.msra.mxu0 0.0
      %792 = vmatpush.msra.mxu0 0.0
      %793 = vmatpush.msra.mxu0 0.0
      %794 = vmatpush.msra.mxu0 0.0
      %795 = vmatpush.msra.mxu0 0.0
      %796 = vmatpush.msra.mxu0 0.0
      %v797 = vand.u32 %v233, 4294901760
      %798 = vmatpush.msra.mxu0 %v797
      %v799 = vand.u32 %v232, 4294901760
      %800 = vmatpush.msra.mxu0 %v799
      %v801 = vand.u32 %v231, 4294901760
      %802 = vmatpush.msra.mxu0 %v801
      %v803 = vand.u32 %v230, 4294901760
      %804 = vmatpush.msra.mxu0 %v803
      %v805 = vand.u32 %v240, 4294901760
      %v806 = vsub.f32 %v240, %v805
      %v807 = vand.u32 %v806, 4294901760
      %808 = vmatmul.f32.gmra.mxu0 %v807
      %v809 = vpop.f32.mrf.mxu0
      %v810 = vadd.f32 %v773, %v809
      %v811 = vand.u32 %v243, 4294901760
      %v812 = vsub.f32 %v243, %v811
      %v813 = vand.u32 %v812, 4294901760
      %814 = vmatmul.f32.gmra.mxu0 %v813
      %v815 = vpop.f32.mrf.mxu0
      %v816 = vadd.f32 %v778, %v815
      %v817 = vand.u32 %v246, 4294901760
      %v818 = vsub.f32 %v246, %v817
      %v819 = vand.u32 %v818, 4294901760
      %820 = vmatmul.f32.gmra.mxu0 %v819
      %v821 = vpop.f32.mrf.mxu0
      %v822 = vadd.f32 %v783, %v821
      %823 = vdwg.mxu0
      %824 = vmatpush.msra.mxu0 0.0
      %825 = vmatpush.msra.mxu0 0.0
      %826 = vmatpush.msra.mxu0 0.0
      %827 = vmatpush.msra.mxu0 0.0
      %828 = vmatpush.msra.mxu0 0.0
      %829 = vmatpush.msra.mxu0 0.0
      %830 = vmatpush.msra.mxu0 0.0
      %831 = vmatpush.msra.mxu0 0.0
      %832 = vmatpush.msra.mxu0 0.0
      %833 = vmatpush.msra.mxu0 0.0
      %834 = vmatpush.msra.mxu0 0.0
      %835 = vmatpush.msra.mxu0 0.0
      %v836 = vand.u32 %v233, 4294901760
      %v837 = vsub.f32 %v233, %v836
      %v838 = vand.u32 %v837, 4294901760
      %839 = vmatpush.msra.mxu0 %v838
      %v840 = vand.u32 %v232, 4294901760
      %v841 = vsub.f32 %v232, %v840
      %v842 = vand.u32 %v841, 4294901760
      %843 = vmatpush.msra.mxu0 %v842
      %v844 = vand.u32 %v231, 4294901760
      %v845 = vsub.f32 %v231, %v844
      %v846 = vand.u32 %v845, 4294901760
      %847 = vmatpush.msra.mxu0 %v846
      %v848 = vand.u32 %v230, 4294901760
      %v849 = vsub.f32 %v230, %v848
      %v850 = vand.u32 %v849, 4294901760
      %851 = vmatpush.msra.mxu0 %v850
      %v852 = vand.u32 %v240, 4294901760
      %853 = vmatmul.f32.gmra.mxu0 %v852
      %v854 = vpop.f32.mrf.mxu0
      %v855 = vadd.f32 %v810, %v854
      %v856 = vand.u32 %v243, 4294901760
      %857 = vmatmul.f32.gmra.mxu0 %v856
      %v858 = vpop.f32.mrf.mxu0
      %v859 = vadd.f32 %v816, %v858
      %v860 = vand.u32 %v246, 4294901760
      %861 = vmatmul.f32.gmra.mxu0 %v860
      %v862 = vpop.f32.mrf.mxu0
      %v863 = vadd.f32 %v822, %v862
      %864 = vdwg.mxu0
      %865 = vmatpush.msra.mxu0 0.0
      %866 = vmatpush.msra.mxu0 0.0
      %867 = vmatpush.msra.mxu0 0.0
      %868 = vmatpush.msra.mxu0 0.0
      %869 = vmatpush.msra.mxu0 0.0
      %870 = vmatpush.msra.mxu0 0.0
      %871 = vmatpush.msra.mxu0 0.0
      %872 = vmatpush.msra.mxu0 0.0
      %873 = vmatpush.msra.mxu0 0.0
      %874 = vmatpush.msra.mxu0 0.0
      %875 = vmatpush.msra.mxu0 0.0
      %876 = vmatpush.msra.mxu0 0.0
      %v877 = vand.u32 %v233, 4294901760
      %878 = vmatpush.msra.mxu0 %v877
      %v879 = vand.u32 %v232, 4294901760
      %880 = vmatpush.msra.mxu0 %v879
      %v881 = vand.u32 %v231, 4294901760
      %882 = vmatpush.msra.mxu0 %v881
      %v883 = vand.u32 %v230, 4294901760
      %884 = vmatpush.msra.mxu0 %v883
      %v885 = vand.u32 %v240, 4294901760
      %886 = vmatmul.f32.gmra.mxu0 %v885
      %v887 = vpop.f32.mrf.mxu0
      %v888 = vadd.f32 %v855, %v887
      %v889 = vand.u32 %v243, 4294901760
      %890 = vmatmul.f32.gmra.mxu0 %v889
      %v891 = vpop.f32.mrf.mxu0
      %v892 = vadd.f32 %v859, %v891
      %v893 = vand.u32 %v246, 4294901760
      %894 = vmatmul.f32.gmra.mxu0 %v893
      %v895 = vpop.f32.mrf.mxu0
      %v896 = vadd.f32 %v863, %v895
      %897 = vdwg.mxu0
      %vm898 = vcmp.gt.f32.partialorder %v888, 0.0
      %vm899 = vcmp.gt.f32.partialorder %v892, 0.0
      %vm900 = vcmp.gt.f32.partialorder %v896, 0.0
      %v901 = vmin.f32 %v888, 0.0
      %v902 = vmin.f32 %v892, 0.0
      %v903 = vmin.f32 %v896, 0.0
      %v904 = vmul.f32 %v901, 1.442695
      %v905 = vpow.pop %v904
      %v906 = vmul.f32 %v902, 1.442695
      %v907 = vpow.pop %v906
      %v908 = vmul.f32 %v903, 1.442695
      %v909 = vpow.pop %v908
      %v910 = vsub.f32 %v905, 1.0
      %v911 = vsub.f32 %v907, 1.0
      %v912 = vsub.f32 %v909, 1.0
      %v913 = vsel %vm898, %v888, %v910
      %v914 = vsel %vm899, %v892, %v911
      %v915 = vsel %vm900, %v896, %v912
      %vm916 = vcmask 162816
      %917 = vst.msk [vmem:[%s200] sm:$0xff] %vm916, %v913
      %918 = vst.msk [vmem:[%s200 + $0x8] sm:$0xff] %vm916, %v914
      %919 = vst.msk [vmem:[%s200 + $0x10] sm:$0xff] %vm916, %v915
      %s920 = smul.u32 %s16, 24
      %v921 = vlaneseq
      %v922 = vshrl.u32 %v921, 7
      %v923 = vadd.s32 %v922, 8
      %v924 = vadd.s32 %v922, 16
      %v925 = vstv %s920
      %v926 = vadd.s32 %v925, %v922
      %v927 = vadd.s32 %v925, %v923
      %v928 = vadd.s32 %v925, %v924
      %vm929 = vcmp.lt.s32.totalorder %v926, 32
      %vm930 = vcmp.lt.s32.totalorder %v927, 32
      %vm931 = vcmp.lt.s32.totalorder %v928, 32
      %v932 = vsel %vm929, 1, 0
      %v933 = vsel %vm930, 1, 0
      %v934 = vsel %vm931, 1, 0
      %v935 = vcvt.s32.f32 %v932
      %v936 = vcvt.s32.f32 %v933
      %v937 = vcvt.s32.f32 %v934
      %v938 = vmul.f32 %v913, %v935
      %v939 = vmul.f32 %v914, %v936
      %v940 = vmul.f32 %v915, %v937
      %v941 = vld [vmem:[%s4] sm:$0x1]
      %v942 = vsel %vm916, %v938, 0.0
      %v943 = vsel %vm916, %v939, 0.0
      %v944 = vadd.f32 %v942, %v943
      %v945 = vsel %vm916, %v940, 0.0
      %v946 = vadd.f32 %v944, %v945
      %v947 = vrot.slane %v946, 4
      %v948 = vadd.f32 %v946, %v947
      %v949 = vrot.slane %v948, 2
      %v950 = vadd.f32 %v948, %v949
      %v951 = vrot.slane %v950, 1
      %v952 = vadd.f32 %v950, %v951
      %v953 = vadd.f32 %v941, %v952
      %vm954 = vcmask 155648
      %955 = vst.msk [vmem:[%s4] sm:$0x1] %vm954, %v953
      %v956 = vld [vmem:[%s4 + $0x1] sm:$0x1]
      %v957 = vmul.f32 %v938, %v913
      %v958 = vmul.f32 %v939, %v914
      %v959 = vmul.f32 %v940, %v915
      %v960 = vsel %vm916, %v957, 0.0
      %v961 = vsel %vm916, %v958, 0.0
      %v962 = vadd.f32 %v960, %v961
      %v963 = vsel %vm916, %v959, 0.0
      %v964 = vadd.f32 %v962, %v963
      %v965 = vrot.slane %v964, 4
      %v966 = vadd.f32 %v964, %v965
      %v967 = vrot.slane %v966, 2
      %v968 = vadd.f32 %v966, %v967
      %v969 = vrot.slane %v968, 1
      %v970 = vadd.f32 %v968, %v969
      %v971 = vadd.f32 %v956, %v970
      %972 = vst.msk [vmem:[%s4 + $0x1] sm:$0x1] %vm954, %v971
      %s973 = smul.u32 3, %s16
      %p974 = scmp.lt.s32.totalorder %s973, 5
      %s975 = scalar_select %p974, %s973, 5
      %s976 = smul.addr %s975, 8
      %s977 = scalar_lea.vmem %s3, %s976
      // Predicated region
      $region37: #{_lambda_.23} parent=31 // pred_check
        %p978 = pneg %p102
      $region38: #{_lambda_.23} parent=31 // pred_check_branch
        %980 = sbr.rel (%p978) target = $region40
      $region39: #{_lambda_.23} parent=31 // pred_region
        %s981 = smul.u32 3, %s16
      $region40: #{_lambda_.23} parent=31 // pred_fallthru
        _
      // Predicated region
      $region41: #{_lambda_.23} parent=31 // pred_check
        %p982 = pneg %p123
      $region42: #{_lambda_.23} parent=31 // pred_check_branch
        %984 = sbr.rel (%p982) target = $region44
      $region43: #{_lambda_.23} parent=31 // pred_region
        _
      $region44: #{_lambda_.23} parent=31 // pred_fallthru
        _
      // Predicated region
      $region45: #{_lambda_.23} parent=31 // pred_check
        %p985 = pneg %p123
      $region46: #{_lambda_.23} parent=31 // pred_check_branch
        %987 = sbr.rel (%p985) target = $region48
      $region47: #{_lambda_.23} parent=31 // pred_region
        _
      $region48: #{_lambda_.23} parent=31 // pred_fallthru
        _
    $region32: #{_lambda_.23} parent=5 // pred_fallthru
      _
    %p988 = scmp.le.s32.totalorder 2, %s11
    // Predicated region
    $region49: #{_lambda_.23} parent=5 // pred_check
      %p989 = pneg %p988
    $region50: #{_lambda_.23} parent=5 // pred_check_branch
      %991 = sbr.rel (%p989) target = $region52
    $region51: #{_lambda_.23} parent=5 // pred_region
      %s992 = ssub.s32 %s11, 2
      // Predicated region
      $region53: #{_lambda_.23} parent=51 // pred_check
        %p993 = pneg %p108
      $region54: #{_lambda_.23} parent=51 // pred_check_branch
        %995 = sbr.rel (%p993) target = $region56
      $region55: #{_lambda_.23} parent=51 // pred_region
        %s996 = smul.u32 3, %s17
        %p997 = scmp.lt.s32.totalorder %s996, 5
        %s998 = scalar_select %p997, %s996, 5
        %s999 = smul.addr %s998, 8
        %s1000 = scalar_lea.vmem %s3, %s999
      $region56: #{_lambda_.23} parent=51 // pred_fallthru
        _
    $region52: #{_lambda_.23} parent=5 // pred_fallthru
      _
  $region6: #{_lambda_.23} parent=0 // loop_footer
    %s15 = sadd.s32 1, %s11
  $region7: #{_lambda_.23} parent=0 // loop_footer_branch
    %10 = sbr.rel target = $region3
  $region8: #{_lambda_.23} parent=0 // loop_exit
    _

// kernel: _lambda_.27
$region0: #{_lambda_.27}
  #allocation0 [shape = 'u32[]', space=smem, size = 0x4, offset = 0x4, fixed_abs, tag = 'smem constant byte address 0x4 - core index']
  #allocation1 [shape = 'u32[72,128]{1,0:T(1,128)}', space=vmem, size = 0x9000, scoped, tag = 'internal scratch']
  %s0 = inlined_call_operand.vmem [shape: f32[48,160], index: 0, kind: input, shape index: {}]
  %s1 = inlined_call_operand.vmem [shape: f32[160,40], index: 1, kind: input, shape index: {}]
  %s2 = inlined_call_operand.vmem [shape: f32[1,40], index: 2, kind: input, shape index: {}]
  %s3 = inlined_call_operand.vmem [shape: f32[48,40], index: 3, kind: output, shape index: {0}]
  %s4 = inlined_call_operand.vmem [shape: f32[2,40], index: 4, kind: output, shape index: {1}]
  %5 = xla_tuple %s3, %s4
  %s6 = sld [smem:[#allocation0]]
  $region57: #{_lambda_.27} parent=0
    _
  %s8 = ssub.s32 1, %s6
  %s9 = scalar_select 0, %s8, %s6
  loop: start=0, step=1, limit=4
  $region2: #{_lambda_.27} parent=0 // loop_pre_header
    _
  $region3: #{_lambda_.27} parent=0 // loop_header
    %s11 = sphi 0, %s15
    %p12 = scmp.ge.s32.totalorder %s11, 4
    %s21 = sphi 0, %s23
    %s24 = sphi 0, %s21
    %s25 = sphi 0, %s24
    %s41 = sphi 0, %s25
    %s45 = sphi 0, %s45
    %s47 = sphi 0, %s45
    %s48 = sphi 0, %s47
    %s62 = sphi 0, %s48
    %s66 = sphi 0, %s66
    %s68 = sphi 0, %s66
    %s69 = sphi 0, %s68
    %s83 = sphi 0, %s69
    %s89 = sphi 0, %s91
    %s92 = sphi 0, %s89
    %s93 = sphi 0, %s92
    %s109 = sphi 0, %s93
    %s113 = sphi 0, %s113
    %s115 = sphi 0, %s113
    %s116 = sphi 0, %s115
    %s130 = sphi 0, %s116
  $region4: #{_lambda_.27} parent=0 // loop_header_branch
    %14 = sbr.rel (%p12) target = $region8
  $region5: #{_lambda_.27} parent=0 // loop_body
    %s16 = ssub.s32 %s11, 1
    %s17 = ssub.s32 %s11, 2
    %s18 = sadd.s32 %s11, 1
    %s19 = ssub.s32 %s11, %s18
    %p20 = scmp.eq.s32.totalorder %s19, 0
    %s22 = sadd.s32 %s21, 1
    %s23 = scalar_select %p20, %s21, %s22
    %p26 = pneg %p20
    %p27 = scmp.eq.s32.totalorder %s11, 1
    %p28 = por %p26, %p27
    %p29 = scmp.ne.s32.totalorder %s21, %s24
    %p30 = scmp.eq.s32.totalorder %s11, 0
    %p31 = por %p29, %p30
    %p32 = scmp.ne.s32.totalorder %s21, %s24
    %p33 = scmp.eq.s32.totalorder %s16, 1
    %p34 = por %p32, %p33
    %p35 = scmp.ne.s32.totalorder %s24, %s25
    %p36 = scmp.eq.s32.totalorder %s16, 0
    %p37 = por %p35, %p36
    %p38 = scmp.ne.s32.totalorder %s24, %s25
    %p39 = scmp.eq.s32.totalorder %s17, 1
    %p40 = por %p38, %p39
    %p42 = scmp.ne.s32.totalorder %s25, %s41
    %p43 = scmp.eq.s32.totalorder %s17, 0
    %p44 = por %p42, %p43
    %s46 = sadd.s32 %s45, 1
    %p49 = scmp.eq.s32.totalorder %s11, 1
    %p50 = scmp.ne.s32.totalorder %s45, %s47
    %p51 = scmp.eq.s32.totalorder %s11, 0
    %p52 = por %p50, %p51
    %p53 = scmp.ne.s32.totalorder %s45, %s47
    %p54 = scmp.eq.s32.totalorder %s16, 1
    %p55 = por %p53, %p54
    %p56 = scmp.ne.s32.totalorder %s47, %s48
    %p57 = scmp.eq.s32.totalorder %s16, 0
    %p58 = por %p56, %p57
    %p59 = scmp.ne.s32.totalorder %s47, %s48
    %p60 = scmp.eq.s32.totalorder %s17, 1
    %p61 = por %p59, %p60
    %p63 = scmp.ne.s32.totalorder %s48, %s62
    %p64 = scmp.eq.s32.totalorder %s17, 0
    %p65 = por %p63, %p64
    %s67 = sadd.s32 %s66, 1
    %p70 = scmp.eq.s32.totalorder %s11, 1
    %p71 = scmp.ne.s32.totalorder %s66, %s68
    %p72 = scmp.eq.s32.totalorder %s11, 0
    %p73 = por %p71, %p72
    %p74 = scmp.ne.s32.totalorder %s66, %s68
    %p75 = scmp.eq.s32.totalorder %s16, 1
    %p76 = por %p74, %p75
    %p77 = scmp.ne.s32.totalorder %s68, %s69
    %p78 = scmp.eq.s32.totalorder %s16, 0
    %p79 = por %p77, %p78
    %p80 = scmp.ne.s32.totalorder %s68, %s69
    %p81 = scmp.eq.s32.totalorder %s17, 1
    %p82 = por %p80, %p81
    %p84 = scmp.ne.s32.totalorder %s69, %s83
    %p85 = scmp.eq.s32.totalorder %s17, 0
    %p86 = por %p84, %p85
    %s87 = ssub.s32 %s11, %s18
    %p88 = scmp.eq.s32.totalorder %s87, 0
    %s90 = sadd.s32 %s89, 1
    %s91 = scalar_select %p88, %s89, %s90
    %p94 = pneg %p88
    %p95 = scmp.eq.s32.totalorder %s11, 1
    %p96 = por %p94, %p95
    %p97 = scmp.ne.s32.totalorder %s89, %s92
    %p98 = scmp.eq.s32.totalorder %s11, 0
    %p99 = por %p97, %p98
    %p100 = scmp.ne.s32.totalorder %s89, %s92
    %p101 = scmp.eq.s32.totalorder %s16, 1
    %p102 = por %p100, %p101
    %p103 = scmp.ne.s32.totalorder %s92, %s93
    %p104 = scmp.eq.s32.totalorder %s16, 0
    %p105 = por %p103, %p104
    %p106 = scmp.ne.s32.totalorder %s92, %s93
    %p107 = scmp.eq.s32.totalorder %s17, 1
    %p108 = por %p106, %p107
    %p110 = scmp.ne.s32.totalorder %s93, %s109
    %p111 = scmp.eq.s32.totalorder %s17, 0
    %p112 = por %p110, %p111
    %s114 = sadd.s32 %s113, 1
    %p117 = scmp.eq.s32.totalorder %s11, 1
    %p118 = scmp.ne.s32.totalorder %s113, %s115
    %p119 = scmp.eq.s32.totalorder %s11, 0
    %p120 = por %p118, %p119
    %p121 = scmp.ne.s32.totalorder %s113, %s115
    %p122 = scmp.eq.s32.totalorder %s16, 1
    %p123 = por %p121, %p122
    %p124 = scmp.ne.s32.totalorder %s115, %s116
    %p125 = scmp.eq.s32.totalorder %s16, 0
    %p126 = por %p124, %p125
    %p127 = scmp.ne.s32.totalorder %s115, %s116
    %p128 = scmp.eq.s32.totalorder %s17, 1
    %p129 = por %p127, %p128
    %p131 = scmp.ne.s32.totalorder %s116, %s130
    %p132 = scmp.eq.s32.totalorder %s17, 0
    %p133 = por %p131, %p132
    %p134 = scmp.le.s32.totalorder 1, %s11
    %p135 = scmp.lt.s32.totalorder %s11, 3
    %p136 = pnand %p134, %p135
    %p137 = pneg %p136
    // Predicated region
    $region9: #{_lambda_.27} parent=5 // pred_check
      _
    $region10: #{_lambda_.27} parent=5 // pred_check_branch
      %139 = sbr.rel (%p136) target = $region12
    $region11: #{_lambda_.27} parent=5 // pred_region
      %s140 = ssub.s32 %s11, 1
      // Predicated region
      $region13: #{_lambda_.27} parent=11 // pred_check
        %p141 = pneg %p58
      $region14: #{_lambda_.27} parent=11 // pred_check_branch
        %143 = sbr.rel (%p141) target = $region16
      $region15: #{_lambda_.27} parent=11 // pred_region
        _
      $region16: #{_lambda_.27} parent=11 // pred_fallthru
        _
      // Predicated region
      $region17: #{_lambda_.27} parent=11 // pred_check
        %p144 = pneg %p79
      $region18: #{_lambda_.27} parent=11 // pred_check_branch
        %146 = sbr.rel (%p144) target = $region20
      $region19: #{_lambda_.27} parent=11 // pred_region
        _
      $region20: #{_lambda_.27} parent=11 // pred_fallthru
        _
    $region12: #{_lambda_.27} parent=5 // pred_fallthru
      _
    %p147 = scmp.lt.s32.totalorder %s11, 2
    // Predicated region
    $region21: #{_lambda_.27} parent=5 // pred_check
      %p148 = pneg %p147
    $region22: #{_lambda_.27} parent=5 // pred_check_branch
      %150 = sbr.rel (%p148) target = $region24
    $region23: #{_lambda_.27} parent=5 // pred_region
      // Predicated region
      $region25: #{_lambda_.27} parent=23 // pred_check
        %p151 = pneg %p31
      $region26: #{_lambda_.27} parent=23 // pred_check_branch
        %153 = sbr.rel (%p151) target = $region28
      $region27: #{_lambda_.27} parent=23 // pred_region
        %s154 = smul.u32 3, %s11
        %p155 = scmp.lt.s32.totalorder %s154, 5
        %s156 = scalar_select %p155, %s154, 5
        %s157 = smul.addr %s156, 2
        %s158 = smul.addr %s157, 8
        %s159 = scalar_lea.vmem %s0, %s158
        %s160 = smul.u32 3, %s11
      $region28: #{_lambda_.27} parent=23 // pred_fallthru
        _
    $region24: #{_lambda_.27} parent=5 // pred_fallthru
      _
    %p161 = scmp.le.s32.totalorder 1, %s11
    %p162 = scmp.lt.s32.totalorder %s11, 3
    %p163 = pnand %p161, %p162
    %p164 = pneg %p163
    // Predicated region
    $region29: #{_lambda_.27} parent=5 // pred_check
      _
    $region30: #{_lambda_.27} parent=5 // pred_check_branch
      %166 = sbr.rel (%p163) target = $region32
    $region31: #{_lambda_.27} parent=5 // pred_region
      %s167 = ssub.s32 %s11, 1
      %s168 = smul.u32 3, %s16
      %p169 = scmp.lt.s32.totalorder %s168, 5
      %s170 = scalar_select %p169, %s168, 5
      %s171 = smul.addr %s170, 2
      %s172 = smul.addr %s171, 8
      %s173 = scalar_lea.vmem %s0, %s172
      %p174 = pneg %p37
      %p175 = pneg %p34
      %p176 = pneg %p58
      %p177 = pneg %p55
      %p178 = pneg %p79
      %p179 = pneg %p76
      %p180 = pneg %p105
      %p181 = pneg %p102
      %s182 = smul.u32 3, %s16
      %p183 = scmp.lt.s32.totalorder %s182, 5
      %s184 = scalar_select %p183, %s182, 5
      %s185 = smul.addr %s184, 8
      %s186 = scalar_lea.vmem %s3, %s185
      %p187 = pneg %p126
      %p188 = pneg %p123
      %s189 = smul.u32 3, %s16
      %p190 = scmp.lt.s32.totalorder %s189, 5
      %s191 = scalar_select %p190, %s189, 5
      %s192 = smul.addr %s191, 2
      %s193 = smul.addr %s192, 8
      %s194 = scalar_lea.vmem %s0, %s193
      %s195 = smul.u32 3, %s16
      %s196 = smul.u32 3, %s16
      %p197 = scmp.lt.s32.totalorder %s196, 5
      %s198 = scalar_select %p197, %s196, 5
      %s199 = smul.addr %s198, 8
      %s200 = scalar_lea.vmem %s3, %s199
      %s201 = smul.u32 3, %s16
      %p202 = scmp.eq.s32.totalorder %s16, 0
      // Predicated region
      $region33: #{_lambda_.27} parent=31 // pred_check
        %p203 = pneg %p202
      $region34: #{_lambda_.27} parent=31 // pred_check_branch
        %205 = sbr.rel (%p203) target = $region36
      $region35: #{_lambda_.27} parent=31 // pred_region
        %vm206 = vcmask 320512
        %207 = vst.msk [vmem:[%s4] sm:$0x3] %vm206, 0.0
      $region36: #{_lambda_.27} parent=31 // pred_fallthru
        _
      %v208 = vld [vmem:[%s194] sm:$0xff]
      %v209 = vld [vmem:[%s194 + $0x8] sm:$0xff]
      %v210 = vld [vmem:[%s194 + $0x10] sm:$0xff]
      %v211 = vld [vmem:[%s194 + $0x18] sm:$0xff]
      %v212 = vld [vmem:[%s194 + $0x20] sm:$0xff]
      %v213 = vld [vmem:[%s194 + $0x28] sm:$0xff]
      %v214 = vld [vmem:[%s1] sm:$0xff]
      %v215 = vld [vmem:[%s1 + $0x8] sm:$0xff]
      %v216 = vld [vmem:[%s1 + $0x10] sm:$0xff]
      %v217 = vld [vmem:[%s1 + $0x18] sm:$0xff]
      %v218 = vld [vmem:[%s1 + $0x20] sm:$0xff]
      %v219 = vld [vmem:[%s1 + $0x28] sm:$0xff]
      %v220 = vld [vmem:[%s1 + $0x30] sm:$0xff]
      %v221 = vld [vmem:[%s1 + $0x38] sm:$0xff]
      %v222 = vld [vmem:[%s1 + $0x40] sm:$0xff]
      %v223 = vld [vmem:[%s1 + $0x48] sm:$0xff]
      %v224 = vld [vmem:[%s1 + $0x50] sm:$0xff]
      %v225 = vld [vmem:[%s1 + $0x58] sm:$0xff]
      %v226 = vld [vmem:[%s1 + $0x60] sm:$0xff]
      %v227 = vld [vmem:[%s1 + $0x68] sm:$0xff]
      %v228 = vld [vmem:[%s1 + $0x70] sm:$0xff]
      %v229 = vld [vmem:[%s1 + $0x78] sm:$0xff]
      %v230 = vld [vmem:[%s1 + $0x80] sm:$0xff]
      %v231 = vld [vmem:[%s1 + $0x88] sm:$0xff]
      %v232 = vld [vmem:[%s1 + $0x90] sm:$0xff]
      %v233 = vld [vmem:[%s1 + $0x98] sm:$0xff]
      %v234 = vld [vmem:[%s2] sm:$0x1]
      %v236 = vperm.slane %v234, 0
      %vm238 = vcmask 261120
      %v240 = vsel %vm238, %v209, 0
      %v243 = vsel %vm238, %v211, 0
      %v246 = vsel %vm238, %v213, 0
      %v248 = vand.u32 %v229, 4294901760
      %249 = vmatpush.msra.mxu0 %v248
      %v250 = vand.u32 %v228, 4294901760
      %251 = vmatpush.msra.mxu0 %v250
      %v252 = vand.u32 %v227, 4294901760
      %253 = vmatpush.msra.mxu0 %v252
      %v254 = vand.u32 %v226, 4294901760
      %255 = vmatpush.msra.mxu0 %v254
      %v256 = vand.u32 %v225, 4294901760
      %257 = vmatpush.msra.mxu0 %v256
      %v258 = vand.u32 %v224, 4294901760
      %259 = vmatpush.msra.mxu0 %v258
      %v260 = vand.u32 %v223, 4294901760
      %261 = vmatpush.msra.mxu0 %v260
      %v262 = vand.u32 %v222, 4294901760
      %263 = vmatpush.msra.mxu0 %v262
      %v264 = vand.u32 %v221, 4294901760
      %265 = vmatpush.msra.mxu0 %v264
      %v266 = vand.u32 %v220, 4294901760
      %267 = vmatpush.msra.mxu0 %v266
      %v268 = vand.u32 %v219, 4294901760
      %269 = vmatpush.msra.mxu0 %v268
      %v270 = vand.u32 %v218, 4294901760
      %271 = vmatpush.msra.mxu0 %v270
      %v272 = vand.u32 %v217, 4294901760
      %273 = vmatpush.msra.mxu0 %v272
      %v274 = vand.u32 %v216, 4294901760
      %275 = vmatpush.msra.mxu0 %v274
      %v276 = vand.u32 %v215, 4294901760
      %277 = vmatpush.msra.mxu0 %v276
      %v278 = vand.u32 %v214, 4294901760
      %279 = vmatpush.msra.mxu0 %v278
      %v280 = vand.u32 %v208, 4294901760
      %v281 = vsub.f32 %v208, %v280
      %v282 = vand.u32 %v281, 4294901760
      %v283 = vsub.f32 %v281, %v282
      %v284 = vand.u32 %v283, 4294901760
      %285 = vmatmul.f32.gmra.mxu0 %v284
      %v286 = vpop.f32.mrf.mxu0
      %v287 = vadd.f32 %v236, %v286
      %v288 = vand.u32 %v210, 4294901760
      %v289 = vsub.f32 %v210, %v288
      %v290 = vand.u32 %v289, 4294901760
      %v291 = vsub.f32 %v289, %v290
      %v292 = vand.u32 %v291, 4294901760
      %293 = vmatmul.f32.gmra.mxu0 %v292
      %v294 = vpop.f32.mrf.mxu0
      %v295 = vadd.f32 %v236, %v294
      %v296 = vand.u32 %v212, 4294901760
      %v297 = vsub.f32 %v212, %v296
      %v298 = vand.u32 %v297, 4294901760
      %v299 = vsub.f32 %v297, %v298
      %v300 = vand.u32 %v299, 4294901760
      %301 = vmatmul.f32.gmra.mxu0 %v300
      %v302 = vpop.f32.mrf.mxu0
      %v303 = vadd.f32 %v236, %v302
      %304 = vdwg.mxu0
      %v305 = vand.u32 %v229, 4294901760
      %v306 = vsub.f32 %v229, %v305
      %v307 = vand.u32 %v306, 4294901760
      %v308 = vsub.f32 %v306, %v307
      %v309 = vand.u32 %v308, 4294901760
      %310 = vmatpush.msra.mxu0 %v309
      %v311 = vand.u32 %v228, 4294901760
      %v312 = vsub.f32 %v228, %v311
      %v313 = vand.u32 %v312, 4294901760
      %v314 = vsub.f32 %v312, %v313
      %v315 = vand.u32 %v314, 4294901760
      %316 = vmatpush.msra.mxu0 %v315
      %v317 = vand.u32 %v227, 4294901760
      %v318 = vsub.f32 %v227, %v317
      %v319 = vand.u32 %v318, 4294901760
      %v320 = vsub.f32 %v318, %v319
      %v321 = vand.u32 %v320, 4294901760
      %322 = vmatpush.msra.mxu0 %v321
      %v323 = vand.u32 %v226, 4294901760
      %v324 = vsub.f32 %v226, %v323
      %v325 = vand.u32 %v324, 4294901760
      %v326 = vsub.f32 %v324, %v325
      %v327 = vand.u32 %v326, 4294901760
      %328 = vmatpush.msra.mxu0 %v327
      %v329 = vand.u32 %v225, 4294901760
      %v330 = vsub.f32 %v225, %v329
      %v331 = vand.u32 %v330, 4294901760
      %v332 = vsub.f32 %v330, %v331
      %v333 = vand.u32 %v332, 4294901760
      %334 = vmatpush.msra.mxu0 %v333
      %v335 = vand.u32 %v224, 4294901760
      %v336 = vsub.f32 %v224, %v335
      %v337 = vand.u32 %v336, 4294901760
      %v338 = vsub.f32 %v336, %v337
      %v339 = vand.u32 %v338, 4294901760
      %340 = vmatpush.msra.mxu0 %v339
      %v341 = vand.u32 %v223, 4294901760
      %v342 = vsub.f32 %v223, %v341
      %v343 = vand.u32 %v342, 4294901760
      %v344 = vsub.f32 %v342, %v343
      %v345 = vand.u32 %v344, 4294901760
      %346 = vmatpush.msra.mxu0 %v345
      %v347 = vand.u32 %v222, 4294901760
      %v348 = vsub.f32 %v222, %v347
      %v349 = vand.u32 %v348, 4294901760
      %v350 = vsub.f32 %v348, %v349
      %v351 = vand.u32 %v350, 4294901760
      %352 = vmatpush.msra.mxu0 %v351
      %v353 = vand.u32 %v221, 4294901760
      %v354 = vsub.f32 %v221, %v353
      %v355 = vand.u32 %v354, 4294901760
      %v356 = vsub.f32 %v354, %v355
      %v357 = vand.u32 %v356, 4294901760
      %358 = vmatpush.msra.mxu0 %v357
      %v359 = vand.u32 %v220, 4294901760
      %v360 = vsub.f32 %v220, %v359
      %v361 = vand.u32 %v360, 4294901760
      %v362 = vsub.f32 %v360, %v361
      %v363 = vand.u32 %v362, 4294901760
      %364 = vmatpush.msra.mxu0 %v363
      %v365 = vand.u32 %v219, 4294901760
      %v366 = vsub.f32 %v219, %v365
      %v367 = vand.u32 %v366, 4294901760
      %v368 = vsub.f32 %v366, %v367
      %v369 = vand.u32 %v368, 4294901760
      %370 = vmatpush.msra.mxu0 %v369
      %v371 = vand.u32 %v218, 4294901760
      %v372 = vsub.f32 %v218, %v371
      %v373 = vand.u32 %v372, 4294901760
      %v374 = vsub.f32 %v372, %v373
      %v375 = vand.u32 %v374, 4294901760
      %376 = vmatpush.msra.mxu0 %v375
      %v377 = vand.u32 %v217, 4294901760
      %v378 = vsub.f32 %v217, %v377
      %v379 = vand.u32 %v378, 4294901760
      %v380 = vsub.f32 %v378, %v379
      %v381 = vand.u32 %v380, 4294901760
      %382 = vmatpush.msra.mxu0 %v381
      %v383 = vand.u32 %v216, 4294901760
      %v384 = vsub.f32 %v216, %v383
      %v385 = vand.u32 %v384, 4294901760
      %v386 = vsub.f32 %v384, %v385
      %v387 = vand.u32 %v386, 4294901760
      %388 = vmatpush.msra.mxu0 %v387
      %v389 = vand.u32 %v215, 4294901760
      %v390 = vsub.f32 %v215, %v389
      %v391 = vand.u32 %v390, 4294901760
      %v392 = vsub.f32 %v390, %v391
      %v393 = vand.u32 %v392, 4294901760
      %394 = vmatpush.msra.mxu0 %v393
      %v395 = vand.u32 %v214, 4294901760
      %v396 = vsub.f32 %v214, %v395
      %v397 = vand.u32 %v396, 4294901760
      %v398 = vsub.f32 %v396, %v397
      %v399 = vand.u32 %v398, 4294901760
      %400 = vmatpush.msra.mxu0 %v399
      %v401 = vand.u32 %v208, 4294901760
      %402 = vmatmul.f32.gmra.mxu0 %v401
      %v403 = vpop.f32.mrf.mxu0
      %v404 = vadd.f32 %v287, %v403
      %v405 = vand.u32 %v210, 4294901760
      %406 = vmatmul.f32.gmra.mxu0 %v405
      %v407 = vpop.f32.mrf.mxu0
      %v408 = vadd.f32 %v295, %v407
      %v409 = vand.u32 %v212, 4294901760
      %410 = vmatmul.f32.gmra.mxu0 %v409
      %v411 = vpop.f32.mrf.mxu0
      %v412 = vadd.f32 %v303, %v411
      %413 = vdwg.mxu0
      %v414 = vand.u32 %v229, 4294901760
      %v415 = vsub.f32 %v229, %v414
      %416 = vmatpush.msra.mxu0 %v415
      %v417 = vand.u32 %v228, 4294901760
      %v418 = vsub.f32 %v228, %v417
      %419 = vmatpush.msra.mxu0 %v418
      %v420 = vand.u32 %v227, 4294901760
      %v421 = vsub.f32 %v227, %v420
      %422 = vmatpush.msra.mxu0 %v421
      %v423 = vand.u32 %v226, 4294901760
      %v424 = vsub.f32 %v226, %v423
      %425 = vmatpush.msra.mxu0 %v424
      %v426 = vand.u32 %v225, 4294901760
      %v427 = vsub.f32 %v225, %v426
      %428 = vmatpush.msra.mxu0 %v427
      %v429 = vand.u32 %v224, 4294901760
      %v430 = vsub.f32 %v224, %v429
      %431 = vmatpush.msra.mxu0 %v430
      %v432 = vand.u32 %v223, 4294901760
      %v433 = vsub.f32 %v223, %v432
      %434 = vmatpush.msra.mxu0 %v433
      %v435 = vand.u32 %v222, 4294901760
      %v436 = vsub.f32 %v222, %v435
      %437 = vmatpush.msra.mxu0 %v436
      %v438 = vand.u32 %v221, 4294901760
      %v439 = vsub.f32 %v221, %v438
      %440 = vmatpush.msra.mxu0 %v439
      %v441 = vand.u32 %v220, 4294901760
      %v442 = vsub.f32 %v220, %v441
      %443 = vmatpush.msra.mxu0 %v442
      %v444 = vand.u32 %v219, 4294901760
      %v445 = vsub.f32 %v219, %v444
      %446 = vmatpush.msra.mxu0 %v445
      %v447 = vand.u32 %v218, 4294901760
      %v448 = vsub.f32 %v218, %v447
      %449 = vmatpush.msra.mxu0 %v448
      %v450 = vand.u32 %v217, 4294901760
      %v451 = vsub.f32 %v217, %v450
      %452 = vmatpush.msra.mxu0 %v451
      %v453 = vand.u32 %v216, 4294901760
      %v454 = vsub.f32 %v216, %v453
      %455 = vmatpush.msra.mxu0 %v454
      %v456 = vand.u32 %v215, 4294901760
      %v457 = vsub.f32 %v215, %v456
      %458 = vmatpush.msra.mxu0 %v457
      %v459 = vand.u32 %v214, 4294901760
      %v460 = vsub.f32 %v214, %v459
      %461 = vmatpush.msra.mxu0 %v460
      %v462 = vand.u32 %v208, 4294901760
      %v463 = vsub.f32 %v208, %v462
      %464 = vmatmul.f32.gmra.mxu0 %v463
      %v465 = vpop.f32.mrf.mxu0
      %v466 = vadd.f32 %v404, %v465
      %v467 = vand.u32 %v210, 4294901760
      %v468 = vsub.f32 %v210, %v467
      %469 = vmatmul.f32.gmra.mxu0 %v468
      %v470 = vpop.f32.mrf.mxu0
      %v471 = vadd.f32 %v408, %v470
      %v472 = vand.u32 %v212, 4294901760
      %v473 = vsub.f32 %v212, %v472
      %474 = vmatmul.f32.gmra.mxu0 %v473
      %v475 = vpop.f32.mrf.mxu0
      %v476 = vadd.f32 %v412, %v475
      %477 = vdwg.mxu0
      %v478 = vand.u32 %v229, 4294901760
      %479 = vmatpush.msra.mxu0 %v478
      %v480 = vand.u32 %v228, 4294901760
      %481 = vmatpush.msra.mxu0 %v480
      %v482 = vand.u32 %v227, 4294901760
      %483 = vmatpush.msra.mxu0 %v482
      %v484 = vand.u32 %v226, 4294901760
      %485 = vmatpush.msra.mxu0 %v484
      %v486 = vand.u32 %v225, 4294901760
      %487 = vmatpush.msra.mxu0 %v486
      %v488 = vand.u32 %v224, 4294901760
      %489 = vmatpush.msra.mxu0 %v488
      %v490 = vand.u32 %v223, 4294901760
      %491 = vmatpush.msra.mxu0 %v490
      %v492 = vand.u32 %v222, 4294901760
      %493 = vmatpush.msra.mxu0 %v492
      %v494 = vand.u32 %v221, 4294901760
      %495 = vmatpush.msra.mxu0 %v494
      %v496 = vand.u32 %v220, 4294901760
      %497 = vmatpush.msra.mxu0 %v496
      %v498 = vand.u32 %v219, 4294901760
      %499 = vmatpush.msra.mxu0 %v498
      %v500 = vand.u32 %v218, 4294901760
      %501 = vmatpush.msra.mxu0 %v500
      %v502 = vand.u32 %v217, 4294901760
      %503 = vmatpush.msra.mxu0 %v502
      %v504 = vand.u32 %v216, 4294901760
      %505 = vmatpush.msra.mxu0 %v504
      %v506 = vand.u32 %v215, 4294901760
      %507 = vmatpush.msra.mxu0 %v506
      %v508 = vand.u32 %v214, 4294901760
      %509 = vmatpush.msra.mxu0 %v508
      %v510 = vand.u32 %v208, 4294901760
      %v511 = vsub.f32 %v208, %v510
      %v512 = vand.u32 %v511, 4294901760
      %513 = vmatmul.f32.gmra.mxu0 %v512
      %v514 = vpop.f32.mrf.mxu0
      %v515 = vadd.f32 %v466, %v514
      %v516 = vand.u32 %v210, 4294901760
      %v517 = vsub.f32 %v210, %v516
      %v518 = vand.u32 %v517, 4294901760
      %519 = vmatmul.f32.gmra.mxu0 %v518
      %v520 = vpop.f32.mrf.mxu0
      %v521 = vadd.f32 %v471, %v520
      %v522 = vand.u32 %v212, 4294901760
      %v523 = vsub.f32 %v212, %v522
      %v524 = vand.u32 %v523, 4294901760
      %525 = vmatmul.f32.gmra.mxu0 %v524
      %v526 = vpop.f32.mrf.mxu0
      %v527 = vadd.f32 %v476, %v526
      %528 = vdwg.mxu0
      %v529 = vand.u32 %v229, 4294901760
      %v530 = vsub.f32 %v229, %v529
      %v531 = vand.u32 %v530, 4294901760
      %532 = vmatpush.msra.mxu0 %v531
      %v533 = vand.u32 %v228, 4294901760
      %v534 = vsub.f32 %v228, %v533
      %v535 = vand.u32 %v534, 4294901760
      %536 = vmatpush.msra.mxu0 %v535
      %v537 = vand.u32 %v227, 4294901760
      %v538 = vsub.f32 %v227, %v537
      %v539 = vand.u32 %v538, 4294901760
      %540 = vmatpush.msra.mxu0 %v539
      %v541 = vand.u32 %v226, 4294901760
      %v542 = vsub.f32 %v226, %v541
      %v543 = vand.u32 %v542, 4294901760
      %544 = vmatpush.msra.mxu0 %v543
      %v545 = vand.u32 %v225, 4294901760
      %v546 = vsub.f32 %v225, %v545
      %v547 = vand.u32 %v546, 4294901760
      %548 = vmatpush.msra.mxu0 %v547
      %v549 = vand.u32 %v224, 4294901760
      %v550 = vsub.f32 %v224, %v549
      %v551 = vand.u32 %v550, 4294901760
      %552 = vmatpush.msra.mxu0 %v551
      %v553 = vand.u32 %v223, 4294901760
      %v554 = vsub.f32 %v223, %v553
      %v555 = vand.u32 %v554, 4294901760
      %556 = vmatpush.msra.mxu0 %v555
      %v557 = vand.u32 %v222, 4294901760
      %v558 = vsub.f32 %v222, %v557
      %v559 = vand.u32 %v558, 4294901760
      %560 = vmatpush.msra.mxu0 %v559
      %v561 = vand.u32 %v221, 4294901760
      %v562 = vsub.f32 %v221, %v561
      %v563 = vand.u32 %v562, 4294901760
      %564 = vmatpush.msra.mxu0 %v563
      %v565 = vand.u32 %v220, 4294901760
      %v566 = vsub.f32 %v220, %v565
      %v567 = vand.u32 %v566, 4294901760
      %568 = vmatpush.msra.mxu0 %v567
      %v569 = vand.u32 %v219, 4294901760
      %v570 = vsub.f32 %v219, %v569
      %v571 = vand.u32 %v570, 4294901760
      %572 = vmatpush.msra.mxu0 %v571
      %v573 = vand.u32 %v218, 4294901760
      %v574 = vsub.f32 %v218, %v573
      %v575 = vand.u32 %v574, 4294901760
      %576 = vmatpush.msra.mxu0 %v575
      %v577 = vand.u32 %v217, 4294901760
      %v578 = vsub.f32 %v217, %v577
      %v579 = vand.u32 %v578, 4294901760
      %580 = vmatpush.msra.mxu0 %v579
      %v581 = vand.u32 %v216, 4294901760
      %v582 = vsub.f32 %v216, %v581
      %v583 = vand.u32 %v582, 4294901760
      %584 = vmatpush.msra.mxu0 %v583
      %v585 = vand.u32 %v215, 4294901760
      %v586 = vsub.f32 %v215, %v585
      %v587 = vand.u32 %v586, 4294901760
      %588 = vmatpush.msra.mxu0 %v587
      %v589 = vand.u32 %v214, 4294901760
      %v590 = vsub.f32 %v214, %v589
      %v591 = vand.u32 %v590, 4294901760
      %592 = vmatpush.msra.mxu0 %v591
      %v593 = vand.u32 %v208, 4294901760
      %594 = vmatmul.f32.gmra.mxu0 %v593
      %v595 = vpop.f32.mrf.mxu0
      %v596 = vadd.f32 %v515, %v595
      %v597 = vand.u32 %v210, 4294901760
      %598 = vmatmul.f32.gmra.mxu0 %v597
      %v599 = vpop.f32.mrf.mxu0
      %v600 = vadd.f32 %v521, %v599
      %v601 = vand.u32 %v212, 4294901760
      %602 = vmatmul.f32.gmra.mxu0 %v601
      %v603 = vpop.f32.mrf.mxu0
      %v604 = vadd.f32 %v527, %v603
      %605 = vdwg.mxu0
      %v606 = vand.u32 %v229, 4294901760
      %607 = vmatpush.msra.mxu0 %v606
      %v608 = vand.u32 %v228, 4294901760
      %609 = vmatpush.msra.mxu0 %v608
      %v610 = vand.u32 %v227, 4294901760
      %611 = vmatpush.msra.mxu0 %v610
      %v612 = vand.u32 %v226, 4294901760
      %613 = vmatpush.msra.mxu0 %v612
      %v614 = vand.u32 %v225, 4294901760
      %615 = vmatpush.msra.mxu0 %v614
      %v616 = vand.u32 %v224, 4294901760
      %617 = vmatpush.msra.mxu0 %v616
      %v618 = vand.u32 %v223, 4294901760
      %619 = vmatpush.msra.mxu0 %v618
      %v620 = vand.u32 %v222, 4294901760
      %621 = vmatpush.msra.mxu0 %v620
      %v622 = vand.u32 %v221, 4294901760
      %623 = vmatpush.msra.mxu0 %v622
      %v624 = vand.u32 %v220, 4294901760
      %625 = vmatpush.msra.mxu0 %v624
      %v626 = vand.u32 %v219, 4294901760
      %627 = vmatpush.msra.mxu0 %v626
      %v628 = vand.u32 %v218, 4294901760
      %629 = vmatpush.msra.mxu0 %v628
      %v630 = vand.u32 %v217, 4294901760
      %631 = vmatpush.msra.mxu0 %v630
      %v632 = vand.u32 %v216, 4294901760
      %633 = vmatpush.msra.mxu0 %v632
      %v634 = vand.u32 %v215, 4294901760
      %635 = vmatpush.msra.mxu0 %v634
      %v636 = vand.u32 %v214, 4294901760
      %637 = vmatpush.msra.mxu0 %v636
      %v638 = vand.u32 %v208, 4294901760
      %639 = vmatmul.f32.gmra.mxu0 %v638
      %v640 = vpop.f32.mrf.mxu0
      %v641 = vadd.f32 %v596, %v640
      %v642 = vand.u32 %v210, 4294901760
      %643 = vmatmul.f32.gmra.mxu0 %v642
      %v644 = vpop.f32.mrf.mxu0
      %v645 = vadd.f32 %v600, %v644
      %v646 = vand.u32 %v212, 4294901760
      %647 = vmatmul.f32.gmra.mxu0 %v646
      %v648 = vpop.f32.mrf.mxu0
      %v649 = vadd.f32 %v604, %v648
      %650 = vdwg.mxu0
      %651 = vmatpush.msra.mxu0 0.0
      %652 = vmatpush.msra.mxu0 0.0
      %653 = vmatpush.msra.mxu0 0.0
      %654 = vmatpush.msra.mxu0 0.0
      %655 = vmatpush.msra.mxu0 0.0
      %656 = vmatpush.msra.mxu0 0.0
      %657 = vmatpush.msra.mxu0 0.0
      %658 = vmatpush.msra.mxu0 0.0
      %659 = vmatpush.msra.mxu0 0.0
      %660 = vmatpush.msra.mxu0 0.0
      %661 = vmatpush.msra.mxu0 0.0
      %662 = vmatpush.msra.mxu0 0.0
      %v663 = vand.u32 %v233, 4294901760
      %664 = vmatpush.msra.mxu0 %v663
      %v665 = vand.u32 %v232, 4294901760
      %666 = vmatpush.msra.mxu0 %v665
      %v667 = vand.u32 %v231, 4294901760
      %668 = vmatpush.msra.mxu0 %v667
      %v669 = vand.u32 %v230, 4294901760
      %670 = vmatpush.msra.mxu0 %v669
      %v671 = vand.u32 %v240, 4294901760
      %v672 = vsub.f32 %v240, %v671
      %v673 = vand.u32 %v672, 4294901760
      %v674 = vsub.f32 %v672, %v673
      %v675 = vand.u32 %v674, 4294901760
      %676 = vmatmul.f32.gmra.mxu0 %v675
      %v677 = vpop.f32.mrf.mxu0
      %v678 = vadd.f32 %v641, %v677
      %v679 = vand.u32 %v243, 4294901760
      %v680 = vsub.f32 %v243, %v679
      %v681 = vand.u32 %v680, 4294901760
      %v682 = vsub.f32 %v680, %v681
      %v683 = vand.u32 %v682, 4294901760
      %684 = vmatmul.f32.gmra.mxu0 %v683
      %v685 = vpop.f32.mrf.mxu0
      %v686 = vadd.f32 %v645, %v685
      %v687 = vand.u32 %v246, 4294901760
      %v688 = vsub.f32 %v246, %v687
      %v689 = vand.u32 %v688, 4294901760
      %v690 = vsub.f32 %v688, %v689
      %v691 = vand.u32 %v690, 4294901760
      %692 = vmatmul.f32.gmra.mxu0 %v691
      %v693 = vpop.f32.mrf.mxu0
      %v694 = vadd.f32 %v649, %v693
      %695 = vdwg.mxu0
      %696 = vmatpush.msra.mxu0 0.0
      %697 = vmatpush.msra.mxu0 0.0
      %698 = vmatpush.msra.mxu0 0.0
      %699 = vmatpush.msra.mxu0 0.0
      %700 = vmatpush.msra.mxu0 0.0
      %701 = vmatpush.msra.mxu0 0.0
      %702 = vmatpush.msra.mxu0 0.0
      %703 = vmatpush.msra.mxu0 0.0
      %704 = vmatpush.msra.mxu0 0.0
      %705 = vmatpush.msra.mxu0 0.0
      %706 = vmatpush.msra.mxu0 0.0
      %707 = vmatpush.msra.mxu0 0.0
      %v708 = vand.u32 %v233, 4294901760
      %v709 = vsub.f32 %v233, %v708
      %v710 = vand.u32 %v709, 4294901760
      %v711 = vsub.f32 %v709, %v710
      %v712 = vand.u32 %v711, 4294901760
      %713 = vmatpush.msra.mxu0 %v712
      %v714 = vand.u32 %v232, 4294901760
      %v715 = vsub.f32 %v232, %v714
      %v716 = vand.u32 %v715, 4294901760
      %v717 = vsub.f32 %v715, %v716
      %v718 = vand.u32 %v717, 4294901760
      %719 = vmatpush.msra.mxu0 %v718
      %v720 = vand.u32 %v231, 4294901760
      %v721 = vsub.f32 %v231, %v720
      %v722 = vand.u32 %v721, 4294901760
      %v723 = vsub.f32 %v721, %v722
      %v724 = vand.u32 %v723, 4294901760
      %725 = vmatpush.msra.mxu0 %v724
      %v726 = vand.u32 %v230, 4294901760
      %v727 = vsub.f32 %v230, %v726
      %v728 = vand.u32 %v727, 4294901760
      %v729 = vsub.f32 %v727, %v728
      %v730 = vand.u32 %v729, 4294901760
      %731 = vmatpush.msra.mxu0 %v730
      %v732 = vand.u32 %v240, 4294901760
      %733 = vmatmul.f32.gmra.mxu0 %v732
      %v734 = vpop.f32.mrf.mxu0
      %v735 = vadd.f32 %v678, %v734
      %v736 = vand.u32 %v243, 4294901760
      %737 = vmatmul.f32.gmra.mxu0 %v736
      %v738 = vpop.f32.mrf.mxu0
      %v739 = vadd.f32 %v686, %v738
      %v740 = vand.u32 %v246, 4294901760
      %741 = vmatmul.f32.gmra.mxu0 %v740
      %v742 = vpop.f32.mrf.mxu0
      %v743 = vadd.f32 %v694, %v742
      %744 = vdwg.mxu0
      %745 = vmatpush.msra.mxu0 0.0
      %746 = vmatpush.msra.mxu0 0.0
      %747 = vmatpush.msra.mxu0 0.0
      %748 = vmatpush.msra.mxu0 0.0
      %749 = vmatpush.msra.mxu0 0.0
      %750 = vmatpush.msra.mxu0 0.0
      %751 = vmatpush.msra.mxu0 0.0
      %752 = vmatpush.msra.mxu0 0.0
      %753 = vmatpush.msra.mxu0 0.0
      %754 = vmatpush.msra.mxu0 0.0
      %755 = vmatpush.msra.mxu0 0.0
      %756 = vmatpush.msra.mxu0 0.0
      %v757 = vand.u32 %v233, 4294901760
      %v758 = vsub.f32 %v233, %v757
      %759 = vmatpush.msra.mxu0 %v758
      %v760 = vand.u32 %v232, 4294901760
      %v761 = vsub.f32 %v232, %v760
      %762 = vmatpush.msra.mxu0 %v761
      %v763 = vand.u32 %v231, 4294901760
      %v764 = vsub.f32 %v231, %v763
      %765 = vmatpush.msra.mxu0 %v764
      %v766 = vand.u32 %v230, 4294901760
      %v767 = vsub.f32 %v230, %v766
      %768 = vmatpush.msra.mxu0 %v767
      %v769 = vand.u32 %v240, 4294901760
      %v770 = vsub.f32 %v240, %v769
      %771 = vmatmul.f32.gmra.mxu0 %v770
      %v772 = vpop.f32.mrf.mxu0
      %v773 = vadd.f32 %v735, %v772
      %v774 = vand.u32 %v243, 4294901760
      %v775 = vsub.f32 %v243, %v774
      %776 = vmatmul.f32.gmra.mxu0 %v775
      %v777 = vpop.f32.mrf.mxu0
      %v778 = vadd.f32 %v739, %v777
      %v779 = vand.u32 %v246, 4294901760
      %v780 = vsub.f32 %v246, %v779
      %781 = vmatmul.f32.gmra.mxu0 %v780
      %v782 = vpop.f32.mrf.mxu0
      %v783 = vadd.f32 %v743, %v782
      %784 = vdwg.mxu0
      %785 = vmatpush.msra.mxu0 0.0
      %786 = vmatpush.msra.mxu0 0.0
      %787 = vmatpush.msra.mxu0 0.0
      %788 = vmatpush.msra.mxu0 0.0
      %789 = vmatpush.msra.mxu0 0.0
      %790 = vmatpush.msra.mxu0 0.0
      %791 = vmatpush.msra.mxu0 0.0
      %792 = vmatpush.msra.mxu0 0.0
      %793 = vmatpush.msra.mxu0 0.0
      %794 = vmatpush.msra.mxu0 0.0
      %795 = vmatpush.msra.mxu0 0.0
      %796 = vmatpush.msra.mxu0 0.0
      %v797 = vand.u32 %v233, 4294901760
      %798 = vmatpush.msra.mxu0 %v797
      %v799 = vand.u32 %v232, 4294901760
      %800 = vmatpush.msra.mxu0 %v799
      %v801 = vand.u32 %v231, 4294901760
      %802 = vmatpush.msra.mxu0 %v801
      %v803 = vand.u32 %v230, 4294901760
      %804 = vmatpush.msra.mxu0 %v803
      %v805 = vand.u32 %v240, 4294901760
      %v806 = vsub.f32 %v240, %v805
      %v807 = vand.u32 %v806, 4294901760
      %808 = vmatmul.f32.gmra.mxu0 %v807
      %v809 = vpop.f32.mrf.mxu0
      %v810 = vadd.f32 %v773, %v809
      %v811 = vand.u32 %v243, 4294901760
      %v812 = vsub.f32 %v243, %v811
      %v813 = vand.u32 %v812, 4294901760
      %814 = vmatmul.f32.gmra.mxu0 %v813
      %v815 = vpop.f32.mrf.mxu0
      %v816 = vadd.f32 %v778, %v815
      %v817 = vand.u32 %v246, 4294901760
      %v818 = vsub.f32 %v246, %v817
      %v819 = vand.u32 %v818, 4294901760
      %820 = vmatmul.f32.gmra.mxu0 %v819
      %v821 = vpop.f32.mrf.mxu0
      %v822 = vadd.f32 %v783, %v821
      %823 = vdwg.mxu0
      %824 = vmatpush.msra.mxu0 0.0
      %825 = vmatpush.msra.mxu0 0.0
      %826 = vmatpush.msra.mxu0 0.0
      %827 = vmatpush.msra.mxu0 0.0
      %828 = vmatpush.msra.mxu0 0.0
      %829 = vmatpush.msra.mxu0 0.0
      %830 = vmatpush.msra.mxu0 0.0
      %831 = vmatpush.msra.mxu0 0.0
      %832 = vmatpush.msra.mxu0 0.0
      %833 = vmatpush.msra.mxu0 0.0
      %834 = vmatpush.msra.mxu0 0.0
      %835 = vmatpush.msra.mxu0 0.0
      %v836 = vand.u32 %v233, 4294901760
      %v837 = vsub.f32 %v233, %v836
      %v838 = vand.u32 %v837, 4294901760
      %839 = vmatpush.msra.mxu0 %v838
      %v840 = vand.u32 %v232, 4294901760
      %v841 = vsub.f32 %v232, %v840
      %v842 = vand.u32 %v841, 4294901760
      %843 = vmatpush.msra.mxu0 %v842
      %v844 = vand.u32 %v231, 4294901760
      %v845 = vsub.f32 %v231, %v844
      %v846 = vand.u32 %v845, 4294901760
      %847 = vmatpush.msra.mxu0 %v846
      %v848 = vand.u32 %v230, 4294901760
      %v849 = vsub.f32 %v230, %v848
      %v850 = vand.u32 %v849, 4294901760
      %851 = vmatpush.msra.mxu0 %v850
      %v852 = vand.u32 %v240, 4294901760
      %853 = vmatmul.f32.gmra.mxu0 %v852
      %v854 = vpop.f32.mrf.mxu0
      %v855 = vadd.f32 %v810, %v854
      %v856 = vand.u32 %v243, 4294901760
      %857 = vmatmul.f32.gmra.mxu0 %v856
      %v858 = vpop.f32.mrf.mxu0
      %v859 = vadd.f32 %v816, %v858
      %v860 = vand.u32 %v246, 4294901760
      %861 = vmatmul.f32.gmra.mxu0 %v860
      %v862 = vpop.f32.mrf.mxu0
      %v863 = vadd.f32 %v822, %v862
      %864 = vdwg.mxu0
      %865 = vmatpush.msra.mxu0 0.0
      %866 = vmatpush.msra.mxu0 0.0
      %867 = vmatpush.msra.mxu0 0.0
      %868 = vmatpush.msra.mxu0 0.0
      %869 = vmatpush.msra.mxu0 0.0
      %870 = vmatpush.msra.mxu0 0.0
      %871 = vmatpush.msra.mxu0 0.0
      %872 = vmatpush.msra.mxu0 0.0
      %873 = vmatpush.msra.mxu0 0.0
      %874 = vmatpush.msra.mxu0 0.0
      %875 = vmatpush.msra.mxu0 0.0
      %876 = vmatpush.msra.mxu0 0.0
      %v877 = vand.u32 %v233, 4294901760
      %878 = vmatpush.msra.mxu0 %v877
      %v879 = vand.u32 %v232, 4294901760
      %880 = vmatpush.msra.mxu0 %v879
      %v881 = vand.u32 %v231, 4294901760
      %882 = vmatpush.msra.mxu0 %v881
      %v883 = vand.u32 %v230, 4294901760
      %884 = vmatpush.msra.mxu0 %v883
      %v885 = vand.u32 %v240, 4294901760
      %886 = vmatmul.f32.gmra.mxu0 %v885
      %v887 = vpop.f32.mrf.mxu0
      %v888 = vadd.f32 %v855, %v887
      %v889 = vand.u32 %v243, 4294901760
      %890 = vmatmul.f32.gmra.mxu0 %v889
      %v891 = vpop.f32.mrf.mxu0
      %v892 = vadd.f32 %v859, %v891
      %v893 = vand.u32 %v246, 4294901760
      %894 = vmatmul.f32.gmra.mxu0 %v893
      %v895 = vpop.f32.mrf.mxu0
      %v896 = vadd.f32 %v863, %v895
      %897 = vdwg.mxu0
      %vm898 = vcmp.gt.f32.partialorder %v888, 0.0
      %vm899 = vcmp.gt.f32.partialorder %v892, 0.0
      %vm900 = vcmp.gt.f32.partialorder %v896, 0.0
      %v901 = vmin.f32 %v888, 0.0
      %v902 = vmin.f32 %v892, 0.0
      %v903 = vmin.f32 %v896, 0.0
      %v904 = vmul.f32 %v901, 1.442695
      %v905 = vpow.pop %v904
      %v906 = vmul.f32 %v902, 1.442695
      %v907 = vpow.pop %v906
      %v908 = vmul.f32 %v903, 1.442695
      %v909 = vpow.pop %v908
      %v910 = vsub.f32 %v905, 1.0
      %v911 = vsub.f32 %v907, 1.0
      %v912 = vsub.f32 %v909, 1.0
      %v913 = vsel %vm898, %v888, %v910
      %v914 = vsel %vm899, %v892, %v911
      %v915 = vsel %vm900, %v896, %v912
      %vm916 = vcmask 326656
      %917 = vst.msk [vmem:[%s200] sm:$0xff] %vm916, %v913
      %918 = vst.msk [vmem:[%s200 + $0x8] sm:$0xff] %vm916, %v914
      %919 = vst.msk [vmem:[%s200 + $0x10] sm:$0xff] %vm916, %v915
      %s920 = smul.u32 %s16, 24
      %v921 = vlaneseq
      %v922 = vshrl.u32 %v921, 7
      %v923 = vadd.s32 %v922, 8
      %v924 = vadd.s32 %v922, 16
      %v925 = vstv %s920
      %v926 = vadd.s32 %v925, %v922
      %v927 = vadd.s32 %v925, %v923
      %v928 = vadd.s32 %v925, %v924
      %vm929 = vcmp.lt.s32.totalorder %v926, 32
      %vm930 = vcmp.lt.s32.totalorder %v927, 32
      %vm931 = vcmp.lt.s32.totalorder %v928, 32
      %v932 = vsel %vm929, 1, 0
      %v933 = vsel %vm930, 1, 0
      %v934 = vsel %vm931, 1, 0
      %v935 = vcvt.s32.f32 %v932
      %v936 = vcvt.s32.f32 %v933
      %v937 = vcvt.s32.f32 %v934
      %v938 = vmul.f32 %v913, %v935
      %v939 = vmul.f32 %v914, %v936
      %v940 = vmul.f32 %v915, %v937
      %v941 = vld [vmem:[%s4] sm:$0x1]
      %v942 = vsel %vm916, %v938, 0.0
      %v943 = vsel %vm916, %v939, 0.0
      %v944 = vadd.f32 %v942, %v943
      %v945 = vsel %vm916, %v940, 0.0
      %v946 = vadd.f32 %v944, %v945
      %v947 = vrot.slane %v946, 4
      %v948 = vadd.f32 %v946, %v947
      %v949 = vrot.slane %v948, 2
      %v950 = vadd.f32 %v948, %v949
      %v951 = vrot.slane %v950, 1
      %v952 = vadd.f32 %v950, %v951
      %v953 = vadd.f32 %v941, %v952
      %vm954 = vcmask 319488
      %955 = vst.msk [vmem:[%s4] sm:$0x1] %vm954, %v953
      %v956 = vld [vmem:[%s4 + $0x1] sm:$0x1]
      %v957 = vmul.f32 %v938, %v913
      %v958 = vmul.f32 %v939, %v914
      %v959 = vmul.f32 %v940, %v915
      %v960 = vsel %vm916, %v957, 0.0
      %v961 = vsel %vm916, %v958, 0.0
      %v962 = vadd.f32 %v960, %v961
      %v963 = vsel %vm916, %v959, 0.0
      %v964 = vadd.f32 %v962, %v963
      %v965 = vrot.slane %v964, 4
      %v966 = vadd.f32 %v964, %v965
      %v967 = vrot.slane %v966, 2
      %v968 = vadd.f32 %v966, %v967
      %v969 = vrot.slane %v968, 1
      %v970 = vadd.f32 %v968, %v969
      %v971 = vadd.f32 %v956, %v970
      %972 = vst.msk [vmem:[%s4 + $0x1] sm:$0x1] %vm954, %v971
      %s973 = smul.u32 3, %s16
      %p974 = scmp.lt.s32.totalorder %s973, 5
      %s975 = scalar_select %p974, %s973, 5
      %s976 = smul.addr %s975, 8
      %s977 = scalar_lea.vmem %s3, %s976
      // Predicated region
      $region37: #{_lambda_.27} parent=31 // pred_check
        %p978 = pneg %p102
      $region38: #{_lambda_.27} parent=31 // pred_check_branch
        %980 = sbr.rel (%p978) target = $region40
      $region39: #{_lambda_.27} parent=31 // pred_region
        %s981 = smul.u32 3, %s16
      $region40: #{_lambda_.27} parent=31 // pred_fallthru
        _
      // Predicated region
      $region41: #{_lambda_.27} parent=31 // pred_check
        %p982 = pneg %p123
      $region42: #{_lambda_.27} parent=31 // pred_check_branch
        %984 = sbr.rel (%p982) target = $region44
      $region43: #{_lambda_.27} parent=31 // pred_region
        _
      $region44: #{_lambda_.27} parent=31 // pred_fallthru
        _
      // Predicated region
      $region45: #{_lambda_.27} parent=31 // pred_check
        %p985 = pneg %p123
      $region46: #{_lambda_.27} parent=31 // pred_check_branch
        %987 = sbr.rel (%p985) target = $region48
      $region47: #{_lambda_.27} parent=31 // pred_region
        _
      $region48: #{_lambda_.27} parent=31 // pred_fallthru
        _
    $region32: #{_lambda_.27} parent=5 // pred_fallthru
      _
    %p988 = scmp.le.s32.totalorder 2, %s11
    // Predicated region
    $region49: #{_lambda_.27} parent=5 // pred_check
      %p989 = pneg %p988
    $region50: #{_lambda_.27} parent=5 // pred_check_branch
      %991 = sbr.rel (%p989) target = $region52
    $region51: #{_lambda_.27} parent=5 // pred_region
      %s992 = ssub.s32 %s11, 2
      // Predicated region
      $region53: #{_lambda_.27} parent=51 // pred_check
        %p993 = pneg %p108
      $region54: #{_lambda_.27} parent=51 // pred_check_branch
        %995 = sbr.rel (%p993) target = $region56
      $region55: #{_lambda_.27} parent=51 // pred_region
        %s996 = smul.u32 3, %s17
        %p997 = scmp.lt.s32.totalorder %s996, 5
        %s998 = scalar_select %p997, %s996, 5
        %s999 = smul.addr %s998, 8
        %s1000 = scalar_lea.vmem %s3, %s999
      $region56: #{_lambda_.27} parent=51 // pred_fallthru
        _
    $region52: #{_lambda_.27} parent=5 // pred_fallthru
      _
  $region6: #{_lambda_.27} parent=0 // loop_footer
    %s15 = sadd.s32 1, %s11
  $region7: #{_lambda_.27} parent=0 // loop_footer_branch
    %10 = sbr.rel target = $region3
  $region8: #{_lambda_.27} parent=0 // loop_exit
    _

// kernel: _lambda_.28
$region0: #{_lambda_.28}
  #allocation0 [shape = 'u32[]', space=smem, size = 0x4, offset = 0x4, fixed_abs, tag = 'smem constant byte address 0x4 - core index']
  #allocation1 [shape = 'u32[72,128]{1,0:T(1,128)}', space=vmem, size = 0x9000, scoped, tag = 'internal scratch']
  %s0 = inlined_call_operand.vmem [shape: f32[48,40], index: 0, kind: input, shape index: {}]
  %s1 = inlined_call_operand.vmem [shape: f32[2,40], index: 1, kind: input, shape index: {}]
  %s2 = inlined_call_operand.vmem [shape: f32[1,40], index: 2, kind: input, shape index: {}]
  %s3 = inlined_call_operand.vmem [shape: f32[1,40], index: 3, kind: input, shape index: {}]
  %s4 = inlined_call_operand.vmem [shape: f32[48,40], index: 4, kind: output, shape index: {}]
  %s5 = sld [smem:[#allocation0]]
  $region49: #{_lambda_.28} parent=0
    _
  %s7 = ssub.s32 1, %s5
  %s8 = scalar_select 0, %s7, %s5
  loop: start=0, step=1, limit=4
  $region2: #{_lambda_.28} parent=0 // loop_pre_header
    _
  $region3: #{_lambda_.28} parent=0 // loop_header
    %s10 = sphi 0, %s14
    %p11 = scmp.ge.s32.totalorder %s10, 4
    %s20 = sphi 0, %s22
    %s23 = sphi 0, %s20
    %s24 = sphi 0, %s23
    %s40 = sphi 0, %s24
    %s44 = sphi 0, %s44
    %s46 = sphi 0, %s44
    %s47 = sphi 0, %s46
    %s61 = sphi 0, %s47
    %s65 = sphi 0, %s65
    %s67 = sphi 0, %s65
    %s68 = sphi 0, %s67
    %s82 = sphi 0, %s68
    %s86 = sphi 0, %s86
    %s88 = sphi 0, %s86
    %s89 = sphi 0, %s88
    %s103 = sphi 0, %s89
    %s109 = sphi 0, %s111
    %s112 = sphi 0, %s109
    %s113 = sphi 0, %s112
    %s129 = sphi 0, %s113
  $region4: #{_lambda_.28} parent=0 // loop_header_branch
    %13 = sbr.rel (%p11) target = $region8
  $region5: #{_lambda_.28} parent=0 // loop_body
    %s15 = ssub.s32 %s10, 1
    %s16 = ssub.s32 %s10, 2
    %s17 = sadd.s32 %s10, 1
    %s18 = ssub.s32 %s10, %s17
    %p19 = scmp.eq.s32.totalorder %s18, 0
    %s21 = sadd.s32 %s20, 1
    %s22 = scalar_select %p19, %s20, %s21
    %p25 = pneg %p19
    %p26 = scmp.eq.s32.totalorder %s10, 1
    %p27 = por %p25, %p26
    %p28 = scmp.ne.s32.totalorder %s20, %s23
    %p29 = scmp.eq.s32.totalorder %s10, 0
    %p30 = por %p28, %p29
    %p31 = scmp.ne.s32.totalorder %s20, %s23
    %p32 = scmp.eq.s32.totalorder %s15, 1
    %p33 = por %p31, %p32
    %p34 = scmp.ne.s32.totalorder %s23, %s24
    %p35 = scmp.eq.s32.totalorder %s15, 0
    %p36 = por %p34, %p35
    %p37 = scmp.ne.s32.totalorder %s23, %s24
    %p38 = scmp.eq.s32.totalorder %s16, 1
    %p39 = por %p37, %p38
    %p41 = scmp.ne.s32.totalorder %s24, %s40
    %p42 = scmp.eq.s32.totalorder %s16, 0
    %p43 = por %p41, %p42
    %s45 = sadd.s32 %s44, 1
    %p48 = scmp.eq.s32.totalorder %s10, 1
    %p49 = scmp.ne.s32.totalorder %s44, %s46
    %p50 = scmp.eq.s32.totalorder %s10, 0
    %p51 = por %p49, %p50
    %p52 = scmp.ne.s32.totalorder %s44, %s46
    %p53 = scmp.eq.s32.totalorder %s15, 1
    %p54 = por %p52, %p53
    %p55 = scmp.ne.s32.totalorder %s46, %s47
    %p56 = scmp.eq.s32.totalorder %s15, 0
    %p57 = por %p55, %p56
    %p58 = scmp.ne.s32.totalorder %s46, %s47
    %p59 = scmp.eq.s32.totalorder %s16, 1
    %p60 = por %p58, %p59
    %p62 = scmp.ne.s32.totalorder %s47, %s61
    %p63 = scmp.eq.s32.totalorder %s16, 0
    %p64 = por %p62, %p63
    %s66 = sadd.s32 %s65, 1
    %p69 = scmp.eq.s32.totalorder %s10, 1
    %p70 = scmp.ne.s32.totalorder %s65, %s67
    %p71 = scmp.eq.s32.totalorder %s10, 0
    %p72 = por %p70, %p71
    %p73 = scmp.ne.s32.totalorder %s65, %s67
    %p74 = scmp.eq.s32.totalorder %s15, 1
    %p75 = por %p73, %p74
    %p76 = scmp.ne.s32.totalorder %s67, %s68
    %p77 = scmp.eq.s32.totalorder %s15, 0
    %p78 = por %p76, %p77
    %p79 = scmp.ne.s32.totalorder %s67, %s68
    %p80 = scmp.eq.s32.totalorder %s16, 1
    %p81 = por %p79, %p80
    %p83 = scmp.ne.s32.totalorder %s68, %s82
    %p84 = scmp.eq.s32.totalorder %s16, 0
    %p85 = por %p83, %p84
    %s87 = sadd.s32 %s86, 1
    %p90 = scmp.eq.s32.totalorder %s10, 1
    %p91 = scmp.ne.s32.totalorder %s86, %s88
    %p92 = scmp.eq.s32.totalorder %s10, 0
    %p93 = por %p91, %p92
    %p94 = scmp.ne.s32.totalorder %s86, %s88
    %p95 = scmp.eq.s32.totalorder %s15, 1
    %p96 = por %p94, %p95
    %p97 = scmp.ne.s32.totalorder %s88, %s89
    %p98 = scmp.eq.s32.totalorder %s15, 0
    %p99 = por %p97, %p98
    %p100 = scmp.ne.s32.totalorder %s88, %s89
    %p101 = scmp.eq.s32.totalorder %s16, 1
    %p102 = por %p100, %p101
    %p104 = scmp.ne.s32.totalorder %s89, %s103
    %p105 = scmp.eq.s32.totalorder %s16, 0
    %p106 = por %p104, %p105
    %s107 = ssub.s32 %s10, %s17
    %p108 = scmp.eq.s32.totalorder %s107, 0
    %s110 = sadd.s32 %s109, 1
    %s111 = scalar_select %p108, %s109, %s110
    %p114 = pneg %p108
    %p115 = scmp.eq.s32.totalorder %s10, 1
    %p116 = por %p114, %p115
    %p117 = scmp.ne.s32.totalorder %s109, %s112
    %p118 = scmp.eq.s32.totalorder %s10, 0
    %p119 = por %p117, %p118
    %p120 = scmp.ne.s32.totalorder %s109, %s112
    %p121 = scmp.eq.s32.totalorder %s15, 1
    %p122 = por %p120, %p121
    %p123 = scmp.ne.s32.totalorder %s112, %s113
    %p124 = scmp.eq.s32.totalorder %s15, 0
    %p125 = por %p123, %p124
    %p126 = scmp.ne.s32.totalorder %s112, %s113
    %p127 = scmp.eq.s32.totalorder %s16, 1
    %p128 = por %p126, %p127
    %p130 = scmp.ne.s32.totalorder %s113, %s129
    %p131 = scmp.eq.s32.totalorder %s16, 0
    %p132 = por %p130, %p131
    %p133 = scmp.le.s32.totalorder 1, %s10
    %p134 = scmp.lt.s32.totalorder %s10, 3
    %p135 = pnand %p133, %p134
    %p136 = pneg %p135
    // Predicated region
    $region9: #{_lambda_.28} parent=5 // pred_check
      _
    $region10: #{_lambda_.28} parent=5 // pred_check_branch
      %138 = sbr.rel (%p135) target = $region12
    $region11: #{_lambda_.28} parent=5 // pred_region
      %s139 = ssub.s32 %s10, 1
      // Predicated region
      $region13: #{_lambda_.28} parent=11 // pred_check
        %p140 = pneg %p57
      $region14: #{_lambda_.28} parent=11 // pred_check_branch
        %142 = sbr.rel (%p140) target = $region16
      $region15: #{_lambda_.28} parent=11 // pred_region
        _
      $region16: #{_lambda_.28} parent=11 // pred_fallthru
        _
      // Predicated region
      $region17: #{_lambda_.28} parent=11 // pred_check
        %p143 = pneg %p78
      $region18: #{_lambda_.28} parent=11 // pred_check_branch
        %145 = sbr.rel (%p143) target = $region20
      $region19: #{_lambda_.28} parent=11 // pred_region
        _
      $region20: #{_lambda_.28} parent=11 // pred_fallthru
        _
      // Predicated region
      $region21: #{_lambda_.28} parent=11 // pred_check
        %p146 = pneg %p99
      $region22: #{_lambda_.28} parent=11 // pred_check_branch
        %148 = sbr.rel (%p146) target = $region24
      $region23: #{_lambda_.28} parent=11 // pred_region
        _
      $region24: #{_lambda_.28} parent=11 // pred_fallthru
        _
    $region12: #{_lambda_.28} parent=5 // pred_fallthru
      _
    %p149 = scmp.lt.s32.totalorder %s10, 2
    // Predicated region
    $region25: #{_lambda_.28} parent=5 // pred_check
      %p150 = pneg %p149
    $region26: #{_lambda_.28} parent=5 // pred_check_branch
      %152 = sbr.rel (%p150) target = $region28
    $region27: #{_lambda_.28} parent=5 // pred_region
      // Predicated region
      $region29: #{_lambda_.28} parent=27 // pred_check
        %p153 = pneg %p30
      $region30: #{_lambda_.28} parent=27 // pred_check_branch
        %155 = sbr.rel (%p153) target = $region32
      $region31: #{_lambda_.28} parent=27 // pred_region
        %s156 = smul.u32 3, %s10
        %p157 = scmp.lt.s32.totalorder %s156, 5
        %s158 = scalar_select %p157, %s156, 5
        %s159 = smul.addr %s158, 8
        %s160 = scalar_lea.vmem %s0, %s159
        %s161 = smul.u32 3, %s10
      $region32: #{_lambda_.28} parent=27 // pred_fallthru
        _
    $region28: #{_lambda_.28} parent=5 // pred_fallthru
      _
    %p162 = scmp.le.s32.totalorder 1, %s10
    %p163 = scmp.lt.s32.totalorder %s10, 3
    %p164 = pnand %p162, %p163
    %p165 = pneg %p164
    // Predicated region
    $region33: #{_lambda_.28} parent=5 // pred_check
      _
    $region34: #{_lambda_.28} parent=5 // pred_check_branch
      %167 = sbr.rel (%p164) target = $region36
    $region35: #{_lambda_.28} parent=5 // pred_region
      %s168 = ssub.s32 %s10, 1
      %s169 = smul.u32 3, %s15
      %p170 = scmp.lt.s32.totalorder %s169, 5
      %s171 = scalar_select %p170, %s169, 5
      %s172 = smul.addr %s171, 8
      %s173 = scalar_lea.vmem %s0, %s172
      %p174 = pneg %p36
      %p175 = pneg %p33
      %p176 = pneg %p57
      %p177 = pneg %p54
      %p178 = pneg %p78
      %p179 = pneg %p75
      %p180 = pneg %p99
      %p181 = pneg %p96
      %p182 = pneg %p125
      %p183 = pneg %p122
      %s184 = smul.u32 3, %s15
      %p185 = scmp.lt.s32.totalorder %s184, 5
      %s186 = scalar_select %p185, %s184, 5
      %s187 = smul.addr %s186, 8
      %s188 = scalar_lea.vmem %s4, %s187
      %s189 = smul.u32 3, %s15
      %p190 = scmp.lt.s32.totalorder %s189, 5
      %s191 = scalar_select %p190, %s189, 5
      %s192 = smul.addr %s191, 8
      %s193 = scalar_lea.vmem %s0, %s192
      %s194 = smul.u32 3, %s15
      %s195 = smul.u32 3, %s15
      %p196 = scmp.lt.s32.totalorder %s195, 5
      %s197 = scalar_select %p196, %s195, 5
      %s198 = smul.addr %s197, 8
      %s199 = scalar_lea.vmem %s4, %s198
      %s200 = smul.u32 3, %s15
      %v201 = vld [vmem:[%s1] sm:$0x1]
      %v202 = vmul.f32 %v201, 0.03125
      %v203 = vld [vmem:[%s1 + $0x1] sm:$0x1]
      %v204 = vmul.f32 %v203, 0.03125
      %v205 = vmul.f32 %v202, %v202
      %v206 = vsub.f32 %v204, %v205
      %v207 = vmax.f32 %v206, 0.0
      %v208 = vld [vmem:[%s2] sm:$0x1]
      %v209 = vadd.f32 %v207, 1e-05
      %v210 = vrsqrt.pop %v209
      %v211 = vmul.f32 %v210, %v209
      %v212 = vmul.f32 %v211, %v210
      %v213 = vmul.f32 0.5, %v212
      %v214 = vsub.f32 1.5, %v213
      %v215 = vmul.f32 %v210, %v214
      %vm216 = vweird.f32 %v209
      %vm217 = vweird.f32 %v210
      %vm218 = vmor %vm216, %vm217
      %v219 = vsel %vm218, %v210, %v215
      %v220 = vmul.f32 %v208, %v219
      %v221 = vld [vmem:[%s193] sm:$0xff]
      %v222 = vld [vmem:[%s193 + $0x8] sm:$0xff]
      %v223 = vld [vmem:[%s193 + $0x10] sm:$0xff]
      %v224 = vperm.slane %v202, 0
      %v225 = vsub.f32 %v221, %v224
      %v226 = vsub.f32 %v222, %v224
      %v227 = vsub.f32 %v223, %v224
      %v229 = vperm.slane %v220, 0
      %v231 = vmul.f32 %v225, %v229
      %v232 = vmul.f32 %v226, %v229
      %v233 = vmul.f32 %v227, %v229
      %v234 = vld [vmem:[%s3] sm:$0x1]
      %v236 = vperm.slane %v234, 0
      %v238 = vadd.f32 %v231, %v236
      %v239 = vadd.f32 %v232, %v236
      %v240 = vadd.f32 %v233, %v236
      %vm241 = vcmp.gt.f32.partialorder %v238, 0.0
      %vm242 = vcmp.gt.f32.partialorder %v239, 0.0
      %vm243 = vcmp.gt.f32.partialorder %v240, 0.0
      %v244 = vmin.f32 %v238, 0.0
      %v245 = vmin.f32 %v239, 0.0
      %v246 = vmin.f32 %v240, 0.0
      %v247 = vmul.f32 %v244, 1.442695
      %v248 = vpow.pop %v247
      %v249 = vmul.f32 %v245, 1.442695
      %v250 = vpow.pop %v249
      %v251 = vmul.f32 %v246, 1.442695
      %v252 = vpow.pop %v251
      %v253 = vsub.f32 %v248, 1.0
      %v254 = vsub.f32 %v250, 1.0
      %v255 = vsub.f32 %v252, 1.0
      %v256 = vsel %vm241, %v238, %v253
      %v257 = vsel %vm242, %v239, %v254
      %v258 = vsel %vm243, %v240, %v255
      %vm259 = vcmp.gt.f32.partialorder %v256, 0.0
      %vm260 = vcmp.gt.f32.partialorder %v257, 0.0
      %vm261 = vcmp.gt.f32.partialorder %v258, 0.0
      %v262 = vmin.f32 %v256, 0.0
      %v263 = vmin.f32 %v257, 0.0
      %v264 = vmin.f32 %v258, 0.0
      %v265 = vmul.f32 %v262, 1.442695
      %v266 = vpow.pop %v265
      %v267 = vmul.f32 %v263, 1.442695
      %v268 = vpow.pop %v267
      %v269 = vmul.f32 %v264, 1.442695
      %v270 = vpow.pop %v269
      %v271 = vsub.f32 %v266, 1.0
      %v272 = vsub.f32 %v268, 1.0
      %v273 = vsub.f32 %v270, 1.0
      %v274 = vsel %vm259, %v256, %v271
      %v275 = vsel %vm260, %v257, %v272
      %v276 = vsel %vm261, %v258, %v273
      %vm277 = vcmp.gt.f32.partialorder %v274, 0.0
      %vm278 = vcmp.gt.f32.partialorder %v275, 0.0
      %vm279 = vcmp.gt.f32.partialorder %v276, 0.0
      %v280 = vmin.f32 %v274, 0.0
      %v281 = vmin.f32 %v275, 0.0
      %v282 = vmin.f32 %v276, 0.0
      %v283 = vmul.f32 %v280, 1.442695
      %v284 = vpow.pop %v283
      %v285 = vmul.f32 %v281, 1.442695
      %v286 = vpow.pop %v285
      %v287 = vmul.f32 %v282, 1.442695
      %v288 = vpow.pop %v287
      %v289 = vsub.f32 %v284, 1.0
      %v290 = vsub.f32 %v286, 1.0
      %v291 = vsub.f32 %v288, 1.0
      %v292 = vsel %vm277, %v274, %v289
      %v293 = vsel %vm278, %v275, %v290
      %v294 = vsel %vm279, %v276, %v291
      %vm295 = vcmp.gt.f32.partialorder %v292, 0.0
      %vm296 = vcmp.gt.f32.partialorder %v293, 0.0
      %vm297 = vcmp.gt.f32.partialorder %v294, 0.0
      %v298 = vmin.f32 %v292, 0.0
      %v299 = vmin.f32 %v293, 0.0
      %v300 = vmin.f32 %v294, 0.0
      %v301 = vmul.f32 %v298, 1.442695
      %v302 = vpow.pop %v301
      %v303 = vmul.f32 %v299, 1.442695
      %v304 = vpow.pop %v303
      %v305 = vmul.f32 %v300, 1.442695
      %v306 = vpow.pop %v305
      %v307 = vsub.f32 %v302, 1.0
      %v308 = vsub.f32 %v304, 1.0
      %v309 = vsub.f32 %v306, 1.0
      %v310 = vsel %vm295, %v292, %v307
      %v311 = vsel %vm296, %v293, %v308
      %v312 = vsel %vm297, %v294, %v309
      %vm313 = vcmask 326656
      %314 = vst.msk [vmem:[%s199] sm:$0xff] %vm313, %v310
      %315 = vst.msk [vmem:[%s199 + $0x8] sm:$0xff] %vm313, %v311
      %316 = vst.msk [vmem:[%s199 + $0x10] sm:$0xff] %vm313, %v312
      %s317 = smul.u32 3, %s15
      %p318 = scmp.lt.s32.totalorder %s317, 5
      %s319 = scalar_select %p318, %s317, 5
      %s320 = smul.addr %s319, 8
      %s321 = scalar_lea.vmem %s4, %s320
      // Predicated region
      $region37: #{_lambda_.28} parent=35 // pred_check
        %p322 = pneg %p122
      $region38: #{_lambda_.28} parent=35 // pred_check_branch
        %324 = sbr.rel (%p322) target = $region40
      $region39: #{_lambda_.28} parent=35 // pred_region
        %s325 = smul.u32 3, %s15
      $region40: #{_lambda_.28} parent=35 // pred_fallthru
        _
    $region36: #{_lambda_.28} parent=5 // pred_fallthru
      _
    %p326 = scmp.le.s32.totalorder 2, %s10
    // Predicated region
    $region41: #{_lambda_.28} parent=5 // pred_check
      %p327 = pneg %p326
    $region42: #{_lambda_.28} parent=5 // pred_check_branch
      %329 = sbr.rel (%p327) target = $region44
    $region43: #{_lambda_.28} parent=5 // pred_region
      %s330 = ssub.s32 %s10, 2
      // Predicated region
      $region45: #{_lambda_.28} parent=43 // pred_check
        %p331 = pneg %p128
      $region46: #{_lambda_.28} parent=43 // pred_check_branch
        %333 = sbr.rel (%p331) target = $region48
      $region47: #{_lambda_.28} parent=43 // pred_region
        %s334 = smul.u32 3, %s16
        %p335 = scmp.lt.s32.totalorder %s334, 5
        %s336 = scalar_select %p335, %s334, 5
        %s337 = smul.addr %s336, 8
        %s338 = scalar_lea.vmem %s4, %s337
      $region48: #{_lambda_.28} parent=43 // pred_fallthru
        _
    $region44: #{_lambda_.28} parent=5 // pred_fallthru
      _
  $region6: #{_lambda_.28} parent=0 // loop_footer
    %s14 = sadd.s32 1, %s10
  $region7: #{_lambda_.28} parent=0 // loop_footer_branch
    %9 = sbr.rel target = $region3
  $region8: #{_lambda_.28} parent=0 // loop_exit
    _

// kernel: _lambda_.29
$region0: #{_lambda_.29}
  #allocation0 [shape = 'u32[]', space=smem, size = 0x4, offset = 0x4, fixed_abs, tag = 'smem constant byte address 0x4 - core index']
  #allocation1 [shape = 'u32[72,128]{1,0:T(1,128)}', space=vmem, size = 0x9000, scoped, tag = 'internal scratch']
  %s0 = inlined_call_operand.vmem [shape: f32[48,320], index: 0, kind: input, shape index: {}]
  %s1 = inlined_call_operand.vmem [shape: f32[320,20], index: 1, kind: input, shape index: {}]
  %s2 = inlined_call_operand.vmem [shape: f32[1,20], index: 2, kind: input, shape index: {}]
  %s3 = inlined_call_operand.vmem [shape: f32[48,20], index: 3, kind: output, shape index: {0}]
  %s4 = inlined_call_operand.vmem [shape: f32[2,20], index: 4, kind: output, shape index: {1}]
  %5 = xla_tuple %s3, %s4
  %s6 = sld [smem:[#allocation0]]
  $region57: #{_lambda_.29} parent=0
    _
  %s8 = ssub.s32 1, %s6
  %s9 = scalar_select 0, %s8, %s6
  loop: start=0, step=1, limit=4
  $region2: #{_lambda_.29} parent=0 // loop_pre_header
    _
  $region3: #{_lambda_.29} parent=0 // loop_header
    %s11 = sphi 0, %s15
    %p12 = scmp.ge.s32.totalorder %s11, 4
    %s21 = sphi 0, %s23
    %s24 = sphi 0, %s21
    %s25 = sphi 0, %s24
    %s41 = sphi 0, %s25
    %s45 = sphi 0, %s45
    %s47 = sphi 0, %s45
    %s48 = sphi 0, %s47
    %s62 = sphi 0, %s48
    %s66 = sphi 0, %s66
    %s68 = sphi 0, %s66
    %s69 = sphi 0, %s68
    %s83 = sphi 0, %s69
    %s89 = sphi 0, %s91
    %s92 = sphi 0, %s89
    %s93 = sphi 0, %s92
    %s109 = sphi 0, %s93
    %s113 = sphi 0, %s113
    %s115 = sphi 0, %s113
    %s116 = sphi 0, %s115
    %s130 = sphi 0, %s116
  $region4: #{_lambda_.29} parent=0 // loop_header_branch
    %14 = sbr.rel (%p12) target = $region8
  $region5: #{_lambda_.29} parent=0 // loop_body
    %s16 = ssub.s32 %s11, 1
    %s17 = ssub.s32 %s11, 2
    %s18 = sadd.s32 %s11, 1
    %s19 = ssub.s32 %s11, %s18
    %p20 = scmp.eq.s32.totalorder %s19, 0
    %s22 = sadd.s32 %s21, 1
    %s23 = scalar_select %p20, %s21, %s22
    %p26 = pneg %p20
    %p27 = scmp.eq.s32.totalorder %s11, 1
    %p28 = por %p26, %p27
    %p29 = scmp.ne.s32.totalorder %s21, %s24
    %p30 = scmp.eq.s32.totalorder %s11, 0
    %p31 = por %p29, %p30
    %p32 = scmp.ne.s32.totalorder %s21, %s24
    %p33 = scmp.eq.s32.totalorder %s16, 1
    %p34 = por %p32, %p33
    %p35 = scmp.ne.s32.totalorder %s24, %s25
    %p36 = scmp.eq.s32.totalorder %s16, 0
    %p37 = por %p35, %p36
    %p38 = scmp.ne.s32.totalorder %s24, %s25
    %p39 = scmp.eq.s32.totalorder %s17, 1
    %p40 = por %p38, %p39
    %p42 = scmp.ne.s32.totalorder %s25, %s41
    %p43 = scmp.eq.s32.totalorder %s17, 0
    %p44 = por %p42, %p43
    %s46 = sadd.s32 %s45, 1
    %p49 = scmp.eq.s32.totalorder %s11, 1
    %p50 = scmp.ne.s32.totalorder %s45, %s47
    %p51 = scmp.eq.s32.totalorder %s11, 0
    %p52 = por %p50, %p51
    %p53 = scmp.ne.s32.totalorder %s45, %s47
    %p54 = scmp.eq.s32.totalorder %s16, 1
    %p55 = por %p53, %p54
    %p56 = scmp.ne.s32.totalorder %s47, %s48
    %p57 = scmp.eq.s32.totalorder %s16, 0
    %p58 = por %p56, %p57
    %p59 = scmp.ne.s32.totalorder %s47, %s48
    %p60 = scmp.eq.s32.totalorder %s17, 1
    %p61 = por %p59, %p60
    %p63 = scmp.ne.s32.totalorder %s48, %s62
    %p64 = scmp.eq.s32.totalorder %s17, 0
    %p65 = por %p63, %p64
    %s67 = sadd.s32 %s66, 1
    %p70 = scmp.eq.s32.totalorder %s11, 1
    %p71 = scmp.ne.s32.totalorder %s66, %s68
    %p72 = scmp.eq.s32.totalorder %s11, 0
    %p73 = por %p71, %p72
    %p74 = scmp.ne.s32.totalorder %s66, %s68
    %p75 = scmp.eq.s32.totalorder %s16, 1
    %p76 = por %p74, %p75
    %p77 = scmp.ne.s32.totalorder %s68, %s69
    %p78 = scmp.eq.s32.totalorder %s16, 0
    %p79 = por %p77, %p78
    %p80 = scmp.ne.s32.totalorder %s68, %s69
    %p81 = scmp.eq.s32.totalorder %s17, 1
    %p82 = por %p80, %p81
    %p84 = scmp.ne.s32.totalorder %s69, %s83
    %p85 = scmp.eq.s32.totalorder %s17, 0
    %p86 = por %p84, %p85
    %s87 = ssub.s32 %s11, %s18
    %p88 = scmp.eq.s32.totalorder %s87, 0
    %s90 = sadd.s32 %s89, 1
    %s91 = scalar_select %p88, %s89, %s90
    %p94 = pneg %p88
    %p95 = scmp.eq.s32.totalorder %s11, 1
    %p96 = por %p94, %p95
    %p97 = scmp.ne.s32.totalorder %s89, %s92
    %p98 = scmp.eq.s32.totalorder %s11, 0
    %p99 = por %p97, %p98
    %p100 = scmp.ne.s32.totalorder %s89, %s92
    %p101 = scmp.eq.s32.totalorder %s16, 1
    %p102 = por %p100, %p101
    %p103 = scmp.ne.s32.totalorder %s92, %s93
    %p104 = scmp.eq.s32.totalorder %s16, 0
    %p105 = por %p103, %p104
    %p106 = scmp.ne.s32.totalorder %s92, %s93
    %p107 = scmp.eq.s32.totalorder %s17, 1
    %p108 = por %p106, %p107
    %p110 = scmp.ne.s32.totalorder %s93, %s109
    %p111 = scmp.eq.s32.totalorder %s17, 0
    %p112 = por %p110, %p111
    %s114 = sadd.s32 %s113, 1
    %p117 = scmp.eq.s32.totalorder %s11, 1
    %p118 = scmp.ne.s32.totalorder %s113, %s115
    %p119 = scmp.eq.s32.totalorder %s11, 0
    %p120 = por %p118, %p119
    %p121 = scmp.ne.s32.totalorder %s113, %s115
    %p122 = scmp.eq.s32.totalorder %s16, 1
    %p123 = por %p121, %p122
    %p124 = scmp.ne.s32.totalorder %s115, %s116
    %p125 = scmp.eq.s32.totalorder %s16, 0
    %p126 = por %p124, %p125
    %p127 = scmp.ne.s32.totalorder %s115, %s116
    %p128 = scmp.eq.s32.totalorder %s17, 1
    %p129 = por %p127, %p128
    %p131 = scmp.ne.s32.totalorder %s116, %s130
    %p132 = scmp.eq.s32.totalorder %s17, 0
    %p133 = por %p131, %p132
    %p134 = scmp.le.s32.totalorder 1, %s11
    %p135 = scmp.lt.s32.totalorder %s11, 3
    %p136 = pnand %p134, %p135
    %p137 = pneg %p136
    // Predicated region
    $region9: #{_lambda_.29} parent=5 // pred_check
      _
    $region10: #{_lambda_.29} parent=5 // pred_check_branch
      %139 = sbr.rel (%p136) target = $region12
    $region11: #{_lambda_.29} parent=5 // pred_region
      %s140 = ssub.s32 %s11, 1
      // Predicated region
      $region13: #{_lambda_.29} parent=11 // pred_check
        %p141 = pneg %p58
      $region14: #{_lambda_.29} parent=11 // pred_check_branch
        %143 = sbr.rel (%p141) target = $region16
      $region15: #{_lambda_.29} parent=11 // pred_region
        _
      $region16: #{_lambda_.29} parent=11 // pred_fallthru
        _
      // Predicated region
      $region17: #{_lambda_.29} parent=11 // pred_check
        %p144 = pneg %p79
      $region18: #{_lambda_.29} parent=11 // pred_check_branch
        %146 = sbr.rel (%p144) target = $region20
      $region19: #{_lambda_.29} parent=11 // pred_region
        _
      $region20: #{_lambda_.29} parent=11 // pred_fallthru
        _
    $region12: #{_lambda_.29} parent=5 // pred_fallthru
      _
    %p147 = scmp.lt.s32.totalorder %s11, 2
    // Predicated region
    $region21: #{_lambda_.29} parent=5 // pred_check
      %p148 = pneg %p147
    $region22: #{_lambda_.29} parent=5 // pred_check_branch
      %150 = sbr.rel (%p148) target = $region24
    $region23: #{_lambda_.29} parent=5 // pred_region
      // Predicated region
      $region25: #{_lambda_.29} parent=23 // pred_check
        %p151 = pneg %p31
      $region26: #{_lambda_.29} parent=23 // pred_check_branch
        %153 = sbr.rel (%p151) target = $region28
      $region27: #{_lambda_.29} parent=23 // pred_region
        %s154 = smul.u32 3, %s11
        %p155 = scmp.lt.s32.totalorder %s154, 5
        %s156 = scalar_select %p155, %s154, 5
        %s157 = smul.addr %s156, 3
        %s158 = smul.addr %s157, 8
        %s159 = scalar_lea.vmem %s0, %s158
        %s160 = smul.u32 3, %s11
      $region28: #{_lambda_.29} parent=23 // pred_fallthru
        _
    $region24: #{_lambda_.29} parent=5 // pred_fallthru
      _
    %p161 = scmp.le.s32.totalorder 1, %s11
    %p162 = scmp.lt.s32.totalorder %s11, 3
    %p163 = pnand %p161, %p162
    %p164 = pneg %p163
    // Predicated region
    $region29: #{_lambda_.29} parent=5 // pred_check
      _
    $region30: #{_lambda_.29} parent=5 // pred_check_branch
      %166 = sbr.rel (%p163) target = $region32
    $region31: #{_lambda_.29} parent=5 // pred_region
      %s167 = ssub.s32 %s11, 1
      %s168 = smul.u32 3, %s16
      %p169 = scmp.lt.s32.totalorder %s168, 5
      %s170 = scalar_select %p169, %s168, 5
      %s171 = smul.addr %s170, 3
      %s172 = smul.addr %s171, 8
      %s173 = scalar_lea.vmem %s0, %s172
      %p174 = pneg %p37
      %p175 = pneg %p34
      %p176 = pneg %p58
      %p177 = pneg %p55
      %p178 = pneg %p79
      %p179 = pneg %p76
      %p180 = pneg %p105
      %p181 = pneg %p102
      %s182 = smul.u32 3, %s16
      %p183 = scmp.lt.s32.totalorder %s182, 5
      %s184 = scalar_select %p183, %s182, 5
      %s185 = smul.addr %s184, 8
      %s186 = scalar_lea.vmem %s3, %s185
      %p187 = pneg %p126
      %p188 = pneg %p123
      %s189 = smul.u32 3, %s16
      %p190 = scmp.lt.s32.totalorder %s189, 5
      %s191 = scalar_select %p190, %s189, 5
      %s192 = smul.addr %s191, 3
      %s193 = smul.addr %s192, 8
      %s194 = scalar_lea.vmem %s0, %s193
      %s195 = smul.u32 3, %s16
      %s196 = smul.u32 3, %s16
      %p197 = scmp.lt.s32.totalorder %s196, 5
      %s198 = scalar_select %p197, %s196, 5
      %s199 = smul.addr %s198, 8
      %s200 = scalar_lea.vmem %s3, %s199
      %s201 = smul.u32 3, %s16
      %p202 = scmp.eq.s32.totalorder %s16, 0
      // Predicated region
      $region33: #{_lambda_.29} parent=31 // pred_check
        %p203 = pneg %p202
      $region34: #{_lambda_.29} parent=31 // pred_check_branch
        %205 = sbr.rel (%p203) target = $region36
      $region35: #{_lambda_.29} parent=31 // pred_region
        %vm206 = vcmask 156672
        %207 = vst.msk [vmem:[%s4] sm:$0x3] %vm206, 0.0
      $region36: #{_lambda_.29} parent=31 // pred_fallthru
        _
      %v208 = vld [vmem:[%s194] sm:$0xff]
      %v209 = vld [vmem:[%s194 + $0x8] sm:$0xff]
      %v210 = vld [vmem:[%s194 + $0x10] sm:$0xff]
      %v211 = vld [vmem:[%s194 + $0x18] sm:$0xff]
      %v212 = vld [vmem:[%s194 + $0x20] sm:$0xff]
      %v213 = vld [vmem:[%s194 + $0x28] sm:$0xff]
      %v214 = vld [vmem:[%s194 + $0x30] sm:$0xff]
      %v215 = vld [vmem:[%s194 + $0x38] sm:$0xff]
      %v216 = vld [vmem:[%s194 + $0x40] sm:$0xff]
      %v217 = vld [vmem:[%s1] sm:$0xff]
      %v218 = vld [vmem:[%s1 + $0x8] sm:$0xff]
      %v219 = vld [vmem:[%s1 + $0x10] sm:$0xff]
      %v220 = vld [vmem:[%s1 + $0x18] sm:$0xff]
      %v221 = vld [vmem:[%s1 + $0x20] sm:$0xff]
      %v222 = vld [vmem:[%s1 + $0x28] sm:$0xff]
      %v223 = vld [vmem:[%s1 + $0x30] sm:$0xff]
      %v224 = vld [vmem:[%s1 + $0x38] sm:$0xff]
      %v225 = vld [vmem:[%s1 + $0x40] sm:$0xff]
      %v226 = vld [vmem:[%s1 + $0x48] sm:$0xff]
      %v227 = vld [vmem:[%s1 + $0x50] sm:$0xff]
      %v228 = vld [vmem:[%s1 + $0x58] sm:$0xff]
      %v229 = vld [vmem:[%s1 + $0x60] sm:$0xff]
      %v230 = vld [vmem:[%s1 + $0x68] sm:$0xff]
      %v231 = vld [vmem:[%s1 + $0x70] sm:$0xff]
      %v232 = vld [vmem:[%s1 + $0x78] sm:$0xff]
      %v233 = vld [vmem:[%s1 + $0x80] sm:$0xff]
      %v234 = vld [vmem:[%s1 + $0x88] sm:$0xff]
      %v235 = vld [vmem:[%s1 + $0x90] sm:$0xff]
      %v236 = vld [vmem:[%s1 + $0x98] sm:$0xff]
      %v237 = vld [vmem:[%s1 + $0xa0] sm:$0xff]
      %v238 = vld [vmem:[%s1 + $0xa8] sm:$0xff]
      %v239 = vld [vmem:[%s1 + $0xb0] sm:$0xff]
      %v240 = vld [vmem:[%s1 + $0xb8] sm:$0xff]
      %v241 = vld [vmem:[%s1 + $0xc0] sm:$0xff]
      %v242 = vld [vmem:[%s1 + $0xc8] sm:$0xff]
      %v243 = vld [vmem:[%s1 + $0xd0] sm:$0xff]
      %v244 = vld [vmem:[%s1 + $0xd8] sm:$0xff]
      %v245 = vld [vmem:[%s1 + $0xe0] sm:$0xff]
      %v246 = vld [vmem:[%s1 + $0xe8] sm:$0xff]
      %v247 = vld [vmem:[%s1 + $0xf0] sm:$0xff]
      %v248 = vld [vmem:[%s1 + $0xf8] sm:$0xff]
      %v249 = vld [vmem:[%s1 + $0x100] sm:$0xff]
      %v250 = vld [vmem:[%s1 + $0x108] sm:$0xff]
      %v251 = vld [vmem:[%s1 + $0x110] sm:$0xff]
      %v252 = vld [vmem:[%s1 + $0x118] sm:$0xff]
      %v253 = vld [vmem:[%s1 + $0x120] sm:$0xff]
      %v254 = vld [vmem:[%s1 + $0x128] sm:$0xff]
      %v255 = vld [vmem:[%s1 + $0x130] sm:$0xff]
      %v256 = vld [vmem:[%s1 + $0x138] sm:$0xff]
      %v257 = vld [vmem:[%s2] sm:$0x1]
      %v259 = vperm.slane %v257, 0
      %vm261 = vcmask 523264
      %v263 = vsel %vm261, %v210, 0
      %v266 = vsel %vm261, %v213, 0
      %v269 = vsel %vm261, %v216, 0
      %v271 = vand.u32 %v232, 4294901760
      %272 = vmatpush.msra.mxu0 %v271
      %v273 = vand.u32 %v231, 4294901760
      %274 = vmatpush.msra.mxu0 %v273
      %v275 = vand.u32 %v230, 4294901760
      %276 = vmatpush.msra.mxu0 %v275
      %v277 = vand.u32 %v229, 4294901760
      %278 = vmatpush.msra.mxu0 %v277
      %v279 = vand.u32 %v228, 4294901760
      %280 = vmatpush.msra.mxu0 %v279
      %v281 = vand.u32 %v227, 4294901760
      %282 = vmatpush.msra.mxu0 %v281
      %v283 = vand.u32 %v226, 4294901760
      %284 = vmatpush.msra.mxu0 %v283
      %v285 = vand.u32 %v225, 4294901760
      %286 = vmatpush.msra.mxu0 %v285
      %v287 = vand.u32 %v224, 4294901760
      %288 = vmatpush.msra.mxu0 %v287
      %v289 = vand.u32 %v223, 4294901760
      %290 = vmatpush.msra.mxu0 %v289
      %v291 = vand.u32 %v222, 4294901760
      %292 = vmatpush.msra.mxu0 %v291
      %v293 = vand.u32 %v221, 4294901760
      %294 = vmatpush.msra.mxu0 %v293
      %v295 = vand.u32 %v220, 4294901760
      %296 = vmatpush.msra.mxu0 %v295
      %v297 = vand.u32 %v219, 4294901760
      %298 = vmatpush.msra.mxu0 %v297
      %v299 = vand.u32 %v218, 4294901760
      %300 = vmatpush.msra.mxu0 %v299
      %v301 = vand.u32 %v217, 4294901760
      %302 = vmatpush.msra.mxu0 %v301
      %v303 = vand.u32 %v208, 4294901760
      %v304 = vsub.f32 %v208, %v303
      %v305 = vand.u32 %v304, 4294901760
      %v306 = vsub.f32 %v304, %v305
      %v307 = vand.u32 %v306, 4294901760
      %308 = vmatmul.f32.gmra.mxu0 %v307
      %v309 = vpop.f32.mrf.mxu0
      %v310 = vadd.f32 %v259, %v309
      %v311 = vand.u32 %v211, 4294901760
      %v312 = vsub.f32 %v211, %v311
      %v313 = vand.u32 %v312, 4294901760
      %v314 = vsub.f32 %v312, %v313
      %v315 = vand.u32 %v314, 4294901760
      %316 = vmatmul.f32.gmra.mxu0 %v315
      %v317 = vpop.f32.mrf.mxu0
      %v318 = vadd.f32 %v259, %v317
      %v319 = vand.u32 %v214, 4294901760
      %v320 = vsub.f32 %v214, %v319
      %v321 = vand.u32 %v320, 4294901760
      %v322 = vsub.f32 %v320, %v321
      %v323 = vand.u32 %v322, 4294901760
      %324 = vmatmul.f32.gmra.mxu0 %v323
      %v325 = vpop.f32.mrf.mxu0
      %v326 = vadd.f32 %v259, %v325
      %327 = vdwg.mxu0
      %v328 = vand.u32 %v232, 4294901760
      %v329 = vsub.f32 %v232, %v328
      %v330 = vand.u32 %v329, 4294901760
      %v331 = vsub.f32 %v329, %v330
      %v332 = vand.u32 %v331, 4294901760
      %333 = vmatpush.msra.mxu0 %v332
      %v334 = vand.u32 %v231, 4294901760
      %v335 = vsub.f32 %v231, %v334
      %v336 = vand.u32 %v335, 4294901760
      %v337 = vsub.f32 %v335, %v336
      %v338 = vand.u32 %v337, 4294901760
      %339 = vmatpush.msra.mxu0 %v338
      %v340 = vand.u32 %v230, 4294901760
      %v341 = vsub.f32 %v230, %v340
      %v342 = vand.u32 %v341, 4294901760
      %v343 = vsub.f32 %v341, %v342
      %v344 = vand.u32 %v343, 4294901760
      %345 = vmatpush.msra.mxu0 %v344
      %v346 = vand.u32 %v229, 4294901760
      %v347 = vsub.f32 %v229, %v346
      %v348 = vand.u32 %v347, 4294901760
      %v349 = vsub.f32 %v347, %v348
      %v350 = vand.u32 %v349, 4294901760
      %351 = vmatpush.msra.mxu0 %v350
      %v352 = vand.u32 %v228, 4294901760
      %v353 = vsub.f32 %v228, %v352
      %v354 = vand.u32 %v353, 4294901760
      %v355 = vsub.f32 %v353, %v354
      %v356 = vand.u32 %v355, 4294901760
      %357 = vmatpush.msra.mxu0 %v356
      %v358 = vand.u32 %v227, 4294901760
      %v359 = vsub.f32 %v227, %v358
      %v360 = vand.u32 %v359, 4294901760
      %v361 = vsub.f32 %v359, %v360
      %v362 = vand.u32 %v361, 4294901760
      %363 = vmatpush.msra.mxu0 %v362
      %v364 = vand.u32 %v226, 4294901760
      %v365 = vsub.f32 %v226, %v364
      %v366 = vand.u32 %v365, 4294901760
      %v367 = vsub.f32 %v365, %v366
      %v368 = vand.u32 %v367, 4294901760
      %369 = vmatpush.msra.mxu0 %v368
      %v370 = vand.u32 %v225, 4294901760
      %v371 = vsub.f32 %v225, %v370
      %v372 = vand.u32 %v371, 4294901760
      %v373 = vsub.f32 %v371, %v372
      %v374 = vand.u32 %v373, 4294901760
      %375 = vmatpush.msra.mxu0 %v374
      %v376 = vand.u32 %v224, 4294901760
      %v377 = vsub.f32 %v224, %v376
      %v378 = vand.u32 %v377, 4294901760
      %v379 = vsub.f32 %v377, %v378
      %v380 = vand.u32 %v379, 4294901760
      %381 = vmatpush.msra.mxu0 %v380
      %v382 = vand.u32 %v223, 4294901760
      %v383 = vsub.f32 %v223, %v382
      %v384 = vand.u32 %v383, 4294901760
      %v385 = vsub.f32 %v383, %v384
      %v386 = vand.u32 %v385, 4294901760
      %387 = vmatpush.msra.mxu0 %v386
      %v388 = vand.u32 %v222, 4294901760
      %v389 = vsub.f32 %v222, %v388
      %v390 = vand.u32 %v389, 4294901760
      %v391 = vsub.f32 %v389, %v390
      %v392 = vand.u32 %v391, 4294901760
      %393 = vmatpush.msra.mxu0 %v392
      %v394 = vand.u32 %v221, 4294901760
      %v395 = vsub.f32 %v221, %v394
      %v396 = vand.u32 %v395, 4294901760
      %v397 = vsub.f32 %v395, %v396
      %v398 = vand.u32 %v397, 4294901760
      %399 = vmatpush.msra.mxu0 %v398
      %v400 = vand.u32 %v220, 4294901760
      %v401 = vsub.f32 %v220, %v400
      %v402 = vand.u32 %v401, 4294901760
      %v403 = vsub.f32 %v401, %v402
      %v404 = vand.u32 %v403, 4294901760
      %405 = vmatpush.msra.mxu0 %v404
      %v406 = vand.u32 %v219, 4294901760
      %v407 = vsub.f32 %v219, %v406
      %v408 = vand.u32 %v407, 4294901760
      %v409 = vsub.f32 %v407, %v408
      %v410 = vand.u32 %v409, 4294901760
      %411 = vmatpush.msra.mxu0 %v410
      %v412 = vand.u32 %v218, 4294901760
      %v413 = vsub.f32 %v218, %v412
      %v414 = vand.u32 %v413, 4294901760
      %v415 = vsub.f32 %v413, %v414
      %v416 = vand.u32 %v415, 4294901760
      %417 = vmatpush.msra.mxu0 %v416
      %v418 = vand.u32 %v217, 4294901760
      %v419 = vsub.f32 %v217, %v418
      %v420 = vand.u32 %v419, 4294901760
      %v421 = vsub.f32 %v419, %v420
      %v422 = vand.u32 %v421, 4294901760
      %423 = vmatpush.msra.mxu0 %v422
      %v424 = vand.u32 %v208, 4294901760
      %425 = vmatmul.f32.gmra.mxu0 %v424
      %v426 = vpop.f32.mrf.mxu0
      %v427 = vadd.f32 %v310, %v426
      %v428 = vand.u32 %v211, 4294901760
      %429 = vmatmul.f32.gmra.mxu0 %v428
      %v430 = vpop.f32.mrf.mxu0
      %v431 = vadd.f32 %v318, %v430
      %v432 = vand.u32 %v214, 4294901760
      %433 = vmatmul.f32.gmra.mxu0 %v432
      %v434 = vpop.f32.mrf.mxu0
      %v435 = vadd.f32 %v326, %v434
      %436 = vdwg.mxu0
      %v437 = vand.u32 %v232, 4294901760
      %v438 = vsub.f32 %v232, %v437
      %439 = vmatpush.msra.mxu0 %v438
      %v440 = vand.u32 %v231, 4294901760
      %v441 = vsub.f32 %v231, %v440
      %442 = vmatpush.msra.mxu0 %v441
      %v443 = vand.u32 %v230, 4294901760
      %v444 = vsub.f32 %v230, %v443
      %445 = vmatpush.msra.mxu0 %v444
      %v446 = vand.u32 %v229, 4294901760
      %v447 = vsub.f32 %v229, %v446
      %448 = vmatpush.msra.mxu0 %v447
      %v449 = vand.u32 %v228, 4294901760
      %v450 = vsub.f32 %v228, %v449
      %451 = vmatpush.msra.mxu0 %v450
      %v452 = vand.u32 %v227, 4294901760
      %v453 = vsub.f32 %v227, %v452
      %454 = vmatpush.msra.mxu0 %v453
      %v455 = vand.u32 %v226, 4294901760
      %v456 = vsub.f32 %v226, %v455
      %457 = vmatpush.msra.mxu0 %v456
      %v458 = vand.u32 %v225, 4294901760
      %v459 = vsub.f32 %v225, %v458
      %460 = vmatpush.msra.mxu0 %v459
      %v461 = vand.u32 %v224, 4294901760
      %v462 = vsub.f32 %v224, %v461
      %463 = vmatpush.msra.mxu0 %v462
      %v464 = vand.u32 %v223, 4294901760
      %v465 = vsub.f32 %v223, %v464
      %466 = vmatpush.msra.mxu0 %v465
      %v467 = vand.u32 %v222, 4294901760
      %v468 = vsub.f32 %v222, %v467
      %469 = vmatpush.msra.mxu0 %v468
      %v470 = vand.u32 %v221, 4294901760
      %v471 = vsub.f32 %v221, %v470
      %472 = vmatpush.msra.mxu0 %v471
      %v473 = vand.u32 %v220, 4294901760
      %v474 = vsub.f32 %v220, %v473
      %475 = vmatpush.msra.mxu0 %v474
      %v476 = vand.u32 %v219, 4294901760
      %v477 = vsub.f32 %v219, %v476
      %478 = vmatpush.msra.mxu0 %v477
      %v479 = vand.u32 %v218, 4294901760
      %v480 = vsub.f32 %v218, %v479
      %481 = vmatpush.msra.mxu0 %v480
      %v482 = vand.u32 %v217, 4294901760
      %v483 = vsub.f32 %v217, %v482
      %484 = vmatpush.msra.mxu0 %v483
      %v485 = vand.u32 %v208, 4294901760
      %v486 = vsub.f32 %v208, %v485
      %487 = vmatmul.f32.gmra.mxu0 %v486
      %v488 = vpop.f32.mrf.mxu0
      %v489 = vadd.f32 %v427, %v488
      %v490 = vand.u32 %v211, 4294901760
      %v491 = vsub.f32 %v211, %v490
      %492 = vmatmul.f32.gmra.mxu0 %v491
      %v493 = vpop.f32.mrf.mxu0
      %v494 = vadd.f32 %v431, %v493
      %v495 = vand.u32 %v214, 4294901760
      %v496 = vsub.f32 %v214, %v495
      %497 = vmatmul.f32.gmra.mxu0 %v496
      %v498 = vpop.f32.mrf.mxu0
      %v499 = vadd.f32 %v435, %v498
      %500 = vdwg.mxu0
      %v501 = vand.u32 %v232, 4294901760
      %502 = vmatpush.msra.mxu0 %v501
      %v503 = vand.u32 %v231, 4294901760
      %504 = vmatpush.msra.mxu0 %v503
      %v505 = vand.u32 %v230, 4294901760
      %506 = vmatpush.msra.mxu0 %v505
      %v507 = vand.u32 %v229, 4294901760
      %508 = vmatpush.msra.mxu0 %v507
      %v509 = vand.u32 %v228, 4294901760
      %510 = vmatpush.msra.mxu0 %v509
      %v511 = vand.u32 %v227, 4294901760
      %512 = vmatpush.msra.mxu0 %v511
      %v513 = vand.u32 %v226, 4294901760
      %514 = vmatpush.msra.mxu0 %v513
      %v515 = vand.u32 %v225, 4294901760
      %516 = vmatpush.msra.mxu0 %v515
      %v517 = vand.u32 %v224, 4294901760
      %518 = vmatpush.msra.mxu0 %v517
      %v519 = vand.u32 %v223, 4294901760
      %520 = vmatpush.msra.mxu0 %v519
      %v521 = vand.u32 %v222, 4294901760
      %522 = vmatpush.msra.mxu0 %v521
      %v523 = vand.u32 %v221, 4294901760
      %524 = vmatpush.msra.mxu0 %v523
      %v525 = vand.u32 %v220, 4294901760
      %526 = vmatpush.msra.mxu0 %v525
      %v527 = vand.u32 %v219, 4294901760
      %528 = vmatpush.msra.mxu0 %v527
      %v529 = vand.u32 %v218, 4294901760
      %530 = vmatpush.msra.mxu0 %v529
      %v531 = vand.u32 %v217, 4294901760
      %532 = vmatpush.msra.mxu0 %v531
      %v533 = vand.u32 %v208, 4294901760
      %v534 = vsub.f32 %v208, %v533
      %v535 = vand.u32 %v534, 4294901760
      %536 = vmatmul.f32.gmra.mxu0 %v535
      %v537 = vpop.f32.mrf.mxu0
      %v538 = vadd.f32 %v489, %v537
      %v539 = vand.u32 %v211, 4294901760
      %v540 = vsub.f32 %v211, %v539
      %v541 = vand.u32 %v540, 4294901760
      %542 = vmatmul.f32.gmra.mxu0 %v541
      %v543 = vpop.f32.mrf.mxu0
      %v544 = vadd.f32 %v494, %v543
      %v545 = vand.u32 %v214, 4294901760
      %v546 = vsub.f32 %v214, %v545
      %v547 = vand.u32 %v546, 4294901760
      %548 = vmatmul.f32.gmra.mxu0 %v547
      %v549 = vpop.f32.mrf.mxu0
      %v550 = vadd.f32 %v499, %v549
      %551 = vdwg.mxu0
      %v552 = vand.u32 %v232, 4294901760
      %v553 = vsub.f32 %v232, %v552
      %v554 = vand.u32 %v553, 4294901760
      %555 = vmatpush.msra.mxu0 %v554
      %v556 = vand.u32 %v231, 4294901760
      %v557 = vsub.f32 %v231, %v556
      %v558 = vand.u32 %v557, 4294901760
      %559 = vmatpush.msra.mxu0 %v558
      %v560 = vand.u32 %v230, 4294901760
      %v561 = vsub.f32 %v230, %v560
      %v562 = vand.u32 %v561, 4294901760
      %563 = vmatpush.msra.mxu0 %v562
      %v564 = vand.u32 %v229, 4294901760
      %v565 = vsub.f32 %v229, %v564
      %v566 = vand.u32 %v565, 4294901760
      %567 = vmatpush.msra.mxu0 %v566
      %v568 = vand.u32 %v228, 4294901760
      %v569 = vsub.f32 %v228, %v568
      %v570 = vand.u32 %v569, 4294901760
      %571 = vmatpush.msra.mxu0 %v570
      %v572 = vand.u32 %v227, 4294901760
      %v573 = vsub.f32 %v227, %v572
      %v574 = vand.u32 %v573, 4294901760
      %575 = vmatpush.msra.mxu0 %v574
      %v576 = vand.u32 %v226, 4294901760
      %v577 = vsub.f32 %v226, %v576
      %v578 = vand.u32 %v577, 4294901760
      %579 = vmatpush.msra.mxu0 %v578
      %v580 = vand.u32 %v225, 4294901760
      %v581 = vsub.f32 %v225, %v580
      %v582 = vand.u32 %v581, 4294901760
      %583 = vmatpush.msra.mxu0 %v582
      %v584 = vand.u32 %v224, 4294901760
      %v585 = vsub.f32 %v224, %v584
      %v586 = vand.u32 %v585, 4294901760
      %587 = vmatpush.msra.mxu0 %v586
      %v588 = vand.u32 %v223, 4294901760
      %v589 = vsub.f32 %v223, %v588
      %v590 = vand.u32 %v589, 4294901760
      %591 = vmatpush.msra.mxu0 %v590
      %v592 = vand.u32 %v222, 4294901760
      %v593 = vsub.f32 %v222, %v592
      %v594 = vand.u32 %v593, 4294901760
      %595 = vmatpush.msra.mxu0 %v594
      %v596 = vand.u32 %v221, 4294901760
      %v597 = vsub.f32 %v221, %v596
      %v598 = vand.u32 %v597, 4294901760
      %599 = vmatpush.msra.mxu0 %v598
      %v600 = vand.u32 %v220, 4294901760
      %v601 = vsub.f32 %v220, %v600
      %v602 = vand.u32 %v601, 4294901760
      %603 = vmatpush.msra.mxu0 %v602
      %v604 = vand.u32 %v219, 4294901760
      %v605 = vsub.f32 %v219, %v604
      %v606 = vand.u32 %v605, 4294901760
      %607 = vmatpush.msra.mxu0 %v606
      %v608 = vand.u32 %v218, 4294901760
      %v609 = vsub.f32 %v218, %v608
      %v610 = vand.u32 %v609, 4294901760
      %611 = vmatpush.msra.mxu0 %v610
      %v612 = vand.u32 %v217, 4294901760
      %v613 = vsub.f32 %v217, %v612
      %v614 = vand.u32 %v613, 4294901760
      %615 = vmatpush.msra.mxu0 %v614
      %v616 = vand.u32 %v208, 4294901760
      %617 = vmatmul.f32.gmra.mxu0 %v616
      %v618 = vpop.f32.mrf.mxu0
      %v619 = vadd.f32 %v538, %v618
      %v620 = vand.u32 %v211, 4294901760
      %621 = vmatmul.f32.gmra.mxu0 %v620
      %v622 = vpop.f32.mrf.mxu0
      %v623 = vadd.f32 %v544, %v622
      %v624 = vand.u32 %v214, 4294901760
      %625 = vmatmul.f32.gmra.mxu0 %v624
      %v626 = vpop.f32.mrf.mxu0
      %v627 = vadd.f32 %v550, %v626
      %628 = vdwg.mxu0
      %v629 = vand.u32 %v232, 4294901760
      %630 = vmatpush.msra.mxu0 %v629
      %v631 = vand.u32 %v231, 4294901760
      %632 = vmatpush.msra.mxu0 %v631
      %v633 = vand.u32 %v230, 4294901760
      %634 = vmatpush.msra.mxu0 %v633
      %v635 = vand.u32 %v229, 4294901760
      %636 = vmatpush.msra.mxu0 %v635
      %v637 = vand.u32 %v228, 4294901760
      %638 = vmatpush.msra.mxu0 %v637
      %v639 = vand.u32 %v227, 4294901760
      %640 = vmatpush.msra.mxu0 %v639
      %v641 = vand.u32 %v226, 4294901760
      %642 = vmatpush.msra.mxu0 %v641
      %v643 = vand.u32 %v225, 4294901760
      %644 = vmatpush.msra.mxu0 %v643
      %v645 = vand.u32 %v224, 4294901760
      %646 = vmatpush.msra.mxu0 %v645
      %v647 = vand.u32 %v223, 4294901760
      %648 = vmatpush.msra.mxu0 %v647
      %v649 = vand.u32 %v222, 4294901760
      %650 = vmatpush.msra.mxu0 %v649
      %v651 = vand.u32 %v221, 4294901760
      %652 = vmatpush.msra.mxu0 %v651
      %v653 = vand.u32 %v220, 4294901760
      %654 = vmatpush.msra.mxu0 %v653
      %v655 = vand.u32 %v219, 4294901760
      %656 = vmatpush.msra.mxu0 %v655
      %v657 = vand.u32 %v218, 4294901760
      %658 = vmatpush.msra.mxu0 %v657
      %v659 = vand.u32 %v217, 4294901760
      %660 = vmatpush.msra.mxu0 %v659
      %v661 = vand.u32 %v208, 4294901760
      %662 = vmatmul.f32.gmra.mxu0 %v661
      %v663 = vpop.f32.mrf.mxu0
      %v664 = vadd.f32 %v619, %v663
      %v665 = vand.u32 %v211, 4294901760
      %666 = vmatmul.f32.gmra.mxu0 %v665
      %v667 = vpop.f32.mrf.mxu0
      %v668 = vadd.f32 %v623, %v667
      %v669 = vand.u32 %v214, 4294901760
      %670 = vmatmul.f32.gmra.mxu0 %v669
      %v671 = vpop.f32.mrf.mxu0
      %v672 = vadd.f32 %v627, %v671
      %673 = vdwg.mxu0
      %v674 = vand.u32 %v248, 4294901760
      %675 = vmatpush.msra.mxu0 %v674
      %v676 = vand.u32 %v247, 4294901760
      %677 = vmatpush.msra.mxu0 %v676
      %v678 = vand.u32 %v246, 4294901760
      %679 = vmatpush.msra.mxu0 %v678
      %v680 = vand.u32 %v245, 4294901760
      %681 = vmatpush.msra.mxu0 %v680
      %v682 = vand.u32 %v244, 4294901760
      %683 = vmatpush.msra.mxu0 %v682
      %v684 = vand.u32 %v243, 4294901760
      %685 = vmatpush.msra.mxu0 %v684
      %v686 = vand.u32 %v242, 4294901760
      %687 = vmatpush.msra.mxu0 %v686
      %v688 = vand.u32 %v241, 4294901760
      %689 = vmatpush.msra.mxu0 %v688
      %v690 = vand.u32 %v240, 4294901760
      %691 = vmatpush.msra.mxu0 %v690
      %v692 = vand.u32 %v239, 4294901760
      %693 = vmatpush.msra.mxu0 %v692
      %v694 = vand.u32 %v238, 4294901760
      %695 = vmatpush.msra.mxu0 %v694
      %v696 = vand.u32 %v237, 4294901760
      %697 = vmatpush.msra.mxu0 %v696
      %v698 = vand.u32 %v236, 4294901760
      %699 = vmatpush.msra.mxu0 %v698
      %v700 = vand.u32 %v235, 4294901760
      %701 = vmatpush.msra.mxu0 %v700
      %v702 = vand.u32 %v234, 4294901760
      %703 = vmatpush.msra.mxu0 %v702
      %v704 = vand.u32 %v233, 4294901760
      %705 = vmatpush.msra.mxu0 %v704
      %v706 = vand.u32 %v209, 4294901760
      %v707 = vsub.f32 %v209, %v706
      %v708 = vand.u32 %v707, 4294901760
      %v709 = vsub.f32 %v707, %v708
      %v710 = vand.u32 %v709, 4294901760
      %711 = vmatmul.f32.gmra.mxu0 %v710
      %v712 = vpop.f32.mrf.mxu0
      %v713 = vadd.f32 %v664, %v712
      %v714 = vand.u32 %v212, 4294901760
      %v715 = vsub.f32 %v212, %v714
      %v716 = vand.u32 %v715, 4294901760
      %v717 = vsub.f32 %v715, %v716
      %v718 = vand.u32 %v717, 4294901760
      %719 = vmatmul.f32.gmra.mxu0 %v718
      %v720 = vpop.f32.mrf.mxu0
      %v721 = vadd.f32 %v668, %v720
      %v722 = vand.u32 %v215, 4294901760
      %v723 = vsub.f32 %v215, %v722
      %v724 = vand.u32 %v723, 4294901760
      %v725 = vsub.f32 %v723, %v724
      %v726 = vand.u32 %v725, 4294901760
      %727 = vmatmul.f32.gmra.mxu0 %v726
      %v728 = vpop.f32.mrf.mxu0
      %v729 = vadd.f32 %v672, %v728
      %730 = vdwg.mxu0
      %v731 = vand.u32 %v248, 4294901760
      %v732 = vsub.f32 %v248, %v731
      %v733 = vand.u32 %v732, 4294901760
      %v734 = vsub.f32 %v732, %v733
      %v735 = vand.u32 %v734, 4294901760
      %736 = vmatpush.msra.mxu0 %v735
      %v737 = vand.u32 %v247, 4294901760
      %v738 = vsub.f32 %v247, %v737
      %v739 = vand.u32 %v738, 4294901760
      %v740 = vsub.f32 %v738, %v739
      %v741 = vand.u32 %v740, 4294901760
      %742 = vmatpush.msra.mxu0 %v741
      %v743 = vand.u32 %v246, 4294901760
      %v744 = vsub.f32 %v246, %v743
      %v745 = vand.u32 %v744, 4294901760
      %v746 = vsub.f32 %v744, %v745
      %v747 = vand.u32 %v746, 4294901760
      %748 = vmatpush.msra.mxu0 %v747
      %v749 = vand.u32 %v245, 4294901760
      %v750 = vsub.f32 %v245, %v749
      %v751 = vand.u32 %v750, 4294901760
      %v752 = vsub.f32 %v750, %v751
      %v753 = vand.u32 %v752, 4294901760
      %754 = vmatpush.msra.mxu0 %v753
      %v755 = vand.u32 %v244, 4294901760
      %v756 = vsub.f32 %v244, %v755
      %v757 = vand.u32 %v756, 4294901760
      %v758 = vsub.f32 %v756, %v757
      %v759 = vand.u32 %v758, 4294901760
      %760 = vmatpush.msra.mxu0 %v759
      %v761 = vand.u32 %v243, 4294901760
      %v762 = vsub.f32 %v243, %v761
      %v763 = vand.u32 %v762, 4294901760
      %v764 = vsub.f32 %v762, %v763
      %v765 = vand.u32 %v764, 4294901760
      %766 = vmatpush.msra.mxu0 %v765
      %v767 = vand.u32 %v242, 4294901760
      %v768 = vsub.f32 %v242, %v767
      %v769 = vand.u32 %v768, 4294901760
      %v770 = vsub.f32 %v768, %v769
      %v771 = vand.u32 %v770, 4294901760
      %772 = vmatpush.msra.mxu0 %v771
      %v773 = vand.u32 %v241, 4294901760
      %v774 = vsub.f32 %v241, %v773
      %v775 = vand.u32 %v774, 4294901760
      %v776 = vsub.f32 %v774, %v775
      %v777 = vand.u32 %v776, 4294901760
      %778 = vmatpush.msra.mxu0 %v777
      %v779 = vand.u32 %v240, 4294901760
      %v780 = vsub.f32 %v240, %v779
      %v781 = vand.u32 %v780, 4294901760
      %v782 = vsub.f32 %v780, %v781
      %v783 = vand.u32 %v782, 4294901760
      %784 = vmatpush.msra.mxu0 %v783
      %v785 = vand.u32 %v239, 4294901760
      %v786 = vsub.f32 %v239, %v785
      %v787 = vand.u32 %v786, 4294901760
      %v788 = vsub.f32 %v786, %v787
      %v789 = vand.u32 %v788, 4294901760
      %790 = vmatpush.msra.mxu0 %v789
      %v791 = vand.u32 %v238, 4294901760
      %v792 = vsub.f32 %v238, %v791
      %v793 = vand.u32 %v792, 4294901760
      %v794 = vsub.f32 %v792, %v793
      %v795 = vand.u32 %v794, 4294901760
      %796 = vmatpush.msra.mxu0 %v795
      %v797 = vand.u32 %v237, 4294901760
      %v798 = vsub.f32 %v237, %v797
      %v799 = vand.u32 %v798, 4294901760
      %v800 = vsub.f32 %v798, %v799
      %v801 = vand.u32 %v800, 4294901760
      %802 = vmatpush.msra.mxu0 %v801
      %v803 = vand.u32 %v236, 4294901760
      %v804 = vsub.f32 %v236, %v803
      %v805 = vand.u32 %v804, 4294901760
      %v806 = vsub.f32 %v804, %v805
      %v807 = vand.u32 %v806, 4294901760
      %808 = vmatpush.msra.mxu0 %v807
      %v809 = vand.u32 %v235, 4294901760
      %v810 = vsub.f32 %v235, %v809
      %v811 = vand.u32 %v810, 4294901760
      %v812 = vsub.f32 %v810, %v811
      %v813 = vand.u32 %v812, 4294901760
      %814 = vmatpush.msra.mxu0 %v813
      %v815 = vand.u32 %v234, 4294901760
      %v816 = vsub.f32 %v234, %v815
      %v817 = vand.u32 %v816, 4294901760
      %v818 = vsub.f32 %v816, %v817
      %v819 = vand.u32 %v818, 4294901760
      %820 = vmatpush.msra.mxu0 %v819
      %v821 = vand.u32 %v233, 4294901760
      %v822 = vsub.f32 %v233, %v821
      %v823 = vand.u32 %v822, 4294901760
      %v824 = vsub.f32 %v822, %v823
      %v825 = vand.u32 %v824, 4294901760
      %826 = vmatpush.msra.mxu0 %v825
      %v827 = vand.u32 %v209, 4294901760
      %828 = vmatmul.f32.gmra.mxu0 %v827
      %v829 = vpop.f32.mrf.mxu0
      %v830 = vadd.f32 %v713, %v829
      %v831 = vand.u32 %v212, 4294901760
      %832 = vmatmul.f32.gmra.mxu0 %v831
      %v833 = vpop.f32.mrf.mxu0
      %v834 = vadd.f32 %v721, %v833
      %v835 = vand.u32 %v215, 4294901760
      %836 = vmatmul.f32.gmra.mxu0 %v835
      %v837 = vpop.f32.mrf.mxu0
      %v838 = vadd.f32 %v729, %v837
      %839 = vdwg.mxu0
      %v840 = vand.u32 %v248, 4294901760
      %v841 = vsub.f32 %v248, %v840
      %842 = vmatpush.msra.mxu0 %v841
      %v843 = vand.u32 %v247, 4294901760
      %v844 = vsub.f32 %v247, %v843
      %845 = vmatpush.msra.mxu0 %v844
      %v846 = vand.u32 %v246, 4294901760
      %v847 = vsub.f32 %v246, %v846
      %848 = vmatpush.msra.mxu0 %v847
      %v849 = vand.u32 %v245, 4294901760
      %v850 = vsub.f32 %v245, %v849
      %851 = vmatpush.msra.mxu0 %v850
      %v852 = vand.u32 %v244, 4294901760
      %v853 = vsub.f32 %v244, %v852
      %854 = vmatpush.msra.mxu0 %v853
      %v855 = vand.u32 %v243, 4294901760
      %v856 = vsub.f32 %v243, %v855
      %857 = vmatpush.msra.mxu0 %v856
      %v858 = vand.u32 %v242, 4294901760
      %v859 = vsub.f32 %v242, %v858
      %860 = vmatpush.msra.mxu0 %v859
      %v861 = vand.u32 %v241, 4294901760
      %v862 = vsub.f32 %v241, %v861
      %863 = vmatpush.msra.mxu0 %v862
      %v864 = vand.u32 %v240, 4294901760
      %v865 = vsub.f32 %v240, %v864
      %866 = vmatpush.msra.mxu0 %v865
      %v867 = vand.u32 %v239, 4294901760
      %v868 = vsub.f32 %v239, %v867
      %869 = vmatpush.msra.mxu0 %v868
      %v870 = vand.u32 %v238, 4294901760
      %v871 = vsub.f32 %v238, %v870
      %872 = vmatpush.msra.mxu0 %v871
      %v873 = vand.u32 %v237, 4294901760
      %v874 = vsub.f32 %v237, %v873
      %875 = vmatpush.msra.mxu0 %v874
      %v876 = vand.u32 %v236, 4294901760
      %v877 = vsub.f32 %v236, %v876
      %878 = vmatpush.msra.mxu0 %v877
      %v879 = vand.u32 %v235, 4294901760
      %v880 = vsub.f32 %v235, %v879
      %881 = vmatpush.msra.mxu0 %v880
      %v882 = vand.u32 %v234, 4294901760
      %v883 = vsub.f32 %v234, %v882
      %884 = vmatpush.msra.mxu0 %v883
      %v885 = vand.u32 %v233, 4294901760
      %v886 = vsub.f32 %v233, %v885
      %887 = vmatpush.msra.mxu0 %v886
      %v888 = vand.u32 %v209, 4294901760
      %v889 = vsub.f32 %v209, %v888
      %890 = vmatmul.f32.gmra.mxu0 %v889
      %v891 = vpop.f32.mrf.mxu0
      %v892 = vadd.f32 %v830, %v891
      %v893 = vand.u32 %v212, 4294901760
      %v894 = vsub.f32 %v212, %v893
      %895 = vmatmul.f32.gmra.mxu0 %v894
      %v896 = vpop.f32.mrf.mxu0
      %v897 = vadd.f32 %v834, %v896
      %v898 = vand.u32 %v215, 4294901760
      %v899 = vsub.f32 %v215, %v898
      %900 = vmatmul.f32.gmra.mxu0 %v899
      %v901 = vpop.f32.mrf.mxu0
      %v902 = vadd.f32 %v838, %v901
      %903 = vdwg.mxu0
      %v904 = vand.u32 %v248, 4294901760
      %905 = vmatpush.msra.mxu0 %v904
      %v906 = vand.u32 %v247, 4294901760
      %907 = vmatpush.msra.mxu0 %v906
      %v908 = vand.u32 %v246, 4294901760
      %909 = vmatpush.msra.mxu0 %v908
      %v910 = vand.u32 %v245, 4294901760
      %911 = vmatpush.msra.mxu0 %v910
      %v912 = vand.u32 %v244, 4294901760
      %913 = vmatpush.msra.mxu0 %v912
      %v914 = vand.u32 %v243, 4294901760
      %915 = vmatpush.msra.mxu0 %v914
      %v916 = vand.u32 %v242, 4294901760
      %917 = vmatpush.msra.mxu0 %v916
      %v918 = vand.u32 %v241, 4294901760
      %919 = vmatpush.msra.mxu0 %v918
      %v920 = vand.u32 %v240, 4294901760
      %921 = vmatpush.msra.mxu0 %v920
      %v922 = vand.u32 %v239, 4294901760
      %923 = vmatpush.msra.mxu0 %v922
      %v924 = vand.u32 %v238, 4294901760
      %925 = vmatpush.msra.mxu0 %v924
      %v926 = vand.u32 %v237, 4294901760
      %927 = vmatpush.msra.mxu0 %v926
      %v928 = vand.u32 %v236, 4294901760
      %929 = vmatpush.msra.mxu0 %v928
      %v930 = vand.u32 %v235, 4294901760
      %931 = vmatpush.msra.mxu0 %v930
      %v932 = vand.u32 %v234, 4294901760
      %933 = vmatpush.msra.mxu0 %v932
      %v934 = vand.u32 %v233, 4294901760
      %935 = vmatpush.msra.mxu0 %v934
      %v936 = vand.u32 %v209, 4294901760
      %v937 = vsub.f32 %v209, %v936
      %v938 = vand.u32 %v937, 4294901760
      %939 = vmatmul.f32.gmra.mxu0 %v938
      %v940 = vpop.f32.mrf.mxu0
      %v941 = vadd.f32 %v892, %v940
      %v942 = vand.u32 %v212, 4294901760
      %v943 = vsub.f32 %v212, %v942
      %v944 = vand.u32 %v943, 4294901760
      %945 = vmatmul.f32.gmra.mxu0 %v944
      %v946 = vpop.f32.mrf.mxu0
      %v947 = vadd.f32 %v897, %v946
      %v948 = vand.u32 %v215, 4294901760
      %v949 = vsub.f32 %v215, %v948
      %v950 = vand.u32 %v949, 4294901760
      %951 = vmatmul.f32.gmra.mxu0 %v950
      %v952 = vpop.f32.mrf.mxu0
      %v953 = vadd.f32 %v902, %v952
      %954 = vdwg.mxu0
      %v955 = vand.u32 %v248, 4294901760
      %v956 = vsub.f32 %v248, %v955
      %v957 = vand.u32 %v956, 4294901760
      %958 = vmatpush.msra.mxu0 %v957
      %v959 = vand.u32 %v247, 4294901760
      %v960 = vsub.f32 %v247, %v959
      %v961 = vand.u32 %v960, 4294901760
      %962 = vmatpush.msra.mxu0 %v961
      %v963 = vand.u32 %v246, 4294901760
      %v964 = vsub.f32 %v246, %v963
      %v965 = vand.u32 %v964, 4294901760
      %966 = vmatpush.msra.mxu0 %v965
      %v967 = vand.u32 %v245, 4294901760
      %v968 = vsub.f32 %v245, %v967
      %v969 = vand.u32 %v968, 4294901760
      %970 = vmatpush.msra.mxu0 %v969
      %v971 = vand.u32 %v244, 4294901760
      %v972 = vsub.f32 %v244, %v971
      %v973 = vand.u32 %v972, 4294901760
      %974 = vmatpush.msra.mxu0 %v973
      %v975 = vand.u32 %v243, 4294901760
      %v976 = vsub.f32 %v243, %v975
      %v977 = vand.u32 %v976, 4294901760
      %978 = vmatpush.msra.mxu0 %v977
      %v979 = vand.u32 %v242, 4294901760
      %v980 = vsub.f32 %v242, %v979
      %v981 = vand.u32 %v980, 4294901760
      %982 = vmatpush.msra.mxu0 %v981
      %v983 = vand.u32 %v241, 4294901760
      %v984 = vsub.f32 %v241, %v983
      %v985 = vand.u32 %v984, 4294901760
      %986 = vmatpush.msra.mxu0 %v985
      %v987 = vand.u32 %v240, 4294901760
      %v988 = vsub.f32 %v240, %v987
      %v989 = vand.u32 %v988, 4294901760
      %990 = vmatpush.msra.mxu0 %v989
      %v991 = vand.u32 %v239, 4294901760
      %v992 = vsub.f32 %v239, %v991
      %v993 = vand.u32 %v992, 4294901760
      %994 = vmatpush.msra.mxu0 %v993
      %v995 = vand.u32 %v238, 4294901760
      %v996 = vsub.f32 %v238, %v995
      %v997 = vand.u32 %v996, 4294901760
      %998 = vmatpush.msra.mxu0 %v997
      %v999 = vand.u32 %v237, 4294901760
      %v1000 = vsub.f32 %v237, %v999
      %v1001 = vand.u32 %v1000, 4294901760
      %1002 = vmatpush.msra.mxu0 %v1001
      %v1003 = vand.u32 %v236, 4294901760
      %v1004 = vsub.f32 %v236, %v1003
      %v1005 = vand.u32 %v1004, 4294901760
      %1006 = vmatpush.msra.mxu0 %v1005
      %v1007 = vand.u32 %v235, 4294901760
      %v1008 = vsub.f32 %v235, %v1007
      %v1009 = vand.u32 %v1008, 4294901760
      %1010 = vmatpush.msra.mxu0 %v1009
      %v1011 = vand.u32 %v234, 4294901760
      %v1012 = vsub.f32 %v234, %v1011
      %v1013 = vand.u32 %v1012, 4294901760
      %1014 = vmatpush.msra.mxu0 %v1013
      %v1015 = vand.u32 %v233, 4294901760
      %v1016 = vsub.f32 %v233, %v1015
      %v1017 = vand.u32 %v1016, 4294901760
      %1018 = vmatpush.msra.mxu0 %v1017
      %v1019 = vand.u32 %v209, 4294901760
      %1020 = vmatmul.f32.gmra.mxu0 %v1019
      %v1021 = vpop.f32.mrf.mxu0
      %v1022 = vadd.f32 %v941, %v1021
      %v1023 = vand.u32 %v212, 4294901760
      %1024 = vmatmul.f32.gmra.mxu0 %v1023
      %v1025 = vpop.f32.mrf.mxu0
      %v1026 = vadd.f32 %v947, %v1025
      %v1027 = vand.u32 %v215, 4294901760
      %1028 = vmatmul.f32.gmra.mxu0 %v1027
      %v1029 = vpop.f32.mrf.mxu0
      %v1030 = vadd.f32 %v953, %v1029
      %1031 = vdwg.mxu0
      %v1032 = vand.u32 %v248, 4294901760
      %1033 = vmatpush.msra.mxu0 %v1032
      %v1034 = vand.u32 %v247, 4294901760
      %1035 = vmatpush.msra.mxu0 %v1034
      %v1036 = vand.u32 %v246, 4294901760
      %1037 = vmatpush.msra.mxu0 %v1036
      %v1038 = vand.u32 %v245, 4294901760
      %1039 = vmatpush.msra.mxu0 %v1038
      %v1040 = vand.u32 %v244, 4294901760
      %1041 = vmatpush.msra.mxu0 %v1040
      %v1042 = vand.u32 %v243, 4294901760
      %1043 = vmatpush.msra.mxu0 %v1042
      %v1044 = vand.u32 %v242, 4294901760
      %1045 = vmatpush.msra.mxu0 %v1044
      %v1046 = vand.u32 %v241, 4294901760
      %1047 = vmatpush.msra.mxu0 %v1046
      %v1048 = vand.u32 %v240, 4294901760
      %1049 = vmatpush.msra.mxu0 %v1048
      %v1050 = vand.u32 %v239, 4294901760
      %1051 = vmatpush.msra.mxu0 %v1050
      %v1052 = vand.u32 %v238, 4294901760
      %1053 = vmatpush.msra.mxu0 %v1052
      %v1054 = vand.u32 %v237, 4294901760
      %1055 = vmatpush.msra.mxu0 %v1054
      %v1056 = vand.u32 %v236, 4294901760
      %1057 = vmatpush.msra.mxu0 %v1056
      %v1058 = vand.u32 %v235, 4294901760
      %1059 = vmatpush.msra.mxu0 %v1058
      %v1060 = vand.u32 %v234, 4294901760
      %1061 = vmatpush.msra.mxu0 %v1060
      %v1062 = vand.u32 %v233, 4294901760
      %1063 = vmatpush.msra.mxu0 %v1062
      %v1064 = vand.u32 %v209, 4294901760
      %1065 = vmatmul.f32.gmra.mxu0 %v1064
      %v1066 = vpop.f32.mrf.mxu0
      %v1067 = vadd.f32 %v1022, %v1066
      %v1068 = vand.u32 %v212, 4294901760
      %1069 = vmatmul.f32.gmra.mxu0 %v1068
      %v1070 = vpop.f32.mrf.mxu0
      %v1071 = vadd.f32 %v1026, %v1070
      %v1072 = vand.u32 %v215, 4294901760
      %1073 = vmatmul.f32.gmra.mxu0 %v1072
      %v1074 = vpop.f32.mrf.mxu0
      %v1075 = vadd.f32 %v1030, %v1074
      %1076 = vdwg.mxu0
      %1077 = vmatpush.msra.mxu0 0.0
      %1078 = vmatpush.msra.mxu0 0.0
      %1079 = vmatpush.msra.mxu0 0.0
      %1080 = vmatpush.msra.mxu0 0.0
      %1081 = vmatpush.msra.mxu0 0.0
      %1082 = vmatpush.msra.mxu0 0.0
      %1083 = vmatpush.msra.mxu0 0.0
      %1084 = vmatpush.msra.mxu0 0.0
      %v1085 = vand.u32 %v256, 4294901760
      %1086 = vmatpush.msra.mxu0 %v1085
      %v1087 = vand.u32 %v255, 4294901760
      %1088 = vmatpush.msra.mxu0 %v1087
      %v1089 = vand.u32 %v254, 4294901760
      %1090 = vmatpush.msra.mxu0 %v1089
      %v1091 = vand.u32 %v253, 4294901760
      %1092 = vmatpush.msra.mxu0 %v1091
      %v1093 = vand.u32 %v252, 4294901760
      %1094 = vmatpush.msra.mxu0 %v1093
      %v1095 = vand.u32 %v251, 4294901760
      %1096 = vmatpush.msra.mxu0 %v1095
      %v1097 = vand.u32 %v250, 4294901760
      %1098 = vmatpush.msra.mxu0 %v1097
      %v1099 = vand.u32 %v249, 4294901760
      %1100 = vmatpush.msra.mxu0 %v1099
      %v1101 = vand.u32 %v263, 4294901760
      %v1102 = vsub.f32 %v263, %v1101
      %v1103 = vand.u32 %v1102, 4294901760
      %v1104 = vsub.f32 %v1102, %v1103
      %v1105 = vand.u32 %v1104, 4294901760
      %1106 = vmatmul.f32.gmra.mxu0 %v1105
      %v1107 = vpop.f32.mrf.mxu0
      %v1108 = vadd.f32 %v1067, %v1107
      %v1109 = vand.u32 %v266, 4294901760
      %v1110 = vsub.f32 %v266, %v1109
      %v1111 = vand.u32 %v1110, 4294901760
      %v1112 = vsub.f32 %v1110, %v1111
      %v1113 = vand.u32 %v1112, 4294901760
      %1114 = vmatmul.f32.gmra.mxu0 %v1113
      %v1115 = vpop.f32.mrf.mxu0
      %v1116 = vadd.f32 %v1071, %v1115
      %v1117 = vand.u32 %v269, 4294901760
      %v1118 = vsub.f32 %v269, %v1117
      %v1119 = vand.u32 %v1118, 4294901760
      %v1120 = vsub.f32 %v1118, %v1119
      %v1121 = vand.u32 %v1120, 4294901760
      %1122 = vmatmul.f32.gmra.mxu0 %v1121
      %v1123 = vpop.f32.mrf.mxu0
      %v1124 = vadd.f32 %v1075, %v1123
      %1125 = vdwg.mxu0
      %1126 = vmatpush.msra.mxu0 0.0
      %1127 = vmatpush.msra.mxu0 0.0
      %1128 = vmatpush.msra.mxu0 0.0
      %1129 = vmatpush.msra.mxu0 0.0
      %1130 = vmatpush.msra.mxu0 0.0
      %1131 = vmatpush.msra.mxu0 0.0
      %1132 = vmatpush.msra.mxu0 0.0
      %1133 = vmatpush.msra.mxu0 0.0
      %v1134 = vand.u32 %v256, 4294901760
      %v1135 = vsub.f32 %v256, %v1134
      %v1136 = vand.u32 %v1135, 4294901760
      %v1137 = vsub.f32 %v1135, %v1136
      %v1138 = vand.u32 %v1137, 4294901760
      %1139 = vmatpush.msra.mxu0 %v1138
      %v1140 = vand.u32 %v255, 4294901760
      %v1141 = vsub.f32 %v255, %v1140
      %v1142 = vand.u32 %v1141, 4294901760
      %v1143 = vsub.f32 %v1141, %v1142
      %v1144 = vand.u32 %v1143, 4294901760
      %1145 = vmatpush.msra.mxu0 %v1144
      %v1146 = vand.u32 %v254, 4294901760
      %v1147 = vsub.f32 %v254, %v1146
      %v1148 = vand.u32 %v1147, 4294901760
      %v1149 = vsub.f32 %v1147, %v1148
      %v1150 = vand.u32 %v1149, 4294901760
      %1151 = vmatpush.msra.mxu0 %v1150
      %v1152 = vand.u32 %v253, 4294901760
      %v1153 = vsub.f32 %v253, %v1152
      %v1154 = vand.u32 %v1153, 4294901760
      %v1155 = vsub.f32 %v1153, %v1154
      %v1156 = vand.u32 %v1155, 4294901760
      %1157 = vmatpush.msra.mxu0 %v1156
      %v1158 = vand.u32 %v252, 4294901760
      %v1159 = vsub.f32 %v252, %v1158
      %v1160 = vand.u32 %v1159, 4294901760
      %v1161 = vsub.f32 %v1159, %v1160
      %v1162 = vand.u32 %v1161, 4294901760
      %1163 = vmatpush.msra.mxu0 %v1162
      %v1164 = vand.u32 %v251, 4294901760
      %v1165 = vsub.f32 %v251, %v1164
      %v1166 = vand.u32 %v1165, 4294901760
      %v1167 = vsub.f32 %v1165, %v1166
      %v1168 = vand.u32 %v1167, 4294901760
      %1169 = vmatpush.msra.mxu0 %v1168
      %v1170 = vand.u32 %v250, 4294901760
      %v1171 = vsub.f32 %v250, %v1170
      %v1172 = vand.u32 %v1171, 4294901760
      %v1173 = vsub.f32 %v1171, %v1172
      %v1174 = vand.u32 %v1173, 4294901760
      %1175 = vmatpush.msra.mxu0 %v1174
      %v1176 = vand.u32 %v249, 4294901760
      %v1177 = vsub.f32 %v249, %v1176
      %v1178 = vand.u32 %v1177, 4294901760
      %v1179 = vsub.f32 %v1177, %v1178
      %v1180 = vand.u32 %v1179, 4294901760
      %1181 = vmatpush.msra.mxu0 %v1180
      %v1182 = vand.u32 %v263, 4294901760
      %1183 = vmatmul.f32.gmra.mxu0 %v1182
      %v1184 = vpop.f32.mrf.mxu0
      %v1185 = vadd.f32 %v1108, %v1184
      %v1186 = vand.u32 %v266, 4294901760
      %1187 = vmatmul.f32.gmra.mxu0 %v1186
      %v1188 = vpop.f32.mrf.mxu0
      %v1189 = vadd.f32 %v1116, %v1188
      %v1190 = vand.u32 %v269, 4294901760
      %1191 = vmatmul.f32.gmra.mxu0 %v1190
      %v1192 = vpop.f32.mrf.mxu0
      %v1193 = vadd.f32 %v1124, %v1192
      %1194 = vdwg.mxu0
      %1195 = vmatpush.msra.mxu0 0.0
      %1196 = vmatpush.msra.mxu0 0.0
      %1197 = vmatpush.msra.mxu0 0.0
      %1198 = vmatpush.msra.mxu0 0.0
      %1199 = vmatpush.msra.mxu0 0.0
      %1200 = vmatpush.msra.mxu0 0.0
      %1201 = vmatpush.msra.mxu0 0.0
      %1202 = vmatpush.msra.mxu0 0.0
      %v1203 = vand.u32 %v256, 4294901760
      %v1204 = vsub.f32 %v256, %v1203
      %1205 = vmatpush.msra.mxu0 %v1204
      %v1206 = vand.u32 %v255, 4294901760
      %v1207 = vsub.f32 %v255, %v1206
      %1208 = vmatpush.msra.mxu0 %v1207
      %v1209 = vand.u32 %v254, 4294901760
      %v1210 = vsub.f32 %v254, %v1209
      %1211 = vmatpush.msra.mxu0 %v1210
      %v1212 = vand.u32 %v253, 4294901760
      %v1213 = vsub.f32 %v253, %v1212
      %1214 = vmatpush.msra.mxu0 %v1213
      %v1215 = vand.u32 %v252, 4294901760
      %v1216 = vsub.f32 %v252, %v1215
      %1217 = vmatpush.msra.mxu0 %v1216
      %v1218 = vand.u32 %v251, 4294901760
      %v1219 = vsub.f32 %v251, %v1218
      %1220 = vmatpush.msra.mxu0 %v1219
      %v1221 = vand.u32 %v250, 4294901760
      %v1222 = vsub.f32 %v250, %v1221
      %1223 = vmatpush.msra.mxu0 %v1222
      %v1224 = vand.u32 %v249, 4294901760
      %v1225 = vsub.f32 %v249, %v1224
      %1226 = vmatpush.msra.mxu0 %v1225
      %v1227 = vand.u32 %v263, 4294901760
      %v1228 = vsub.f32 %v263, %v1227
      %1229 = vmatmul.f32.gmra.mxu0 %v1228
      %v1230 = vpop.f32.mrf.mxu0
      %v1231 = vadd.f32 %v1185, %v1230
      %v1232 = vand.u32 %v266, 4294901760
      %v1233 = vsub.f32 %v266, %v1232
      %1234 = vmatmul.f32.gmra.mxu0 %v1233
      %v1235 = vpop.f32.mrf.mxu0
      %v1236 = vadd.f32 %v1189, %v1235
      %v1237 = vand.u32 %v269, 4294901760
      %v1238 = vsub.f32 %v269, %v1237
      %1239 = vmatmul.f32.gmra.mxu0 %v1238
      %v1240 = vpop.f32.mrf.mxu0
      %v1241 = vadd.f32 %v1193, %v1240
      %1242 = vdwg.mxu0
      %1243 = vmatpush.msra.mxu0 0.0
      %1244 = vmatpush.msra.mxu0 0.0
      %1245 = vmatpush.msra.mxu0 0.0
      %1246 = vmatpush.msra.mxu0 0.0
      %1247 = vmatpush.msra.mxu0 0.0
      %1248 = vmatpush.msra.mxu0 0.0
      %1249 = vmatpush.msra.mxu0 0.0
      %1250 = vmatpush.msra.mxu0 0.0
      %v1251 = vand.u32 %v256, 4294901760
      %1252 = vmatpush.msra.mxu0 %v1251
      %v1253 = vand.u32 %v255, 4294901760
      %1254 = vmatpush.msra.mxu0 %v1253
      %v1255 = vand.u32 %v254, 4294901760
      %1256 = vmatpush.msra.mxu0 %v1255
      %v1257 = vand.u32 %v253, 4294901760
      %1258 = vmatpush.msra.mxu0 %v1257
      %v1259 = vand.u32 %v252, 4294901760
      %1260 = vmatpush.msra.mxu0 %v1259
      %v1261 = vand.u32 %v251, 4294901760
      %1262 = vmatpush.msra.mxu0 %v1261
      %v1263 = vand.u32 %v250, 4294901760
      %1264 = vmatpush.msra.mxu0 %v1263
      %v1265 = vand.u32 %v249, 4294901760
      %1266 = vmatpush.msra.mxu0 %v1265
      %v1267 = vand.u32 %v263, 4294901760
      %v1268 = vsub.f32 %v263, %v1267
      %v1269 = vand.u32 %v1268, 4294901760
      %1270 = vmatmul.f32.gmra.mxu0 %v1269
      %v1271 = vpop.f32.mrf.mxu0
      %v1272 = vadd.f32 %v1231, %v1271
      %v1273 = vand.u32 %v266, 4294901760
      %v1274 = vsub.f32 %v266, %v1273
      %v1275 = vand.u32 %v1274, 4294901760
      %1276 = vmatmul.f32.gmra.mxu0 %v1275
      %v1277 = vpop.f32.mrf.mxu0
      %v1278 = vadd.f32 %v1236, %v1277
      %v1279 = vand.u32 %v269, 4294901760
      %v1280 = vsub.f32 %v269, %v1279
      %v1281 = vand.u32 %v1280, 4294901760
      %1282 = vmatmul.f32.gmra.mxu0 %v1281
      %v1283 = vpop.f32.mrf.mxu0
      %v1284 = vadd.f32 %v1241, %v1283
      %1285 = vdwg.mxu0
      %1286 = vmatpush.msra.mxu0 0.0
      %1287 = vmatpush.msra.mxu0 0.0
      %1288 = vmatpush.msra.mxu0 0.0
      %1289 = vmatpush.msra.mxu0 0.0
      %1290 = vmatpush.msra.mxu0 0.0
      %1291 = vmatpush.msra.mxu0 0.0
      %1292 = vmatpush.msra.mxu0 0.0
      %1293 = vmatpush.msra.mxu0 0.0
      %v1294 = vand.u32 %v256, 4294901760
      %v1295 = vsub.f32 %v256, %v1294
      %v1296 = vand.u32 %v1295, 4294901760
      %1297 = vmatpush.msra.mxu0 %v1296
      %v1298 = vand.u32 %v255, 4294901760
      %v1299 = vsub.f32 %v255, %v1298
      %v1300 = vand.u32 %v1299, 4294901760
      %1301 = vmatpush.msra.mxu0 %v1300
      %v1302 = vand.u32 %v254, 4294901760
      %v1303 = vsub.f32 %v254, %v1302
      %v1304 = vand.u32 %v1303, 4294901760
      %1305 = vmatpush.msra.mxu0 %v1304
      %v1306 = vand.u32 %v253, 4294901760
      %v1307 = vsub.f32 %v253, %v1306
      %v1308 = vand.u32 %v1307, 4294901760
      %1309 = vmatpush.msra.mxu0 %v1308
      %v1310 = vand.u32 %v252, 4294901760
      %v1311 = vsub.f32 %v252, %v1310
      %v1312 = vand.u32 %v1311, 4294901760
      %1313 = vmatpush.msra.mxu0 %v1312
      %v1314 = vand.u32 %v251, 4294901760
      %v1315 = vsub.f32 %v251, %v1314
      %v1316 = vand.u32 %v1315, 4294901760
      %1317 = vmatpush.msra.mxu0 %v1316
      %v1318 = vand.u32 %v250, 4294901760
      %v1319 = vsub.f32 %v250, %v1318
      %v1320 = vand.u32 %v1319, 4294901760
      %1321 = vmatpush.msra.mxu0 %v1320
      %v1322 = vand.u32 %v249, 4294901760
      %v1323 = vsub.f32 %v249, %v1322
      %v1324 = vand.u32 %v1323, 4294901760
      %1325 = vmatpush.msra.mxu0 %v1324
      %v1326 = vand.u32 %v263, 4294901760
      %1327 = vmatmul.f32.gmra.mxu0 %v1326
      %v1328 = vpop.f32.mrf.mxu0
      %v1329 = vadd.f32 %v1272, %v1328
      %v1330 = vand.u32 %v266, 4294901760
      %1331 = vmatmul.f32.gmra.mxu0 %v1330
      %v1332 = vpop.f32.mrf.mxu0
      %v1333 = vadd.f32 %v1278, %v1332
      %v1334 = vand.u32 %v269, 4294901760
      %1335 = vmatmul.f32.gmra.mxu0 %v1334
      %v1336 = vpop.f32.mrf.mxu0
      %v1337 = vadd.f32 %v1284, %v1336
      %1338 = vdwg.mxu0
      %1339 = vmatpush.msra.mxu0 0.0
      %1340 = vmatpush.msra.mxu0 0.0
      %1341 = vmatpush.msra.mxu0 0.0
      %1342 = vmatpush.msra.mxu0 0.0
      %1343 = vmatpush.msra.mxu0 0.0
      %1344 = vmatpush.msra.mxu0 0.0
      %1345 = vmatpush.msra.mxu0 0.0
      %1346 = vmatpush.msra.mxu0 0.0
      %v1347 = vand.u32 %v256, 4294901760
      %1348 = vmatpush.msra.mxu0 %v1347
      %v1349 = vand.u32 %v255, 4294901760
      %1350 = vmatpush.msra.mxu0 %v1349
      %v1351 = vand.u32 %v254, 4294901760
      %1352 = vmatpush.msra.mxu0 %v1351
      %v1353 = vand.u32 %v253, 4294901760
      %1354 = vmatpush.msra.mxu0 %v1353
      %v1355 = vand.u32 %v252, 4294901760
      %1356 = vmatpush.msra.mxu0 %v1355
      %v1357 = vand.u32 %v251, 4294901760
      %1358 = vmatpush.msra.mxu0 %v1357
      %v1359 = vand.u32 %v250, 4294901760
      %1360 = vmatpush.msra.mxu0 %v1359
      %v1361 = vand.u32 %v249, 4294901760
      %1362 = vmatpush.msra.mxu0 %v1361
      %v1363 = vand.u32 %v263, 4294901760
      %1364 = vmatmul.f32.gmra.mxu0 %v1363
      %v1365 = vpop.f32.mrf.mxu0
      %v1366 = vadd.f32 %v1329, %v1365
      %v1367 = vand.u32 %v266, 4294901760
      %1368 = vmatmul.f32.gmra.mxu0 %v1367
      %v1369 = vpop.f32.mrf.mxu0
      %v1370 = vadd.f32 %v1333, %v1369
      %v1371 = vand.u32 %v269, 4294901760
      %1372 = vmatmul.f32.gmra.mxu0 %v1371
      %v1373 = vpop.f32.mrf.mxu0
      %v1374 = vadd.f32 %v1337, %v1373
      %1375 = vdwg.mxu0
      %vm1376 = vcmask 162816
      %1377 = vst.msk [vmem:[%s200] sm:$0xff] %vm1376, %v1366
      %1378 = vst.msk [vmem:[%s200 + $0x8] sm:$0xff] %vm1376, %v1370
      %1379 = vst.msk [vmem:[%s200 + $0x10] sm:$0xff] %vm1376, %v1374
      %s1380 = smul.u32 %s16, 24
      %v1381 = vlaneseq
      %v1382 = vshrl.u32 %v1381, 7
      %v1383 = vadd.s32 %v1382, 8
      %v1384 = vadd.s32 %v1382, 16
      %v1385 = vstv %s1380
      %v1386 = vadd.s32 %v1385, %v1382
      %v1387 = vadd.s32 %v1385, %v1383
      %v1388 = vadd.s32 %v1385, %v1384
      %vm1389 = vcmp.lt.s32.totalorder %v1386, 32
      %vm1390 = vcmp.lt.s32.totalorder %v1387, 32
      %vm1391 = vcmp.lt.s32.totalorder %v1388, 32
      %v1392 = vsel %vm1389, 1, 0
      %v1393 = vsel %vm1390, 1, 0
      %v1394 = vsel %vm1391, 1, 0
      %v1395 = vcvt.s32.f32 %v1392
      %v1396 = vcvt.s32.f32 %v1393
      %v1397 = vcvt.s32.f32 %v1394
      %v1398 = vmul.f32 %v1366, %v1395
      %v1399 = vmul.f32 %v1370, %v1396
      %v1400 = vmul.f32 %v1374, %v1397
      %v1401 = vld [vmem:[%s4] sm:$0x1]
      %v1402 = vsel %vm1376, %v1398, 0.0
      %v1403 = vsel %vm1376, %v1399, 0.0
      %v1404 = vadd.f32 %v1402, %v1403
      %v1405 = vsel %vm1376, %v1400, 0.0
      %v1406 = vadd.f32 %v1404, %v1405
      %v1407 = vrot.slane %v1406, 4
      %v1408 = vadd.f32 %v1406, %v1407
      %v1409 = vrot.slane %v1408, 2
      %v1410 = vadd.f32 %v1408, %v1409
      %v1411 = vrot.slane %v1410, 1
      %v1412 = vadd.f32 %v1410, %v1411
      %v1413 = vadd.f32 %v1401, %v1412
      %vm1414 = vcmask 155648
      %1415 = vst.msk [vmem:[%s4] sm:$0x1] %vm1414, %v1413
      %v1416 = vld [vmem:[%s4 + $0x1] sm:$0x1]
      %v1417 = vmul.f32 %v1398, %v1366
      %v1418 = vmul.f32 %v1399, %v1370
      %v1419 = vmul.f32 %v1400, %v1374
      %v1420 = vsel %vm1376, %v1417, 0.0
      %v1421 = vsel %vm1376, %v1418, 0.0
      %v1422 = vadd.f32 %v1420, %v1421
      %v1423 = vsel %vm1376, %v1419, 0.0
      %v1424 = vadd.f32 %v1422, %v1423
      %v1425 = vrot.slane %v1424, 4
      %v1426 = vadd.f32 %v1424, %v1425
      %v1427 = vrot.slane %v1426, 2
      %v1428 = vadd.f32 %v1426, %v1427
      %v1429 = vrot.slane %v1428, 1
      %v1430 = vadd.f32 %v1428, %v1429
      %v1431 = vadd.f32 %v1416, %v1430
      %1432 = vst.msk [vmem:[%s4 + $0x1] sm:$0x1] %vm1414, %v1431
      %s1433 = smul.u32 3, %s16
      %p1434 = scmp.lt.s32.totalorder %s1433, 5
      %s1435 = scalar_select %p1434, %s1433, 5
      %s1436 = smul.addr %s1435, 8
      %s1437 = scalar_lea.vmem %s3, %s1436
      // Predicated region
      $region37: #{_lambda_.29} parent=31 // pred_check
        %p1438 = pneg %p102
      $region38: #{_lambda_.29} parent=31 // pred_check_branch
        %1440 = sbr.rel (%p1438) target = $region40
      $region39: #{_lambda_.29} parent=31 // pred_region
        %s1441 = smul.u32 3, %s16
      $region40: #{_lambda_.29} parent=31 // pred_fallthru
        _
      // Predicated region
      $region41: #{_lambda_.29} parent=31 // pred_check
        %p1442 = pneg %p123
      $region42: #{_lambda_.29} parent=31 // pred_check_branch
        %1444 = sbr.rel (%p1442) target = $region44
      $region43: #{_lambda_.29} parent=31 // pred_region
        _
      $region44: #{_lambda_.29} parent=31 // pred_fallthru
        _
      // Predicated region
      $region45: #{_lambda_.29} parent=31 // pred_check
        %p1445 = pneg %p123
      $region46: #{_lambda_.29} parent=31 // pred_check_branch
        %1447 = sbr.rel (%p1445) target = $region48
      $region47: #{_lambda_.29} parent=31 // pred_region
        _
      $region48: #{_lambda_.29} parent=31 // pred_fallthru
        _
    $region32: #{_lambda_.29} parent=5 // pred_fallthru
      _
    %p1448 = scmp.le.s32.totalorder 2, %s11
    // Predicated region
    $region49: #{_lambda_.29} parent=5 // pred_check
      %p1449 = pneg %p1448
    $region50: #{_lambda_.29} parent=5 // pred_check_branch
      %1451 = sbr.rel (%p1449) target = $region52
    $region51: #{_lambda_.29} parent=5 // pred_region
      %s1452 = ssub.s32 %s11, 2
      // Predicated region
      $region53: #{_lambda_.29} parent=51 // pred_check
        %p1453 = pneg %p108
      $region54: #{_lambda_.29} parent=51 // pred_check_branch
        %1455 = sbr.rel (%p1453) target = $region56
      $region55: #{_lambda_.29} parent=51 // pred_region
        %s1456 = smul.u32 3, %s17
        %p1457 = scmp.lt.s32.totalorder %s1456, 5
        %s1458 = scalar_select %p1457, %s1456, 5
        %s1459 = smul.addr %s1458, 8
        %s1460 = scalar_lea.vmem %s3, %s1459
      $region56: #{_lambda_.29} parent=51 // pred_fallthru
        _
    $region52: #{_lambda_.29} parent=5 // pred_fallthru
      _
  $region6: #{_lambda_.29} parent=0 // loop_footer
    %s15 = sadd.s32 1, %s11
  $region7: #{_lambda_.29} parent=0 // loop_footer_branch
    %10 = sbr.rel target = $region3
  $region8: #{_lambda_.29} parent=0 // loop_exit
    _

// kernel: _lambda_.31
$region0: #{_lambda_.31}
  #allocation0 [shape = 'u32[]', space=smem, size = 0x4, offset = 0x4, fixed_abs, tag = 'smem constant byte address 0x4 - core index']
  #allocation1 [shape = 'u32[72,128]{1,0:T(1,128)}', space=vmem, size = 0x9000, scoped, tag = 'internal scratch']
  %s0 = inlined_call_operand.vmem [shape: f32[48,160], index: 0, kind: input, shape index: {}]
  %s1 = inlined_call_operand.vmem [shape: f32[160,20], index: 1, kind: input, shape index: {}]
  %s2 = inlined_call_operand.vmem [shape: f32[1,20], index: 2, kind: input, shape index: {}]
  %s3 = inlined_call_operand.vmem [shape: f32[48,20], index: 3, kind: output, shape index: {0}]
  %s4 = inlined_call_operand.vmem [shape: f32[2,20], index: 4, kind: output, shape index: {1}]
  %5 = xla_tuple %s3, %s4
  %s6 = sld [smem:[#allocation0]]
  $region57: #{_lambda_.31} parent=0
    _
  %s8 = ssub.s32 1, %s6
  %s9 = scalar_select 0, %s8, %s6
  loop: start=0, step=1, limit=4
  $region2: #{_lambda_.31} parent=0 // loop_pre_header
    _
  $region3: #{_lambda_.31} parent=0 // loop_header
    %s11 = sphi 0, %s15
    %p12 = scmp.ge.s32.totalorder %s11, 4
    %s21 = sphi 0, %s23
    %s24 = sphi 0, %s21
    %s25 = sphi 0, %s24
    %s41 = sphi 0, %s25
    %s45 = sphi 0, %s45
    %s47 = sphi 0, %s45
    %s48 = sphi 0, %s47
    %s62 = sphi 0, %s48
    %s66 = sphi 0, %s66
    %s68 = sphi 0, %s66
    %s69 = sphi 0, %s68
    %s83 = sphi 0, %s69
    %s89 = sphi 0, %s91
    %s92 = sphi 0, %s89
    %s93 = sphi 0, %s92
    %s109 = sphi 0, %s93
    %s113 = sphi 0, %s113
    %s115 = sphi 0, %s113
    %s116 = sphi 0, %s115
    %s130 = sphi 0, %s116
  $region4: #{_lambda_.31} parent=0 // loop_header_branch
    %14 = sbr.rel (%p12) target = $region8
  $region5: #{_lambda_.31} parent=0 // loop_body
    %s16 = ssub.s32 %s11, 1
    %s17 = ssub.s32 %s11, 2
    %s18 = sadd.s32 %s11, 1
    %s19 = ssub.s32 %s11, %s18
    %p20 = scmp.eq.s32.totalorder %s19, 0
    %s22 = sadd.s32 %s21, 1
    %s23 = scalar_select %p20, %s21, %s22
    %p26 = pneg %p20
    %p27 = scmp.eq.s32.totalorder %s11, 1
    %p28 = por %p26, %p27
    %p29 = scmp.ne.s32.totalorder %s21, %s24
    %p30 = scmp.eq.s32.totalorder %s11, 0
    %p31 = por %p29, %p30
    %p32 = scmp.ne.s32.totalorder %s21, %s24
    %p33 = scmp.eq.s32.totalorder %s16, 1
    %p34 = por %p32, %p33
    %p35 = scmp.ne.s32.totalorder %s24, %s25
    %p36 = scmp.eq.s32.totalorder %s16, 0
    %p37 = por %p35, %p36
    %p38 = scmp.ne.s32.totalorder %s24, %s25
    %p39 = scmp.eq.s32.totalorder %s17, 1
    %p40 = por %p38, %p39
    %p42 = scmp.ne.s32.totalorder %s25, %s41
    %p43 = scmp.eq.s32.totalorder %s17, 0
    %p44 = por %p42, %p43
    %s46 = sadd.s32 %s45, 1
    %p49 = scmp.eq.s32.totalorder %s11, 1
    %p50 = scmp.ne.s32.totalorder %s45, %s47
    %p51 = scmp.eq.s32.totalorder %s11, 0
    %p52 = por %p50, %p51
    %p53 = scmp.ne.s32.totalorder %s45, %s47
    %p54 = scmp.eq.s32.totalorder %s16, 1
    %p55 = por %p53, %p54
    %p56 = scmp.ne.s32.totalorder %s47, %s48
    %p57 = scmp.eq.s32.totalorder %s16, 0
    %p58 = por %p56, %p57
    %p59 = scmp.ne.s32.totalorder %s47, %s48
    %p60 = scmp.eq.s32.totalorder %s17, 1
    %p61 = por %p59, %p60
    %p63 = scmp.ne.s32.totalorder %s48, %s62
    %p64 = scmp.eq.s32.totalorder %s17, 0
    %p65 = por %p63, %p64
    %s67 = sadd.s32 %s66, 1
    %p70 = scmp.eq.s32.totalorder %s11, 1
    %p71 = scmp.ne.s32.totalorder %s66, %s68
    %p72 = scmp.eq.s32.totalorder %s11, 0
    %p73 = por %p71, %p72
    %p74 = scmp.ne.s32.totalorder %s66, %s68
    %p75 = scmp.eq.s32.totalorder %s16, 1
    %p76 = por %p74, %p75
    %p77 = scmp.ne.s32.totalorder %s68, %s69
    %p78 = scmp.eq.s32.totalorder %s16, 0
    %p79 = por %p77, %p78
    %p80 = scmp.ne.s32.totalorder %s68, %s69
    %p81 = scmp.eq.s32.totalorder %s17, 1
    %p82 = por %p80, %p81
    %p84 = scmp.ne.s32.totalorder %s69, %s83
    %p85 = scmp.eq.s32.totalorder %s17, 0
    %p86 = por %p84, %p85
    %s87 = ssub.s32 %s11, %s18
    %p88 = scmp.eq.s32.totalorder %s87, 0
    %s90 = sadd.s32 %s89, 1
    %s91 = scalar_select %p88, %s89, %s90
    %p94 = pneg %p88
    %p95 = scmp.eq.s32.totalorder %s11, 1
    %p96 = por %p94, %p95
    %p97 = scmp.ne.s32.totalorder %s89, %s92
    %p98 = scmp.eq.s32.totalorder %s11, 0
    %p99 = por %p97, %p98
    %p100 = scmp.ne.s32.totalorder %s89, %s92
    %p101 = scmp.eq.s32.totalorder %s16, 1
    %p102 = por %p100, %p101
    %p103 = scmp.ne.s32.totalorder %s92, %s93
    %p104 = scmp.eq.s32.totalorder %s16, 0
    %p105 = por %p103, %p104
    %p106 = scmp.ne.s32.totalorder %s92, %s93
    %p107 = scmp.eq.s32.totalorder %s17, 1
    %p108 = por %p106, %p107
    %p110 = scmp.ne.s32.totalorder %s93, %s109
    %p111 = scmp.eq.s32.totalorder %s17, 0
    %p112 = por %p110, %p111
    %s114 = sadd.s32 %s113, 1
    %p117 = scmp.eq.s32.totalorder %s11, 1
    %p118 = scmp.ne.s32.totalorder %s113, %s115
    %p119 = scmp.eq.s32.totalorder %s11, 0
    %p120 = por %p118, %p119
    %p121 = scmp.ne.s32.totalorder %s113, %s115
    %p122 = scmp.eq.s32.totalorder %s16, 1
    %p123 = por %p121, %p122
    %p124 = scmp.ne.s32.totalorder %s115, %s116
    %p125 = scmp.eq.s32.totalorder %s16, 0
    %p126 = por %p124, %p125
    %p127 = scmp.ne.s32.totalorder %s115, %s116
    %p128 = scmp.eq.s32.totalorder %s17, 1
    %p129 = por %p127, %p128
    %p131 = scmp.ne.s32.totalorder %s116, %s130
    %p132 = scmp.eq.s32.totalorder %s17, 0
    %p133 = por %p131, %p132
    %p134 = scmp.le.s32.totalorder 1, %s11
    %p135 = scmp.lt.s32.totalorder %s11, 3
    %p136 = pnand %p134, %p135
    %p137 = pneg %p136
    // Predicated region
    $region9: #{_lambda_.31} parent=5 // pred_check
      _
    $region10: #{_lambda_.31} parent=5 // pred_check_branch
      %139 = sbr.rel (%p136) target = $region12
    $region11: #{_lambda_.31} parent=5 // pred_region
      %s140 = ssub.s32 %s11, 1
      // Predicated region
      $region13: #{_lambda_.31} parent=11 // pred_check
        %p141 = pneg %p58
      $region14: #{_lambda_.31} parent=11 // pred_check_branch
        %143 = sbr.rel (%p141) target = $region16
      $region15: #{_lambda_.31} parent=11 // pred_region
        _
      $region16: #{_lambda_.31} parent=11 // pred_fallthru
        _
      // Predicated region
      $region17: #{_lambda_.31} parent=11 // pred_check
        %p144 = pneg %p79
      $region18: #{_lambda_.31} parent=11 // pred_check_branch
        %146 = sbr.rel (%p144) target = $region20
      $region19: #{_lambda_.31} parent=11 // pred_region
        _
      $region20: #{_lambda_.31} parent=11 // pred_fallthru
        _
    $region12: #{_lambda_.31} parent=5 // pred_fallthru
      _
    %p147 = scmp.lt.s32.totalorder %s11, 2
    // Predicated region
    $region21: #{_lambda_.31} parent=5 // pred_check
      %p148 = pneg %p147
    $region22: #{_lambda_.31} parent=5 // pred_check_branch
      %150 = sbr.rel (%p148) target = $region24
    $region23: #{_lambda_.31} parent=5 // pred_region
      // Predicated region
      $region25: #{_lambda_.31} parent=23 // pred_check
        %p151 = pneg %p31
      $region26: #{_lambda_.31} parent=23 // pred_check_branch
        %153 = sbr.rel (%p151) target = $region28
      $region27: #{_lambda_.31} parent=23 // pred_region
        %s154 = smul.u32 3, %s11
        %p155 = scmp.lt.s32.totalorder %s154, 5
        %s156 = scalar_select %p155, %s154, 5
        %s157 = smul.addr %s156, 2
        %s158 = smul.addr %s157, 8
        %s159 = scalar_lea.vmem %s0, %s158
        %s160 = smul.u32 3, %s11
      $region28: #{_lambda_.31} parent=23 // pred_fallthru
        _
    $region24: #{_lambda_.31} parent=5 // pred_fallthru
      _
    %p161 = scmp.le.s32.totalorder 1, %s11
    %p162 = scmp.lt.s32.totalorder %s11, 3
    %p163 = pnand %p161, %p162
    %p164 = pneg %p163
    // Predicated region
    $region29: #{_lambda_.31} parent=5 // pred_check
      _
    $region30: #{_lambda_.31} parent=5 // pred_check_branch
      %166 = sbr.rel (%p163) target = $region32
    $region31: #{_lambda_.31} parent=5 // pred_region
      %s167 = ssub.s32 %s11, 1
      %s168 = smul.u32 3, %s16
      %p169 = scmp.lt.s32.totalorder %s168, 5
      %s170 = scalar_select %p169, %s168, 5
      %s171 = smul.addr %s170, 2
      %s172 = smul.addr %s171, 8
      %s173 = scalar_lea.vmem %s0, %s172
      %p174 = pneg %p37
      %p175 = pneg %p34
      %p176 = pneg %p58
      %p177 = pneg %p55
      %p178 = pneg %p79
      %p179 = pneg %p76
      %p180 = pneg %p105
      %p181 = pneg %p102
      %s182 = smul.u32 3, %s16
      %p183 = scmp.lt.s32.totalorder %s182, 5
      %s184 = scalar_select %p183, %s182, 5
      %s185 = smul.addr %s184, 8
      %s186 = scalar_lea.vmem %s3, %s185
      %p187 = pneg %p126
      %p188 = pneg %p123
      %s189 = smul.u32 3, %s16
      %p190 = scmp.lt.s32.totalorder %s189, 5
      %s191 = scalar_select %p190, %s189, 5
      %s192 = smul.addr %s191, 2
      %s193 = smul.addr %s192, 8
      %s194 = scalar_lea.vmem %s0, %s193
      %s195 = smul.u32 3, %s16
      %s196 = smul.u32 3, %s16
      %p197 = scmp.lt.s32.totalorder %s196, 5
      %s198 = scalar_select %p197, %s196, 5
      %s199 = smul.addr %s198, 8
      %s200 = scalar_lea.vmem %s3, %s199
      %s201 = smul.u32 3, %s16
      %p202 = scmp.eq.s32.totalorder %s16, 0
      // Predicated region
      $region33: #{_lambda_.31} parent=31 // pred_check
        %p203 = pneg %p202
      $region34: #{_lambda_.31} parent=31 // pred_check_branch
        %205 = sbr.rel (%p203) target = $region36
      $region35: #{_lambda_.31} parent=31 // pred_region
        %vm206 = vcmask 156672
        %207 = vst.msk [vmem:[%s4] sm:$0x3] %vm206, 0.0
      $region36: #{_lambda_.31} parent=31 // pred_fallthru
        _
      %v208 = vld [vmem:[%s194] sm:$0xff]
      %v209 = vld [vmem:[%s194 + $0x8] sm:$0xff]
      %v210 = vld [vmem:[%s194 + $0x10] sm:$0xff]
      %v211 = vld [vmem:[%s194 + $0x18] sm:$0xff]
      %v212 = vld [vmem:[%s194 + $0x20] sm:$0xff]
      %v213 = vld [vmem:[%s194 + $0x28] sm:$0xff]
      %v214 = vld [vmem:[%s1] sm:$0xff]
      %v215 = vld [vmem:[%s1 + $0x8] sm:$0xff]
      %v216 = vld [vmem:[%s1 + $0x10] sm:$0xff]
      %v217 = vld [vmem:[%s1 + $0x18] sm:$0xff]
      %v218 = vld [vmem:[%s1 + $0x20] sm:$0xff]
      %v219 = vld [vmem:[%s1 + $0x28] sm:$0xff]
      %v220 = vld [vmem:[%s1 + $0x30] sm:$0xff]
      %v221 = vld [vmem:[%s1 + $0x38] sm:$0xff]
      %v222 = vld [vmem:[%s1 + $0x40] sm:$0xff]
      %v223 = vld [vmem:[%s1 + $0x48] sm:$0xff]
      %v224 = vld [vmem:[%s1 + $0x50] sm:$0xff]
      %v225 = vld [vmem:[%s1 + $0x58] sm:$0xff]
      %v226 = vld [vmem:[%s1 + $0x60] sm:$0xff]
      %v227 = vld [vmem:[%s1 + $0x68] sm:$0xff]
      %v228 = vld [vmem:[%s1 + $0x70] sm:$0xff]
      %v229 = vld [vmem:[%s1 + $0x78] sm:$0xff]
      %v230 = vld [vmem:[%s1 + $0x80] sm:$0xff]
      %v231 = vld [vmem:[%s1 + $0x88] sm:$0xff]
      %v232 = vld [vmem:[%s1 + $0x90] sm:$0xff]
      %v233 = vld [vmem:[%s1 + $0x98] sm:$0xff]
      %v234 = vld [vmem:[%s2] sm:$0x1]
      %v236 = vperm.slane %v234, 0
      %vm238 = vcmask 261120
      %v240 = vsel %vm238, %v209, 0
      %v243 = vsel %vm238, %v211, 0
      %v246 = vsel %vm238, %v213, 0
      %v248 = vand.u32 %v229, 4294901760
      %249 = vmatpush.msra.mxu0 %v248
      %v250 = vand.u32 %v228, 4294901760
      %251 = vmatpush.msra.mxu0 %v250
      %v252 = vand.u32 %v227, 4294901760
      %253 = vmatpush.msra.mxu0 %v252
      %v254 = vand.u32 %v226, 4294901760
      %255 = vmatpush.msra.mxu0 %v254
      %v256 = vand.u32 %v225, 4294901760
      %257 = vmatpush.msra.mxu0 %v256
      %v258 = vand.u32 %v224, 4294901760
      %259 = vmatpush.msra.mxu0 %v258
      %v260 = vand.u32 %v223, 4294901760
      %261 = vmatpush.msra.mxu0 %v260
      %v262 = vand.u32 %v222, 4294901760
      %263 = vmatpush.msra.mxu0 %v262
      %v264 = vand.u32 %v221, 4294901760
      %265 = vmatpush.msra.mxu0 %v264
      %v266 = vand.u32 %v220, 4294901760
      %267 = vmatpush.msra.mxu0 %v266
      %v268 = vand.u32 %v219, 4294901760
      %269 = vmatpush.msra.mxu0 %v268
      %v270 = vand.u32 %v218, 4294901760
      %271 = vmatpush.msra.mxu0 %v270
      %v272 = vand.u32 %v217, 4294901760
      %273 = vmatpush.msra.mxu0 %v272
      %v274 = vand.u32 %v216, 4294901760
      %275 = vmatpush.msra.mxu0 %v274
      %v276 = vand.u32 %v215, 4294901760
      %277 = vmatpush.msra.mxu0 %v276
      %v278 = vand.u32 %v214, 4294901760
      %279 = vmatpush.msra.mxu0 %v278
      %v280 = vand.u32 %v208, 4294901760
      %v281 = vsub.f32 %v208, %v280
      %v282 = vand.u32 %v281, 4294901760
      %v283 = vsub.f32 %v281, %v282
      %v284 = vand.u32 %v283, 4294901760
      %285 = vmatmul.f32.gmra.mxu0 %v284
      %v286 = vpop.f32.mrf.mxu0
      %v287 = vadd.f32 %v236, %v286
      %v288 = vand.u32 %v210, 4294901760
      %v289 = vsub.f32 %v210, %v288
      %v290 = vand.u32 %v289, 4294901760
      %v291 = vsub.f32 %v289, %v290
      %v292 = vand.u32 %v291, 4294901760
      %293 = vmatmul.f32.gmra.mxu0 %v292
      %v294 = vpop.f32.mrf.mxu0
      %v295 = vadd.f32 %v236, %v294
      %v296 = vand.u32 %v212, 4294901760
      %v297 = vsub.f32 %v212, %v296
      %v298 = vand.u32 %v297, 4294901760
      %v299 = vsub.f32 %v297, %v298
      %v300 = vand.u32 %v299, 4294901760
      %301 = vmatmul.f32.gmra.mxu0 %v300
      %v302 = vpop.f32.mrf.mxu0
      %v303 = vadd.f32 %v236, %v302
      %304 = vdwg.mxu0
      %v305 = vand.u32 %v229, 4294901760
      %v306 = vsub.f32 %v229, %v305
      %v307 = vand.u32 %v306, 4294901760
      %v308 = vsub.f32 %v306, %v307
      %v309 = vand.u32 %v308, 4294901760
      %310 = vmatpush.msra.mxu0 %v309
      %v311 = vand.u32 %v228, 4294901760
      %v312 = vsub.f32 %v228, %v311
      %v313 = vand.u32 %v312, 4294901760
      %v314 = vsub.f32 %v312, %v313
      %v315 = vand.u32 %v314, 4294901760
      %316 = vmatpush.msra.mxu0 %v315
      %v317 = vand.u32 %v227, 4294901760
      %v318 = vsub.f32 %v227, %v317
      %v319 = vand.u32 %v318, 4294901760
      %v320 = vsub.f32 %v318, %v319
      %v321 = vand.u32 %v320, 4294901760
      %322 = vmatpush.msra.mxu0 %v321
      %v323 = vand.u32 %v226, 4294901760
      %v324 = vsub.f32 %v226, %v323
      %v325 = vand.u32 %v324, 4294901760
      %v326 = vsub.f32 %v324, %v325
      %v327 = vand.u32 %v326, 4294901760
      %328 = vmatpush.msra.mxu0 %v327
      %v329 = vand.u32 %v225, 4294901760
      %v330 = vsub.f32 %v225, %v329
      %v331 = vand.u32 %v330, 4294901760
      %v332 = vsub.f32 %v330, %v331
      %v333 = vand.u32 %v332, 4294901760
      %334 = vmatpush.msra.mxu0 %v333
      %v335 = vand.u32 %v224, 4294901760
      %v336 = vsub.f32 %v224, %v335
      %v337 = vand.u32 %v336, 4294901760
      %v338 = vsub.f32 %v336, %v337
      %v339 = vand.u32 %v338, 4294901760
      %340 = vmatpush.msra.mxu0 %v339
      %v341 = vand.u32 %v223, 4294901760
      %v342 = vsub.f32 %v223, %v341
      %v343 = vand.u32 %v342, 4294901760
      %v344 = vsub.f32 %v342, %v343
      %v345 = vand.u32 %v344, 4294901760
      %346 = vmatpush.msra.mxu0 %v345
      %v347 = vand.u32 %v222, 4294901760
      %v348 = vsub.f32 %v222, %v347
      %v349 = vand.u32 %v348, 4294901760
      %v350 = vsub.f32 %v348, %v349
      %v351 = vand.u32 %v350, 4294901760
      %352 = vmatpush.msra.mxu0 %v351
      %v353 = vand.u32 %v221, 4294901760
      %v354 = vsub.f32 %v221, %v353
      %v355 = vand.u32 %v354, 4294901760
      %v356 = vsub.f32 %v354, %v355
      %v357 = vand.u32 %v356, 4294901760
      %358 = vmatpush.msra.mxu0 %v357
      %v359 = vand.u32 %v220, 4294901760
      %v360 = vsub.f32 %v220, %v359
      %v361 = vand.u32 %v360, 4294901760
      %v362 = vsub.f32 %v360, %v361
      %v363 = vand.u32 %v362, 4294901760
      %364 = vmatpush.msra.mxu0 %v363
      %v365 = vand.u32 %v219, 4294901760
      %v366 = vsub.f32 %v219, %v365
      %v367 = vand.u32 %v366, 4294901760
      %v368 = vsub.f32 %v366, %v367
      %v369 = vand.u32 %v368, 4294901760
      %370 = vmatpush.msra.mxu0 %v369
      %v371 = vand.u32 %v218, 4294901760
      %v372 = vsub.f32 %v218, %v371
      %v373 = vand.u32 %v372, 4294901760
      %v374 = vsub.f32 %v372, %v373
      %v375 = vand.u32 %v374, 4294901760
      %376 = vmatpush.msra.mxu0 %v375
      %v377 = vand.u32 %v217, 4294901760
      %v378 = vsub.f32 %v217, %v377
      %v379 = vand.u32 %v378, 4294901760
      %v380 = vsub.f32 %v378, %v379
      %v381 = vand.u32 %v380, 4294901760
      %382 = vmatpush.msra.mxu0 %v381
      %v383 = vand.u32 %v216, 4294901760
      %v384 = vsub.f32 %v216, %v383
      %v385 = vand.u32 %v384, 4294901760
      %v386 = vsub.f32 %v384, %v385
      %v387 = vand.u32 %v386, 4294901760
      %388 = vmatpush.msra.mxu0 %v387
      %v389 = vand.u32 %v215, 4294901760
      %v390 = vsub.f32 %v215, %v389
      %v391 = vand.u32 %v390, 4294901760
      %v392 = vsub.f32 %v390, %v391
      %v393 = vand.u32 %v392, 4294901760
      %394 = vmatpush.msra.mxu0 %v393
      %v395 = vand.u32 %v214, 4294901760
      %v396 = vsub.f32 %v214, %v395
      %v397 = vand.u32 %v396, 4294901760
      %v398 = vsub.f32 %v396, %v397
      %v399 = vand.u32 %v398, 4294901760
      %400 = vmatpush.msra.mxu0 %v399
      %v401 = vand.u32 %v208, 4294901760
      %402 = vmatmul.f32.gmra.mxu0 %v401
      %v403 = vpop.f32.mrf.mxu0
      %v404 = vadd.f32 %v287, %v403
      %v405 = vand.u32 %v210, 4294901760
      %406 = vmatmul.f32.gmra.mxu0 %v405
      %v407 = vpop.f32.mrf.mxu0
      %v408 = vadd.f32 %v295, %v407
      %v409 = vand.u32 %v212, 4294901760
      %410 = vmatmul.f32.gmra.mxu0 %v409
      %v411 = vpop.f32.mrf.mxu0
      %v412 = vadd.f32 %v303, %v411
      %413 = vdwg.mxu0
      %v414 = vand.u32 %v229, 4294901760
      %v415 = vsub.f32 %v229, %v414
      %416 = vmatpush.msra.mxu0 %v415
      %v417 = vand.u32 %v228, 4294901760
      %v418 = vsub.f32 %v228, %v417
      %419 = vmatpush.msra.mxu0 %v418
      %v420 = vand.u32 %v227, 4294901760
      %v421 = vsub.f32 %v227, %v420
      %422 = vmatpush.msra.mxu0 %v421
      %v423 = vand.u32 %v226, 4294901760
      %v424 = vsub.f32 %v226, %v423
      %425 = vmatpush.msra.mxu0 %v424
      %v426 = vand.u32 %v225, 4294901760
      %v427 = vsub.f32 %v225, %v426
      %428 = vmatpush.msra.mxu0 %v427
      %v429 = vand.u32 %v224, 4294901760
      %v430 = vsub.f32 %v224, %v429
      %431 = vmatpush.msra.mxu0 %v430
      %v432 = vand.u32 %v223, 4294901760
      %v433 = vsub.f32 %v223, %v432
      %434 = vmatpush.msra.mxu0 %v433
      %v435 = vand.u32 %v222, 4294901760
      %v436 = vsub.f32 %v222, %v435
      %437 = vmatpush.msra.mxu0 %v436
      %v438 = vand.u32 %v221, 4294901760
      %v439 = vsub.f32 %v221, %v438
      %440 = vmatpush.msra.mxu0 %v439
      %v441 = vand.u32 %v220, 4294901760
      %v442 = vsub.f32 %v220, %v441
      %443 = vmatpush.msra.mxu0 %v442
      %v444 = vand.u32 %v219, 4294901760
      %v445 = vsub.f32 %v219, %v444
      %446 = vmatpush.msra.mxu0 %v445
      %v447 = vand.u32 %v218, 4294901760
      %v448 = vsub.f32 %v218, %v447
      %449 = vmatpush.msra.mxu0 %v448
      %v450 = vand.u32 %v217, 4294901760
      %v451 = vsub.f32 %v217, %v450
      %452 = vmatpush.msra.mxu0 %v451
      %v453 = vand.u32 %v216, 4294901760
      %v454 = vsub.f32 %v216, %v453
      %455 = vmatpush.msra.mxu0 %v454
      %v456 = vand.u32 %v215, 4294901760
      %v457 = vsub.f32 %v215, %v456
      %458 = vmatpush.msra.mxu0 %v457
      %v459 = vand.u32 %v214, 4294901760
      %v460 = vsub.f32 %v214, %v459
      %461 = vmatpush.msra.mxu0 %v460
      %v462 = vand.u32 %v208, 4294901760
      %v463 = vsub.f32 %v208, %v462
      %464 = vmatmul.f32.gmra.mxu0 %v463
      %v465 = vpop.f32.mrf.mxu0
      %v466 = vadd.f32 %v404, %v465
      %v467 = vand.u32 %v210, 4294901760
      %v468 = vsub.f32 %v210, %v467
      %469 = vmatmul.f32.gmra.mxu0 %v468
      %v470 = vpop.f32.mrf.mxu0
      %v471 = vadd.f32 %v408, %v470
      %v472 = vand.u32 %v212, 4294901760
      %v473 = vsub.f32 %v212, %v472
      %474 = vmatmul.f32.gmra.mxu0 %v473
      %v475 = vpop.f32.mrf.mxu0
      %v476 = vadd.f32 %v412, %v475
      %477 = vdwg.mxu0
      %v478 = vand.u32 %v229, 4294901760
      %479 = vmatpush.msra.mxu0 %v478
      %v480 = vand.u32 %v228, 4294901760
      %481 = vmatpush.msra.mxu0 %v480
      %v482 = vand.u32 %v227, 4294901760
      %483 = vmatpush.msra.mxu0 %v482
      %v484 = vand.u32 %v226, 4294901760
      %485 = vmatpush.msra.mxu0 %v484
      %v486 = vand.u32 %v225, 4294901760
      %487 = vmatpush.msra.mxu0 %v486
      %v488 = vand.u32 %v224, 4294901760
      %489 = vmatpush.msra.mxu0 %v488
      %v490 = vand.u32 %v223, 4294901760
      %491 = vmatpush.msra.mxu0 %v490
      %v492 = vand.u32 %v222, 4294901760
      %493 = vmatpush.msra.mxu0 %v492
      %v494 = vand.u32 %v221, 4294901760
      %495 = vmatpush.msra.mxu0 %v494
      %v496 = vand.u32 %v220, 4294901760
      %497 = vmatpush.msra.mxu0 %v496
      %v498 = vand.u32 %v219, 4294901760
      %499 = vmatpush.msra.mxu0 %v498
      %v500 = vand.u32 %v218, 4294901760
      %501 = vmatpush.msra.mxu0 %v500
      %v502 = vand.u32 %v217, 4294901760
      %503 = vmatpush.msra.mxu0 %v502
      %v504 = vand.u32 %v216, 4294901760
      %505 = vmatpush.msra.mxu0 %v504
      %v506 = vand.u32 %v215, 4294901760
      %507 = vmatpush.msra.mxu0 %v506
      %v508 = vand.u32 %v214, 4294901760
      %509 = vmatpush.msra.mxu0 %v508
      %v510 = vand.u32 %v208, 4294901760
      %v511 = vsub.f32 %v208, %v510
      %v512 = vand.u32 %v511, 4294901760
      %513 = vmatmul.f32.gmra.mxu0 %v512
      %v514 = vpop.f32.mrf.mxu0
      %v515 = vadd.f32 %v466, %v514
      %v516 = vand.u32 %v210, 4294901760
      %v517 = vsub.f32 %v210, %v516
      %v518 = vand.u32 %v517, 4294901760
      %519 = vmatmul.f32.gmra.mxu0 %v518
      %v520 = vpop.f32.mrf.mxu0
      %v521 = vadd.f32 %v471, %v520
      %v522 = vand.u32 %v212, 4294901760
      %v523 = vsub.f32 %v212, %v522
      %v524 = vand.u32 %v523, 4294901760
      %525 = vmatmul.f32.gmra.mxu0 %v524
      %v526 = vpop.f32.mrf.mxu0
      %v527 = vadd.f32 %v476, %v526
      %528 = vdwg.mxu0
      %v529 = vand.u32 %v229, 4294901760
      %v530 = vsub.f32 %v229, %v529
      %v531 = vand.u32 %v530, 4294901760
      %532 = vmatpush.msra.mxu0 %v531
      %v533 = vand.u32 %v228, 4294901760
      %v534 = vsub.f32 %v228, %v533
      %v535 = vand.u32 %v534, 4294901760
      %536 = vmatpush.msra.mxu0 %v535
      %v537 = vand.u32 %v227, 4294901760
      %v538 = vsub.f32 %v227, %v537
      %v539 = vand.u32 %v538, 4294901760
      %540 = vmatpush.msra.mxu0 %v539
      %v541 = vand.u32 %v226, 4294901760
      %v542 = vsub.f32 %v226, %v541
      %v543 = vand.u32 %v542, 4294901760
      %544 = vmatpush.msra.mxu0 %v543
      %v545 = vand.u32 %v225, 4294901760
      %v546 = vsub.f32 %v225, %v545
      %v547 = vand.u32 %v546, 4294901760
      %548 = vmatpush.msra.mxu0 %v547
      %v549 = vand.u32 %v224, 4294901760
      %v550 = vsub.f32 %v224, %v549
      %v551 = vand.u32 %v550, 4294901760
      %552 = vmatpush.msra.mxu0 %v551
      %v553 = vand.u32 %v223, 4294901760
      %v554 = vsub.f32 %v223, %v553
      %v555 = vand.u32 %v554, 4294901760
      %556 = vmatpush.msra.mxu0 %v555
      %v557 = vand.u32 %v222, 4294901760
      %v558 = vsub.f32 %v222, %v557
      %v559 = vand.u32 %v558, 4294901760
      %560 = vmatpush.msra.mxu0 %v559
      %v561 = vand.u32 %v221, 4294901760
      %v562 = vsub.f32 %v221, %v561
      %v563 = vand.u32 %v562, 4294901760
      %564 = vmatpush.msra.mxu0 %v563
      %v565 = vand.u32 %v220, 4294901760
      %v566 = vsub.f32 %v220, %v565
      %v567 = vand.u32 %v566, 4294901760
      %568 = vmatpush.msra.mxu0 %v567
      %v569 = vand.u32 %v219, 4294901760
      %v570 = vsub.f32 %v219, %v569
      %v571 = vand.u32 %v570, 4294901760
      %572 = vmatpush.msra.mxu0 %v571
      %v573 = vand.u32 %v218, 4294901760
      %v574 = vsub.f32 %v218, %v573
      %v575 = vand.u32 %v574, 4294901760
      %576 = vmatpush.msra.mxu0 %v575
      %v577 = vand.u32 %v217, 4294901760
      %v578 = vsub.f32 %v217, %v577
      %v579 = vand.u32 %v578, 4294901760
      %580 = vmatpush.msra.mxu0 %v579
      %v581 = vand.u32 %v216, 4294901760
      %v582 = vsub.f32 %v216, %v581
      %v583 = vand.u32 %v582, 4294901760
      %584 = vmatpush.msra.mxu0 %v583
      %v585 = vand.u32 %v215, 4294901760
      %v586 = vsub.f32 %v215, %v585
      %v587 = vand.u32 %v586, 4294901760
      %588 = vmatpush.msra.mxu0 %v587
      %v589 = vand.u32 %v214, 4294901760
      %v590 = vsub.f32 %v214, %v589
      %v591 = vand.u32 %v590, 4294901760
      %592 = vmatpush.msra.mxu0 %v591
      %v593 = vand.u32 %v208, 4294901760
      %594 = vmatmul.f32.gmra.mxu0 %v593
      %v595 = vpop.f32.mrf.mxu0
      %v596 = vadd.f32 %v515, %v595
      %v597 = vand.u32 %v210, 4294901760
      %598 = vmatmul.f32.gmra.mxu0 %v597
      %v599 = vpop.f32.mrf.mxu0
      %v600 = vadd.f32 %v521, %v599
      %v601 = vand.u32 %v212, 4294901760
      %602 = vmatmul.f32.gmra.mxu0 %v601
      %v603 = vpop.f32.mrf.mxu0
      %v604 = vadd.f32 %v527, %v603
      %605 = vdwg.mxu0
      %v606 = vand.u32 %v229, 4294901760
      %607 = vmatpush.msra.mxu0 %v606
      %v608 = vand.u32 %v228, 4294901760
      %609 = vmatpush.msra.mxu0 %v608
      %v610 = vand.u32 %v227, 4294901760
      %611 = vmatpush.msra.mxu0 %v610
      %v612 = vand.u32 %v226, 4294901760
      %613 = vmatpush.msra.mxu0 %v612
      %v614 = vand.u32 %v225, 4294901760
      %615 = vmatpush.msra.mxu0 %v614
      %v616 = vand.u32 %v224, 4294901760
      %617 = vmatpush.msra.mxu0 %v616
      %v618 = vand.u32 %v223, 4294901760
      %619 = vmatpush.msra.mxu0 %v618
      %v620 = vand.u32 %v222, 4294901760
      %621 = vmatpush.msra.mxu0 %v620
      %v622 = vand.u32 %v221, 4294901760
      %623 = vmatpush.msra.mxu0 %v622
      %v624 = vand.u32 %v220, 4294901760
      %625 = vmatpush.msra.mxu0 %v624
      %v626 = vand.u32 %v219, 4294901760
      %627 = vmatpush.msra.mxu0 %v626
      %v628 = vand.u32 %v218, 4294901760
      %629 = vmatpush.msra.mxu0 %v628
      %v630 = vand.u32 %v217, 4294901760
      %631 = vmatpush.msra.mxu0 %v630
      %v632 = vand.u32 %v216, 4294901760
      %633 = vmatpush.msra.mxu0 %v632
      %v634 = vand.u32 %v215, 4294901760
      %635 = vmatpush.msra.mxu0 %v634
      %v636 = vand.u32 %v214, 4294901760
      %637 = vmatpush.msra.mxu0 %v636
      %v638 = vand.u32 %v208, 4294901760
      %639 = vmatmul.f32.gmra.mxu0 %v638
      %v640 = vpop.f32.mrf.mxu0
      %v641 = vadd.f32 %v596, %v640
      %v642 = vand.u32 %v210, 4294901760
      %643 = vmatmul.f32.gmra.mxu0 %v642
      %v644 = vpop.f32.mrf.mxu0
      %v645 = vadd.f32 %v600, %v644
      %v646 = vand.u32 %v212, 4294901760
      %647 = vmatmul.f32.gmra.mxu0 %v646
      %v648 = vpop.f32.mrf.mxu0
      %v649 = vadd.f32 %v604, %v648
      %650 = vdwg.mxu0
      %651 = vmatpush.msra.mxu0 0.0
      %652 = vmatpush.msra.mxu0 0.0
      %653 = vmatpush.msra.mxu0 0.0
      %654 = vmatpush.msra.mxu0 0.0
      %655 = vmatpush.msra.mxu0 0.0
      %656 = vmatpush.msra.mxu0 0.0
      %657 = vmatpush.msra.mxu0 0.0
      %658 = vmatpush.msra.mxu0 0.0
      %659 = vmatpush.msra.mxu0 0.0
      %660 = vmatpush.msra.mxu0 0.0
      %661 = vmatpush.msra.mxu0 0.0
      %662 = vmatpush.msra.mxu0 0.0
      %v663 = vand.u32 %v233, 4294901760
      %664 = vmatpush.msra.mxu0 %v663
      %v665 = vand.u32 %v232, 4294901760
      %666 = vmatpush.msra.mxu0 %v665
      %v667 = vand.u32 %v231, 4294901760
      %668 = vmatpush.msra.mxu0 %v667
      %v669 = vand.u32 %v230, 4294901760
      %670 = vmatpush.msra.mxu0 %v669
      %v671 = vand.u32 %v240, 4294901760
      %v672 = vsub.f32 %v240, %v671
      %v673 = vand.u32 %v672, 4294901760
      %v674 = vsub.f32 %v672, %v673
      %v675 = vand.u32 %v674, 4294901760
      %676 = vmatmul.f32.gmra.mxu0 %v675
      %v677 = vpop.f32.mrf.mxu0
      %v678 = vadd.f32 %v641, %v677
      %v679 = vand.u32 %v243, 4294901760
      %v680 = vsub.f32 %v243, %v679
      %v681 = vand.u32 %v680, 4294901760
      %v682 = vsub.f32 %v680, %v681
      %v683 = vand.u32 %v682, 4294901760
      %684 = vmatmul.f32.gmra.mxu0 %v683
      %v685 = vpop.f32.mrf.mxu0
      %v686 = vadd.f32 %v645, %v685
      %v687 = vand.u32 %v246, 4294901760
      %v688 = vsub.f32 %v246, %v687
      %v689 = vand.u32 %v688, 4294901760
      %v690 = vsub.f32 %v688, %v689
      %v691 = vand.u32 %v690, 4294901760
      %692 = vmatmul.f32.gmra.mxu0 %v691
      %v693 = vpop.f32.mrf.mxu0
      %v694 = vadd.f32 %v649, %v693
      %695 = vdwg.mxu0
      %696 = vmatpush.msra.mxu0 0.0
      %697 = vmatpush.msra.mxu0 0.0
      %698 = vmatpush.msra.mxu0 0.0
      %699 = vmatpush.msra.mxu0 0.0
      %700 = vmatpush.msra.mxu0 0.0
      %701 = vmatpush.msra.mxu0 0.0
      %702 = vmatpush.msra.mxu0 0.0
      %703 = vmatpush.msra.mxu0 0.0
      %704 = vmatpush.msra.mxu0 0.0
      %705 = vmatpush.msra.mxu0 0.0
      %706 = vmatpush.msra.mxu0 0.0
      %707 = vmatpush.msra.mxu0 0.0
      %v708 = vand.u32 %v233, 4294901760
      %v709 = vsub.f32 %v233, %v708
      %v710 = vand.u32 %v709, 4294901760
      %v711 = vsub.f32 %v709, %v710
      %v712 = vand.u32 %v711, 4294901760
      %713 = vmatpush.msra.mxu0 %v712
      %v714 = vand.u32 %v232, 4294901760
      %v715 = vsub.f32 %v232, %v714
      %v716 = vand.u32 %v715, 4294901760
      %v717 = vsub.f32 %v715, %v716
      %v718 = vand.u32 %v717, 4294901760
      %719 = vmatpush.msra.mxu0 %v718
      %v720 = vand.u32 %v231, 4294901760
      %v721 = vsub.f32 %v231, %v720
      %v722 = vand.u32 %v721, 4294901760
      %v723 = vsub.f32 %v721, %v722
      %v724 = vand.u32 %v723, 4294901760
      %725 = vmatpush.msra.mxu0 %v724
      %v726 = vand.u32 %v230, 4294901760
      %v727 = vsub.f32 %v230, %v726
      %v728 = vand.u32 %v727, 4294901760
      %v729 = vsub.f32 %v727, %v728
      %v730 = vand.u32 %v729, 4294901760
      %731 = vmatpush.msra.mxu0 %v730
      %v732 = vand.u32 %v240, 4294901760
      %733 = vmatmul.f32.gmra.mxu0 %v732
      %v734 = vpop.f32.mrf.mxu0
      %v735 = vadd.f32 %v678, %v734
      %v736 = vand.u32 %v243, 4294901760
      %737 = vmatmul.f32.gmra.mxu0 %v736
      %v738 = vpop.f32.mrf.mxu0
      %v739 = vadd.f32 %v686, %v738
      %v740 = vand.u32 %v246, 4294901760
      %741 = vmatmul.f32.gmra.mxu0 %v740
      %v742 = vpop.f32.mrf.mxu0
      %v743 = vadd.f32 %v694, %v742
      %744 = vdwg.mxu0
      %745 = vmatpush.msra.mxu0 0.0
      %746 = vmatpush.msra.mxu0 0.0
      %747 = vmatpush.msra.mxu0 0.0
      %748 = vmatpush.msra.mxu0 0.0
      %749 = vmatpush.msra.mxu0 0.0
      %750 = vmatpush.msra.mxu0 0.0
      %751 = vmatpush.msra.mxu0 0.0
      %752 = vmatpush.msra.mxu0 0.0
      %753 = vmatpush.msra.mxu0 0.0
      %754 = vmatpush.msra.mxu0 0.0
      %755 = vmatpush.msra.mxu0 0.0
      %756 = vmatpush.msra.mxu0 0.0
      %v757 = vand.u32 %v233, 4294901760
      %v758 = vsub.f32 %v233, %v757
      %759 = vmatpush.msra.mxu0 %v758
      %v760 = vand.u32 %v232, 4294901760
      %v761 = vsub.f32 %v232, %v760
      %762 = vmatpush.msra.mxu0 %v761
      %v763 = vand.u32 %v231, 4294901760
      %v764 = vsub.f32 %v231, %v763
      %765 = vmatpush.msra.mxu0 %v764
      %v766 = vand.u32 %v230, 4294901760
      %v767 = vsub.f32 %v230, %v766
      %768 = vmatpush.msra.mxu0 %v767
      %v769 = vand.u32 %v240, 4294901760
      %v770 = vsub.f32 %v240, %v769
      %771 = vmatmul.f32.gmra.mxu0 %v770
      %v772 = vpop.f32.mrf.mxu0
      %v773 = vadd.f32 %v735, %v772
      %v774 = vand.u32 %v243, 4294901760
      %v775 = vsub.f32 %v243, %v774
      %776 = vmatmul.f32.gmra.mxu0 %v775
      %v777 = vpop.f32.mrf.mxu0
      %v778 = vadd.f32 %v739, %v777
      %v779 = vand.u32 %v246, 4294901760
      %v780 = vsub.f32 %v246, %v779
      %781 = vmatmul.f32.gmra.mxu0 %v780
      %v782 = vpop.f32.mrf.mxu0
      %v783 = vadd.f32 %v743, %v782
      %784 = vdwg.mxu0
      %785 = vmatpush.msra.mxu0 0.0
      %786 = vmatpush.msra.mxu0 0.0
      %787 = vmatpush.msra.mxu0 0.0
      %788 = vmatpush.msra.mxu0 0.0
      %789 = vmatpush.msra.mxu0 0.0
      %790 = vmatpush.msra.mxu0 0.0
      %791 = vmatpush.msra.mxu0 0.0
      %792 = vmatpush.msra.mxu0 0.0
      %793 = vmatpush.msra.mxu0 0.0
      %794 = vmatpush.msra.mxu0 0.0
      %795 = vmatpush.msra.mxu0 0.0
      %796 = vmatpush.msra.mxu0 0.0
      %v797 = vand.u32 %v233, 4294901760
      %798 = vmatpush.msra.mxu0 %v797
      %v799 = vand.u32 %v232, 4294901760
      %800 = vmatpush.msra.mxu0 %v799
      %v801 = vand.u32 %v231, 4294901760
      %802 = vmatpush.msra.mxu0 %v801
      %v803 = vand.u32 %v230, 4294901760
      %804 = vmatpush.msra.mxu0 %v803
      %v805 = vand.u32 %v240, 4294901760
      %v806 = vsub.f32 %v240, %v805
      %v807 = vand.u32 %v806, 4294901760
      %808 = vmatmul.f32.gmra.mxu0 %v807
      %v809 = vpop.f32.mrf.mxu0
      %v810 = vadd.f32 %v773, %v809
      %v811 = vand.u32 %v243, 4294901760
      %v812 = vsub.f32 %v243, %v811
      %v813 = vand.u32 %v812, 4294901760
      %814 = vmatmul.f32.gmra.mxu0 %v813
      %v815 = vpop.f32.mrf.mxu0
      %v816 = vadd.f32 %v778, %v815
      %v817 = vand.u32 %v246, 4294901760
      %v818 = vsub.f32 %v246, %v817
      %v819 = vand.u32 %v818, 4294901760
      %820 = vmatmul.f32.gmra.mxu0 %v819
      %v821 = vpop.f32.mrf.mxu0
      %v822 = vadd.f32 %v783, %v821
      %823 = vdwg.mxu0
      %824 = vmatpush.msra.mxu0 0.0
      %825 = vmatpush.msra.mxu0 0.0
      %826 = vmatpush.msra.mxu0 0.0
      %827 = vmatpush.msra.mxu0 0.0
      %828 = vmatpush.msra.mxu0 0.0
      %829 = vmatpush.msra.mxu0 0.0
      %830 = vmatpush.msra.mxu0 0.0
      %831 = vmatpush.msra.mxu0 0.0
      %832 = vmatpush.msra.mxu0 0.0
      %833 = vmatpush.msra.mxu0 0.0
      %834 = vmatpush.msra.mxu0 0.0
      %835 = vmatpush.msra.mxu0 0.0
      %v836 = vand.u32 %v233, 4294901760
      %v837 = vsub.f32 %v233, %v836
      %v838 = vand.u32 %v837, 4294901760
      %839 = vmatpush.msra.mxu0 %v838
      %v840 = vand.u32 %v232, 4294901760
      %v841 = vsub.f32 %v232, %v840
      %v842 = vand.u32 %v841, 4294901760
      %843 = vmatpush.msra.mxu0 %v842
      %v844 = vand.u32 %v231, 4294901760
      %v845 = vsub.f32 %v231, %v844
      %v846 = vand.u32 %v845, 4294901760
      %847 = vmatpush.msra.mxu0 %v846
      %v848 = vand.u32 %v230, 4294901760
      %v849 = vsub.f32 %v230, %v848
      %v850 = vand.u32 %v849, 4294901760
      %851 = vmatpush.msra.mxu0 %v850
      %v852 = vand.u32 %v240, 4294901760
      %853 = vmatmul.f32.gmra.mxu0 %v852
      %v854 = vpop.f32.mrf.mxu0
      %v855 = vadd.f32 %v810, %v854
      %v856 = vand.u32 %v243, 4294901760
      %857 = vmatmul.f32.gmra.mxu0 %v856
      %v858 = vpop.f32.mrf.mxu0
      %v859 = vadd.f32 %v816, %v858
      %v860 = vand.u32 %v246, 4294901760
      %861 = vmatmul.f32.gmra.mxu0 %v860
      %v862 = vpop.f32.mrf.mxu0
      %v863 = vadd.f32 %v822, %v862
      %864 = vdwg.mxu0
      %865 = vmatpush.msra.mxu0 0.0
      %866 = vmatpush.msra.mxu0 0.0
      %867 = vmatpush.msra.mxu0 0.0
      %868 = vmatpush.msra.mxu0 0.0
      %869 = vmatpush.msra.mxu0 0.0
      %870 = vmatpush.msra.mxu0 0.0
      %871 = vmatpush.msra.mxu0 0.0
      %872 = vmatpush.msra.mxu0 0.0
      %873 = vmatpush.msra.mxu0 0.0
      %874 = vmatpush.msra.mxu0 0.0
      %875 = vmatpush.msra.mxu0 0.0
      %876 = vmatpush.msra.mxu0 0.0
      %v877 = vand.u32 %v233, 4294901760
      %878 = vmatpush.msra.mxu0 %v877
      %v879 = vand.u32 %v232, 4294901760
      %880 = vmatpush.msra.mxu0 %v879
      %v881 = vand.u32 %v231, 4294901760
      %882 = vmatpush.msra.mxu0 %v881
      %v883 = vand.u32 %v230, 4294901760
      %884 = vmatpush.msra.mxu0 %v883
      %v885 = vand.u32 %v240, 4294901760
      %886 = vmatmul.f32.gmra.mxu0 %v885
      %v887 = vpop.f32.mrf.mxu0
      %v888 = vadd.f32 %v855, %v887
      %v889 = vand.u32 %v243, 4294901760
      %890 = vmatmul.f32.gmra.mxu0 %v889
      %v891 = vpop.f32.mrf.mxu0
      %v892 = vadd.f32 %v859, %v891
      %v893 = vand.u32 %v246, 4294901760
      %894 = vmatmul.f32.gmra.mxu0 %v893
      %v895 = vpop.f32.mrf.mxu0
      %v896 = vadd.f32 %v863, %v895
      %897 = vdwg.mxu0
      %vm898 = vcmask 162816
      %899 = vst.msk [vmem:[%s200] sm:$0xff] %vm898, %v888
      %900 = vst.msk [vmem:[%s200 + $0x8] sm:$0xff] %vm898, %v892
      %901 = vst.msk [vmem:[%s200 + $0x10] sm:$0xff] %vm898, %v896
      %s902 = smul.u32 %s16, 24
      %v903 = vlaneseq
      %v904 = vshrl.u32 %v903, 7
      %v905 = vadd.s32 %v904, 8
      %v906 = vadd.s32 %v904, 16
      %v907 = vstv %s902
      %v908 = vadd.s32 %v907, %v904
      %v909 = vadd.s32 %v907, %v905
      %v910 = vadd.s32 %v907, %v906
      %vm911 = vcmp.lt.s32.totalorder %v908, 32
      %vm912 = vcmp.lt.s32.totalorder %v909, 32
      %vm913 = vcmp.lt.s32.totalorder %v910, 32
      %v914 = vsel %vm911, 1, 0
      %v915 = vsel %vm912, 1, 0
      %v916 = vsel %vm913, 1, 0
      %v917 = vcvt.s32.f32 %v914
      %v918 = vcvt.s32.f32 %v915
      %v919 = vcvt.s32.f32 %v916
      %v920 = vmul.f32 %v888, %v917
      %v921 = vmul.f32 %v892, %v918
      %v922 = vmul.f32 %v896, %v919
      %v923 = vld [vmem:[%s4] sm:$0x1]
      %v924 = vsel %vm898, %v920, 0.0
      %v925 = vsel %vm898, %v921, 0.0
      %v926 = vadd.f32 %v924, %v925
      %v927 = vsel %vm898, %v922, 0.0
      %v928 = vadd.f32 %v926, %v927
      %v929 = vrot.slane %v928, 4
      %v930 = vadd.f32 %v928, %v929
      %v931 = vrot.slane %v930, 2
      %v932 = vadd.f32 %v930, %v931
      %v933 = vrot.slane %v932, 1
      %v934 = vadd.f32 %v932, %v933
      %v935 = vadd.f32 %v923, %v934
      %vm936 = vcmask 155648
      %937 = vst.msk [vmem:[%s4] sm:$0x1] %vm936, %v935
      %v938 = vld [vmem:[%s4 + $0x1] sm:$0x1]
      %v939 = vmul.f32 %v920, %v888
      %v940 = vmul.f32 %v921, %v892
      %v941 = vmul.f32 %v922, %v896
      %v942 = vsel %vm898, %v939, 0.0
      %v943 = vsel %vm898, %v940, 0.0
      %v944 = vadd.f32 %v942, %v943
      %v945 = vsel %vm898, %v941, 0.0
      %v946 = vadd.f32 %v944, %v945
      %v947 = vrot.slane %v946, 4
      %v948 = vadd.f32 %v946, %v947
      %v949 = vrot.slane %v948, 2
      %v950 = vadd.f32 %v948, %v949
      %v951 = vrot.slane %v950, 1
      %v952 = vadd.f32 %v950, %v951
      %v953 = vadd.f32 %v938, %v952
      %954 = vst.msk [vmem:[%s4 + $0x1] sm:$0x1] %vm936, %v953
      %s955 = smul.u32 3, %s16
      %p956 = scmp.lt.s32.totalorder %s955, 5
      %s957 = scalar_select %p956, %s955, 5
      %s958 = smul.addr %s957, 8
      %s959 = scalar_lea.vmem %s3, %s958
      // Predicated region
      $region37: #{_lambda_.31} parent=31 // pred_check
        %p960 = pneg %p102
      $region38: #{_lambda_.31} parent=31 // pred_check_branch
        %962 = sbr.rel (%p960) target = $region40
      $region39: #{_lambda_.31} parent=31 // pred_region
        %s963 = smul.u32 3, %s16
      $region40: #{_lambda_.31} parent=31 // pred_fallthru
        _
      // Predicated region
      $region41: #{_lambda_.31} parent=31 // pred_check
        %p964 = pneg %p123
      $region42: #{_lambda_.31} parent=31 // pred_check_branch
        %966 = sbr.rel (%p964) target = $region44
      $region43: #{_lambda_.31} parent=31 // pred_region
        _
      $region44: #{_lambda_.31} parent=31 // pred_fallthru
        _
      // Predicated region
      $region45: #{_lambda_.31} parent=31 // pred_check
        %p967 = pneg %p123
      $region46: #{_lambda_.31} parent=31 // pred_check_branch
        %969 = sbr.rel (%p967) target = $region48
      $region47: #{_lambda_.31} parent=31 // pred_region
        _
      $region48: #{_lambda_.31} parent=31 // pred_fallthru
        _
    $region32: #{_lambda_.31} parent=5 // pred_fallthru
      _
    %p970 = scmp.le.s32.totalorder 2, %s11
    // Predicated region
    $region49: #{_lambda_.31} parent=5 // pred_check
      %p971 = pneg %p970
    $region50: #{_lambda_.31} parent=5 // pred_check_branch
      %973 = sbr.rel (%p971) target = $region52
    $region51: #{_lambda_.31} parent=5 // pred_region
      %s974 = ssub.s32 %s11, 2
      // Predicated region
      $region53: #{_lambda_.31} parent=51 // pred_check
        %p975 = pneg %p108
      $region54: #{_lambda_.31} parent=51 // pred_check_branch
        %977 = sbr.rel (%p975) target = $region56
      $region55: #{_lambda_.31} parent=51 // pred_region
        %s978 = smul.u32 3, %s17
        %p979 = scmp.lt.s32.totalorder %s978, 5
        %s980 = scalar_select %p979, %s978, 5
        %s981 = smul.addr %s980, 8
        %s982 = scalar_lea.vmem %s3, %s981
      $region56: #{_lambda_.31} parent=51 // pred_fallthru
        _
    $region52: #{_lambda_.31} parent=5 // pred_fallthru
      _
  $region6: #{_lambda_.31} parent=0 // loop_footer
    %s15 = sadd.s32 1, %s11
  $region7: #{_lambda_.31} parent=0 // loop_footer_branch
    %10 = sbr.rel target = $region3
  $region8: #{_lambda_.31} parent=0 // loop_exit
    _

// kernel: _lambda_.35
$region0: #{_lambda_.35}
  #allocation0 [shape = 'u32[]', space=smem, size = 0x4, offset = 0x4, fixed_abs, tag = 'smem constant byte address 0x4 - core index']
  #allocation1 [shape = 'u32[72,128]{1,0:T(1,128)}', space=vmem, size = 0x9000, scoped, tag = 'internal scratch']
  %s0 = inlined_call_operand.vmem [shape: f32[48,160], index: 0, kind: input, shape index: {}]
  %s1 = inlined_call_operand.vmem [shape: f32[160,40], index: 1, kind: input, shape index: {}]
  %s2 = inlined_call_operand.vmem [shape: f32[1,40], index: 2, kind: input, shape index: {}]
  %s3 = inlined_call_operand.vmem [shape: f32[48,40], index: 3, kind: output, shape index: {0}]
  %s4 = inlined_call_operand.vmem [shape: f32[2,40], index: 4, kind: output, shape index: {1}]
  %5 = xla_tuple %s3, %s4
  %s6 = sld [smem:[#allocation0]]
  $region57: #{_lambda_.35} parent=0
    _
  %s8 = ssub.s32 1, %s6
  %s9 = scalar_select 0, %s8, %s6
  loop: start=0, step=1, limit=4
  $region2: #{_lambda_.35} parent=0 // loop_pre_header
    _
  $region3: #{_lambda_.35} parent=0 // loop_header
    %s11 = sphi 0, %s15
    %p12 = scmp.ge.s32.totalorder %s11, 4
    %s21 = sphi 0, %s23
    %s24 = sphi 0, %s21
    %s25 = sphi 0, %s24
    %s41 = sphi 0, %s25
    %s45 = sphi 0, %s45
    %s47 = sphi 0, %s45
    %s48 = sphi 0, %s47
    %s62 = sphi 0, %s48
    %s66 = sphi 0, %s66
    %s68 = sphi 0, %s66
    %s69 = sphi 0, %s68
    %s83 = sphi 0, %s69
    %s89 = sphi 0, %s91
    %s92 = sphi 0, %s89
    %s93 = sphi 0, %s92
    %s109 = sphi 0, %s93
    %s113 = sphi 0, %s113
    %s115 = sphi 0, %s113
    %s116 = sphi 0, %s115
    %s130 = sphi 0, %s116
  $region4: #{_lambda_.35} parent=0 // loop_header_branch
    %14 = sbr.rel (%p12) target = $region8
  $region5: #{_lambda_.35} parent=0 // loop_body
    %s16 = ssub.s32 %s11, 1
    %s17 = ssub.s32 %s11, 2
    %s18 = sadd.s32 %s11, 1
    %s19 = ssub.s32 %s11, %s18
    %p20 = scmp.eq.s32.totalorder %s19, 0
    %s22 = sadd.s32 %s21, 1
    %s23 = scalar_select %p20, %s21, %s22
    %p26 = pneg %p20
    %p27 = scmp.eq.s32.totalorder %s11, 1
    %p28 = por %p26, %p27
    %p29 = scmp.ne.s32.totalorder %s21, %s24
    %p30 = scmp.eq.s32.totalorder %s11, 0
    %p31 = por %p29, %p30
    %p32 = scmp.ne.s32.totalorder %s21, %s24
    %p33 = scmp.eq.s32.totalorder %s16, 1
    %p34 = por %p32, %p33
    %p35 = scmp.ne.s32.totalorder %s24, %s25
    %p36 = scmp.eq.s32.totalorder %s16, 0
    %p37 = por %p35, %p36
    %p38 = scmp.ne.s32.totalorder %s24, %s25
    %p39 = scmp.eq.s32.totalorder %s17, 1
    %p40 = por %p38, %p39
    %p42 = scmp.ne.s32.totalorder %s25, %s41
    %p43 = scmp.eq.s32.totalorder %s17, 0
    %p44 = por %p42, %p43
    %s46 = sadd.s32 %s45, 1
    %p49 = scmp.eq.s32.totalorder %s11, 1
    %p50 = scmp.ne.s32.totalorder %s45, %s47
    %p51 = scmp.eq.s32.totalorder %s11, 0
    %p52 = por %p50, %p51
    %p53 = scmp.ne.s32.totalorder %s45, %s47
    %p54 = scmp.eq.s32.totalorder %s16, 1
    %p55 = por %p53, %p54
    %p56 = scmp.ne.s32.totalorder %s47, %s48
    %p57 = scmp.eq.s32.totalorder %s16, 0
    %p58 = por %p56, %p57
    %p59 = scmp.ne.s32.totalorder %s47, %s48
    %p60 = scmp.eq.s32.totalorder %s17, 1
    %p61 = por %p59, %p60
    %p63 = scmp.ne.s32.totalorder %s48, %s62
    %p64 = scmp.eq.s32.totalorder %s17, 0
    %p65 = por %p63, %p64
    %s67 = sadd.s32 %s66, 1
    %p70 = scmp.eq.s32.totalorder %s11, 1
    %p71 = scmp.ne.s32.totalorder %s66, %s68
    %p72 = scmp.eq.s32.totalorder %s11, 0
    %p73 = por %p71, %p72
    %p74 = scmp.ne.s32.totalorder %s66, %s68
    %p75 = scmp.eq.s32.totalorder %s16, 1
    %p76 = por %p74, %p75
    %p77 = scmp.ne.s32.totalorder %s68, %s69
    %p78 = scmp.eq.s32.totalorder %s16, 0
    %p79 = por %p77, %p78
    %p80 = scmp.ne.s32.totalorder %s68, %s69
    %p81 = scmp.eq.s32.totalorder %s17, 1
    %p82 = por %p80, %p81
    %p84 = scmp.ne.s32.totalorder %s69, %s83
    %p85 = scmp.eq.s32.totalorder %s17, 0
    %p86 = por %p84, %p85
    %s87 = ssub.s32 %s11, %s18
    %p88 = scmp.eq.s32.totalorder %s87, 0
    %s90 = sadd.s32 %s89, 1
    %s91 = scalar_select %p88, %s89, %s90
    %p94 = pneg %p88
    %p95 = scmp.eq.s32.totalorder %s11, 1
    %p96 = por %p94, %p95
    %p97 = scmp.ne.s32.totalorder %s89, %s92
    %p98 = scmp.eq.s32.totalorder %s11, 0
    %p99 = por %p97, %p98
    %p100 = scmp.ne.s32.totalorder %s89, %s92
    %p101 = scmp.eq.s32.totalorder %s16, 1
    %p102 = por %p100, %p101
    %p103 = scmp.ne.s32.totalorder %s92, %s93
    %p104 = scmp.eq.s32.totalorder %s16, 0
    %p105 = por %p103, %p104
    %p106 = scmp.ne.s32.totalorder %s92, %s93
    %p107 = scmp.eq.s32.totalorder %s17, 1
    %p108 = por %p106, %p107
    %p110 = scmp.ne.s32.totalorder %s93, %s109
    %p111 = scmp.eq.s32.totalorder %s17, 0
    %p112 = por %p110, %p111
    %s114 = sadd.s32 %s113, 1
    %p117 = scmp.eq.s32.totalorder %s11, 1
    %p118 = scmp.ne.s32.totalorder %s113, %s115
    %p119 = scmp.eq.s32.totalorder %s11, 0
    %p120 = por %p118, %p119
    %p121 = scmp.ne.s32.totalorder %s113, %s115
    %p122 = scmp.eq.s32.totalorder %s16, 1
    %p123 = por %p121, %p122
    %p124 = scmp.ne.s32.totalorder %s115, %s116
    %p125 = scmp.eq.s32.totalorder %s16, 0
    %p126 = por %p124, %p125
    %p127 = scmp.ne.s32.totalorder %s115, %s116
    %p128 = scmp.eq.s32.totalorder %s17, 1
    %p129 = por %p127, %p128
    %p131 = scmp.ne.s32.totalorder %s116, %s130
    %p132 = scmp.eq.s32.totalorder %s17, 0
    %p133 = por %p131, %p132
    %p134 = scmp.le.s32.totalorder 1, %s11
    %p135 = scmp.lt.s32.totalorder %s11, 3
    %p136 = pnand %p134, %p135
    %p137 = pneg %p136
    // Predicated region
    $region9: #{_lambda_.35} parent=5 // pred_check
      _
    $region10: #{_lambda_.35} parent=5 // pred_check_branch
      %139 = sbr.rel (%p136) target = $region12
    $region11: #{_lambda_.35} parent=5 // pred_region
      %s140 = ssub.s32 %s11, 1
      // Predicated region
      $region13: #{_lambda_.35} parent=11 // pred_check
        %p141 = pneg %p58
      $region14: #{_lambda_.35} parent=11 // pred_check_branch
        %143 = sbr.rel (%p141) target = $region16
      $region15: #{_lambda_.35} parent=11 // pred_region
        _
      $region16: #{_lambda_.35} parent=11 // pred_fallthru
        _
      // Predicated region
      $region17: #{_lambda_.35} parent=11 // pred_check
        %p144 = pneg %p79
      $region18: #{_lambda_.35} parent=11 // pred_check_branch
        %146 = sbr.rel (%p144) target = $region20
      $region19: #{_lambda_.35} parent=11 // pred_region
        _
      $region20: #{_lambda_.35} parent=11 // pred_fallthru
        _
    $region12: #{_lambda_.35} parent=5 // pred_fallthru
      _
    %p147 = scmp.lt.s32.totalorder %s11, 2
    // Predicated region
    $region21: #{_lambda_.35} parent=5 // pred_check
      %p148 = pneg %p147
    $region22: #{_lambda_.35} parent=5 // pred_check_branch
      %150 = sbr.rel (%p148) target = $region24
    $region23: #{_lambda_.35} parent=5 // pred_region
      // Predicated region
      $region25: #{_lambda_.35} parent=23 // pred_check
        %p151 = pneg %p31
      $region26: #{_lambda_.35} parent=23 // pred_check_branch
        %153 = sbr.rel (%p151) target = $region28
      $region27: #{_lambda_.35} parent=23 // pred_region
        %s154 = smul.u32 3, %s11
        %p155 = scmp.lt.s32.totalorder %s154, 5
        %s156 = scalar_select %p155, %s154, 5
        %s157 = smul.addr %s156, 2
        %s158 = smul.addr %s157, 8
        %s159 = scalar_lea.vmem %s0, %s158
        %s160 = smul.u32 3, %s11
      $region28: #{_lambda_.35} parent=23 // pred_fallthru
        _
    $region24: #{_lambda_.35} parent=5 // pred_fallthru
      _
    %p161 = scmp.le.s32.totalorder 1, %s11
    %p162 = scmp.lt.s32.totalorder %s11, 3
    %p163 = pnand %p161, %p162
    %p164 = pneg %p163
    // Predicated region
    $region29: #{_lambda_.35} parent=5 // pred_check
      _
    $region30: #{_lambda_.35} parent=5 // pred_check_branch
      %166 = sbr.rel (%p163) target = $region32
    $region31: #{_lambda_.35} parent=5 // pred_region
      %s167 = ssub.s32 %s11, 1
      %s168 = smul.u32 3, %s16
      %p169 = scmp.lt.s32.totalorder %s168, 5
      %s170 = scalar_select %p169, %s168, 5
      %s171 = smul.addr %s170, 2
      %s172 = smul.addr %s171, 8
      %s173 = scalar_lea.vmem %s0, %s172
      %p174 = pneg %p37
      %p175 = pneg %p34
      %p176 = pneg %p58
      %p177 = pneg %p55
      %p178 = pneg %p79
      %p179 = pneg %p76
      %p180 = pneg %p105
      %p181 = pneg %p102
      %s182 = smul.u32 3, %s16
      %p183 = scmp.lt.s32.totalorder %s182, 5
      %s184 = scalar_select %p183, %s182, 5
      %s185 = smul.addr %s184, 8
      %s186 = scalar_lea.vmem %s3, %s185
      %p187 = pneg %p126
      %p188 = pneg %p123
      %s189 = smul.u32 3, %s16
      %p190 = scmp.lt.s32.totalorder %s189, 5
      %s191 = scalar_select %p190, %s189, 5
      %s192 = smul.addr %s191, 2
      %s193 = smul.addr %s192, 8
      %s194 = scalar_lea.vmem %s0, %s193
      %s195 = smul.u32 3, %s16
      %s196 = smul.u32 3, %s16
      %p197 = scmp.lt.s32.totalorder %s196, 5
      %s198 = scalar_select %p197, %s196, 5
      %s199 = smul.addr %s198, 8
      %s200 = scalar_lea.vmem %s3, %s199
      %s201 = smul.u32 3, %s16
      %p202 = scmp.eq.s32.totalorder %s16, 0
      // Predicated region
      $region33: #{_lambda_.35} parent=31 // pred_check
        %p203 = pneg %p202
      $region34: #{_lambda_.35} parent=31 // pred_check_branch
        %205 = sbr.rel (%p203) target = $region36
      $region35: #{_lambda_.35} parent=31 // pred_region
        %vm206 = vcmask 320512
        %207 = vst.msk [vmem:[%s4] sm:$0x3] %vm206, 0.0
      $region36: #{_lambda_.35} parent=31 // pred_fallthru
        _
      %v208 = vld [vmem:[%s194] sm:$0xff]
      %v209 = vld [vmem:[%s194 + $0x8] sm:$0xff]
      %v210 = vld [vmem:[%s194 + $0x10] sm:$0xff]
      %v211 = vld [vmem:[%s194 + $0x18] sm:$0xff]
      %v212 = vld [vmem:[%s194 + $0x20] sm:$0xff]
      %v213 = vld [vmem:[%s194 + $0x28] sm:$0xff]
      %v214 = vld [vmem:[%s1] sm:$0xff]
      %v215 = vld [vmem:[%s1 + $0x8] sm:$0xff]
      %v216 = vld [vmem:[%s1 + $0x10] sm:$0xff]
      %v217 = vld [vmem:[%s1 + $0x18] sm:$0xff]
      %v218 = vld [vmem:[%s1 + $0x20] sm:$0xff]
      %v219 = vld [vmem:[%s1 + $0x28] sm:$0xff]
      %v220 = vld [vmem:[%s1 + $0x30] sm:$0xff]
      %v221 = vld [vmem:[%s1 + $0x38] sm:$0xff]
      %v222 = vld [vmem:[%s1 + $0x40] sm:$0xff]
      %v223 = vld [vmem:[%s1 + $0x48] sm:$0xff]
      %v224 = vld [vmem:[%s1 + $0x50] sm:$0xff]
      %v225 = vld [vmem:[%s1 + $0x58] sm:$0xff]
      %v226 = vld [vmem:[%s1 + $0x60] sm:$0xff]
      %v227 = vld [vmem:[%s1 + $0x68] sm:$0xff]
      %v228 = vld [vmem:[%s1 + $0x70] sm:$0xff]
      %v229 = vld [vmem:[%s1 + $0x78] sm:$0xff]
      %v230 = vld [vmem:[%s1 + $0x80] sm:$0xff]
      %v231 = vld [vmem:[%s1 + $0x88] sm:$0xff]
      %v232 = vld [vmem:[%s1 + $0x90] sm:$0xff]
      %v233 = vld [vmem:[%s1 + $0x98] sm:$0xff]
      %v234 = vld [vmem:[%s2] sm:$0x1]
      %v236 = vperm.slane %v234, 0
      %vm238 = vcmask 261120
      %v240 = vsel %vm238, %v209, 0
      %v243 = vsel %vm238, %v211, 0
      %v246 = vsel %vm238, %v213, 0
      %v248 = vand.u32 %v229, 4294901760
      %249 = vmatpush.msra.mxu0 %v248
      %v250 = vand.u32 %v228, 4294901760
      %251 = vmatpush.msra.mxu0 %v250
      %v252 = vand.u32 %v227, 4294901760
      %253 = vmatpush.msra.mxu0 %v252
      %v254 = vand.u32 %v226, 4294901760
      %255 = vmatpush.msra.mxu0 %v254
      %v256 = vand.u32 %v225, 4294901760
      %257 = vmatpush.msra.mxu0 %v256
      %v258 = vand.u32 %v224, 4294901760
      %259 = vmatpush.msra.mxu0 %v258
      %v260 = vand.u32 %v223, 4294901760
      %261 = vmatpush.msra.mxu0 %v260
      %v262 = vand.u32 %v222, 4294901760
      %263 = vmatpush.msra.mxu0 %v262
      %v264 = vand.u32 %v221, 4294901760
      %265 = vmatpush.msra.mxu0 %v264
      %v266 = vand.u32 %v220, 4294901760
      %267 = vmatpush.msra.mxu0 %v266
      %v268 = vand.u32 %v219, 4294901760
      %269 = vmatpush.msra.mxu0 %v268
      %v270 = vand.u32 %v218, 4294901760
      %271 = vmatpush.msra.mxu0 %v270
      %v272 = vand.u32 %v217, 4294901760
      %273 = vmatpush.msra.mxu0 %v272
      %v274 = vand.u32 %v216, 4294901760
      %275 = vmatpush.msra.mxu0 %v274
      %v276 = vand.u32 %v215, 4294901760
      %277 = vmatpush.msra.mxu0 %v276
      %v278 = vand.u32 %v214, 4294901760
      %279 = vmatpush.msra.mxu0 %v278
      %v280 = vand.u32 %v208, 4294901760
      %v281 = vsub.f32 %v208, %v280
      %v282 = vand.u32 %v281, 4294901760
      %v283 = vsub.f32 %v281, %v282
      %v284 = vand.u32 %v283, 4294901760
      %285 = vmatmul.f32.gmra.mxu0 %v284
      %v286 = vpop.f32.mrf.mxu0
      %v287 = vadd.f32 %v236, %v286
      %v288 = vand.u32 %v210, 4294901760
      %v289 = vsub.f32 %v210, %v288
      %v290 = vand.u32 %v289, 4294901760
      %v291 = vsub.f32 %v289, %v290
      %v292 = vand.u32 %v291, 4294901760
      %293 = vmatmul.f32.gmra.mxu0 %v292
      %v294 = vpop.f32.mrf.mxu0
      %v295 = vadd.f32 %v236, %v294
      %v296 = vand.u32 %v212, 4294901760
      %v297 = vsub.f32 %v212, %v296
      %v298 = vand.u32 %v297, 4294901760
      %v299 = vsub.f32 %v297, %v298
      %v300 = vand.u32 %v299, 4294901760
      %301 = vmatmul.f32.gmra.mxu0 %v300
      %v302 = vpop.f32.mrf.mxu0
      %v303 = vadd.f32 %v236, %v302
      %304 = vdwg.mxu0
      %v305 = vand.u32 %v229, 4294901760
      %v306 = vsub.f32 %v229, %v305
      %v307 = vand.u32 %v306, 4294901760
      %v308 = vsub.f32 %v306, %v307
      %v309 = vand.u32 %v308, 4294901760
      %310 = vmatpush.msra.mxu0 %v309
      %v311 = vand.u32 %v228, 4294901760
      %v312 = vsub.f32 %v228, %v311
      %v313 = vand.u32 %v312, 4294901760
      %v314 = vsub.f32 %v312, %v313
      %v315 = vand.u32 %v314, 4294901760
      %316 = vmatpush.msra.mxu0 %v315
      %v317 = vand.u32 %v227, 4294901760
      %v318 = vsub.f32 %v227, %v317
      %v319 = vand.u32 %v318, 4294901760
      %v320 = vsub.f32 %v318, %v319
      %v321 = vand.u32 %v320, 4294901760
      %322 = vmatpush.msra.mxu0 %v321
      %v323 = vand.u32 %v226, 4294901760
      %v324 = vsub.f32 %v226, %v323
      %v325 = vand.u32 %v324, 4294901760
      %v326 = vsub.f32 %v324, %v325
      %v327 = vand.u32 %v326, 4294901760
      %328 = vmatpush.msra.mxu0 %v327
      %v329 = vand.u32 %v225, 4294901760
      %v330 = vsub.f32 %v225, %v329
      %v331 = vand.u32 %v330, 4294901760
      %v332 = vsub.f32 %v330, %v331
      %v333 = vand.u32 %v332, 4294901760
      %334 = vmatpush.msra.mxu0 %v333
      %v335 = vand.u32 %v224, 4294901760
      %v336 = vsub.f32 %v224, %v335
      %v337 = vand.u32 %v336, 4294901760
      %v338 = vsub.f32 %v336, %v337
      %v339 = vand.u32 %v338, 4294901760
      %340 = vmatpush.msra.mxu0 %v339
      %v341 = vand.u32 %v223, 4294901760
      %v342 = vsub.f32 %v223, %v341
      %v343 = vand.u32 %v342, 4294901760
      %v344 = vsub.f32 %v342, %v343
      %v345 = vand.u32 %v344, 4294901760
      %346 = vmatpush.msra.mxu0 %v345
      %v347 = vand.u32 %v222, 4294901760
      %v348 = vsub.f32 %v222, %v347
      %v349 = vand.u32 %v348, 4294901760
      %v350 = vsub.f32 %v348, %v349
      %v351 = vand.u32 %v350, 4294901760
      %352 = vmatpush.msra.mxu0 %v351
      %v353 = vand.u32 %v221, 4294901760
      %v354 = vsub.f32 %v221, %v353
      %v355 = vand.u32 %v354, 4294901760
      %v356 = vsub.f32 %v354, %v355
      %v357 = vand.u32 %v356, 4294901760
      %358 = vmatpush.msra.mxu0 %v357
      %v359 = vand.u32 %v220, 4294901760
      %v360 = vsub.f32 %v220, %v359
      %v361 = vand.u32 %v360, 4294901760
      %v362 = vsub.f32 %v360, %v361
      %v363 = vand.u32 %v362, 4294901760
      %364 = vmatpush.msra.mxu0 %v363
      %v365 = vand.u32 %v219, 4294901760
      %v366 = vsub.f32 %v219, %v365
      %v367 = vand.u32 %v366, 4294901760
      %v368 = vsub.f32 %v366, %v367
      %v369 = vand.u32 %v368, 4294901760
      %370 = vmatpush.msra.mxu0 %v369
      %v371 = vand.u32 %v218, 4294901760
      %v372 = vsub.f32 %v218, %v371
      %v373 = vand.u32 %v372, 4294901760
      %v374 = vsub.f32 %v372, %v373
      %v375 = vand.u32 %v374, 4294901760
      %376 = vmatpush.msra.mxu0 %v375
      %v377 = vand.u32 %v217, 4294901760
      %v378 = vsub.f32 %v217, %v377
      %v379 = vand.u32 %v378, 4294901760
      %v380 = vsub.f32 %v378, %v379
      %v381 = vand.u32 %v380, 4294901760
      %382 = vmatpush.msra.mxu0 %v381
      %v383 = vand.u32 %v216, 4294901760
      %v384 = vsub.f32 %v216, %v383
      %v385 = vand.u32 %v384, 4294901760
      %v386 = vsub.f32 %v384, %v385
      %v387 = vand.u32 %v386, 4294901760
      %388 = vmatpush.msra.mxu0 %v387
      %v389 = vand.u32 %v215, 4294901760
      %v390 = vsub.f32 %v215, %v389
      %v391 = vand.u32 %v390, 4294901760
      %v392 = vsub.f32 %v390, %v391
      %v393 = vand.u32 %v392, 4294901760
      %394 = vmatpush.msra.mxu0 %v393
      %v395 = vand.u32 %v214, 4294901760
      %v396 = vsub.f32 %v214, %v395
      %v397 = vand.u32 %v396, 4294901760
      %v398 = vsub.f32 %v396, %v397
      %v399 = vand.u32 %v398, 4294901760
      %400 = vmatpush.msra.mxu0 %v399
      %v401 = vand.u32 %v208, 4294901760
      %402 = vmatmul.f32.gmra.mxu0 %v401
      %v403 = vpop.f32.mrf.mxu0
      %v404 = vadd.f32 %v287, %v403
      %v405 = vand.u32 %v210, 4294901760
      %406 = vmatmul.f32.gmra.mxu0 %v405
      %v407 = vpop.f32.mrf.mxu0
      %v408 = vadd.f32 %v295, %v407
      %v409 = vand.u32 %v212, 4294901760
      %410 = vmatmul.f32.gmra.mxu0 %v409
      %v411 = vpop.f32.mrf.mxu0
      %v412 = vadd.f32 %v303, %v411
      %413 = vdwg.mxu0
      %v414 = vand.u32 %v229, 4294901760
      %v415 = vsub.f32 %v229, %v414
      %416 = vmatpush.msra.mxu0 %v415
      %v417 = vand.u32 %v228, 4294901760
      %v418 = vsub.f32 %v228, %v417
      %419 = vmatpush.msra.mxu0 %v418
      %v420 = vand.u32 %v227, 4294901760
      %v421 = vsub.f32 %v227, %v420
      %422 = vmatpush.msra.mxu0 %v421
      %v423 = vand.u32 %v226, 4294901760
      %v424 = vsub.f32 %v226, %v423
      %425 = vmatpush.msra.mxu0 %v424
      %v426 = vand.u32 %v225, 4294901760
      %v427 = vsub.f32 %v225, %v426
      %428 = vmatpush.msra.mxu0 %v427
      %v429 = vand.u32 %v224, 4294901760
      %v430 = vsub.f32 %v224, %v429
      %431 = vmatpush.msra.mxu0 %v430
      %v432 = vand.u32 %v223, 4294901760
      %v433 = vsub.f32 %v223, %v432
      %434 = vmatpush.msra.mxu0 %v433
      %v435 = vand.u32 %v222, 4294901760
      %v436 = vsub.f32 %v222, %v435
      %437 = vmatpush.msra.mxu0 %v436
      %v438 = vand.u32 %v221, 4294901760
      %v439 = vsub.f32 %v221, %v438
      %440 = vmatpush.msra.mxu0 %v439
      %v441 = vand.u32 %v220, 4294901760
      %v442 = vsub.f32 %v220, %v441
      %443 = vmatpush.msra.mxu0 %v442
      %v444 = vand.u32 %v219, 4294901760
      %v445 = vsub.f32 %v219, %v444
      %446 = vmatpush.msra.mxu0 %v445
      %v447 = vand.u32 %v218, 4294901760
      %v448 = vsub.f32 %v218, %v447
      %449 = vmatpush.msra.mxu0 %v448
      %v450 = vand.u32 %v217, 4294901760
      %v451 = vsub.f32 %v217, %v450
      %452 = vmatpush.msra.mxu0 %v451
      %v453 = vand.u32 %v216, 4294901760
      %v454 = vsub.f32 %v216, %v453
      %455 = vmatpush.msra.mxu0 %v454
      %v456 = vand.u32 %v215, 4294901760
      %v457 = vsub.f32 %v215, %v456
      %458 = vmatpush.msra.mxu0 %v457
      %v459 = vand.u32 %v214, 4294901760
      %v460 = vsub.f32 %v214, %v459
      %461 = vmatpush.msra.mxu0 %v460
      %v462 = vand.u32 %v208, 4294901760
      %v463 = vsub.f32 %v208, %v462
      %464 = vmatmul.f32.gmra.mxu0 %v463
      %v465 = vpop.f32.mrf.mxu0
      %v466 = vadd.f32 %v404, %v465
      %v467 = vand.u32 %v210, 4294901760
      %v468 = vsub.f32 %v210, %v467
      %469 = vmatmul.f32.gmra.mxu0 %v468
      %v470 = vpop.f32.mrf.mxu0
      %v471 = vadd.f32 %v408, %v470
      %v472 = vand.u32 %v212, 4294901760
      %v473 = vsub.f32 %v212, %v472
      %474 = vmatmul.f32.gmra.mxu0 %v473
      %v475 = vpop.f32.mrf.mxu0
      %v476 = vadd.f32 %v412, %v475
      %477 = vdwg.mxu0
      %v478 = vand.u32 %v229, 4294901760
      %479 = vmatpush.msra.mxu0 %v478
      %v480 = vand.u32 %v228, 4294901760
      %481 = vmatpush.msra.mxu0 %v480
      %v482 = vand.u32 %v227, 4294901760
      %483 = vmatpush.msra.mxu0 %v482
      %v484 = vand.u32 %v226, 4294901760
      %485 = vmatpush.msra.mxu0 %v484
      %v486 = vand.u32 %v225, 4294901760
      %487 = vmatpush.msra.mxu0 %v486
      %v488 = vand.u32 %v224, 4294901760
      %489 = vmatpush.msra.mxu0 %v488
      %v490 = vand.u32 %v223, 4294901760
      %491 = vmatpush.msra.mxu0 %v490
      %v492 = vand.u32 %v222, 4294901760
      %493 = vmatpush.msra.mxu0 %v492
      %v494 = vand.u32 %v221, 4294901760
      %495 = vmatpush.msra.mxu0 %v494
      %v496 = vand.u32 %v220, 4294901760
      %497 = vmatpush.msra.mxu0 %v496
      %v498 = vand.u32 %v219, 4294901760
      %499 = vmatpush.msra.mxu0 %v498
      %v500 = vand.u32 %v218, 4294901760
      %501 = vmatpush.msra.mxu0 %v500
      %v502 = vand.u32 %v217, 4294901760
      %503 = vmatpush.msra.mxu0 %v502
      %v504 = vand.u32 %v216, 4294901760
      %505 = vmatpush.msra.mxu0 %v504
      %v506 = vand.u32 %v215, 4294901760
      %507 = vmatpush.msra.mxu0 %v506
      %v508 = vand.u32 %v214, 4294901760
      %509 = vmatpush.msra.mxu0 %v508
      %v510 = vand.u32 %v208, 4294901760
      %v511 = vsub.f32 %v208, %v510
      %v512 = vand.u32 %v511, 4294901760
      %513 = vmatmul.f32.gmra.mxu0 %v512
      %v514 = vpop.f32.mrf.mxu0
      %v515 = vadd.f32 %v466, %v514
      %v516 = vand.u32 %v210, 4294901760
      %v517 = vsub.f32 %v210, %v516
      %v518 = vand.u32 %v517, 4294901760
      %519 = vmatmul.f32.gmra.mxu0 %v518
      %v520 = vpop.f32.mrf.mxu0
      %v521 = vadd.f32 %v471, %v520
      %v522 = vand.u32 %v212, 4294901760
      %v523 = vsub.f32 %v212, %v522
      %v524 = vand.u32 %v523, 4294901760
      %525 = vmatmul.f32.gmra.mxu0 %v524
      %v526 = vpop.f32.mrf.mxu0
      %v527 = vadd.f32 %v476, %v526
      %528 = vdwg.mxu0
      %v529 = vand.u32 %v229, 4294901760
      %v530 = vsub.f32 %v229, %v529
      %v531 = vand.u32 %v530, 4294901760
      %532 = vmatpush.msra.mxu0 %v531
      %v533 = vand.u32 %v228, 4294901760
      %v534 = vsub.f32 %v228, %v533
      %v535 = vand.u32 %v534, 4294901760
      %536 = vmatpush.msra.mxu0 %v535
      %v537 = vand.u32 %v227, 4294901760
      %v538 = vsub.f32 %v227, %v537
      %v539 = vand.u32 %v538, 4294901760
      %540 = vmatpush.msra.mxu0 %v539
      %v541 = vand.u32 %v226, 4294901760
      %v542 = vsub.f32 %v226, %v541
      %v543 = vand.u32 %v542, 4294901760
      %544 = vmatpush.msra.mxu0 %v543
      %v545 = vand.u32 %v225, 4294901760
      %v546 = vsub.f32 %v225, %v545
      %v547 = vand.u32 %v546, 4294901760
      %548 = vmatpush.msra.mxu0 %v547
      %v549 = vand.u32 %v224, 4294901760
      %v550 = vsub.f32 %v224, %v549
      %v551 = vand.u32 %v550, 4294901760
      %552 = vmatpush.msra.mxu0 %v551
      %v553 = vand.u32 %v223, 4294901760
      %v554 = vsub.f32 %v223, %v553
      %v555 = vand.u32 %v554, 4294901760
      %556 = vmatpush.msra.mxu0 %v555
      %v557 = vand.u32 %v222, 4294901760
      %v558 = vsub.f32 %v222, %v557
      %v559 = vand.u32 %v558, 4294901760
      %560 = vmatpush.msra.mxu0 %v559
      %v561 = vand.u32 %v221, 4294901760
      %v562 = vsub.f32 %v221, %v561
      %v563 = vand.u32 %v562, 4294901760
      %564 = vmatpush.msra.mxu0 %v563
      %v565 = vand.u32 %v220, 4294901760
      %v566 = vsub.f32 %v220, %v565
      %v567 = vand.u32 %v566, 4294901760
      %568 = vmatpush.msra.mxu0 %v567
      %v569 = vand.u32 %v219, 4294901760
      %v570 = vsub.f32 %v219, %v569
      %v571 = vand.u32 %v570, 4294901760
      %572 = vmatpush.msra.mxu0 %v571
      %v573 = vand.u32 %v218, 4294901760
      %v574 = vsub.f32 %v218, %v573
      %v575 = vand.u32 %v574, 4294901760
      %576 = vmatpush.msra.mxu0 %v575
      %v577 = vand.u32 %v217, 4294901760
      %v578 = vsub.f32 %v217, %v577
      %v579 = vand.u32 %v578, 4294901760
      %580 = vmatpush.msra.mxu0 %v579
      %v581 = vand.u32 %v216, 4294901760
      %v582 = vsub.f32 %v216, %v581
      %v583 = vand.u32 %v582, 4294901760
      %584 = vmatpush.msra.mxu0 %v583
      %v585 = vand.u32 %v215, 4294901760
      %v586 = vsub.f32 %v215, %v585
      %v587 = vand.u32 %v586, 4294901760
      %588 = vmatpush.msra.mxu0 %v587
      %v589 = vand.u32 %v214, 4294901760
      %v590 = vsub.f32 %v214, %v589
      %v591 = vand.u32 %v590, 4294901760
      %592 = vmatpush.msra.mxu0 %v591
      %v593 = vand.u32 %v208, 4294901760
      %594 = vmatmul.f32.gmra.mxu0 %v593
      %v595 = vpop.f32.mrf.mxu0
      %v596 = vadd.f32 %v515, %v595
      %v597 = vand.u32 %v210, 4294901760
      %598 = vmatmul.f32.gmra.mxu0 %v597
      %v599 = vpop.f32.mrf.mxu0
      %v600 = vadd.f32 %v521, %v599
      %v601 = vand.u32 %v212, 4294901760
      %602 = vmatmul.f32.gmra.mxu0 %v601
      %v603 = vpop.f32.mrf.mxu0
      %v604 = vadd.f32 %v527, %v603
      %605 = vdwg.mxu0
      %v606 = vand.u32 %v229, 4294901760
      %607 = vmatpush.msra.mxu0 %v606
      %v608 = vand.u32 %v228, 4294901760
      %609 = vmatpush.msra.mxu0 %v608
      %v610 = vand.u32 %v227, 4294901760
      %611 = vmatpush.msra.mxu0 %v610
      %v612 = vand.u32 %v226, 4294901760
      %613 = vmatpush.msra.mxu0 %v612
      %v614 = vand.u32 %v225, 4294901760
      %615 = vmatpush.msra.mxu0 %v614
      %v616 = vand.u32 %v224, 4294901760
      %617 = vmatpush.msra.mxu0 %v616
      %v618 = vand.u32 %v223, 4294901760
      %619 = vmatpush.msra.mxu0 %v618
      %v620 = vand.u32 %v222, 4294901760
      %621 = vmatpush.msra.mxu0 %v620
      %v622 = vand.u32 %v221, 4294901760
      %623 = vmatpush.msra.mxu0 %v622
      %v624 = vand.u32 %v220, 4294901760
      %625 = vmatpush.msra.mxu0 %v624
      %v626 = vand.u32 %v219, 4294901760
      %627 = vmatpush.msra.mxu0 %v626
      %v628 = vand.u32 %v218, 4294901760
      %629 = vmatpush.msra.mxu0 %v628
      %v630 = vand.u32 %v217, 4294901760
      %631 = vmatpush.msra.mxu0 %v630
      %v632 = vand.u32 %v216, 4294901760
      %633 = vmatpush.msra.mxu0 %v632
      %v634 = vand.u32 %v215, 4294901760
      %635 = vmatpush.msra.mxu0 %v634
      %v636 = vand.u32 %v214, 4294901760
      %637 = vmatpush.msra.mxu0 %v636
      %v638 = vand.u32 %v208, 4294901760
      %639 = vmatmul.f32.gmra.mxu0 %v638
      %v640 = vpop.f32.mrf.mxu0
      %v641 = vadd.f32 %v596, %v640
      %v642 = vand.u32 %v210, 4294901760
      %643 = vmatmul.f32.gmra.mxu0 %v642
      %v644 = vpop.f32.mrf.mxu0
      %v645 = vadd.f32 %v600, %v644
      %v646 = vand.u32 %v212, 4294901760
      %647 = vmatmul.f32.gmra.mxu0 %v646
      %v648 = vpop.f32.mrf.mxu0
      %v649 = vadd.f32 %v604, %v648
      %650 = vdwg.mxu0
      %651 = vmatpush.msra.mxu0 0.0
      %652 = vmatpush.msra.mxu0 0.0
      %653 = vmatpush.msra.mxu0 0.0
      %654 = vmatpush.msra.mxu0 0.0
      %655 = vmatpush.msra.mxu0 0.0
      %656 = vmatpush.msra.mxu0 0.0
      %657 = vmatpush.msra.mxu0 0.0
      %658 = vmatpush.msra.mxu0 0.0
      %659 = vmatpush.msra.mxu0 0.0
      %660 = vmatpush.msra.mxu0 0.0
      %661 = vmatpush.msra.mxu0 0.0
      %662 = vmatpush.msra.mxu0 0.0
      %v663 = vand.u32 %v233, 4294901760
      %664 = vmatpush.msra.mxu0 %v663
      %v665 = vand.u32 %v232, 4294901760
      %666 = vmatpush.msra.mxu0 %v665
      %v667 = vand.u32 %v231, 4294901760
      %668 = vmatpush.msra.mxu0 %v667
      %v669 = vand.u32 %v230, 4294901760
      %670 = vmatpush.msra.mxu0 %v669
      %v671 = vand.u32 %v240, 4294901760
      %v672 = vsub.f32 %v240, %v671
      %v673 = vand.u32 %v672, 4294901760
      %v674 = vsub.f32 %v672, %v673
      %v675 = vand.u32 %v674, 4294901760
      %676 = vmatmul.f32.gmra.mxu0 %v675
      %v677 = vpop.f32.mrf.mxu0
      %v678 = vadd.f32 %v641, %v677
      %v679 = vand.u32 %v243, 4294901760
      %v680 = vsub.f32 %v243, %v679
      %v681 = vand.u32 %v680, 4294901760
      %v682 = vsub.f32 %v680, %v681
      %v683 = vand.u32 %v682, 4294901760
      %684 = vmatmul.f32.gmra.mxu0 %v683
      %v685 = vpop.f32.mrf.mxu0
      %v686 = vadd.f32 %v645, %v685
      %v687 = vand.u32 %v246, 4294901760
      %v688 = vsub.f32 %v246, %v687
      %v689 = vand.u32 %v688, 4294901760
      %v690 = vsub.f32 %v688, %v689
      %v691 = vand.u32 %v690, 4294901760
      %692 = vmatmul.f32.gmra.mxu0 %v691
      %v693 = vpop.f32.mrf.mxu0
      %v694 = vadd.f32 %v649, %v693
      %695 = vdwg.mxu0
      %696 = vmatpush.msra.mxu0 0.0
      %697 = vmatpush.msra.mxu0 0.0
      %698 = vmatpush.msra.mxu0 0.0
      %699 = vmatpush.msra.mxu0 0.0
      %700 = vmatpush.msra.mxu0 0.0
      %701 = vmatpush.msra.mxu0 0.0
      %702 = vmatpush.msra.mxu0 0.0
      %703 = vmatpush.msra.mxu0 0.0
      %704 = vmatpush.msra.mxu0 0.0
      %705 = vmatpush.msra.mxu0 0.0
      %706 = vmatpush.msra.mxu0 0.0
      %707 = vmatpush.msra.mxu0 0.0
      %v708 = vand.u32 %v233, 4294901760
      %v709 = vsub.f32 %v233, %v708
      %v710 = vand.u32 %v709, 4294901760
      %v711 = vsub.f32 %v709, %v710
      %v712 = vand.u32 %v711, 4294901760
      %713 = vmatpush.msra.mxu0 %v712
      %v714 = vand.u32 %v232, 4294901760
      %v715 = vsub.f32 %v232, %v714
      %v716 = vand.u32 %v715, 4294901760
      %v717 = vsub.f32 %v715, %v716
      %v718 = vand.u32 %v717, 4294901760
      %719 = vmatpush.msra.mxu0 %v718
      %v720 = vand.u32 %v231, 4294901760
      %v721 = vsub.f32 %v231, %v720
      %v722 = vand.u32 %v721, 4294901760
      %v723 = vsub.f32 %v721, %v722
      %v724 = vand.u32 %v723, 4294901760
      %725 = vmatpush.msra.mxu0 %v724
      %v726 = vand.u32 %v230, 4294901760
      %v727 = vsub.f32 %v230, %v726
      %v728 = vand.u32 %v727, 4294901760
      %v729 = vsub.f32 %v727, %v728
      %v730 = vand.u32 %v729, 4294901760
      %731 = vmatpush.msra.mxu0 %v730
      %v732 = vand.u32 %v240, 4294901760
      %733 = vmatmul.f32.gmra.mxu0 %v732
      %v734 = vpop.f32.mrf.mxu0
      %v735 = vadd.f32 %v678, %v734
      %v736 = vand.u32 %v243, 4294901760
      %737 = vmatmul.f32.gmra.mxu0 %v736
      %v738 = vpop.f32.mrf.mxu0
      %v739 = vadd.f32 %v686, %v738
      %v740 = vand.u32 %v246, 4294901760
      %741 = vmatmul.f32.gmra.mxu0 %v740
      %v742 = vpop.f32.mrf.mxu0
      %v743 = vadd.f32 %v694, %v742
      %744 = vdwg.mxu0
      %745 = vmatpush.msra.mxu0 0.0
      %746 = vmatpush.msra.mxu0 0.0
      %747 = vmatpush.msra.mxu0 0.0
      %748 = vmatpush.msra.mxu0 0.0
      %749 = vmatpush.msra.mxu0 0.0
      %750 = vmatpush.msra.mxu0 0.0
      %751 = vmatpush.msra.mxu0 0.0
      %752 = vmatpush.msra.mxu0 0.0
      %753 = vmatpush.msra.mxu0 0.0
      %754 = vmatpush.msra.mxu0 0.0
      %755 = vmatpush.msra.mxu0 0.0
      %756 = vmatpush.msra.mxu0 0.0
      %v757 = vand.u32 %v233, 4294901760
      %v758 = vsub.f32 %v233, %v757
      %759 = vmatpush.msra.mxu0 %v758
      %v760 = vand.u32 %v232, 4294901760
      %v761 = vsub.f32 %v232, %v760
      %762 = vmatpush.msra.mxu0 %v761
      %v763 = vand.u32 %v231, 4294901760
      %v764 = vsub.f32 %v231, %v763
      %765 = vmatpush.msra.mxu0 %v764
      %v766 = vand.u32 %v230, 4294901760
      %v767 = vsub.f32 %v230, %v766
      %768 = vmatpush.msra.mxu0 %v767
      %v769 = vand.u32 %v240, 4294901760
      %v770 = vsub.f32 %v240, %v769
      %771 = vmatmul.f32.gmra.mxu0 %v770
      %v772 = vpop.f32.mrf.mxu0
      %v773 = vadd.f32 %v735, %v772
      %v774 = vand.u32 %v243, 4294901760
      %v775 = vsub.f32 %v243, %v774
      %776 = vmatmul.f32.gmra.mxu0 %v775
      %v777 = vpop.f32.mrf.mxu0
      %v778 = vadd.f32 %v739, %v777
      %v779 = vand.u32 %v246, 4294901760
      %v780 = vsub.f32 %v246, %v779
      %781 = vmatmul.f32.gmra.mxu0 %v780
      %v782 = vpop.f32.mrf.mxu0
      %v783 = vadd.f32 %v743, %v782
      %784 = vdwg.mxu0
      %785 = vmatpush.msra.mxu0 0.0
      %786 = vmatpush.msra.mxu0 0.0
      %787 = vmatpush.msra.mxu0 0.0
      %788 = vmatpush.msra.mxu0 0.0
      %789 = vmatpush.msra.mxu0 0.0
      %790 = vmatpush.msra.mxu0 0.0
      %791 = vmatpush.msra.mxu0 0.0
      %792 = vmatpush.msra.mxu0 0.0
      %793 = vmatpush.msra.mxu0 0.0
      %794 = vmatpush.msra.mxu0 0.0
      %795 = vmatpush.msra.mxu0 0.0
      %796 = vmatpush.msra.mxu0 0.0
      %v797 = vand.u32 %v233, 4294901760
      %798 = vmatpush.msra.mxu0 %v797
      %v799 = vand.u32 %v232, 4294901760
      %800 = vmatpush.msra.mxu0 %v799
      %v801 = vand.u32 %v231, 4294901760
      %802 = vmatpush.msra.mxu0 %v801
      %v803 = vand.u32 %v230, 4294901760
      %804 = vmatpush.msra.mxu0 %v803
      %v805 = vand.u32 %v240, 4294901760
      %v806 = vsub.f32 %v240, %v805
      %v807 = vand.u32 %v806, 4294901760
      %808 = vmatmul.f32.gmra.mxu0 %v807
      %v809 = vpop.f32.mrf.mxu0
      %v810 = vadd.f32 %v773, %v809
      %v811 = vand.u32 %v243, 4294901760
      %v812 = vsub.f32 %v243, %v811
      %v813 = vand.u32 %v812, 4294901760
      %814 = vmatmul.f32.gmra.mxu0 %v813
      %v815 = vpop.f32.mrf.mxu0
      %v816 = vadd.f32 %v778, %v815
      %v817 = vand.u32 %v246, 4294901760
      %v818 = vsub.f32 %v246, %v817
      %v819 = vand.u32 %v818, 4294901760
      %820 = vmatmul.f32.gmra.mxu0 %v819
      %v821 = vpop.f32.mrf.mxu0
      %v822 = vadd.f32 %v783, %v821
      %823 = vdwg.mxu0
      %824 = vmatpush.msra.mxu0 0.0
      %825 = vmatpush.msra.mxu0 0.0
      %826 = vmatpush.msra.mxu0 0.0
      %827 = vmatpush.msra.mxu0 0.0
      %828 = vmatpush.msra.mxu0 0.0
      %829 = vmatpush.msra.mxu0 0.0
      %830 = vmatpush.msra.mxu0 0.0
      %831 = vmatpush.msra.mxu0 0.0
      %832 = vmatpush.msra.mxu0 0.0
      %833 = vmatpush.msra.mxu0 0.0
      %834 = vmatpush.msra.mxu0 0.0
      %835 = vmatpush.msra.mxu0 0.0
      %v836 = vand.u32 %v233, 4294901760
      %v837 = vsub.f32 %v233, %v836
      %v838 = vand.u32 %v837, 4294901760
      %839 = vmatpush.msra.mxu0 %v838
      %v840 = vand.u32 %v232, 4294901760
      %v841 = vsub.f32 %v232, %v840
      %v842 = vand.u32 %v841, 4294901760
      %843 = vmatpush.msra.mxu0 %v842
      %v844 = vand.u32 %v231, 4294901760
      %v845 = vsub.f32 %v231, %v844
      %v846 = vand.u32 %v845, 4294901760
      %847 = vmatpush.msra.mxu0 %v846
      %v848 = vand.u32 %v230, 4294901760
      %v849 = vsub.f32 %v230, %v848
      %v850 = vand.u32 %v849, 4294901760
      %851 = vmatpush.msra.mxu0 %v850
      %v852 = vand.u32 %v240, 4294901760
      %853 = vmatmul.f32.gmra.mxu0 %v852
      %v854 = vpop.f32.mrf.mxu0
      %v855 = vadd.f32 %v810, %v854
      %v856 = vand.u32 %v243, 4294901760
      %857 = vmatmul.f32.gmra.mxu0 %v856
      %v858 = vpop.f32.mrf.mxu0
      %v859 = vadd.f32 %v816, %v858
      %v860 = vand.u32 %v246, 4294901760
      %861 = vmatmul.f32.gmra.mxu0 %v860
      %v862 = vpop.f32.mrf.mxu0
      %v863 = vadd.f32 %v822, %v862
      %864 = vdwg.mxu0
      %865 = vmatpush.msra.mxu0 0.0
      %866 = vmatpush.msra.mxu0 0.0
      %867 = vmatpush.msra.mxu0 0.0
      %868 = vmatpush.msra.mxu0 0.0
      %869 = vmatpush.msra.mxu0 0.0
      %870 = vmatpush.msra.mxu0 0.0
      %871 = vmatpush.msra.mxu0 0.0
      %872 = vmatpush.msra.mxu0 0.0
      %873 = vmatpush.msra.mxu0 0.0
      %874 = vmatpush.msra.mxu0 0.0
      %875 = vmatpush.msra.mxu0 0.0
      %876 = vmatpush.msra.mxu0 0.0
      %v877 = vand.u32 %v233, 4294901760
      %878 = vmatpush.msra.mxu0 %v877
      %v879 = vand.u32 %v232, 4294901760
      %880 = vmatpush.msra.mxu0 %v879
      %v881 = vand.u32 %v231, 4294901760
      %882 = vmatpush.msra.mxu0 %v881
      %v883 = vand.u32 %v230, 4294901760
      %884 = vmatpush.msra.mxu0 %v883
      %v885 = vand.u32 %v240, 4294901760
      %886 = vmatmul.f32.gmra.mxu0 %v885
      %v887 = vpop.f32.mrf.mxu0
      %v888 = vadd.f32 %v855, %v887
      %v889 = vand.u32 %v243, 4294901760
      %890 = vmatmul.f32.gmra.mxu0 %v889
      %v891 = vpop.f32.mrf.mxu0
      %v892 = vadd.f32 %v859, %v891
      %v893 = vand.u32 %v246, 4294901760
      %894 = vmatmul.f32.gmra.mxu0 %v893
      %v895 = vpop.f32.mrf.mxu0
      %v896 = vadd.f32 %v863, %v895
      %897 = vdwg.mxu0
      %vm898 = vcmask 326656
      %899 = vst.msk [vmem:[%s200] sm:$0xff] %vm898, %v888
      %900 = vst.msk [vmem:[%s200 + $0x8] sm:$0xff] %vm898, %v892
      %901 = vst.msk [vmem:[%s200 + $0x10] sm:$0xff] %vm898, %v896
      %s902 = smul.u32 %s16, 24
      %v903 = vlaneseq
      %v904 = vshrl.u32 %v903, 7
      %v905 = vadd.s32 %v904, 8
      %v906 = vadd.s32 %v904, 16
      %v907 = vstv %s902
      %v908 = vadd.s32 %v907, %v904
      %v909 = vadd.s32 %v907, %v905
      %v910 = vadd.s32 %v907, %v906
      %vm911 = vcmp.lt.s32.totalorder %v908, 32
      %vm912 = vcmp.lt.s32.totalorder %v909, 32
      %vm913 = vcmp.lt.s32.totalorder %v910, 32
      %v914 = vsel %vm911, 1, 0
      %v915 = vsel %vm912, 1, 0
      %v916 = vsel %vm913, 1, 0
      %v917 = vcvt.s32.f32 %v914
      %v918 = vcvt.s32.f32 %v915
      %v919 = vcvt.s32.f32 %v916
      %v920 = vmul.f32 %v888, %v917
      %v921 = vmul.f32 %v892, %v918
      %v922 = vmul.f32 %v896, %v919
      %v923 = vld [vmem:[%s4] sm:$0x1]
      %v924 = vsel %vm898, %v920, 0.0
      %v925 = vsel %vm898, %v921, 0.0
      %v926 = vadd.f32 %v924, %v925
      %v927 = vsel %vm898, %v922, 0.0
      %v928 = vadd.f32 %v926, %v927
      %v929 = vrot.slane %v928, 4
      %v930 = vadd.f32 %v928, %v929
      %v931 = vrot.slane %v930, 2
      %v932 = vadd.f32 %v930, %v931
      %v933 = vrot.slane %v932, 1
      %v934 = vadd.f32 %v932, %v933
      %v935 = vadd.f32 %v923, %v934
      %vm936 = vcmask 319488
      %937 = vst.msk [vmem:[%s4] sm:$0x1] %vm936, %v935
      %v938 = vld [vmem:[%s4 + $0x1] sm:$0x1]
      %v939 = vmul.f32 %v920, %v888
      %v940 = vmul.f32 %v921, %v892
      %v941 = vmul.f32 %v922, %v896
      %v942 = vsel %vm898, %v939, 0.0
      %v943 = vsel %vm898, %v940, 0.0
      %v944 = vadd.f32 %v942, %v943
      %v945 = vsel %vm898, %v941, 0.0
      %v946 = vadd.f32 %v944, %v945
      %v947 = vrot.slane %v946, 4
      %v948 = vadd.f32 %v946, %v947
      %v949 = vrot.slane %v948, 2
      %v950 = vadd.f32 %v948, %v949
      %v951 = vrot.slane %v950, 1
      %v952 = vadd.f32 %v950, %v951
      %v953 = vadd.f32 %v938, %v952
      %954 = vst.msk [vmem:[%s4 + $0x1] sm:$0x1] %vm936, %v953
      %s955 = smul.u32 3, %s16
      %p956 = scmp.lt.s32.totalorder %s955, 5
      %s957 = scalar_select %p956, %s955, 5
      %s958 = smul.addr %s957, 8
      %s959 = scalar_lea.vmem %s3, %s958
      // Predicated region
      $region37: #{_lambda_.35} parent=31 // pred_check
        %p960 = pneg %p102
      $region38: #{_lambda_.35} parent=31 // pred_check_branch
        %962 = sbr.rel (%p960) target = $region40
      $region39: #{_lambda_.35} parent=31 // pred_region
        %s963 = smul.u32 3, %s16
      $region40: #{_lambda_.35} parent=31 // pred_fallthru
        _
      // Predicated region
      $region41: #{_lambda_.35} parent=31 // pred_check
        %p964 = pneg %p123
      $region42: #{_lambda_.35} parent=31 // pred_check_branch
        %966 = sbr.rel (%p964) target = $region44
      $region43: #{_lambda_.35} parent=31 // pred_region
        _
      $region44: #{_lambda_.35} parent=31 // pred_fallthru
        _
      // Predicated region
      $region45: #{_lambda_.35} parent=31 // pred_check
        %p967 = pneg %p123
      $region46: #{_lambda_.35} parent=31 // pred_check_branch
        %969 = sbr.rel (%p967) target = $region48
      $region47: #{_lambda_.35} parent=31 // pred_region
        _
      $region48: #{_lambda_.35} parent=31 // pred_fallthru
        _
    $region32: #{_lambda_.35} parent=5 // pred_fallthru
      _
    %p970 = scmp.le.s32.totalorder 2, %s11
    // Predicated region
    $region49: #{_lambda_.35} parent=5 // pred_check
      %p971 = pneg %p970
    $region50: #{_lambda_.35} parent=5 // pred_check_branch
      %973 = sbr.rel (%p971) target = $region52
    $region51: #{_lambda_.35} parent=5 // pred_region
      %s974 = ssub.s32 %s11, 2
      // Predicated region
      $region53: #{_lambda_.35} parent=51 // pred_check
        %p975 = pneg %p108
      $region54: #{_lambda_.35} parent=51 // pred_check_branch
        %977 = sbr.rel (%p975) target = $region56
      $region55: #{_lambda_.35} parent=51 // pred_region
        %s978 = smul.u32 3, %s17
        %p979 = scmp.lt.s32.totalorder %s978, 5
        %s980 = scalar_select %p979, %s978, 5
        %s981 = smul.addr %s980, 8
        %s982 = scalar_lea.vmem %s3, %s981
      $region56: #{_lambda_.35} parent=51 // pred_fallthru
        _
    $region52: #{_lambda_.35} parent=5 // pred_fallthru
      _
  $region6: #{_lambda_.35} parent=0 // loop_footer
    %s15 = sadd.s32 1, %s11
  $region7: #{_lambda_.35} parent=0 // loop_footer_branch
    %10 = sbr.rel target = $region3
  $region8: #{_lambda_.35} parent=0 // loop_exit
    _

// kernel: _lambda_.37
$region0: #{_lambda_.37}
  #allocation0 [shape = 'u32[]', space=smem, size = 0x4, offset = 0x4, fixed_abs, tag = 'smem constant byte address 0x4 - core index']
  #allocation1 [shape = 'u32[72,128]{1,0:T(1,128)}', space=vmem, size = 0x9000, scoped, tag = 'internal scratch']
  #allocation2 [shape = 'f32[1,1]{1,0:T(1,128)S(1)}', space=vmem, size = 0x200, scoped, tag = 'scoped memory for _lambda_.37']
  %s0 = inlined_call_operand.vmem [shape: f32[2,16,320], index: 0, kind: input, shape index: {}]
  %s1 = inlined_call_operand.vmem [shape: f32[1,320], index: 1, kind: input, shape index: {}]
  %s2 = inlined_call_operand.<no memory space> [shape: f32[1,1], index: 2, kind: input, shape index: {}]
  %s3 = inlined_call_operand.hbm [shape: f32[2,1,16], index: 3, kind: output, shape index: {}]
  %s4 = sld [smem:[#allocation0]]
  $region45: #{_lambda_.37} parent=0
    _
  %s6 = ssub.s32 1, %s4
  %s7 = scalar_select 0, %s6, %s4
  %v8 = vstv %s2
  %9 = vst [vmem:[#allocation2] sm:$0x1] %v8
  $region1: #{_lambda_.37} parent=0
    #allocation3 [shape = 'u8[1024]{0}', space=vmem, size = 0x400, scoped, tag = 'output window, operand 0']
    #allocation4 [shape = 's32[2]{0}', space=sflag, size = 0x8, scoped, tag = 'scoped memory for _lambda_.37']
    %10 = vsyncpa [#allocation4], 0
    %s11 = scalar_lea.sflag [#allocation4], 1
    %12 = vsyncpa %s11, 0
    loop: start=0, step=1, limit=4
    $region2: #{_lambda_.37} parent=1 // loop_pre_header
      _
    $region3: #{_lambda_.37} parent=1 // loop_header
      %s14 = sphi 0, %s18
      %p15 = scmp.ge.s32.totalorder %s14, 4
      %s24 = sphi 0, %s26
      %s27 = sphi 0, %s24
      %s28 = sphi 0, %s27
      %s44 = sphi 0, %s28
      %s48 = sphi 0, %s48
      %s50 = sphi 0, %s48
      %s51 = sphi 0, %s50
      %s65 = sphi 0, %s51
      %s69 = sphi 0, %s69
      %s71 = sphi 0, %s69
      %s72 = sphi 0, %s71
      %s86 = sphi 0, %s72
      %s92 = sphi 0, %s94
      %s95 = sphi 0, %s92
      %s96 = sphi 0, %s95
      %s112 = sphi 0, %s96
    $region4: #{_lambda_.37} parent=1 // loop_header_branch
      %17 = sbr.rel (%p15) target = $region8
    $region5: #{_lambda_.37} parent=1 // loop_body
      %s19 = ssub.s32 %s14, 1
      %s20 = ssub.s32 %s14, 2
      %s21 = sadd.s32 %s14, 1
      %s22 = ssub.s32 %s14, %s21
      %p23 = scmp.eq.s32.totalorder %s22, 0
      %s25 = sadd.s32 %s24, 1
      %s26 = scalar_select %p23, %s24, %s25
      %p29 = pneg %p23
      %p30 = scmp.eq.s32.totalorder %s14, 1
      %p31 = por %p29, %p30
      %p32 = scmp.ne.s32.totalorder %s24, %s27
      %p33 = scmp.eq.s32.totalorder %s14, 0
      %p34 = por %p32, %p33
      %p35 = scmp.ne.s32.totalorder %s24, %s27
      %p36 = scmp.eq.s32.totalorder %s19, 1
      %p37 = por %p35, %p36
      %p38 = scmp.ne.s32.totalorder %s27, %s28
      %p39 = scmp.eq.s32.totalorder %s19, 0
      %p40 = por %p38, %p39
      %p41 = scmp.ne.s32.totalorder %s27, %s28
      %p42 = scmp.eq.s32.totalorder %s20, 1
      %p43 = por %p41, %p42
      %p45 = scmp.ne.s32.totalorder %s28, %s44
      %p46 = scmp.eq.s32.totalorder %s20, 0
      %p47 = por %p45, %p46
      %s49 = sadd.s32 %s48, 1
      %p52 = scmp.eq.s32.totalorder %s14, 1
      %p53 = scmp.ne.s32.totalorder %s48, %s50
      %p54 = scmp.eq.s32.totalorder %s14, 0
      %p55 = por %p53, %p54
      %p56 = scmp.ne.s32.totalorder %s48, %s50
      %p57 = scmp.eq.s32.totalorder %s19, 1
      %p58 = por %p56, %p57
      %p59 = scmp.ne.s32.totalorder %s50, %s51
      %p60 = scmp.eq.s32.totalorder %s19, 0
      %p61 = por %p59, %p60
      %p62 = scmp.ne.s32.totalorder %s50, %s51
      %p63 = scmp.eq.s32.totalorder %s20, 1
      %p64 = por %p62, %p63
      %p66 = scmp.ne.s32.totalorder %s51, %s65
      %p67 = scmp.eq.s32.totalorder %s20, 0
      %p68 = por %p66, %p67
      %s70 = sadd.s32 %s69, 1
      %p73 = scmp.eq.s32.totalorder %s14, 1
      %p74 = scmp.ne.s32.totalorder %s69, %s71
      %p75 = scmp.eq.s32.totalorder %s14, 0
      %p76 = por %p74, %p75
      %p77 = scmp.ne.s32.totalorder %s69, %s71
      %p78 = scmp.eq.s32.totalorder %s19, 1
      %p79 = por %p77, %p78
      %p80 = scmp.ne.s32.totalorder %s71, %s72
      %p81 = scmp.eq.s32.totalorder %s19, 0
      %p82 = por %p80, %p81
      %p83 = scmp.ne.s32.totalorder %s71, %s72
      %p84 = scmp.eq.s32.totalorder %s20, 1
      %p85 = por %p83, %p84
      %p87 = scmp.ne.s32.totalorder %s72, %s86
      %p88 = scmp.eq.s32.totalorder %s20, 0
      %p89 = por %p87, %p88
      %s90 = ssub.s32 %s14, %s21
      %p91 = scmp.eq.s32.totalorder %s90, 0
      %s93 = sadd.s32 %s92, 1
      %s94 = scalar_select %p91, %s92, %s93
      %p97 = pneg %p91
      %p98 = scmp.eq.s32.totalorder %s14, 1
      %p99 = por %p97, %p98
      %p100 = scmp.ne.s32.totalorder %s92, %s95
      %p101 = scmp.eq.s32.totalorder %s14, 0
      %p102 = por %p100, %p101
      %p103 = scmp.ne.s32.totalorder %s92, %s95
      %p104 = scmp.eq.s32.totalorder %s19, 1
      %p105 = por %p103, %p104
      %p106 = scmp.ne.s32.totalorder %s95, %s96
      %p107 = scmp.eq.s32.totalorder %s19, 0
      %p108 = por %p106, %p107
      %p109 = scmp.ne.s32.totalorder %s95, %s96
      %p110 = scmp.eq.s32.totalorder %s20, 1
      %p111 = por %p109, %p110
      %p113 = scmp.ne.s32.totalorder %s96, %s112
      %p114 = scmp.eq.s32.totalorder %s20, 0
      %p115 = por %p113, %p114
      %p116 = scmp.le.s32.totalorder 1, %s14
      %p117 = scmp.lt.s32.totalorder %s14, 3
      %p118 = pnand %p116, %p117
      %p119 = pneg %p118
      // Predicated region
      $region9: #{_lambda_.37} parent=5 // pred_check
        _
      $region10: #{_lambda_.37} parent=5 // pred_check_branch
        %121 = sbr.rel (%p118) target = $region12
      $region11: #{_lambda_.37} parent=5 // pred_region
        %s122 = ssub.s32 %s14, 1
        // Predicated region
        $region13: #{_lambda_.37} parent=11 // pred_check
          %p123 = pneg %p61
        $region14: #{_lambda_.37} parent=11 // pred_check_branch
          %125 = sbr.rel (%p123) target = $region16
        $region15: #{_lambda_.37} parent=11 // pred_region
          _
        $region16: #{_lambda_.37} parent=11 // pred_fallthru
          _
        // Predicated region
        $region17: #{_lambda_.37} parent=11 // pred_check
          %p126 = pneg %p82
        $region18: #{_lambda_.37} parent=11 // pred_check_branch
          %128 = sbr.rel (%p126) target = $region20
        $region19: #{_lambda_.37} parent=11 // pred_region
          _
        $region20: #{_lambda_.37} parent=11 // pred_fallthru
          _
      $region12: #{_lambda_.37} parent=5 // pred_fallthru
        _
      %p129 = scmp.lt.s32.totalorder %s14, 2
      // Predicated region
      $region21: #{_lambda_.37} parent=5 // pred_check
        %p130 = pneg %p129
      $region22: #{_lambda_.37} parent=5 // pred_check_branch
        %132 = sbr.rel (%p130) target = $region24
      $region23: #{_lambda_.37} parent=5 // pred_region
        // Predicated region
        $region25: #{_lambda_.37} parent=23 // pred_check
          %p133 = pneg %p34
        $region26: #{_lambda_.37} parent=23 // pred_check_branch
          %135 = sbr.rel (%p133) target = $region28
        $region27: #{_lambda_.37} parent=23 // pred_region
          %p136 = scmp.lt.s32.totalorder %s14, 1
          %s137 = scalar_select %p136, %s14, 1
          %s138 = smul.addr %s137, 6
          %s139 = smul.addr %s138, 8
          %s140 = scalar_lea.vmem %s0, %s139
        $region28: #{_lambda_.37} parent=23 // pred_fallthru
          _
      $region24: #{_lambda_.37} parent=5 // pred_fallthru
        _
      %p141 = scmp.le.s32.totalorder 1, %s14
      %p142 = scmp.lt.s32.totalorder %s14, 3
      %p143 = pnand %p141, %p142
      %p144 = pneg %p143
      // Predicated region
      $region29: #{_lambda_.37} parent=5 // pred_check
        _
      $region30: #{_lambda_.37} parent=5 // pred_check_branch
        %146 = sbr.rel (%p143) target = $region32
      $region31: #{_lambda_.37} parent=5 // pred_region
        %s147 = ssub.s32 %s14, 1
        %p148 = scmp.lt.s32.totalorder %s19, 1
        %s149 = scalar_select %p148, %s19, 1
        %s150 = smul.addr %s149, 6
        %s151 = smul.addr %s150, 8
        %s152 = scalar_lea.vmem %s0, %s151
        %p153 = pneg %p40
        %p154 = pneg %p37
        %p155 = pneg %p61
        %p156 = pneg %p58
        %p157 = pneg %p82
        %p158 = pneg %p79
        %p159 = pneg %p108
        %p160 = pneg %p105
        %s161 = sand.u32 %s95, 1
        %s162 = scalar_lea.sflag [#allocation4], %s161
        %s163 = sand.u32 %s95, 1
        %s164 = scalar_lea.vmem [#allocation3], %s163
        %p165 = scmp.lt.s32.totalorder %s19, 1
        %s166 = scalar_select %p165, %s19, 1
        %s167 = smul.addr %s166, 6
        %s168 = smul.addr %s167, 8
        %s169 = scalar_lea.vmem %s0, %s168
        %v170 = vld [vmem:[%s169] sm:$0xff]
        %v171 = vld [vmem:[%s169 + $0x8] sm:$0xff]
        %v172 = vld [vmem:[%s169 + $0x10] sm:$0xff]
        %v173 = vld [vmem:[%s169 + $0x18] sm:$0xff]
        %v174 = vld [vmem:[%s169 + $0x20] sm:$0xff]
        %v175 = vld [vmem:[%s169 + $0x28] sm:$0xff]
        %v176 = vld [vmem:[%s1] sm:$0x7]
        %v178 = vperm.slane %v176, 0
        %v179 = vperm.slane %v176, 1
        %v180 = vperm.slane %v176, 2
        %v184 = vmul.f32 %v170, %v178
        %v185 = vmul.f32 %v171, %v179
        %v186 = vmul.f32 %v172, %v180
        %v187 = vmul.f32 %v173, %v178
        %v188 = vmul.f32 %v174, %v179
        %v189 = vmul.f32 %v175, %v180
        %v190 = vadd.f32 %v184, %v185
        %vm191 = vcmask 523264
        %v192 = vsel %vm191, %v186, 0.0
        %v193 = vadd.f32 %v190, %v192
        %194 = vadd.xlane.f32.xlu0 %v193
        %v195 = vpop.xlane.xlu0 %194
        %v196 = vadd.f32 %v187, %v188
        %v197 = vsel %vm191, %v189, 0.0
        %v198 = vadd.f32 %v196, %v197
        %199 = vadd.xlane.f32.xlu0 %v198
        %v200 = vpop.xlane.xlu0 %199
        %v201 = vld [vmem:[#allocation2] sm:$0x1]
        %203 = vset.pattern.permute.xlu0 0
        %204 = vperm.xlu0 %203, %v201
        %v205 = vpop.permute.xlu0 %204
        %v207 = vperm.slane %v205, 0
        %v208 = vadd.f32 %v195, %v207
        %v209 = vadd.f32 %v200, %v207
        %v212 = vlaneseq
        %v213 = vand.u32 %v212, 127
        %v214 = vperm.slane %v208, %v213
        %v215 = vadd.s32 %v213, 4294967288
        %v216 = vperm.slane %v209, %v215
        %vm217 = vcmask 130112
        %v218 = vsel %vm217, %v216, %v214
        %vm220 = vcmask 122880
        %221 = vst.msk [vmem:[%s164] sm:$0x1] %vm220, %v218
        %s222 = sand.u32 %s95, 1
        %s223 = scalar_lea.sflag [#allocation4], %s222
        %s224 = sand.u32 %s95, 1
        %s225 = scalar_lea.vmem [#allocation3], %s224
        // Predicated region
        $region33: #{_lambda_.37} parent=31 // pred_check
          %p226 = pneg %p105
        $region34: #{_lambda_.37} parent=31 // pred_check_branch
          %228 = sbr.rel (%p226) target = $region36
        $region35: #{_lambda_.37} parent=31 // pred_region
          %230 = vsyncadd %s223, 0
          %s231 = scalar_lea.hbm %s3, %s19
          %s233 = sshll.u32 %s225, 4
          %s234 = int_to_ptr.vmem [resolvable:$true] %s233
          %s235 = sshll.u32 %s231, 4
          %s236 = int_to_ptr.hbm [resolvable:$true] %s235
          %238 = dma.vmem_to_hbm [thread:$0]  %s234, 16, %s236, %s223
        $region36: #{_lambda_.37} parent=31 // pred_fallthru
          _
      $region32: #{_lambda_.37} parent=5 // pred_fallthru
        _
      %p239 = scmp.le.s32.totalorder 2, %s14
      // Predicated region
      $region37: #{_lambda_.37} parent=5 // pred_check
        %p240 = pneg %p239
      $region38: #{_lambda_.37} parent=5 // pred_check_branch
        %242 = sbr.rel (%p240) target = $region40
      $region39: #{_lambda_.37} parent=5 // pred_region
        %s243 = ssub.s32 %s14, 2
        // Predicated region
        $region41: #{_lambda_.37} parent=39 // pred_check
          %p244 = pneg %p111
        $region42: #{_lambda_.37} parent=39 // pred_check_branch
          %246 = sbr.rel (%p244) target = $region44
        $region43: #{_lambda_.37} parent=39 // pred_region
          %s247 = sand.u32 %s96, 1
          %s248 = scalar_lea.sflag [#allocation4], %s247
          %s249 = sand.u32 %s96, 1
          %s250 = scalar_lea.vmem [#allocation3], %s249
          %252 = dma.done %s248, 16
        $region44: #{_lambda_.37} parent=39 // pred_fallthru
          _
      $region40: #{_lambda_.37} parent=5 // pred_fallthru
        _
    $region6: #{_lambda_.37} parent=1 // loop_footer
      %s18 = sadd.s32 1, %s14
    $region7: #{_lambda_.37} parent=1 // loop_footer_branch
      %13 = sbr.rel target = $region3
    $region8: #{_lambda_.37} parent=1 // loop_exit
      _
    %253 = vsyncpa [#allocation4], 1
    %s254 = scalar_lea.sflag [#allocation4], 1
    %255 = vsyncpa %s254, 1

</llo_original>
